<compile_context>
chip_gen: v7x
topology: tpu7x:2x2x1
jax: 0.10.0
libtpu: 0.0.40
codegen_flags: <defaults>
</compile_context>

<pallas_src>
import functools

import numpy as np
import jax
import jax.numpy as jnp
from jax.experimental import pallas as pl
from jax.experimental.pallas import tpu as pltpu

# ----------------------------------------------------------------------------
# Config (small, consistent with the module: dataset='GID' -> 4 input channels)
# ----------------------------------------------------------------------------
LAYERS = [1, 1]          # len(layers) == 2
DEPTH = 2
BASE = 8                 # base_multiplier (kept small for the example)
HALF_BASE = BASE // 2
NUM_CLASSES = 5
MULTI = {0: 1, 1: 2, 2: 4, 3: 8}
OPS_NUM = 3              # cell(512,512).ops_num for our concrete MixedCell

C_PAD = 128              # lane-dense channel padding for all internal activations
M_ALIGN = 16             # bf16 sublane packing granularity for the M (rows) axis

CONNECTIONS = [
    np.array([[-1, 0], [0, 0]]),
    np.array([[-1, 0], [0, 1]]),
    np.array([[0, 0], [1, 0]]),
    np.array([[0, 1], [1, 0]]),
    np.array([[0, 0], [1, 1]]),
    np.array([[0, 1], [1, 1]]),
]

# ----------------------------------------------------------------------------
# Pallas kernel: fused  act( patches @ W * scale + bias )  [+ sum over op-blocks]
# ----------------------------------------------------------------------------
def _fused_matmul_kernel(x_ref, w_ref, s_ref, b_ref, o_ref, *, apply_relu, num_blocks):
    acc = jnp.dot(x_ref[...], w_ref[...], preferred_element_type=jnp.float32)
    acc = acc * s_ref[...] + b_ref[...]
    if apply_relu:
        acc = jnp.maximum(acc, 0.0)
    n_out = acc.shape[1] // num_blocks
    out = acc[:, :n_out]
    for k in range(1, num_blocks):          # in-kernel reduction over candidate ops
        out = out + acc[:, k * n_out:(k + 1) * n_out]
    o_ref[...] = out.astype(o_ref.dtype)


def fused_matmul(x, w, scale, bias, *, apply_relu, num_blocks=1, out_dtype=jnp.bfloat16):
    """x: [M, K] bf16 patches, w: [K, N_tot] bf16, scale/bias: [N_tot] f32.
    Returns [M, N_tot // num_blocks]. K and N_tot are multiples of 128 by construction."""
    M, K = x.shape
    Kw, Ntot = w.shape
    assert K == Kw and Ntot % num_blocks == 0
    Nout = Ntot // num_blocks
    Mp = -(-M // M_ALIGN) * M_ALIGN
    if Mp != M:                      # only the 2x2-spatial cells (M=8) hit this path
        x = jnp.pad(x, ((0, Mp - M), (0, 0)))

    out = pl.pallas_call(
        functools.partial(_fused_matmul_kernel, apply_relu=apply_relu,
                          num_blocks=num_blocks),
        out_shape=jax.ShapeDtypeStruct((Mp, Nout), out_dtype),
        grid=(1,),                   # single M block: matmuls are tiny, avoid pipeline overhead
        in_specs=[
            pl.BlockSpec((Mp, K), lambda i: (0, 0)),
            pl.BlockSpec((K, Ntot), lambda i: (0, 0)),
            pl.BlockSpec((1, Ntot), lambda i: (0, 0)),
            pl.BlockSpec((1, Ntot), lambda i: (0, 0)),
        ],
        out_specs=pl.BlockSpec((Mp, Nout), lambda i: (0, 0)),
        compiler_params=pltpu.CompilerParams(dimension_semantics=("arbitrary",)),
    )(x, w, scale.reshape(1, Ntot).astype(jnp.float32),
      bias.reshape(1, Ntot).astype(jnp.float32))
    return out if Mp == M else out[:M]


# ----------------------------------------------------------------------------
# Plain-JAX glue: im2col, bilinear (align_corners=True) resize
# ----------------------------------------------------------------------------
def im2col(x, kh, kw, stride, padding):
    """x: [N, H, W, C] -> patches [N*OH*OW, kh*kw*C] (row ordering = (kh, kw, C))."""
    N, H, W, C = x.shape
    if padding > 0:
        x = jnp.pad(x, ((0, 0), (padding, padding), (padding, padding), (0, 0)))
    OH = (H + 2 * padding - kh) // stride + 1
    OW = (W + 2 * padding - kw) // stride + 1
    cols = []
    for i in range(kh):
        for j in range(kw):
            cols.append(x[:, i:i + stride * OH:stride, j:j + stride * OW:stride, :])
    patches = cols[0] if len(cols) == 1 else jnp.concatenate(cols, axis=-1)
    return patches.reshape(N * OH * OW, kh * kw * C), OH, OW


def conv_layer(x, p, stride, padding, relu, *, scale=None, bias=None,
               num_blocks=1, out_dtype=jnp.bfloat16):
    """Conv + folded-BN (+ReLU) on channel-padded NHWC via ONE fused Pallas kernel."""
    patches, OH, OW = im2col(x, p['kh'], p['kw'], stride, padding)
    s = p['scale'] if scale is None else scale
    b = p['bias'] if bias is None else bias
    out = fused_matmul(patches, p['w_emb'], s, b, apply_relu=relu,
                       num_blocks=num_blocks, out_dtype=out_dtype)
    return out.reshape(x.shape[0], OH, OW, out.shape[-1])


def upsample_bilinear_ac(x, size):
    """Bilinear resize with align_corners=True (PyTorch nn.Upsample semantics). NHWC."""
    N, H, W, C = x.shape
    oh, ow = int(size[0]), int(size[1])
    if (H, W) == (oh, ow):
        return x
    xf = x.astype(jnp.float32)
    ry = jnp.linspace(0.0, H - 1.0, oh) if oh > 1 else jnp.zeros((oh,), jnp.float32)
    rx = jnp.linspace(0.0, W - 1.0, ow) if ow > 1 else jnp.zeros((ow,), jnp.float32)
    y0 = jnp.clip(jnp.floor(ry).astype(jnp.int32), 0, H - 1)
    y1 = jnp.minimum(y0 + 1, H - 1)
    x0 = jnp.clip(jnp.floor(rx).astype(jnp.int32), 0, W - 1)
    x1 = jnp.minimum(x0 + 1, W - 1)
    wy = (ry - y0.astype(jnp.float32)).reshape(1, oh, 1, 1)
    wx = (rx - x0.astype(jnp.float32)).reshape(1, 1, ow, 1)
    a = xf[:, y0][:, :, x0]
    b = xf[:, y0][:, :, x1]
    c = xf[:, y1][:, :, x0]
    d = xf[:, y1][:, :, x1]
    top = a * (1.0 - wx) + b * wx
    bot = c * (1.0 - wx) + d * wx
    return (top * (1.0 - wy) + bot * wy).astype(x.dtype)


# ----------------------------------------------------------------------------
# Parameter initialization (deterministic, in-script); weights pre-embedded into
# the lane-dense padded layouts so the forward pass has no pad/reshape overhead.
# ----------------------------------------------------------------------------
class KeyGen:
    def __init__(self, key):
        self.key = key

    def __call__(self):
        self.key, sub = jax.random.split(self.key)
        return sub


def _pad_vec(v, n):
    return jnp.zeros((n,), v.dtype).at[:v.shape[0]].set(v)


def _init_bn(kg, cout):
    # BN folded (eval): scale = gamma / sqrt(var+eps), bias = beta - mean*scale (+conv bias*scale)
    scale = 1.0 + 0.1 * jax.random.normal(kg(), (cout,), jnp.float32)
    bias = 0.1 * jax.random.normal(kg(), (cout,), jnp.float32)
    return scale, bias


def init_conv_layer(kg, kh, kw, cin, cout, cin_pad, cout_pad, with_bn=True, in_segments=None):
    """Native conv weight [kh,kw,cin,cout] embedded into padded [kh*kw*cin_pad, cout_pad]."""
    w = jax.random.normal(kg(), (kh, kw, cin, cout), jnp.float32) / np.sqrt(kh * kw * cin)
    w_emb = jnp.zeros((kh, kw, cin_pad, cout_pad), jnp.float32)
    if in_segments is None:
        in_segments = [(0, 0, cin)]            # (dst offset in padded input, src offset, length)
    for dst, src, ln in in_segments:
        w_emb = w_emb.at[:, :, dst:dst + ln, :cout].set(w[:, :, src:src + ln, :])
    if with_bn:
        scale, bias = _init_bn(kg, cout)
    else:
        scale = jnp.ones((cout,), jnp.float32)
        bias = 0.1 * jax.random.normal(kg(), (cout,), jnp.float32)   # plain conv bias
    return {'w_emb': w_emb.reshape(kh * kw * cin_pad, cout_pad).astype(jnp.bfloat16),
            'scale': _pad_vec(scale, cout_pad), 'bias': _pad_vec(bias, cout_pad),
            'kh': kh, 'kw': kw, 'cout': cout}


def init_mixed_cell(kg, cin, cout):
    """DARTS-style MixedCell: 3 candidate convs (1x1, 3x3, 3x3), all embedded into one
    shared 3x3 im2col layout and concatenated along N -> single fused matmul."""
    kernels = [(1, 1), (3, 3), (3, 3)]
    w_blocks = []
    scale_pad = jnp.zeros((OPS_NUM, C_PAD), jnp.float32)
    bias_pad = jnp.zeros((OPS_NUM, C_PAD), jnp.float32)
    for k, (kh, kw) in enumerate(kernels):
        w = jax.random.normal(kg(), (kh, kw, cin, cout), jnp.float32) / np.sqrt(kh * kw * cin)
        we = jnp.zeros((3, 3, C_PAD, C_PAD), jnp.float32)
        r0, c0 = (3 - kh) // 2, (3 - kw) // 2          # 1x1 -> center tap of the 3x3 patch
        we = we.at[r0:r0 + kh, c0:c0 + kw, :cin, :cout].set(w)
        w_blocks.append(we)
        s, b = _init_bn(kg, cout)
        scale_pad = scale_pad.at[k, :cout].set(s)
        bias_pad = bias_pad.at[k, :cout].set(b)
    w_fused = jnp.concatenate(w_blocks, axis=-1).reshape(
        9 * C_PAD, OPS_NUM * C_PAD).astype(jnp.bfloat16)
    return {'w_emb': w_fused, 'scale_pad': scale_pad, 'bias_pad': bias_pad,
            'cin': cin, 'cout': cout, 'kh': 3, 'kw': 3}


def build_params(key):
    kg = KeyGen(key)
    params = {}
    params['stem0'] = init_conv_layer(kg, 3, 3, 4, HALF_BASE, C_PAD, C_PAD)   # 'GID' -> 4 in-ch
    params['stem1'] = init_conv_layer(kg, 3, 3, HALF_BASE, HALF_BASE, C_PAD, C_PAD)
    params['stem2'] = init_conv_layer(kg, 3, 3, HALF_BASE, BASE, C_PAD, C_PAD)

    cells = []
    num_last_features = 0
    last_segments = []
    n_last = 0
    for i in range(len(LAYERS)):
        cells.append([])
        for j in range(DEPTH):
            d = {}
            num_connect = 0
            for conn in CONNECTIONS:
                if (np.array([i, j]) == conn[1]).all():
                    num_connect += 1
                    if conn[0][0] == -1:
                        cin = BASE * MULTI[0]
                    else:
                        cin = BASE * MULTI[int(conn[0][1])]
                    cout = BASE * MULTI[j]
                    d[tuple(int(v) for v in conn[0])] = init_mixed_cell(kg, cin, cout)
            cells[i].append(d)
            if i == len(LAYERS) - 1 and num_connect != 0:
                cout = BASE * MULTI[j]
                # concat of padded last features: real channels of node j live at n_last*C_PAD
                last_segments.append((n_last * C_PAD, num_last_features, cout))
                num_last_features += cout
                n_last += 1
    params['cells'] = cells

    params['lc0'] = init_conv_layer(kg, 3, 3, num_last_features, 256,
                                    n_last * C_PAD, 256, in_segments=last_segments)
    params['lc1'] = init_conv_layer(kg, 3, 3, 256, 256, 256, 256)
    params['lc2'] = init_conv_layer(kg, 1, 1, 256, NUM_CLASSES, 256, C_PAD, with_bn=False)
    params['alphas'] = 0.001 * jax.random.normal(kg(), (len(LAYERS), DEPTH, OPS_NUM), jnp.float32)
    return params


# ----------------------------------------------------------------------------
# Forward pass
# ----------------------------------------------------------------------------
def mixed_cell(x, cellp, alpha):
    cin, cout = cellp['cin'], cellp['cout']
    if cout > cin:            # going to a deeper scale -> spatial stride 2
        stride, xin = 2, x
    elif cout < cin:          # going to a shallower scale -> upsample first
        factor = cin // cout
        stride = 1
        xin = upsample_bilinear_ac(x, (x.shape[1] * factor, x.shape[2] * factor))
    else:
        stride, xin = 1, x
    # softmax alphas are strictly positive, so alpha*ReLU(z) == ReLU(alpha*z):
    # fold alpha into the folded-BN affine; the 3 ops + their sum run in one kernel.
    scale = (alpha[:, None] * cellp['scale_pad']).reshape(-1)
    bias = (alpha[:, None] * cellp['bias_pad']).reshape(-1)
    return conv_layer(xin, cellp, stride, 1, True, scale=scale, bias=bias,
                      num_blocks=OPS_NUM)


def searchnet3_forward(x_nchw, params):
    x = jnp.transpose(x_nchw, (0, 2, 3, 1)).astype(jnp.bfloat16)   # NCHW -> NHWC
    x = jnp.pad(x, ((0, 0), (0, 0), (0, 0), (0, C_PAD - x.shape[-1])))  # lane-dense channels

    t = conv_layer(x, params['stem0'], 2, 1, True)
    t = conv_layer(t, params['stem1'], 1, 1, True)
    pre = conv_layer(t, params['stem2'], 2, 1, True)

    # normalized_alphas[i][j] = softmax(alphas[i][j]) (the torch.randn init is overwritten)
    normalized_alphas = jax.nn.softmax(params['alphas'], axis=-1)

    features = []
    for i in range(len(LAYERS)):
        features.append([])
        for j in range(DEPTH):
            features[i].append(None)
            for conn in CONNECTIONS:
                if (np.array([i, j]) == conn[1]).all():
                    cellp = params['cells'][i][j][tuple(int(v) for v in conn[0])]
                    if conn[0][0] == -1:
                        out = mixed_cell(pre, cellp, normalized_alphas[i, j])
                    else:
                        src = features[int(conn[0][0])][int(conn[0][1])]
                        if src is None:
                            continue
                        out = mixed_cell(src, cellp, normalized_alphas[i, j])
                    features[i][j] = out if features[i][j] is None else features[i][j] + out

    last = [f for f in features[len(LAYERS) - 1] if f is not None]
    target_hw = last[0].shape[1:3]
    last = [upsample_bilinear_ac(f, target_hw) for f in last]
    result = jnp.concatenate(last, axis=-1)   # channel-padded concat (n_last * C_PAD)

    # last_conv: Conv3x3+BN + Dropout + Conv3x3+BN + Dropout + Conv1x1 (no ReLUs)
    # TODO(synk): Dropout is identity (eval semantics).
    result = conv_layer(result, params['lc0'], 1, 1, False)
    result = conv_layer(result, params['lc1'], 1, 1, False)
    result = conv_layer(result, params['lc2'], 1, 0, False, out_dtype=jnp.float32)
    result = result[..., :NUM_CLASSES]

    result = upsample_bilinear_ac(result, (x.shape[1], x.shape[2]))
    return jnp.transpose(result, (0, 3, 1, 2))   # back to NCHW


# ----------------------------------------------------------------------------
if __name__ == "__main__":
    key = jax.random.PRNGKey(0)
    k_param, k_input = jax.random.split(key)
    params = build_params(k_param)

    x = jax.random.normal(k_input, (2, 4, 16, 16), jnp.float32)  # NCHW, dataset='GID' (4 channels)
    fwd = jax.jit(lambda inp: searchnet3_forward(inp, params))
    out = jax.block_until_ready(fwd(x))

    assert out.shape == (2, NUM_CLASSES, 16, 16), out.shape
    assert bool(jnp.all(jnp.isfinite(out)))
    print("KERNEL_OK")
</pallas_src>

<mosaic_0001>
module attributes {stable_mosaic.version = 11 : i64} {
  func.func @_fused_matmul_kernel(%arg0: i32, %arg1: memref<128x1152xbf16, #tpu.memory_space<vmem>>, %arg2: memref<1152x128xbf16, #tpu.memory_space<vmem>>, %arg3: memref<1x128xf32, #tpu.memory_space<vmem>>, %arg4: memref<1x128xf32, #tpu.memory_space<vmem>>, %arg5: memref<128x128xbf16, #tpu.memory_space<vmem>>) attributes {dimension_semantics = [#tpu.dimension_semantics<arbitrary>], iteration_bounds = array<i64: 1>, scalar_prefetch = 0 : i64, scratch_operands = 0 : i64, tpu.core_type = #tpu.core_type<tc>, window_params = [{pipeline_mode = #tpu.pipeline_mode<synchronous>, transform_indices = @transform_0, window_bounds = array<i64: 128, 1152>}, {pipeline_mode = #tpu.pipeline_mode<synchronous>, transform_indices = @transform_1, window_bounds = array<i64: 1152, 128>}, {pipeline_mode = #tpu.pipeline_mode<synchronous>, transform_indices = @transform_2, window_bounds = array<i64: 1, 128>}, {pipeline_mode = #tpu.pipeline_mode<synchronous>, transform_indices = @transform_3, window_bounds = array<i64: 1, 128>}, {pipeline_mode = #tpu.pipeline_mode<synchronous>, transform_indices = @transform_4, window_bounds = array<i64: 128, 128>}]} {
    %c0 = arith.constant 0 : index
    %c0_0 = arith.constant 0 : index
    %0 = vector.load %arg1[%c0, %c0_0] : memref<128x1152xbf16, #tpu.memory_space<vmem>>, vector<128x1152xbf16>
    %c0_1 = arith.constant 0 : index
    %c0_2 = arith.constant 0 : index
    %1 = vector.load %arg2[%c0_1, %c0_2] : memref<1152x128xbf16, #tpu.memory_space<vmem>>, vector<1152x128xbf16>
    %cst = arith.constant dense<0.000000e+00> : vector<128x128xf32>
    %2 = tpu.matmul %0, %1, %cst {dimension_numbers = #tpu.dot_dimension_numbers<[1], [0], [0], [1], [0, 0, 1, 1], [], []>} : vector<128x1152xbf16>, vector<1152x128xbf16>, vector<128x128xf32> -> vector<128x128xf32>
    %c0_3 = arith.constant 0 : index
    %c0_4 = arith.constant 0 : index
    %3 = vector.load %arg3[%c0_3, %c0_4] : memref<1x128xf32, #tpu.memory_space<vmem>>, vector<1x128xf32>
    %4 = vector.broadcast %3 : vector<1x128xf32> to vector<128x128xf32>
    %5 = arith.mulf %2, %4 : vector<128x128xf32>
    %c0_5 = arith.constant 0 : index
    %c0_6 = arith.constant 0 : index
    %6 = vector.load %arg4[%c0_5, %c0_6] : memref<1x128xf32, #tpu.memory_space<vmem>>, vector<1x128xf32>
    %7 = vector.broadcast %6 : vector<1x128xf32> to vector<128x128xf32>
    %8 = arith.addf %5, %7 : vector<128x128xf32>
    %cst_7 = arith.constant 0.000000e+00 : f32
    %9 = vector.broadcast %cst_7 : f32 to vector<128x128xf32>
    %10 = arith.maximumf %8, %9 : vector<128x128xf32>
    %11 = arith.truncf %10 : vector<128x128xf32> to vector<128x128xbf16>
    %c0_8 = arith.constant 0 : index
    %c0_9 = arith.constant 0 : index
    %12 = vector.load %arg5[%c0_8, %c0_9] : memref<128x128xbf16, #tpu.memory_space<vmem>>, vector<128x128xbf16>
    tpu.vector_store %arg5[%c0_8, %c0_9], %11 {strides = array<i32>} : memref<128x128xbf16, #tpu.memory_space<vmem>>, vector<128x128xbf16>,
    return
  }
  func.func @transform_0(%arg0: i32) -> (i32, i32) {
    %c0_i32 = arith.constant 0 : i32
    %c0_i32_0 = arith.constant 0 : i32
    %c0_i32_1 = arith.constant 0 : i32
    return %c0_i32, %c0_i32_0 : i32, i32
  }
  func.func @transform_1(%arg0: i32) -> (i32, i32) {
    %c0_i32 = arith.constant 0 : i32
    %c0_i32_0 = arith.constant 0 : i32
    %c0_i32_1 = arith.constant 0 : i32
    return %c0_i32, %c0_i32_0 : i32, i32
  }
  func.func @transform_2(%arg0: i32) -> (i32, i32) {
    %c0_i32 = arith.constant 0 : i32
    %c0_i32_0 = arith.constant 0 : i32
    %c0_i32_1 = arith.constant 0 : i32
    return %c0_i32, %c0_i32_0 : i32, i32
  }
  func.func @transform_3(%arg0: i32) -> (i32, i32) {
    %c0_i32 = arith.constant 0 : i32
    %c0_i32_0 = arith.constant 0 : i32
    %c0_i32_1 = arith.constant 0 : i32
    return %c0_i32, %c0_i32_0 : i32, i32
  }
  func.func @transform_4(%arg0: i32) -> (i32, i32) {
    %c0_i32 = arith.constant 0 : i32
    %c0_i32_0 = arith.constant 0 : i32
    %c0_i32_1 = arith.constant 0 : i32
    return %c0_i32, %c0_i32_0 : i32, i32
  }
}

module attributes {stable_mosaic.version = 11 : i64} {
  func.func @_fused_matmul_kernel(%arg0: i32, %arg1: memref<32x1152xbf16, #tpu.memory_space<vmem>>, %arg2: memref<1152x128xbf16, #tpu.memory_space<vmem>>, %arg3: memref<1x128xf32, #tpu.memory_space<vmem>>, %arg4: memref<1x128xf32, #tpu.memory_space<vmem>>, %arg5: memref<32x128xbf16, #tpu.memory_space<vmem>>) attributes {dimension_semantics = [#tpu.dimension_semantics<arbitrary>], iteration_bounds = array<i64: 1>, scalar_prefetch = 0 : i64, scratch_operands = 0 : i64, tpu.core_type = #tpu.core_type<tc>, window_params = [{pipeline_mode = #tpu.pipeline_mode<synchronous>, transform_indices = @transform_0, window_bounds = array<i64: 32, 1152>}, {pipeline_mode = #tpu.pipeline_mode<synchronous>, transform_indices = @transform_1, window_bounds = array<i64: 1152, 128>}, {pipeline_mode = #tpu.pipeline_mode<synchronous>, transform_indices = @transform_2, window_bounds = array<i64: 1, 128>}, {pipeline_mode = #tpu.pipeline_mode<synchronous>, transform_indices = @transform_3, window_bounds = array<i64: 1, 128>}, {pipeline_mode = #tpu.pipeline_mode<synchronous>, transform_indices = @transform_4, window_bounds = array<i64: 32, 128>}]} {
    %c0 = arith.constant 0 : index
    %c0_0 = arith.constant 0 : index
    %0 = vector.load %arg1[%c0, %c0_0] : memref<32x1152xbf16, #tpu.memory_space<vmem>>, vector<32x1152xbf16>
    %c0_1 = arith.constant 0 : index
    %c0_2 = arith.constant 0 : index
    %1 = vector.load %arg2[%c0_1, %c0_2] : memref<1152x128xbf16, #tpu.memory_space<vmem>>, vector<1152x128xbf16>
    %cst = arith.constant dense<0.000000e+00> : vector<32x128xf32>
    %2 = tpu.matmul %0, %1, %cst {dimension_numbers = #tpu.dot_dimension_numbers<[1], [0], [0], [1], [0, 0, 1, 1], [], []>} : vector<32x1152xbf16>, vector<1152x128xbf16>, vector<32x128xf32> -> vector<32x128xf32>
    %c0_3 = arith.constant 0 : index
    %c0_4 = arith.constant 0 : index
    %3 = vector.load %arg3[%c0_3, %c0_4] : memref<1x128xf32, #tpu.memory_space<vmem>>, vector<1x128xf32>
    %4 = vector.broadcast %3 : vector<1x128xf32> to vector<32x128xf32>
    %5 = arith.mulf %2, %4 : vector<32x128xf32>
    %c0_5 = arith.constant 0 : index
    %c0_6 = arith.constant 0 : index
    %6 = vector.load %arg4[%c0_5, %c0_6] : memref<1x128xf32, #tpu.memory_space<vmem>>, vector<1x128xf32>
    %7 = vector.broadcast %6 : vector<1x128xf32> to vector<32x128xf32>
    %8 = arith.addf %5, %7 : vector<32x128xf32>
    %cst_7 = arith.constant 0.000000e+00 : f32
    %9 = vector.broadcast %cst_7 : f32 to vector<32x128xf32>
    %10 = arith.maximumf %8, %9 : vector<32x128xf32>
    %11 = arith.truncf %10 : vector<32x128xf32> to vector<32x128xbf16>
    %c0_8 = arith.constant 0 : index
    %c0_9 = arith.constant 0 : index
    %12 = vector.load %arg5[%c0_8, %c0_9] : memref<32x128xbf16, #tpu.memory_space<vmem>>, vector<32x128xbf16>
    tpu.vector_store %arg5[%c0_8, %c0_9], %11 {strides = array<i32>} : memref<32x128xbf16, #tpu.memory_space<vmem>>, vector<32x128xbf16>,
    return
  }
  func.func @transform_0(%arg0: i32) -> (i32, i32) {
    %c0_i32 = arith.constant 0 : i32
    %c0_i32_0 = arith.constant 0 : i32
    %c0_i32_1 = arith.constant 0 : i32
    return %c0_i32, %c0_i32_0 : i32, i32
  }
  func.func @transform_1(%arg0: i32) -> (i32, i32) {
    %c0_i32 = arith.constant 0 : i32
    %c0_i32_0 = arith.constant 0 : i32
    %c0_i32_1 = arith.constant 0 : i32
    return %c0_i32, %c0_i32_0 : i32, i32
  }
  func.func @transform_2(%arg0: i32) -> (i32, i32) {
    %c0_i32 = arith.constant 0 : i32
    %c0_i32_0 = arith.constant 0 : i32
    %c0_i32_1 = arith.constant 0 : i32
    return %c0_i32, %c0_i32_0 : i32, i32
  }
  func.func @transform_3(%arg0: i32) -> (i32, i32) {
    %c0_i32 = arith.constant 0 : i32
    %c0_i32_0 = arith.constant 0 : i32
    %c0_i32_1 = arith.constant 0 : i32
    return %c0_i32, %c0_i32_0 : i32, i32
  }
  func.func @transform_4(%arg0: i32) -> (i32, i32) {
    %c0_i32 = arith.constant 0 : i32
    %c0_i32_0 = arith.constant 0 : i32
    %c0_i32_1 = arith.constant 0 : i32
    return %c0_i32, %c0_i32_0 : i32, i32
  }
}

module attributes {stable_mosaic.version = 11 : i64} {
  func.func @_fused_matmul_kernel(%arg0: i32, %arg1: memref<32x1152xbf16, #tpu.memory_space<vmem>>, %arg2: memref<1152x384xbf16, #tpu.memory_space<vmem>>, %arg3: memref<1x384xf32, #tpu.memory_space<vmem>>, %arg4: memref<1x384xf32, #tpu.memory_space<vmem>>, %arg5: memref<32x128xbf16, #tpu.memory_space<vmem>>) attributes {dimension_semantics = [#tpu.dimension_semantics<arbitrary>], iteration_bounds = array<i64: 1>, scalar_prefetch = 0 : i64, scratch_operands = 0 : i64, tpu.core_type = #tpu.core_type<tc>, window_params = [{pipeline_mode = #tpu.pipeline_mode<synchronous>, transform_indices = @transform_0, window_bounds = array<i64: 32, 1152>}, {pipeline_mode = #tpu.pipeline_mode<synchronous>, transform_indices = @transform_1, window_bounds = array<i64: 1152, 384>}, {pipeline_mode = #tpu.pipeline_mode<synchronous>, transform_indices = @transform_2, window_bounds = array<i64: 1, 384>}, {pipeline_mode = #tpu.pipeline_mode<synchronous>, transform_indices = @transform_3, window_bounds = array<i64: 1, 384>}, {pipeline_mode = #tpu.pipeline_mode<synchronous>, transform_indices = @transform_4, window_bounds = array<i64: 32, 128>}]} {
    %c0 = arith.constant 0 : index
    %c0_0 = arith.constant 0 : index
    %0 = vector.load %arg1[%c0, %c0_0] : memref<32x1152xbf16, #tpu.memory_space<vmem>>, vector<32x1152xbf16>
    %c0_1 = arith.constant 0 : index
    %c0_2 = arith.constant 0 : index
    %1 = vector.load %arg2[%c0_1, %c0_2] : memref<1152x384xbf16, #tpu.memory_space<vmem>>, vector<1152x384xbf16>
    %cst = arith.constant dense<0.000000e+00> : vector<32x384xf32>
    %2 = tpu.matmul %0, %1, %cst {dimension_numbers = #tpu.dot_dimension_numbers<[1], [0], [0], [1], [0, 0, 1, 1], [], []>} : vector<32x1152xbf16>, vector<1152x384xbf16>, vector<32x384xf32> -> vector<32x384xf32>
    %c0_3 = arith.constant 0 : index
    %c0_4 = arith.constant 0 : index
    %3 = vector.load %arg3[%c0_3, %c0_4] : memref<1x384xf32, #tpu.memory_space<vmem>>, vector<1x384xf32>
    %4 = vector.broadcast %3 : vector<1x384xf32> to vector<32x384xf32>
    %5 = arith.mulf %2, %4 : vector<32x384xf32>
    %c0_5 = arith.constant 0 : index
    %c0_6 = arith.constant 0 : index
    %6 = vector.load %arg4[%c0_5, %c0_6] : memref<1x384xf32, #tpu.memory_space<vmem>>, vector<1x384xf32>
    %7 = vector.broadcast %6 : vector<1x384xf32> to vector<32x384xf32>
    %8 = arith.addf %5, %7 : vector<32x384xf32>
    %cst_7 = arith.constant 0.000000e+00 : f32
    %9 = vector.broadcast %cst_7 : f32 to vector<32x384xf32>
    %10 = arith.maximumf %8, %9 : vector<32x384xf32>
    %11 = vector.extract_strided_slice %10 {offsets = [0, 0], sizes = [32, 128], strides = [1, 1]} : vector<32x384xf32> to vector<32x128xf32>
    %12 = vector.extract_strided_slice %10 {offsets = [0, 128], sizes = [32, 128], strides = [1, 1]} : vector<32x384xf32> to vector<32x128xf32>
    %13 = arith.addf %11, %12 : vector<32x128xf32>
    %14 = vector.extract_strided_slice %10 {offsets = [0, 256], sizes = [32, 128], strides = [1, 1]} : vector<32x384xf32> to vector<32x128xf32>
    %15 = arith.addf %13, %14 : vector<32x128xf32>
    %16 = arith.truncf %15 : vector<32x128xf32> to vector<32x128xbf16>
    %c0_8 = arith.constant 0 : index
    %c0_9 = arith.constant 0 : index
    %17 = vector.load %arg5[%c0_8, %c0_9] : memref<32x128xbf16, #tpu.memory_space<vmem>>, vector<32x128xbf16>
    tpu.vector_store %arg5[%c0_8, %c0_9], %16 {strides = array<i32>} : memref<32x128xbf16, #tpu.memory_space<vmem>>, vector<32x128xbf16>,
    return
  }
  func.func @transform_0(%arg0: i32) -> (i32, i32) {
    %c0_i32 = arith.constant 0 : i32
    %c0_i32_0 = arith.constant 0 : i32
    %c0_i32_1 = arith.constant 0 : i32
    return %c0_i32, %c0_i32_0 : i32, i32
  }
  func.func @transform_1(%arg0: i32) -> (i32, i32) {
    %c0_i32 = arith.constant 0 : i32
    %c0_i32_0 = arith.constant 0 : i32
    %c0_i32_1 = arith.constant 0 : i32
    return %c0_i32, %c0_i32_0 : i32, i32
  }
  func.func @transform_2(%arg0: i32) -> (i32, i32) {
    %c0_i32 = arith.constant 0 : i32
    %c0_i32_0 = arith.constant 0 : i32
    %c0_i32_1 = arith.constant 0 : i32
    return %c0_i32, %c0_i32_0 : i32, i32
  }
  func.func @transform_3(%arg0: i32) -> (i32, i32) {
    %c0_i32 = arith.constant 0 : i32
    %c0_i32_0 = arith.constant 0 : i32
    %c0_i32_1 = arith.constant 0 : i32
    return %c0_i32, %c0_i32_0 : i32, i32
  }
  func.func @transform_4(%arg0: i32) -> (i32, i32) {
    %c0_i32 = arith.constant 0 : i32
    %c0_i32_0 = arith.constant 0 : i32
    %c0_i32_1 = arith.constant 0 : i32
    return %c0_i32, %c0_i32_0 : i32, i32
  }
}

module attributes {stable_mosaic.version = 11 : i64} {
  func.func @_fused_matmul_kernel(%arg0: i32, %arg1: memref<16x1152xbf16, #tpu.memory_space<vmem>>, %arg2: memref<1152x384xbf16, #tpu.memory_space<vmem>>, %arg3: memref<1x384xf32, #tpu.memory_space<vmem>>, %arg4: memref<1x384xf32, #tpu.memory_space<vmem>>, %arg5: memref<16x128xbf16, #tpu.memory_space<vmem>>) attributes {dimension_semantics = [#tpu.dimension_semantics<arbitrary>], iteration_bounds = array<i64: 1>, scalar_prefetch = 0 : i64, scratch_operands = 0 : i64, tpu.core_type = #tpu.core_type<tc>, window_params = [{pipeline_mode = #tpu.pipeline_mode<synchronous>, transform_indices = @transform_0, window_bounds = array<i64: 16, 1152>}, {pipeline_mode = #tpu.pipeline_mode<synchronous>, transform_indices = @transform_1, window_bounds = array<i64: 1152, 384>}, {pipeline_mode = #tpu.pipeline_mode<synchronous>, transform_indices = @transform_2, window_bounds = array<i64: 1, 384>}, {pipeline_mode = #tpu.pipeline_mode<synchronous>, transform_indices = @transform_3, window_bounds = array<i64: 1, 384>}, {pipeline_mode = #tpu.pipeline_mode<synchronous>, transform_indices = @transform_4, window_bounds = array<i64: 16, 128>}]} {
    %c0 = arith.constant 0 : index
    %c0_0 = arith.constant 0 : index
    %0 = vector.load %arg1[%c0, %c0_0] : memref<16x1152xbf16, #tpu.memory_space<vmem>>, vector<16x1152xbf16>
    %c0_1 = arith.constant 0 : index
    %c0_2 = arith.constant 0 : index
    %1 = vector.load %arg2[%c0_1, %c0_2] : memref<1152x384xbf16, #tpu.memory_space<vmem>>, vector<1152x384xbf16>
    %cst = arith.constant dense<0.000000e+00> : vector<16x384xf32>
    %2 = tpu.matmul %0, %1, %cst {dimension_numbers = #tpu.dot_dimension_numbers<[1], [0], [0], [1], [0, 0, 1, 1], [], []>} : vector<16x1152xbf16>, vector<1152x384xbf16>, vector<16x384xf32> -> vector<16x384xf32>
    %c0_3 = arith.constant 0 : index
    %c0_4 = arith.constant 0 : index
    %3 = vector.load %arg3[%c0_3, %c0_4] : memref<1x384xf32, #tpu.memory_space<vmem>>, vector<1x384xf32>
    %4 = vector.broadcast %3 : vector<1x384xf32> to vector<16x384xf32>
    %5 = arith.mulf %2, %4 : vector<16x384xf32>
    %c0_5 = arith.constant 0 : index
    %c0_6 = arith.constant 0 : index
    %6 = vector.load %arg4[%c0_5, %c0_6] : memref<1x384xf32, #tpu.memory_space<vmem>>, vector<1x384xf32>
    %7 = vector.broadcast %6 : vector<1x384xf32> to vector<16x384xf32>
    %8 = arith.addf %5, %7 : vector<16x384xf32>
    %cst_7 = arith.constant 0.000000e+00 : f32
    %9 = vector.broadcast %cst_7 : f32 to vector<16x384xf32>
    %10 = arith.maximumf %8, %9 : vector<16x384xf32>
    %11 = vector.extract_strided_slice %10 {offsets = [0, 0], sizes = [16, 128], strides = [1, 1]} : vector<16x384xf32> to vector<16x128xf32>
    %12 = vector.extract_strided_slice %10 {offsets = [0, 128], sizes = [16, 128], strides = [1, 1]} : vector<16x384xf32> to vector<16x128xf32>
    %13 = arith.addf %11, %12 : vector<16x128xf32>
    %14 = vector.extract_strided_slice %10 {offsets = [0, 256], sizes = [16, 128], strides = [1, 1]} : vector<16x384xf32> to vector<16x128xf32>
    %15 = arith.addf %13, %14 : vector<16x128xf32>
    %16 = arith.truncf %15 : vector<16x128xf32> to vector<16x128xbf16>
    %c0_8 = arith.constant 0 : index
    %c0_9 = arith.constant 0 : index
    %17 = vector.load %arg5[%c0_8, %c0_9] : memref<16x128xbf16, #tpu.memory_space<vmem>>, vector<16x128xbf16>
    tpu.vector_store %arg5[%c0_8, %c0_9], %16 {strides = array<i32>} : memref<16x128xbf16, #tpu.memory_space<vmem>>, vector<16x128xbf16>,
    return
  }
  func.func @transform_0(%arg0: i32) -> (i32, i32) {
    %c0_i32 = arith.constant 0 : i32
    %c0_i32_0 = arith.constant 0 : i32
    %c0_i32_1 = arith.constant 0 : i32
    return %c0_i32, %c0_i32_0 : i32, i32
  }
  func.func @transform_1(%arg0: i32) -> (i32, i32) {
    %c0_i32 = arith.constant 0 : i32
    %c0_i32_0 = arith.constant 0 : i32
    %c0_i32_1 = arith.constant 0 : i32
    return %c0_i32, %c0_i32_0 : i32, i32
  }
  func.func @transform_2(%arg0: i32) -> (i32, i32) {
    %c0_i32 = arith.constant 0 : i32
    %c0_i32_0 = arith.constant 0 : i32
    %c0_i32_1 = arith.constant 0 : i32
    return %c0_i32, %c0_i32_0 : i32, i32
  }
  func.func @transform_3(%arg0: i32) -> (i32, i32) {
    %c0_i32 = arith.constant 0 : i32
    %c0_i32_0 = arith.constant 0 : i32
    %c0_i32_1 = arith.constant 0 : i32
    return %c0_i32, %c0_i32_0 : i32, i32
  }
  func.func @transform_4(%arg0: i32) -> (i32, i32) {
    %c0_i32 = arith.constant 0 : i32
    %c0_i32_0 = arith.constant 0 : i32
    %c0_i32_1 = arith.constant 0 : i32
    return %c0_i32, %c0_i32_0 : i32, i32
  }
}

module attributes {stable_mosaic.version = 11 : i64} {
  func.func @_fused_matmul_kernel(%arg0: i32, %arg1: memref<32x2304xbf16, #tpu.memory_space<vmem>>, %arg2: memref<2304x256xbf16, #tpu.memory_space<vmem>>, %arg3: memref<1x256xf32, #tpu.memory_space<vmem>>, %arg4: memref<1x256xf32, #tpu.memory_space<vmem>>, %arg5: memref<32x256xbf16, #tpu.memory_space<vmem>>) attributes {dimension_semantics = [#tpu.dimension_semantics<arbitrary>], iteration_bounds = array<i64: 1>, scalar_prefetch = 0 : i64, scratch_operands = 0 : i64, tpu.core_type = #tpu.core_type<tc>, window_params = [{pipeline_mode = #tpu.pipeline_mode<synchronous>, transform_indices = @transform_0, window_bounds = array<i64: 32, 2304>}, {pipeline_mode = #tpu.pipeline_mode<synchronous>, transform_indices = @transform_1, window_bounds = array<i64: 2304, 256>}, {pipeline_mode = #tpu.pipeline_mode<synchronous>, transform_indices = @transform_2, window_bounds = array<i64: 1, 256>}, {pipeline_mode = #tpu.pipeline_mode<synchronous>, transform_indices = @transform_3, window_bounds = array<i64: 1, 256>}, {pipeline_mode = #tpu.pipeline_mode<synchronous>, transform_indices = @transform_4, window_bounds = array<i64: 32, 256>}]} {
    %c0 = arith.constant 0 : index
    %c0_0 = arith.constant 0 : index
    %0 = vector.load %arg1[%c0, %c0_0] : memref<32x2304xbf16, #tpu.memory_space<vmem>>, vector<32x2304xbf16>
    %c0_1 = arith.constant 0 : index
    %c0_2 = arith.constant 0 : index
    %1 = vector.load %arg2[%c0_1, %c0_2] : memref<2304x256xbf16, #tpu.memory_space<vmem>>, vector<2304x256xbf16>
    %cst = arith.constant dense<0.000000e+00> : vector<32x256xf32>
    %2 = tpu.matmul %0, %1, %cst {dimension_numbers = #tpu.dot_dimension_numbers<[1], [0], [0], [1], [0, 0, 1, 1], [], []>} : vector<32x2304xbf16>, vector<2304x256xbf16>, vector<32x256xf32> -> vector<32x256xf32>
    %c0_3 = arith.constant 0 : index
    %c0_4 = arith.constant 0 : index
    %3 = vector.load %arg3[%c0_3, %c0_4] : memref<1x256xf32, #tpu.memory_space<vmem>>, vector<1x256xf32>
    %4 = vector.broadcast %3 : vector<1x256xf32> to vector<32x256xf32>
    %5 = arith.mulf %2, %4 : vector<32x256xf32>
    %c0_5 = arith.constant 0 : index
    %c0_6 = arith.constant 0 : index
    %6 = vector.load %arg4[%c0_5, %c0_6] : memref<1x256xf32, #tpu.memory_space<vmem>>, vector<1x256xf32>
    %7 = vector.broadcast %6 : vector<1x256xf32> to vector<32x256xf32>
    %8 = arith.addf %5, %7 : vector<32x256xf32>
    %9 = arith.truncf %8 : vector<32x256xf32> to vector<32x256xbf16>
    %c0_7 = arith.constant 0 : index
    %c0_8 = arith.constant 0 : index
    %10 = vector.load %arg5[%c0_7, %c0_8] : memref<32x256xbf16, #tpu.memory_space<vmem>>, vector<32x256xbf16>
    tpu.vector_store %arg5[%c0_7, %c0_8], %9 {strides = array<i32>} : memref<32x256xbf16, #tpu.memory_space<vmem>>, vector<32x256xbf16>,
    return
  }
  func.func @transform_0(%arg0: i32) -> (i32, i32) {
    %c0_i32 = arith.constant 0 : i32
    %c0_i32_0 = arith.constant 0 : i32
    %c0_i32_1 = arith.constant 0 : i32
    return %c0_i32, %c0_i32_0 : i32, i32
  }
  func.func @transform_1(%arg0: i32) -> (i32, i32) {
    %c0_i32 = arith.constant 0 : i32
    %c0_i32_0 = arith.constant 0 : i32
    %c0_i32_1 = arith.constant 0 : i32
    return %c0_i32, %c0_i32_0 : i32, i32
  }
  func.func @transform_2(%arg0: i32) -> (i32, i32) {
    %c0_i32 = arith.constant 0 : i32
    %c0_i32_0 = arith.constant 0 : i32
    %c0_i32_1 = arith.constant 0 : i32
    return %c0_i32, %c0_i32_0 : i32, i32
  }
  func.func @transform_3(%arg0: i32) -> (i32, i32) {
    %c0_i32 = arith.constant 0 : i32
    %c0_i32_0 = arith.constant 0 : i32
    %c0_i32_1 = arith.constant 0 : i32
    return %c0_i32, %c0_i32_0 : i32, i32
  }
  func.func @transform_4(%arg0: i32) -> (i32, i32) {
    %c0_i32 = arith.constant 0 : i32
    %c0_i32_0 = arith.constant 0 : i32
    %c0_i32_1 = arith.constant 0 : i32
    return %c0_i32, %c0_i32_0 : i32, i32
  }
}

module attributes {stable_mosaic.version = 11 : i64} {
  func.func @_fused_matmul_kernel(%arg0: i32, %arg1: memref<32x256xbf16, #tpu.memory_space<vmem>>, %arg2: memref<256x128xbf16, #tpu.memory_space<vmem>>, %arg3: memref<1x128xf32, #tpu.memory_space<vmem>>, %arg4: memref<1x128xf32, #tpu.memory_space<vmem>>, %arg5: memref<32x128xf32, #tpu.memory_space<vmem>>) attributes {dimension_semantics = [#tpu.dimension_semantics<arbitrary>], iteration_bounds = array<i64: 1>, scalar_prefetch = 0 : i64, scratch_operands = 0 : i64, tpu.core_type = #tpu.core_type<tc>, window_params = [{pipeline_mode = #tpu.pipeline_mode<synchronous>, transform_indices = @transform_0, window_bounds = array<i64: 32, 256>}, {pipeline_mode = #tpu.pipeline_mode<synchronous>, transform_indices = @transform_1, window_bounds = array<i64: 256, 128>}, {pipeline_mode = #tpu.pipeline_mode<synchronous>, transform_indices = @transform_2, window_bounds = array<i64: 1, 128>}, {pipeline_mode = #tpu.pipeline_mode<synchronous>, transform_indices = @transform_3, window_bounds = array<i64: 1, 128>}, {pipeline_mode = #tpu.pipeline_mode<synchronous>, transform_indices = @transform_4, window_bounds = array<i64: 32, 128>}]} {
    %c0 = arith.constant 0 : index
    %c0_0 = arith.constant 0 : index
    %0 = vector.load %arg1[%c0, %c0_0] : memref<32x256xbf16, #tpu.memory_space<vmem>>, vector<32x256xbf16>
    %c0_1 = arith.constant 0 : index
    %c0_2 = arith.constant 0 : index
    %1 = vector.load %arg2[%c0_1, %c0_2] : memref<256x128xbf16, #tpu.memory_space<vmem>>, vector<256x128xbf16>
    %cst = arith.constant dense<0.000000e+00> : vector<32x128xf32>
    %2 = tpu.matmul %0, %1, %cst {dimension_numbers = #tpu.dot_dimension_numbers<[1], [0], [0], [1], [0, 0, 1, 1], [], []>} : vector<32x256xbf16>, vector<256x128xbf16>, vector<32x128xf32> -> vector<32x128xf32>
    %c0_3 = arith.constant 0 : index
    %c0_4 = arith.constant 0 : index
    %3 = vector.load %arg3[%c0_3, %c0_4] : memref<1x128xf32, #tpu.memory_space<vmem>>, vector<1x128xf32>
    %4 = vector.broadcast %3 : vector<1x128xf32> to vector<32x128xf32>
    %5 = arith.mulf %2, %4 : vector<32x128xf32>
    %c0_5 = arith.constant 0 : index
    %c0_6 = arith.constant 0 : index
    %6 = vector.load %arg4[%c0_5, %c0_6] : memref<1x128xf32, #tpu.memory_space<vmem>>, vector<1x128xf32>
    %7 = vector.broadcast %6 : vector<1x128xf32> to vector<32x128xf32>
    %8 = arith.addf %5, %7 : vector<32x128xf32>
    %c0_7 = arith.constant 0 : index
    %c0_8 = arith.constant 0 : index
    %9 = vector.load %arg5[%c0_7, %c0_8] : memref<32x128xf32, #tpu.memory_space<vmem>>, vector<32x128xf32>
    tpu.vector_store %arg5[%c0_7, %c0_8], %8 {strides = array<i32>} : memref<32x128xf32, #tpu.memory_space<vmem>>, vector<32x128xf32>,
    return
  }
  func.func @transform_0(%arg0: i32) -> (i32, i32) {
    %c0_i32 = arith.constant 0 : i32
    %c0_i32_0 = arith.constant 0 : i32
    %c0_i32_1 = arith.constant 0 : i32
    return %c0_i32, %c0_i32_0 : i32, i32
  }
  func.func @transform_1(%arg0: i32) -> (i32, i32) {
    %c0_i32 = arith.constant 0 : i32
    %c0_i32_0 = arith.constant 0 : i32
    %c0_i32_1 = arith.constant 0 : i32
    return %c0_i32, %c0_i32_0 : i32, i32
  }
  func.func @transform_2(%arg0: i32) -> (i32, i32) {
    %c0_i32 = arith.constant 0 : i32
    %c0_i32_0 = arith.constant 0 : i32
    %c0_i32_1 = arith.constant 0 : i32
    return %c0_i32, %c0_i32_0 : i32, i32
  }
  func.func @transform_3(%arg0: i32) -> (i32, i32) {
    %c0_i32 = arith.constant 0 : i32
    %c0_i32_0 = arith.constant 0 : i32
    %c0_i32_1 = arith.constant 0 : i32
    return %c0_i32, %c0_i32_0 : i32, i32
  }
  func.func @transform_4(%arg0: i32) -> (i32, i32) {
    %c0_i32 = arith.constant 0 : i32
    %c0_i32_0 = arith.constant 0 : i32
    %c0_i32_1 = arith.constant 0 : i32
    return %c0_i32, %c0_i32_0 : i32, i32
  }
}

</mosaic_0001>

<llo_original>
// kernel: _lambda_.12
$region0: #{_lambda_.12}
  #allocation0 [shape = 'u32[]', space=smem, size = 0x4, offset = 0x4, fixed_abs, tag = 'smem constant byte address 0x4 - core index']
  #allocation1 [shape = 'u32[144,128]{1,0:T(1,128)}', space=vmem, size = 0x12000, scoped, tag = 'internal scratch']
  %s0 = inlined_call_operand.vmem [shape: bf16[128,1152], index: 0, kind: input, shape index: {}]
  %s1 = inlined_call_operand.vmem [shape: bf16[1152,128], index: 1, kind: input, shape index: {}]
  %s2 = inlined_call_operand.vmem [shape: f32[1,128], index: 2, kind: input, shape index: {}]
  %s3 = inlined_call_operand.vmem [shape: f32[1,128], index: 3, kind: input, shape index: {}]
  %s4 = inlined_call_operand.vmem [shape: bf16[128,128], index: 4, kind: output, shape index: {}]
  %s5 = sld [smem:[#allocation0]]
  $region26: #{_lambda_.12} parent=0
    _
  %s7 = ssub.s32 1, %s5
  %s8 = scalar_select 0, %s7, %s5
  // Predicated region
  $region2: #{_lambda_.12} parent=0 // pred_check
    _
  $region3: #{_lambda_.12} parent=0 // pred_check_branch
    %10 = sbr.rel (0) target = $region5
  $region4: #{_lambda_.12} parent=0 // pred_region
    _
  $region5: #{_lambda_.12} parent=0 // pred_fallthru
    _
  // Predicated region
  $region6: #{_lambda_.12} parent=0 // pred_check
    _
  $region7: #{_lambda_.12} parent=0 // pred_check_branch
    %12 = sbr.rel (0) target = $region9
  $region8: #{_lambda_.12} parent=0 // pred_region
    _
  $region9: #{_lambda_.12} parent=0 // pred_fallthru
    _
  // Predicated region
  $region10: #{_lambda_.12} parent=0 // pred_check
    _
  $region11: #{_lambda_.12} parent=0 // pred_check_branch
    %14 = sbr.rel (0) target = $region13
  $region12: #{_lambda_.12} parent=0 // pred_region
    _
  $region13: #{_lambda_.12} parent=0 // pred_fallthru
    _
  // Predicated region
  $region14: #{_lambda_.12} parent=0 // pred_check
    _
  $region15: #{_lambda_.12} parent=0 // pred_check_branch
    %16 = sbr.rel (0) target = $region17
  $region16: #{_lambda_.12} parent=0 // pred_region
    _
  $region17: #{_lambda_.12} parent=0 // pred_fallthru
    _
  %v18 = vld [vmem:[%s0] sm:$0xff]
  %v19 = vld [vmem:[%s0 + $0x8] sm:$0xff]
  %v20 = vld [vmem:[%s0 + $0x10] sm:$0xff]
  %v21 = vld [vmem:[%s0 + $0x18] sm:$0xff]
  %v22 = vld [vmem:[%s0 + $0x20] sm:$0xf]
  %v23 = vld [vmem:[%s0 + $0x24] sm:$0xff]
  %v24 = vld [vmem:[%s0 + $0x2c] sm:$0xff]
  %v25 = vld [vmem:[%s0 + $0x34] sm:$0xff]
  %v26 = vld [vmem:[%s0 + $0x3c] sm:$0xff]
  %v27 = vld [vmem:[%s0 + $0x44] sm:$0xf]
  %v28 = vld [vmem:[%s0 + $0x48] sm:$0xff]
  %v29 = vld [vmem:[%s0 + $0x50] sm:$0xff]
  %v30 = vld [vmem:[%s0 + $0x58] sm:$0xff]
  %v31 = vld [vmem:[%s0 + $0x60] sm:$0xff]
  %v32 = vld [vmem:[%s0 + $0x68] sm:$0xf]
  %v33 = vld [vmem:[%s0 + $0x6c] sm:$0xff]
  %v34 = vld [vmem:[%s0 + $0x74] sm:$0xff]
  %v35 = vld [vmem:[%s0 + $0x7c] sm:$0xff]
  %v36 = vld [vmem:[%s0 + $0x84] sm:$0xff]
  %v37 = vld [vmem:[%s0 + $0x8c] sm:$0xf]
  %v38 = vld [vmem:[%s0 + $0x90] sm:$0xff]
  %v39 = vld [vmem:[%s0 + $0x98] sm:$0xff]
  %v40 = vld [vmem:[%s0 + $0xa0] sm:$0xff]
  %v41 = vld [vmem:[%s0 + $0xa8] sm:$0xff]
  %v42 = vld [vmem:[%s0 + $0xb0] sm:$0xf]
  %v43 = vld [vmem:[%s0 + $0xb4] sm:$0xff]
  %v44 = vld [vmem:[%s0 + $0xbc] sm:$0xff]
  %v45 = vld [vmem:[%s0 + $0xc4] sm:$0xff]
  %v46 = vld [vmem:[%s0 + $0xcc] sm:$0xff]
  %v47 = vld [vmem:[%s0 + $0xd4] sm:$0xf]
  %v48 = vld [vmem:[%s0 + $0xd8] sm:$0xff]
  %v49 = vld [vmem:[%s0 + $0xe0] sm:$0xff]
  %v50 = vld [vmem:[%s0 + $0xe8] sm:$0xff]
  %v51 = vld [vmem:[%s0 + $0xf0] sm:$0xff]
  %v52 = vld [vmem:[%s0 + $0xf8] sm:$0xf]
  %v53 = vld [vmem:[%s0 + $0xfc] sm:$0xff]
  %v54 = vld [vmem:[%s0 + $0x104] sm:$0xff]
  %v55 = vld [vmem:[%s0 + $0x10c] sm:$0xff]
  %v56 = vld [vmem:[%s0 + $0x114] sm:$0xff]
  %v57 = vld [vmem:[%s0 + $0x11c] sm:$0xf]
  %v58 = vld [vmem:[%s0 + $0x120] sm:$0xff]
  %v59 = vld [vmem:[%s0 + $0x128] sm:$0xff]
  %v60 = vld [vmem:[%s0 + $0x130] sm:$0xff]
  %v61 = vld [vmem:[%s0 + $0x138] sm:$0xff]
  %v62 = vld [vmem:[%s0 + $0x140] sm:$0xf]
  %v63 = vld [vmem:[%s0 + $0x144] sm:$0xff]
  %v64 = vld [vmem:[%s0 + $0x14c] sm:$0xff]
  %v65 = vld [vmem:[%s0 + $0x154] sm:$0xff]
  %v66 = vld [vmem:[%s0 + $0x15c] sm:$0xff]
  %v67 = vld [vmem:[%s0 + $0x164] sm:$0xf]
  %v68 = vld [vmem:[%s0 + $0x168] sm:$0xff]
  %v69 = vld [vmem:[%s0 + $0x170] sm:$0xff]
  %v70 = vld [vmem:[%s0 + $0x178] sm:$0xff]
  %v71 = vld [vmem:[%s0 + $0x180] sm:$0xff]
  %v72 = vld [vmem:[%s0 + $0x188] sm:$0xf]
  %v73 = vld [vmem:[%s0 + $0x18c] sm:$0xff]
  %v74 = vld [vmem:[%s0 + $0x194] sm:$0xff]
  %v75 = vld [vmem:[%s0 + $0x19c] sm:$0xff]
  %v76 = vld [vmem:[%s0 + $0x1a4] sm:$0xff]
  %v77 = vld [vmem:[%s0 + $0x1ac] sm:$0xf]
  %v78 = vld [vmem:[%s0 + $0x1b0] sm:$0xff]
  %v79 = vld [vmem:[%s0 + $0x1b8] sm:$0xff]
  %v80 = vld [vmem:[%s0 + $0x1c0] sm:$0xff]
  %v81 = vld [vmem:[%s0 + $0x1c8] sm:$0xff]
  %v82 = vld [vmem:[%s0 + $0x1d0] sm:$0xf]
  %v83 = vld [vmem:[%s0 + $0x1d4] sm:$0xff]
  %v84 = vld [vmem:[%s0 + $0x1dc] sm:$0xff]
  %v85 = vld [vmem:[%s0 + $0x1e4] sm:$0xff]
  %v86 = vld [vmem:[%s0 + $0x1ec] sm:$0xff]
  %v87 = vld [vmem:[%s0 + $0x1f4] sm:$0xf]
  %v88 = vld [vmem:[%s0 + $0x1f8] sm:$0xff]
  %v89 = vld [vmem:[%s0 + $0x200] sm:$0xff]
  %v90 = vld [vmem:[%s0 + $0x208] sm:$0xff]
  %v91 = vld [vmem:[%s0 + $0x210] sm:$0xff]
  %v92 = vld [vmem:[%s0 + $0x218] sm:$0xf]
  %v93 = vld [vmem:[%s0 + $0x21c] sm:$0xff]
  %v94 = vld [vmem:[%s0 + $0x224] sm:$0xff]
  %v95 = vld [vmem:[%s0 + $0x22c] sm:$0xff]
  %v96 = vld [vmem:[%s0 + $0x234] sm:$0xff]
  %v97 = vld [vmem:[%s0 + $0x23c] sm:$0xf]
  %v98 = vld [vmem:[%s1] sm:$0xf]
  %v99 = vld [vmem:[%s1 + $0x4] sm:$0xf]
  %v100 = vld [vmem:[%s1 + $0x8] sm:$0xf]
  %v101 = vld [vmem:[%s1 + $0xc] sm:$0xf]
  %v102 = vld [vmem:[%s1 + $0x10] sm:$0xf]
  %v103 = vld [vmem:[%s1 + $0x14] sm:$0xf]
  %v104 = vld [vmem:[%s1 + $0x18] sm:$0xf]
  %v105 = vld [vmem:[%s1 + $0x1c] sm:$0xf]
  %v106 = vld [vmem:[%s1 + $0x20] sm:$0xf]
  %v107 = vld [vmem:[%s1 + $0x24] sm:$0xf]
  %v108 = vld [vmem:[%s1 + $0x28] sm:$0xf]
  %v109 = vld [vmem:[%s1 + $0x2c] sm:$0xf]
  %v110 = vld [vmem:[%s1 + $0x30] sm:$0xf]
  %v111 = vld [vmem:[%s1 + $0x34] sm:$0xf]
  %v112 = vld [vmem:[%s1 + $0x38] sm:$0xf]
  %v113 = vld [vmem:[%s1 + $0x3c] sm:$0xf]
  %v114 = vld [vmem:[%s1 + $0x40] sm:$0xf]
  %v115 = vld [vmem:[%s1 + $0x44] sm:$0xf]
  %v116 = vld [vmem:[%s1 + $0x48] sm:$0xf]
  %v117 = vld [vmem:[%s1 + $0x4c] sm:$0xf]
  %v118 = vld [vmem:[%s1 + $0x50] sm:$0xf]
  %v119 = vld [vmem:[%s1 + $0x54] sm:$0xf]
  %v120 = vld [vmem:[%s1 + $0x58] sm:$0xf]
  %v121 = vld [vmem:[%s1 + $0x5c] sm:$0xf]
  %v122 = vld [vmem:[%s1 + $0x60] sm:$0xf]
  %v123 = vld [vmem:[%s1 + $0x64] sm:$0xf]
  %v124 = vld [vmem:[%s1 + $0x68] sm:$0xf]
  %v125 = vld [vmem:[%s1 + $0x6c] sm:$0xf]
  %v126 = vld [vmem:[%s1 + $0x70] sm:$0xf]
  %v127 = vld [vmem:[%s1 + $0x74] sm:$0xf]
  %v128 = vld [vmem:[%s1 + $0x78] sm:$0xf]
  %v129 = vld [vmem:[%s1 + $0x7c] sm:$0xf]
  %v130 = vld [vmem:[%s1 + $0x80] sm:$0xf]
  %v131 = vld [vmem:[%s1 + $0x84] sm:$0xf]
  %v132 = vld [vmem:[%s1 + $0x88] sm:$0xf]
  %v133 = vld [vmem:[%s1 + $0x8c] sm:$0xf]
  %v134 = vld [vmem:[%s1 + $0x90] sm:$0xf]
  %v135 = vld [vmem:[%s1 + $0x94] sm:$0xf]
  %v136 = vld [vmem:[%s1 + $0x98] sm:$0xf]
  %v137 = vld [vmem:[%s1 + $0x9c] sm:$0xf]
  %v138 = vld [vmem:[%s1 + $0xa0] sm:$0xf]
  %v139 = vld [vmem:[%s1 + $0xa4] sm:$0xf]
  %v140 = vld [vmem:[%s1 + $0xa8] sm:$0xf]
  %v141 = vld [vmem:[%s1 + $0xac] sm:$0xf]
  %v142 = vld [vmem:[%s1 + $0xb0] sm:$0xf]
  %v143 = vld [vmem:[%s1 + $0xb4] sm:$0xf]
  %v144 = vld [vmem:[%s1 + $0xb8] sm:$0xf]
  %v145 = vld [vmem:[%s1 + $0xbc] sm:$0xf]
  %v146 = vld [vmem:[%s1 + $0xc0] sm:$0xf]
  %v147 = vld [vmem:[%s1 + $0xc4] sm:$0xf]
  %v148 = vld [vmem:[%s1 + $0xc8] sm:$0xf]
  %v149 = vld [vmem:[%s1 + $0xcc] sm:$0xf]
  %v150 = vld [vmem:[%s1 + $0xd0] sm:$0xf]
  %v151 = vld [vmem:[%s1 + $0xd4] sm:$0xf]
  %v152 = vld [vmem:[%s1 + $0xd8] sm:$0xf]
  %v153 = vld [vmem:[%s1 + $0xdc] sm:$0xf]
  %v154 = vld [vmem:[%s1 + $0xe0] sm:$0xf]
  %v155 = vld [vmem:[%s1 + $0xe4] sm:$0xf]
  %v156 = vld [vmem:[%s1 + $0xe8] sm:$0xf]
  %v157 = vld [vmem:[%s1 + $0xec] sm:$0xf]
  %v158 = vld [vmem:[%s1 + $0xf0] sm:$0xf]
  %v159 = vld [vmem:[%s1 + $0xf4] sm:$0xf]
  %v160 = vld [vmem:[%s1 + $0xf8] sm:$0xf]
  %v161 = vld [vmem:[%s1 + $0xfc] sm:$0xf]
  %v162 = vld [vmem:[%s1 + $0x100] sm:$0xf]
  %v163 = vld [vmem:[%s1 + $0x104] sm:$0xf]
  %v164 = vld [vmem:[%s1 + $0x108] sm:$0xf]
  %v165 = vld [vmem:[%s1 + $0x10c] sm:$0xf]
  %v166 = vld [vmem:[%s1 + $0x110] sm:$0xf]
  %v167 = vld [vmem:[%s1 + $0x114] sm:$0xf]
  %v168 = vld [vmem:[%s1 + $0x118] sm:$0xf]
  %v169 = vld [vmem:[%s1 + $0x11c] sm:$0xf]
  %v170 = vld [vmem:[%s1 + $0x120] sm:$0xf]
  %v171 = vld [vmem:[%s1 + $0x124] sm:$0xf]
  %v172 = vld [vmem:[%s1 + $0x128] sm:$0xf]
  %v173 = vld [vmem:[%s1 + $0x12c] sm:$0xf]
  %v174 = vld [vmem:[%s1 + $0x130] sm:$0xf]
  %v175 = vld [vmem:[%s1 + $0x134] sm:$0xf]
  %v176 = vld [vmem:[%s1 + $0x138] sm:$0xf]
  %v177 = vld [vmem:[%s1 + $0x13c] sm:$0xf]
  %v178 = vld [vmem:[%s1 + $0x140] sm:$0xf]
  %v179 = vld [vmem:[%s1 + $0x144] sm:$0xf]
  %v180 = vld [vmem:[%s1 + $0x148] sm:$0xf]
  %v181 = vld [vmem:[%s1 + $0x14c] sm:$0xf]
  %v182 = vld [vmem:[%s1 + $0x150] sm:$0xf]
  %v183 = vld [vmem:[%s1 + $0x154] sm:$0xf]
  %v184 = vld [vmem:[%s1 + $0x158] sm:$0xf]
  %v185 = vld [vmem:[%s1 + $0x15c] sm:$0xf]
  %v186 = vld [vmem:[%s1 + $0x160] sm:$0xf]
  %v187 = vld [vmem:[%s1 + $0x164] sm:$0xf]
  %v188 = vld [vmem:[%s1 + $0x168] sm:$0xf]
  %v189 = vld [vmem:[%s1 + $0x16c] sm:$0xf]
  %v190 = vld [vmem:[%s1 + $0x170] sm:$0xf]
  %v191 = vld [vmem:[%s1 + $0x174] sm:$0xf]
  %v192 = vld [vmem:[%s1 + $0x178] sm:$0xf]
  %v193 = vld [vmem:[%s1 + $0x17c] sm:$0xf]
  %v194 = vld [vmem:[%s1 + $0x180] sm:$0xf]
  %v195 = vld [vmem:[%s1 + $0x184] sm:$0xf]
  %v196 = vld [vmem:[%s1 + $0x188] sm:$0xf]
  %v197 = vld [vmem:[%s1 + $0x18c] sm:$0xf]
  %v198 = vld [vmem:[%s1 + $0x190] sm:$0xf]
  %v199 = vld [vmem:[%s1 + $0x194] sm:$0xf]
  %v200 = vld [vmem:[%s1 + $0x198] sm:$0xf]
  %v201 = vld [vmem:[%s1 + $0x19c] sm:$0xf]
  %v202 = vld [vmem:[%s1 + $0x1a0] sm:$0xf]
  %v203 = vld [vmem:[%s1 + $0x1a4] sm:$0xf]
  %v204 = vld [vmem:[%s1 + $0x1a8] sm:$0xf]
  %v205 = vld [vmem:[%s1 + $0x1ac] sm:$0xf]
  %v206 = vld [vmem:[%s1 + $0x1b0] sm:$0xf]
  %v207 = vld [vmem:[%s1 + $0x1b4] sm:$0xf]
  %v208 = vld [vmem:[%s1 + $0x1b8] sm:$0xf]
  %v209 = vld [vmem:[%s1 + $0x1bc] sm:$0xf]
  %v210 = vld [vmem:[%s1 + $0x1c0] sm:$0xf]
  %v211 = vld [vmem:[%s1 + $0x1c4] sm:$0xf]
  %v212 = vld [vmem:[%s1 + $0x1c8] sm:$0xf]
  %v213 = vld [vmem:[%s1 + $0x1cc] sm:$0xf]
  %v214 = vld [vmem:[%s1 + $0x1d0] sm:$0xf]
  %v215 = vld [vmem:[%s1 + $0x1d4] sm:$0xf]
  %v216 = vld [vmem:[%s1 + $0x1d8] sm:$0xf]
  %v217 = vld [vmem:[%s1 + $0x1dc] sm:$0xf]
  %v218 = vld [vmem:[%s1 + $0x1e0] sm:$0xf]
  %v219 = vld [vmem:[%s1 + $0x1e4] sm:$0xf]
  %v220 = vld [vmem:[%s1 + $0x1e8] sm:$0xf]
  %v221 = vld [vmem:[%s1 + $0x1ec] sm:$0xf]
  %v222 = vld [vmem:[%s1 + $0x1f0] sm:$0xf]
  %v223 = vld [vmem:[%s1 + $0x1f4] sm:$0xf]
  %v224 = vld [vmem:[%s1 + $0x1f8] sm:$0xf]
  %v225 = vld [vmem:[%s1 + $0x1fc] sm:$0xf]
  %v226 = vld [vmem:[%s1 + $0x200] sm:$0xf]
  %v227 = vld [vmem:[%s1 + $0x204] sm:$0xf]
  %v228 = vld [vmem:[%s1 + $0x208] sm:$0xf]
  %v229 = vld [vmem:[%s1 + $0x20c] sm:$0xf]
  %v230 = vld [vmem:[%s1 + $0x210] sm:$0xf]
  %v231 = vld [vmem:[%s1 + $0x214] sm:$0xf]
  %v232 = vld [vmem:[%s1 + $0x218] sm:$0xf]
  %v233 = vld [vmem:[%s1 + $0x21c] sm:$0xf]
  %v234 = vld [vmem:[%s1 + $0x220] sm:$0xf]
  %v235 = vld [vmem:[%s1 + $0x224] sm:$0xf]
  %v236 = vld [vmem:[%s1 + $0x228] sm:$0xf]
  %v237 = vld [vmem:[%s1 + $0x22c] sm:$0xf]
  %v238 = vld [vmem:[%s1 + $0x230] sm:$0xf]
  %v239 = vld [vmem:[%s1 + $0x234] sm:$0xf]
  %v240 = vld [vmem:[%s1 + $0x238] sm:$0xf]
  %v241 = vld [vmem:[%s1 + $0x23c] sm:$0xf]
  %v322 = vunpack.c.l.b16 %v18
  %v323 = vunpack.c.h.b16 %v18
  %v324 = vunpack.c.l.b16 %v19
  %v325 = vunpack.c.h.b16 %v19
  %v326 = vunpack.c.l.b16 %v20
  %v327 = vunpack.c.h.b16 %v20
  %v328 = vunpack.c.l.b16 %v21
  %v329 = vunpack.c.h.b16 %v21
  %v330 = vunpack.c.l.b16 %v22
  %v331 = vunpack.c.l.b16 %v23
  %v332 = vunpack.c.h.b16 %v23
  %v333 = vunpack.c.l.b16 %v24
  %v334 = vunpack.c.h.b16 %v24
  %v335 = vunpack.c.l.b16 %v25
  %v336 = vunpack.c.h.b16 %v25
  %v337 = vunpack.c.l.b16 %v26
  %v338 = vunpack.c.h.b16 %v26
  %v339 = vunpack.c.l.b16 %v27
  %v340 = vunpack.c.l.b16 %v28
  %v341 = vunpack.c.h.b16 %v28
  %v342 = vunpack.c.l.b16 %v29
  %v343 = vunpack.c.h.b16 %v29
  %v344 = vunpack.c.l.b16 %v30
  %v345 = vunpack.c.h.b16 %v30
  %v346 = vunpack.c.l.b16 %v31
  %v347 = vunpack.c.h.b16 %v31
  %v348 = vunpack.c.l.b16 %v32
  %v349 = vunpack.c.l.b16 %v33
  %v350 = vunpack.c.h.b16 %v33
  %v351 = vunpack.c.l.b16 %v34
  %v352 = vunpack.c.h.b16 %v34
  %v353 = vunpack.c.l.b16 %v35
  %v354 = vunpack.c.h.b16 %v35
  %v355 = vunpack.c.l.b16 %v36
  %v356 = vunpack.c.h.b16 %v36
  %v357 = vunpack.c.l.b16 %v37
  %v358 = vunpack.c.l.b16 %v38
  %v359 = vunpack.c.h.b16 %v38
  %v360 = vunpack.c.l.b16 %v39
  %v361 = vunpack.c.h.b16 %v39
  %v362 = vunpack.c.l.b16 %v40
  %v363 = vunpack.c.h.b16 %v40
  %v364 = vunpack.c.l.b16 %v41
  %v365 = vunpack.c.h.b16 %v41
  %v366 = vunpack.c.l.b16 %v42
  %v367 = vunpack.c.l.b16 %v43
  %v368 = vunpack.c.h.b16 %v43
  %v369 = vunpack.c.l.b16 %v44
  %v370 = vunpack.c.h.b16 %v44
  %v371 = vunpack.c.l.b16 %v45
  %v372 = vunpack.c.h.b16 %v45
  %v373 = vunpack.c.l.b16 %v46
  %v374 = vunpack.c.h.b16 %v46
  %v375 = vunpack.c.l.b16 %v47
  %v376 = vunpack.c.l.b16 %v48
  %v377 = vunpack.c.h.b16 %v48
  %v378 = vunpack.c.l.b16 %v49
  %v379 = vunpack.c.h.b16 %v49
  %v380 = vunpack.c.l.b16 %v50
  %v381 = vunpack.c.h.b16 %v50
  %v382 = vunpack.c.l.b16 %v51
  %v383 = vunpack.c.h.b16 %v51
  %v384 = vunpack.c.l.b16 %v52
  %v385 = vunpack.c.l.b16 %v53
  %v386 = vunpack.c.h.b16 %v53
  %v387 = vunpack.c.l.b16 %v54
  %v388 = vunpack.c.h.b16 %v54
  %v389 = vunpack.c.l.b16 %v55
  %v390 = vunpack.c.h.b16 %v55
  %v391 = vunpack.c.l.b16 %v56
  %v392 = vunpack.c.h.b16 %v56
  %v393 = vunpack.c.l.b16 %v57
  %v394 = vunpack.c.l.b16 %v58
  %v395 = vunpack.c.h.b16 %v58
  %v396 = vunpack.c.l.b16 %v59
  %v397 = vunpack.c.h.b16 %v59
  %v398 = vunpack.c.l.b16 %v60
  %v399 = vunpack.c.h.b16 %v60
  %v400 = vunpack.c.l.b16 %v61
  %v401 = vunpack.c.h.b16 %v61
  %v402 = vunpack.c.l.b16 %v62
  %v403 = vunpack.c.l.b16 %v63
  %v404 = vunpack.c.h.b16 %v63
  %v405 = vunpack.c.l.b16 %v64
  %v406 = vunpack.c.h.b16 %v64
  %v407 = vunpack.c.l.b16 %v65
  %v408 = vunpack.c.h.b16 %v65
  %v409 = vunpack.c.l.b16 %v66
  %v410 = vunpack.c.h.b16 %v66
  %v411 = vunpack.c.l.b16 %v67
  %v412 = vunpack.c.l.b16 %v68
  %v413 = vunpack.c.h.b16 %v68
  %v414 = vunpack.c.l.b16 %v69
  %v415 = vunpack.c.h.b16 %v69
  %v416 = vunpack.c.l.b16 %v70
  %v417 = vunpack.c.h.b16 %v70
  %v418 = vunpack.c.l.b16 %v71
  %v419 = vunpack.c.h.b16 %v71
  %v420 = vunpack.c.l.b16 %v72
  %v421 = vunpack.c.l.b16 %v73
  %v422 = vunpack.c.h.b16 %v73
  %v423 = vunpack.c.l.b16 %v74
  %v424 = vunpack.c.h.b16 %v74
  %v425 = vunpack.c.l.b16 %v75
  %v426 = vunpack.c.h.b16 %v75
  %v427 = vunpack.c.l.b16 %v76
  %v428 = vunpack.c.h.b16 %v76
  %v429 = vunpack.c.l.b16 %v77
  %v430 = vunpack.c.l.b16 %v78
  %v431 = vunpack.c.h.b16 %v78
  %v432 = vunpack.c.l.b16 %v79
  %v433 = vunpack.c.h.b16 %v79
  %v434 = vunpack.c.l.b16 %v80
  %v435 = vunpack.c.h.b16 %v80
  %v436 = vunpack.c.l.b16 %v81
  %v437 = vunpack.c.h.b16 %v81
  %v438 = vunpack.c.l.b16 %v82
  %v439 = vunpack.c.l.b16 %v83
  %v440 = vunpack.c.h.b16 %v83
  %v441 = vunpack.c.l.b16 %v84
  %v442 = vunpack.c.h.b16 %v84
  %v443 = vunpack.c.l.b16 %v85
  %v444 = vunpack.c.h.b16 %v85
  %v445 = vunpack.c.l.b16 %v86
  %v446 = vunpack.c.h.b16 %v86
  %v447 = vunpack.c.l.b16 %v87
  %v448 = vunpack.c.l.b16 %v88
  %v449 = vunpack.c.h.b16 %v88
  %v450 = vunpack.c.l.b16 %v89
  %v451 = vunpack.c.h.b16 %v89
  %v452 = vunpack.c.l.b16 %v90
  %v453 = vunpack.c.h.b16 %v90
  %v454 = vunpack.c.l.b16 %v91
  %v455 = vunpack.c.h.b16 %v91
  %v456 = vunpack.c.l.b16 %v92
  %v457 = vunpack.c.l.b16 %v93
  %v458 = vunpack.c.h.b16 %v93
  %v459 = vunpack.c.l.b16 %v94
  %v460 = vunpack.c.h.b16 %v94
  %v461 = vunpack.c.l.b16 %v95
  %v462 = vunpack.c.h.b16 %v95
  %v463 = vunpack.c.l.b16 %v96
  %v464 = vunpack.c.h.b16 %v96
  %v465 = vunpack.c.l.b16 %v97
  %v466 = vpack.c.b16 %v331, %v322
  %v467 = vpack.c.b16 %v332, %v323
  %v468 = vpack.c.b16 %v333, %v324
  %v469 = vpack.c.b16 %v334, %v325
  %v470 = vpack.c.b16 %v335, %v326
  %v471 = vpack.c.b16 %v336, %v327
  %v472 = vpack.c.b16 %v337, %v328
  %v473 = vpack.c.b16 %v338, %v329
  %v474 = vpack.c.b16 %v339, %v330
  %v475 = vpack.c.b16 %v349, %v340
  %v476 = vpack.c.b16 %v350, %v341
  %v477 = vpack.c.b16 %v351, %v342
  %v478 = vpack.c.b16 %v352, %v343
  %v479 = vpack.c.b16 %v353, %v344
  %v480 = vpack.c.b16 %v354, %v345
  %v481 = vpack.c.b16 %v355, %v346
  %v482 = vpack.c.b16 %v356, %v347
  %v483 = vpack.c.b16 %v357, %v348
  %v484 = vpack.c.b16 %v367, %v358
  %v485 = vpack.c.b16 %v368, %v359
  %v486 = vpack.c.b16 %v369, %v360
  %v487 = vpack.c.b16 %v370, %v361
  %v488 = vpack.c.b16 %v371, %v362
  %v489 = vpack.c.b16 %v372, %v363
  %v490 = vpack.c.b16 %v373, %v364
  %v491 = vpack.c.b16 %v374, %v365
  %v492 = vpack.c.b16 %v375, %v366
  %v493 = vpack.c.b16 %v385, %v376
  %v494 = vpack.c.b16 %v386, %v377
  %v495 = vpack.c.b16 %v387, %v378
  %v496 = vpack.c.b16 %v388, %v379
  %v497 = vpack.c.b16 %v389, %v380
  %v498 = vpack.c.b16 %v390, %v381
  %v499 = vpack.c.b16 %v391, %v382
  %v500 = vpack.c.b16 %v392, %v383
  %v501 = vpack.c.b16 %v393, %v384
  %v502 = vpack.c.b16 %v403, %v394
  %v503 = vpack.c.b16 %v404, %v395
  %v504 = vpack.c.b16 %v405, %v396
  %v505 = vpack.c.b16 %v406, %v397
  %v506 = vpack.c.b16 %v407, %v398
  %v507 = vpack.c.b16 %v408, %v399
  %v508 = vpack.c.b16 %v409, %v400
  %v509 = vpack.c.b16 %v410, %v401
  %v510 = vpack.c.b16 %v411, %v402
  %v511 = vpack.c.b16 %v421, %v412
  %v512 = vpack.c.b16 %v422, %v413
  %v513 = vpack.c.b16 %v423, %v414
  %v514 = vpack.c.b16 %v424, %v415
  %v515 = vpack.c.b16 %v425, %v416
  %v516 = vpack.c.b16 %v426, %v417
  %v517 = vpack.c.b16 %v427, %v418
  %v518 = vpack.c.b16 %v428, %v419
  %v519 = vpack.c.b16 %v429, %v420
  %v520 = vpack.c.b16 %v439, %v430
  %v521 = vpack.c.b16 %v440, %v431
  %v522 = vpack.c.b16 %v441, %v432
  %v523 = vpack.c.b16 %v442, %v433
  %v524 = vpack.c.b16 %v443, %v434
  %v525 = vpack.c.b16 %v444, %v435
  %v526 = vpack.c.b16 %v445, %v436
  %v527 = vpack.c.b16 %v446, %v437
  %v528 = vpack.c.b16 %v447, %v438
  %v529 = vpack.c.b16 %v457, %v448
  %v530 = vpack.c.b16 %v458, %v449
  %v531 = vpack.c.b16 %v459, %v450
  %v532 = vpack.c.b16 %v460, %v451
  %v533 = vpack.c.b16 %v461, %v452
  %v534 = vpack.c.b16 %v462, %v453
  %v535 = vpack.c.b16 %v463, %v454
  %v536 = vpack.c.b16 %v464, %v455
  %v537 = vpack.c.b16 %v465, %v456
  %v754 = vunpack.c.l.b16 %v98
  %v755 = vunpack.c.l.b16 %v99
  %v756 = vunpack.c.l.b16 %v100
  %v757 = vunpack.c.l.b16 %v101
  %v758 = vunpack.c.l.b16 %v102
  %v759 = vunpack.c.l.b16 %v103
  %v760 = vunpack.c.l.b16 %v104
  %v761 = vunpack.c.l.b16 %v105
  %v762 = vunpack.c.l.b16 %v106
  %v763 = vunpack.c.l.b16 %v107
  %v764 = vunpack.c.l.b16 %v108
  %v765 = vunpack.c.l.b16 %v109
  %v766 = vunpack.c.l.b16 %v110
  %v767 = vunpack.c.l.b16 %v111
  %v768 = vunpack.c.l.b16 %v112
  %v769 = vunpack.c.l.b16 %v113
  %v770 = vunpack.c.l.b16 %v114
  %v771 = vunpack.c.l.b16 %v115
  %v772 = vunpack.c.l.b16 %v116
  %v773 = vunpack.c.l.b16 %v117
  %v774 = vunpack.c.l.b16 %v118
  %v775 = vunpack.c.l.b16 %v119
  %v776 = vunpack.c.l.b16 %v120
  %v777 = vunpack.c.l.b16 %v121
  %v778 = vunpack.c.l.b16 %v122
  %v779 = vunpack.c.l.b16 %v123
  %v780 = vunpack.c.l.b16 %v124
  %v781 = vunpack.c.l.b16 %v125
  %v782 = vunpack.c.l.b16 %v126
  %v783 = vunpack.c.l.b16 %v127
  %v784 = vunpack.c.l.b16 %v128
  %v785 = vunpack.c.l.b16 %v129
  %v786 = vunpack.c.l.b16 %v130
  %v787 = vunpack.c.l.b16 %v131
  %v788 = vunpack.c.l.b16 %v132
  %v789 = vunpack.c.l.b16 %v133
  %v790 = vunpack.c.l.b16 %v134
  %v791 = vunpack.c.l.b16 %v135
  %v792 = vunpack.c.l.b16 %v136
  %v793 = vunpack.c.l.b16 %v137
  %v794 = vunpack.c.l.b16 %v138
  %v795 = vunpack.c.l.b16 %v139
  %v796 = vunpack.c.l.b16 %v140
  %v797 = vunpack.c.l.b16 %v141
  %v798 = vunpack.c.l.b16 %v142
  %v799 = vunpack.c.l.b16 %v143
  %v800 = vunpack.c.l.b16 %v144
  %v801 = vunpack.c.l.b16 %v145
  %v802 = vunpack.c.l.b16 %v146
  %v803 = vunpack.c.l.b16 %v147
  %v804 = vunpack.c.l.b16 %v148
  %v805 = vunpack.c.l.b16 %v149
  %v806 = vunpack.c.l.b16 %v150
  %v807 = vunpack.c.l.b16 %v151
  %v808 = vunpack.c.l.b16 %v152
  %v809 = vunpack.c.l.b16 %v153
  %v810 = vunpack.c.l.b16 %v154
  %v811 = vunpack.c.l.b16 %v155
  %v812 = vunpack.c.l.b16 %v156
  %v813 = vunpack.c.l.b16 %v157
  %v814 = vunpack.c.l.b16 %v158
  %v815 = vunpack.c.l.b16 %v159
  %v816 = vunpack.c.l.b16 %v160
  %v817 = vunpack.c.l.b16 %v161
  %v818 = vunpack.c.l.b16 %v162
  %v819 = vunpack.c.l.b16 %v163
  %v820 = vunpack.c.l.b16 %v164
  %v821 = vunpack.c.l.b16 %v165
  %v822 = vunpack.c.l.b16 %v166
  %v823 = vunpack.c.l.b16 %v167
  %v824 = vunpack.c.l.b16 %v168
  %v825 = vunpack.c.l.b16 %v169
  %v826 = vunpack.c.l.b16 %v170
  %v827 = vunpack.c.l.b16 %v171
  %v828 = vunpack.c.l.b16 %v172
  %v829 = vunpack.c.l.b16 %v173
  %v830 = vunpack.c.l.b16 %v174
  %v831 = vunpack.c.l.b16 %v175
  %v832 = vunpack.c.l.b16 %v176
  %v833 = vunpack.c.l.b16 %v177
  %v834 = vunpack.c.l.b16 %v178
  %v835 = vunpack.c.l.b16 %v179
  %v836 = vunpack.c.l.b16 %v180
  %v837 = vunpack.c.l.b16 %v181
  %v838 = vunpack.c.l.b16 %v182
  %v839 = vunpack.c.l.b16 %v183
  %v840 = vunpack.c.l.b16 %v184
  %v841 = vunpack.c.l.b16 %v185
  %v842 = vunpack.c.l.b16 %v186
  %v843 = vunpack.c.l.b16 %v187
  %v844 = vunpack.c.l.b16 %v188
  %v845 = vunpack.c.l.b16 %v189
  %v846 = vunpack.c.l.b16 %v190
  %v847 = vunpack.c.l.b16 %v191
  %v848 = vunpack.c.l.b16 %v192
  %v849 = vunpack.c.l.b16 %v193
  %v850 = vunpack.c.l.b16 %v194
  %v851 = vunpack.c.l.b16 %v195
  %v852 = vunpack.c.l.b16 %v196
  %v853 = vunpack.c.l.b16 %v197
  %v854 = vunpack.c.l.b16 %v198
  %v855 = vunpack.c.l.b16 %v199
  %v856 = vunpack.c.l.b16 %v200
  %v857 = vunpack.c.l.b16 %v201
  %v858 = vunpack.c.l.b16 %v202
  %v859 = vunpack.c.l.b16 %v203
  %v860 = vunpack.c.l.b16 %v204
  %v861 = vunpack.c.l.b16 %v205
  %v862 = vunpack.c.l.b16 %v206
  %v863 = vunpack.c.l.b16 %v207
  %v864 = vunpack.c.l.b16 %v208
  %v865 = vunpack.c.l.b16 %v209
  %v866 = vunpack.c.l.b16 %v210
  %v867 = vunpack.c.l.b16 %v211
  %v868 = vunpack.c.l.b16 %v212
  %v869 = vunpack.c.l.b16 %v213
  %v870 = vunpack.c.l.b16 %v214
  %v871 = vunpack.c.l.b16 %v215
  %v872 = vunpack.c.l.b16 %v216
  %v873 = vunpack.c.l.b16 %v217
  %v874 = vunpack.c.l.b16 %v218
  %v875 = vunpack.c.l.b16 %v219
  %v876 = vunpack.c.l.b16 %v220
  %v877 = vunpack.c.l.b16 %v221
  %v878 = vunpack.c.l.b16 %v222
  %v879 = vunpack.c.l.b16 %v223
  %v880 = vunpack.c.l.b16 %v224
  %v881 = vunpack.c.l.b16 %v225
  %v882 = vunpack.c.l.b16 %v226
  %v883 = vunpack.c.l.b16 %v227
  %v884 = vunpack.c.l.b16 %v228
  %v885 = vunpack.c.l.b16 %v229
  %v886 = vunpack.c.l.b16 %v230
  %v887 = vunpack.c.l.b16 %v231
  %v888 = vunpack.c.l.b16 %v232
  %v889 = vunpack.c.l.b16 %v233
  %v890 = vunpack.c.l.b16 %v234
  %v891 = vunpack.c.l.b16 %v235
  %v892 = vunpack.c.l.b16 %v236
  %v893 = vunpack.c.l.b16 %v237
  %v894 = vunpack.c.l.b16 %v238
  %v895 = vunpack.c.l.b16 %v239
  %v896 = vunpack.c.l.b16 %v240
  %v897 = vunpack.c.l.b16 %v241
  %v898 = vpack.c.b16 %v755, %v754
  %v899 = vpack.c.b16 %v757, %v756
  %v900 = vpack.c.b16 %v759, %v758
  %v901 = vpack.c.b16 %v761, %v760
  %v902 = vpack.c.b16 %v763, %v762
  %v903 = vpack.c.b16 %v765, %v764
  %v904 = vpack.c.b16 %v767, %v766
  %v905 = vpack.c.b16 %v769, %v768
  %v906 = vpack.c.b16 %v771, %v770
  %v907 = vpack.c.b16 %v773, %v772
  %v908 = vpack.c.b16 %v775, %v774
  %v909 = vpack.c.b16 %v777, %v776
  %v910 = vpack.c.b16 %v779, %v778
  %v911 = vpack.c.b16 %v781, %v780
  %v912 = vpack.c.b16 %v783, %v782
  %v913 = vpack.c.b16 %v785, %v784
  %v914 = vpack.c.b16 %v787, %v786
  %v915 = vpack.c.b16 %v789, %v788
  %v916 = vpack.c.b16 %v791, %v790
  %v917 = vpack.c.b16 %v793, %v792
  %v918 = vpack.c.b16 %v795, %v794
  %v919 = vpack.c.b16 %v797, %v796
  %v920 = vpack.c.b16 %v799, %v798
  %v921 = vpack.c.b16 %v801, %v800
  %v922 = vpack.c.b16 %v803, %v802
  %v923 = vpack.c.b16 %v805, %v804
  %v924 = vpack.c.b16 %v807, %v806
  %v925 = vpack.c.b16 %v809, %v808
  %v926 = vpack.c.b16 %v811, %v810
  %v927 = vpack.c.b16 %v813, %v812
  %v928 = vpack.c.b16 %v815, %v814
  %v929 = vpack.c.b16 %v817, %v816
  %v930 = vpack.c.b16 %v819, %v818
  %v931 = vpack.c.b16 %v821, %v820
  %v932 = vpack.c.b16 %v823, %v822
  %v933 = vpack.c.b16 %v825, %v824
  %v934 = vpack.c.b16 %v827, %v826
  %v935 = vpack.c.b16 %v829, %v828
  %v936 = vpack.c.b16 %v831, %v830
  %v937 = vpack.c.b16 %v833, %v832
  %v938 = vpack.c.b16 %v835, %v834
  %v939 = vpack.c.b16 %v837, %v836
  %v940 = vpack.c.b16 %v839, %v838
  %v941 = vpack.c.b16 %v841, %v840
  %v942 = vpack.c.b16 %v843, %v842
  %v943 = vpack.c.b16 %v845, %v844
  %v944 = vpack.c.b16 %v847, %v846
  %v945 = vpack.c.b16 %v849, %v848
  %v946 = vpack.c.b16 %v851, %v850
  %v947 = vpack.c.b16 %v853, %v852
  %v948 = vpack.c.b16 %v855, %v854
  %v949 = vpack.c.b16 %v857, %v856
  %v950 = vpack.c.b16 %v859, %v858
  %v951 = vpack.c.b16 %v861, %v860
  %v952 = vpack.c.b16 %v863, %v862
  %v953 = vpack.c.b16 %v865, %v864
  %v954 = vpack.c.b16 %v867, %v866
  %v955 = vpack.c.b16 %v869, %v868
  %v956 = vpack.c.b16 %v871, %v870
  %v957 = vpack.c.b16 %v873, %v872
  %v958 = vpack.c.b16 %v875, %v874
  %v959 = vpack.c.b16 %v877, %v876
  %v960 = vpack.c.b16 %v879, %v878
  %v961 = vpack.c.b16 %v881, %v880
  %v962 = vpack.c.b16 %v883, %v882
  %v963 = vpack.c.b16 %v885, %v884
  %v964 = vpack.c.b16 %v887, %v886
  %v965 = vpack.c.b16 %v889, %v888
  %v966 = vpack.c.b16 %v891, %v890
  %v967 = vpack.c.b16 %v893, %v892
  %v968 = vpack.c.b16 %v895, %v894
  %v969 = vpack.c.b16 %v897, %v896
  %1042 = vmatprep.subr.bf16.mxu0 0
  %1043 = vmatpush1.bf16.msra.mxu0 %v898
  %1044 = vmatprep.subr.bf16.mxu0 0
  %1045 = vmatpush1.bf16.msra.mxu0 %v899
  %1046 = vmatprep.subr.bf16.mxu0 0
  %1047 = vmatpush1.bf16.msra.mxu0 %v900
  %1048 = vmatprep.subr.bf16.mxu0 0
  %1049 = vmatpush1.bf16.msra.mxu0 %v901
  %1050 = vmatprep.subr.bf16.mxu0 0
  %1051 = vmatpush1.bf16.msra.mxu0 %v902
  %1052 = vmatprep.subr.bf16.mxu0 0
  %1053 = vmatpush1.bf16.msra.mxu0 %v903
  %1054 = vmatprep.subr.bf16.mxu0 0
  %1055 = vmatpush1.bf16.msra.mxu0 %v904
  %1056 = vmatprep.subr.bf16.mxu0 0
  %1057 = vmatpush1.bf16.msra.mxu0 %v905
  %1058 = vmatprep.subr.bf16.mxu0 0
  %1059 = vmatpush1.bf16.msra.mxu0 %v906
  %1060 = vmatprep.subr.bf16.mxu0 0
  %1061 = vmatpush1.bf16.msra.mxu0 %v907
  %1062 = vmatprep.subr.bf16.mxu0 0
  %1063 = vmatpush1.bf16.msra.mxu0 %v908
  %1064 = vmatprep.subr.bf16.mxu0 0
  %1065 = vmatpush1.bf16.msra.mxu0 %v909
  %1066 = vmatprep.subr.bf16.mxu0 0
  %1067 = vmatpush1.bf16.msra.mxu0 %v910
  %1068 = vmatprep.subr.bf16.mxu0 0
  %1069 = vmatpush1.bf16.msra.mxu0 %v911
  %1070 = vmatprep.subr.bf16.mxu0 0
  %1071 = vmatpush1.bf16.msra.mxu0 %v912
  %1072 = vmatprep.subr.bf16.mxu0 0
  %1073 = vmatpush1.bf16.msra.mxu0 %v913
  %1074 = vmatprep.mubr.bf16.mxu0 %v467
  %1075 = vmatmul.mubr.bf16.gmra.mrb[0].mxu0 %v466
  %v1076 = vpop.f32.mrb[0].mxu0
  %v1077 = vadd.f32 0.0, %v1076
  %v1078 = vpop.f32.mrb[0].mxu0
  %v1079 = vpop.f32.mrb[0].mxu0
  %v1080 = vadd.f32 0.0, %v1079
  %v1081 = vpop.f32.mrb[0].mxu0
  %1082 = vmatprep.mubr.bf16.mxu0 %v476
  %1083 = vmatmul.mubr.bf16.gmra.mrb[0].mxu0 %v475
  %v1084 = vpop.f32.mrb[0].mxu0
  %v1085 = vadd.f32 0.0, %v1084
  %v1086 = vpop.f32.mrb[0].mxu0
  %v1087 = vpop.f32.mrb[0].mxu0
  %v1088 = vadd.f32 0.0, %v1087
  %v1089 = vpop.f32.mrb[0].mxu0
  %1090 = vmatprep.mubr.bf16.mxu0 %v485
  %1091 = vmatmul.mubr.bf16.gmra.mrb[0].mxu0 %v484
  %v1092 = vpop.f32.mrb[0].mxu0
  %v1093 = vadd.f32 0.0, %v1092
  %v1094 = vpop.f32.mrb[0].mxu0
  %v1095 = vpop.f32.mrb[0].mxu0
  %v1096 = vadd.f32 0.0, %v1095
  %v1097 = vpop.f32.mrb[0].mxu0
  %1098 = vmatprep.mubr.bf16.mxu0 %v494
  %1099 = vmatmul.mubr.bf16.gmra.mrb[0].mxu0 %v493
  %v1100 = vpop.f32.mrb[0].mxu0
  %v1101 = vadd.f32 0.0, %v1100
  %v1102 = vpop.f32.mrb[0].mxu0
  %v1103 = vpop.f32.mrb[0].mxu0
  %v1104 = vadd.f32 0.0, %v1103
  %v1105 = vpop.f32.mrb[0].mxu0
  %1106 = vmatprep.mubr.bf16.mxu0 %v503
  %1107 = vmatmul.mubr.bf16.gmra.mrb[0].mxu0 %v502
  %v1108 = vpop.f32.mrb[0].mxu0
  %v1109 = vadd.f32 0.0, %v1108
  %v1110 = vpop.f32.mrb[0].mxu0
  %v1111 = vpop.f32.mrb[0].mxu0
  %v1112 = vadd.f32 0.0, %v1111
  %v1113 = vpop.f32.mrb[0].mxu0
  %1114 = vmatprep.mubr.bf16.mxu0 %v512
  %1115 = vmatmul.mubr.bf16.gmra.mrb[0].mxu0 %v511
  %v1116 = vpop.f32.mrb[0].mxu0
  %v1117 = vadd.f32 0.0, %v1116
  %v1118 = vpop.f32.mrb[0].mxu0
  %v1119 = vpop.f32.mrb[0].mxu0
  %v1120 = vadd.f32 0.0, %v1119
  %v1121 = vpop.f32.mrb[0].mxu0
  %1122 = vmatprep.mubr.bf16.mxu0 %v521
  %1123 = vmatmul.mubr.bf16.gmra.mrb[0].mxu0 %v520
  %v1124 = vpop.f32.mrb[0].mxu0
  %v1125 = vadd.f32 0.0, %v1124
  %v1126 = vpop.f32.mrb[0].mxu0
  %v1127 = vpop.f32.mrb[0].mxu0
  %v1128 = vadd.f32 0.0, %v1127
  %v1129 = vpop.f32.mrb[0].mxu0
  %1130 = vmatprep.mubr.bf16.mxu0 %v530
  %1131 = vmatmul.mubr.bf16.gmra.mrb[0].mxu0 %v529
  %v1132 = vpop.f32.mrb[0].mxu0
  %v1133 = vadd.f32 0.0, %v1132
  %v1134 = vpop.f32.mrb[0].mxu0
  %v1135 = vpop.f32.mrb[0].mxu0
  %v1136 = vadd.f32 0.0, %v1135
  %v1137 = vpop.f32.mrb[0].mxu0
  %1138 = vdwg.mxu0
  %1139 = vmatprep.subr.bf16.mxu0 0
  %1140 = vmatpush1.bf16.msra.mxu0 %v914
  %1141 = vmatprep.subr.bf16.mxu0 0
  %1142 = vmatpush1.bf16.msra.mxu0 %v915
  %1143 = vmatprep.subr.bf16.mxu0 0
  %1144 = vmatpush1.bf16.msra.mxu0 %v916
  %1145 = vmatprep.subr.bf16.mxu0 0
  %1146 = vmatpush1.bf16.msra.mxu0 %v917
  %1147 = vmatprep.subr.bf16.mxu0 0
  %1148 = vmatpush1.bf16.msra.mxu0 %v918
  %1149 = vmatprep.subr.bf16.mxu0 0
  %1150 = vmatpush1.bf16.msra.mxu0 %v919
  %1151 = vmatprep.subr.bf16.mxu0 0
  %1152 = vmatpush1.bf16.msra.mxu0 %v920
  %1153 = vmatprep.subr.bf16.mxu0 0
  %1154 = vmatpush1.bf16.msra.mxu0 %v921
  %1155 = vmatprep.subr.bf16.mxu0 0
  %1156 = vmatpush1.bf16.msra.mxu0 %v922
  %1157 = vmatprep.subr.bf16.mxu0 0
  %1158 = vmatpush1.bf16.msra.mxu0 %v923
  %1159 = vmatprep.subr.bf16.mxu0 0
  %1160 = vmatpush1.bf16.msra.mxu0 %v924
  %1161 = vmatprep.subr.bf16.mxu0 0
  %1162 = vmatpush1.bf16.msra.mxu0 %v925
  %1163 = vmatprep.subr.bf16.mxu0 0
  %1164 = vmatpush1.bf16.msra.mxu0 %v926
  %1165 = vmatprep.subr.bf16.mxu0 0
  %1166 = vmatpush1.bf16.msra.mxu0 %v927
  %1167 = vmatprep.subr.bf16.mxu0 0
  %1168 = vmatpush1.bf16.msra.mxu0 %v928
  %1169 = vmatprep.subr.bf16.mxu0 0
  %1170 = vmatpush1.bf16.msra.mxu0 %v929
  %1171 = vmatprep.mubr.bf16.mxu0 %v469
  %1172 = vmatmul.mubr.bf16.gmra.mrb[0].mxu0 %v468
  %v1173 = vpop.f32.mrb[0].mxu0
  %v1174 = vadd.f32 %v1077, %v1173
  %v1175 = vpop.f32.mrb[0].mxu0
  %v1176 = vpop.f32.mrb[0].mxu0
  %v1177 = vadd.f32 %v1080, %v1176
  %v1178 = vpop.f32.mrb[0].mxu0
  %1179 = vmatprep.mubr.bf16.mxu0 %v478
  %1180 = vmatmul.mubr.bf16.gmra.mrb[0].mxu0 %v477
  %v1181 = vpop.f32.mrb[0].mxu0
  %v1182 = vadd.f32 %v1085, %v1181
  %v1183 = vpop.f32.mrb[0].mxu0
  %v1184 = vpop.f32.mrb[0].mxu0
  %v1185 = vadd.f32 %v1088, %v1184
  %v1186 = vpop.f32.mrb[0].mxu0
  %1187 = vmatprep.mubr.bf16.mxu0 %v487
  %1188 = vmatmul.mubr.bf16.gmra.mrb[0].mxu0 %v486
  %v1189 = vpop.f32.mrb[0].mxu0
  %v1190 = vadd.f32 %v1093, %v1189
  %v1191 = vpop.f32.mrb[0].mxu0
  %v1192 = vpop.f32.mrb[0].mxu0
  %v1193 = vadd.f32 %v1096, %v1192
  %v1194 = vpop.f32.mrb[0].mxu0
  %1195 = vmatprep.mubr.bf16.mxu0 %v496
  %1196 = vmatmul.mubr.bf16.gmra.mrb[0].mxu0 %v495
  %v1197 = vpop.f32.mrb[0].mxu0
  %v1198 = vadd.f32 %v1101, %v1197
  %v1199 = vpop.f32.mrb[0].mxu0
  %v1200 = vpop.f32.mrb[0].mxu0
  %v1201 = vadd.f32 %v1104, %v1200
  %v1202 = vpop.f32.mrb[0].mxu0
  %1203 = vmatprep.mubr.bf16.mxu0 %v505
  %1204 = vmatmul.mubr.bf16.gmra.mrb[0].mxu0 %v504
  %v1205 = vpop.f32.mrb[0].mxu0
  %v1206 = vadd.f32 %v1109, %v1205
  %v1207 = vpop.f32.mrb[0].mxu0
  %v1208 = vpop.f32.mrb[0].mxu0
  %v1209 = vadd.f32 %v1112, %v1208
  %v1210 = vpop.f32.mrb[0].mxu0
  %1211 = vmatprep.mubr.bf16.mxu0 %v514
  %1212 = vmatmul.mubr.bf16.gmra.mrb[0].mxu0 %v513
  %v1213 = vpop.f32.mrb[0].mxu0
  %v1214 = vadd.f32 %v1117, %v1213
  %v1215 = vpop.f32.mrb[0].mxu0
  %v1216 = vpop.f32.mrb[0].mxu0
  %v1217 = vadd.f32 %v1120, %v1216
  %v1218 = vpop.f32.mrb[0].mxu0
  %1219 = vmatprep.mubr.bf16.mxu0 %v523
  %1220 = vmatmul.mubr.bf16.gmra.mrb[0].mxu0 %v522
  %v1221 = vpop.f32.mrb[0].mxu0
  %v1222 = vadd.f32 %v1125, %v1221
  %v1223 = vpop.f32.mrb[0].mxu0
  %v1224 = vpop.f32.mrb[0].mxu0
  %v1225 = vadd.f32 %v1128, %v1224
  %v1226 = vpop.f32.mrb[0].mxu0
  %1227 = vmatprep.mubr.bf16.mxu0 %v532
  %1228 = vmatmul.mubr.bf16.gmra.mrb[0].mxu0 %v531
  %v1229 = vpop.f32.mrb[0].mxu0
  %v1230 = vadd.f32 %v1133, %v1229
  %v1231 = vpop.f32.mrb[0].mxu0
  %v1232 = vpop.f32.mrb[0].mxu0
  %v1233 = vadd.f32 %v1136, %v1232
  %v1234 = vpop.f32.mrb[0].mxu0
  %1235 = vdwg.mxu0
  %1236 = vmatprep.subr.bf16.mxu0 0
  %1237 = vmatpush1.bf16.msra.mxu0 %v930
  %1238 = vmatprep.subr.bf16.mxu0 0
  %1239 = vmatpush1.bf16.msra.mxu0 %v931
  %1240 = vmatprep.subr.bf16.mxu0 0
  %1241 = vmatpush1.bf16.msra.mxu0 %v932
  %1242 = vmatprep.subr.bf16.mxu0 0
  %1243 = vmatpush1.bf16.msra.mxu0 %v933
  %1244 = vmatprep.subr.bf16.mxu0 0
  %1245 = vmatpush1.bf16.msra.mxu0 %v934
  %1246 = vmatprep.subr.bf16.mxu0 0
  %1247 = vmatpush1.bf16.msra.mxu0 %v935
  %1248 = vmatprep.subr.bf16.mxu0 0
  %1249 = vmatpush1.bf16.msra.mxu0 %v936
  %1250 = vmatprep.subr.bf16.mxu0 0
  %1251 = vmatpush1.bf16.msra.mxu0 %v937
  %1252 = vmatprep.subr.bf16.mxu0 0
  %1253 = vmatpush1.bf16.msra.mxu0 %v938
  %1254 = vmatprep.subr.bf16.mxu0 0
  %1255 = vmatpush1.bf16.msra.mxu0 %v939
  %1256 = vmatprep.subr.bf16.mxu0 0
  %1257 = vmatpush1.bf16.msra.mxu0 %v940
  %1258 = vmatprep.subr.bf16.mxu0 0
  %1259 = vmatpush1.bf16.msra.mxu0 %v941
  %1260 = vmatprep.subr.bf16.mxu0 0
  %1261 = vmatpush1.bf16.msra.mxu0 %v942
  %1262 = vmatprep.subr.bf16.mxu0 0
  %1263 = vmatpush1.bf16.msra.mxu0 %v943
  %1264 = vmatprep.subr.bf16.mxu0 0
  %1265 = vmatpush1.bf16.msra.mxu0 %v944
  %1266 = vmatprep.subr.bf16.mxu0 0
  %1267 = vmatpush1.bf16.msra.mxu0 %v945
  %1268 = vmatprep.mubr.bf16.mxu0 %v471
  %1269 = vmatmul.mubr.bf16.gmra.mrb[0].mxu0 %v470
  %v1270 = vpop.f32.mrb[0].mxu0
  %v1271 = vadd.f32 %v1174, %v1270
  %v1272 = vpop.f32.mrb[0].mxu0
  %v1273 = vpop.f32.mrb[0].mxu0
  %v1274 = vadd.f32 %v1177, %v1273
  %v1275 = vpop.f32.mrb[0].mxu0
  %1276 = vmatprep.mubr.bf16.mxu0 %v480
  %1277 = vmatmul.mubr.bf16.gmra.mrb[0].mxu0 %v479
  %v1278 = vpop.f32.mrb[0].mxu0
  %v1279 = vadd.f32 %v1182, %v1278
  %v1280 = vpop.f32.mrb[0].mxu0
  %v1281 = vpop.f32.mrb[0].mxu0
  %v1282 = vadd.f32 %v1185, %v1281
  %v1283 = vpop.f32.mrb[0].mxu0
  %1284 = vmatprep.mubr.bf16.mxu0 %v489
  %1285 = vmatmul.mubr.bf16.gmra.mrb[0].mxu0 %v488
  %v1286 = vpop.f32.mrb[0].mxu0
  %v1287 = vadd.f32 %v1190, %v1286
  %v1288 = vpop.f32.mrb[0].mxu0
  %v1289 = vpop.f32.mrb[0].mxu0
  %v1290 = vadd.f32 %v1193, %v1289
  %v1291 = vpop.f32.mrb[0].mxu0
  %1292 = vmatprep.mubr.bf16.mxu0 %v498
  %1293 = vmatmul.mubr.bf16.gmra.mrb[0].mxu0 %v497
  %v1294 = vpop.f32.mrb[0].mxu0
  %v1295 = vadd.f32 %v1198, %v1294
  %v1296 = vpop.f32.mrb[0].mxu0
  %v1297 = vpop.f32.mrb[0].mxu0
  %v1298 = vadd.f32 %v1201, %v1297
  %v1299 = vpop.f32.mrb[0].mxu0
  %1300 = vmatprep.mubr.bf16.mxu0 %v507
  %1301 = vmatmul.mubr.bf16.gmra.mrb[0].mxu0 %v506
  %v1302 = vpop.f32.mrb[0].mxu0
  %v1303 = vadd.f32 %v1206, %v1302
  %v1304 = vpop.f32.mrb[0].mxu0
  %v1305 = vpop.f32.mrb[0].mxu0
  %v1306 = vadd.f32 %v1209, %v1305
  %v1307 = vpop.f32.mrb[0].mxu0
  %1308 = vmatprep.mubr.bf16.mxu0 %v516
  %1309 = vmatmul.mubr.bf16.gmra.mrb[0].mxu0 %v515
  %v1310 = vpop.f32.mrb[0].mxu0
  %v1311 = vadd.f32 %v1214, %v1310
  %v1312 = vpop.f32.mrb[0].mxu0
  %v1313 = vpop.f32.mrb[0].mxu0
  %v1314 = vadd.f32 %v1217, %v1313
  %v1315 = vpop.f32.mrb[0].mxu0
  %1316 = vmatprep.mubr.bf16.mxu0 %v525
  %1317 = vmatmul.mubr.bf16.gmra.mrb[0].mxu0 %v524
  %v1318 = vpop.f32.mrb[0].mxu0
  %v1319 = vadd.f32 %v1222, %v1318
  %v1320 = vpop.f32.mrb[0].mxu0
  %v1321 = vpop.f32.mrb[0].mxu0
  %v1322 = vadd.f32 %v1225, %v1321
  %v1323 = vpop.f32.mrb[0].mxu0
  %1324 = vmatprep.mubr.bf16.mxu0 %v534
  %1325 = vmatmul.mubr.bf16.gmra.mrb[0].mxu0 %v533
  %v1326 = vpop.f32.mrb[0].mxu0
  %v1327 = vadd.f32 %v1230, %v1326
  %v1328 = vpop.f32.mrb[0].mxu0
  %v1329 = vpop.f32.mrb[0].mxu0
  %v1330 = vadd.f32 %v1233, %v1329
  %v1331 = vpop.f32.mrb[0].mxu0
  %1332 = vdwg.mxu0
  %1333 = vmatprep.subr.bf16.mxu0 0
  %1334 = vmatpush1.bf16.msra.mxu0 %v946
  %1335 = vmatprep.subr.bf16.mxu0 0
  %1336 = vmatpush1.bf16.msra.mxu0 %v947
  %1337 = vmatprep.subr.bf16.mxu0 0
  %1338 = vmatpush1.bf16.msra.mxu0 %v948
  %1339 = vmatprep.subr.bf16.mxu0 0
  %1340 = vmatpush1.bf16.msra.mxu0 %v949
  %1341 = vmatprep.subr.bf16.mxu0 0
  %1342 = vmatpush1.bf16.msra.mxu0 %v950
  %1343 = vmatprep.subr.bf16.mxu0 0
  %1344 = vmatpush1.bf16.msra.mxu0 %v951
  %1345 = vmatprep.subr.bf16.mxu0 0
  %1346 = vmatpush1.bf16.msra.mxu0 %v952
  %1347 = vmatprep.subr.bf16.mxu0 0
  %1348 = vmatpush1.bf16.msra.mxu0 %v953
  %1349 = vmatprep.subr.bf16.mxu0 0
  %1350 = vmatpush1.bf16.msra.mxu0 %v954
  %1351 = vmatprep.subr.bf16.mxu0 0
  %1352 = vmatpush1.bf16.msra.mxu0 %v955
  %1353 = vmatprep.subr.bf16.mxu0 0
  %1354 = vmatpush1.bf16.msra.mxu0 %v956
  %1355 = vmatprep.subr.bf16.mxu0 0
  %1356 = vmatpush1.bf16.msra.mxu0 %v957
  %1357 = vmatprep.subr.bf16.mxu0 0
  %1358 = vmatpush1.bf16.msra.mxu0 %v958
  %1359 = vmatprep.subr.bf16.mxu0 0
  %1360 = vmatpush1.bf16.msra.mxu0 %v959
  %1361 = vmatprep.subr.bf16.mxu0 0
  %1362 = vmatpush1.bf16.msra.mxu0 %v960
  %1363 = vmatprep.subr.bf16.mxu0 0
  %1364 = vmatpush1.bf16.msra.mxu0 %v961
  %1365 = vmatprep.mubr.bf16.mxu0 %v473
  %1366 = vmatmul.mubr.bf16.gmra.mrb[0].mxu0 %v472
  %v1367 = vpop.f32.mrb[0].mxu0
  %v1368 = vadd.f32 %v1271, %v1367
  %v1369 = vpop.f32.mrb[0].mxu0
  %v1370 = vpop.f32.mrb[0].mxu0
  %v1371 = vadd.f32 %v1274, %v1370
  %v1372 = vpop.f32.mrb[0].mxu0
  %1373 = vmatprep.mubr.bf16.mxu0 %v482
  %1374 = vmatmul.mubr.bf16.gmra.mrb[0].mxu0 %v481
  %v1375 = vpop.f32.mrb[0].mxu0
  %v1376 = vadd.f32 %v1279, %v1375
  %v1377 = vpop.f32.mrb[0].mxu0
  %v1378 = vpop.f32.mrb[0].mxu0
  %v1379 = vadd.f32 %v1282, %v1378
  %v1380 = vpop.f32.mrb[0].mxu0
  %1381 = vmatprep.mubr.bf16.mxu0 %v491
  %1382 = vmatmul.mubr.bf16.gmra.mrb[0].mxu0 %v490
  %v1383 = vpop.f32.mrb[0].mxu0
  %v1384 = vadd.f32 %v1287, %v1383
  %v1385 = vpop.f32.mrb[0].mxu0
  %v1386 = vpop.f32.mrb[0].mxu0
  %v1387 = vadd.f32 %v1290, %v1386
  %v1388 = vpop.f32.mrb[0].mxu0
  %1389 = vmatprep.mubr.bf16.mxu0 %v500
  %1390 = vmatmul.mubr.bf16.gmra.mrb[0].mxu0 %v499
  %v1391 = vpop.f32.mrb[0].mxu0
  %v1392 = vadd.f32 %v1295, %v1391
  %v1393 = vpop.f32.mrb[0].mxu0
  %v1394 = vpop.f32.mrb[0].mxu0
  %v1395 = vadd.f32 %v1298, %v1394
  %v1396 = vpop.f32.mrb[0].mxu0
  %1397 = vmatprep.mubr.bf16.mxu0 %v509
  %1398 = vmatmul.mubr.bf16.gmra.mrb[0].mxu0 %v508
  %v1399 = vpop.f32.mrb[0].mxu0
  %v1400 = vadd.f32 %v1303, %v1399
  %v1401 = vpop.f32.mrb[0].mxu0
  %v1402 = vpop.f32.mrb[0].mxu0
  %v1403 = vadd.f32 %v1306, %v1402
  %v1404 = vpop.f32.mrb[0].mxu0
  %1405 = vmatprep.mubr.bf16.mxu0 %v518
  %1406 = vmatmul.mubr.bf16.gmra.mrb[0].mxu0 %v517
  %v1407 = vpop.f32.mrb[0].mxu0
  %v1408 = vadd.f32 %v1311, %v1407
  %v1409 = vpop.f32.mrb[0].mxu0
  %v1410 = vpop.f32.mrb[0].mxu0
  %v1411 = vadd.f32 %v1314, %v1410
  %v1412 = vpop.f32.mrb[0].mxu0
  %1413 = vmatprep.mubr.bf16.mxu0 %v527
  %1414 = vmatmul.mubr.bf16.gmra.mrb[0].mxu0 %v526
  %v1415 = vpop.f32.mrb[0].mxu0
  %v1416 = vadd.f32 %v1319, %v1415
  %v1417 = vpop.f32.mrb[0].mxu0
  %v1418 = vpop.f32.mrb[0].mxu0
  %v1419 = vadd.f32 %v1322, %v1418
  %v1420 = vpop.f32.mrb[0].mxu0
  %1421 = vmatprep.mubr.bf16.mxu0 %v536
  %1422 = vmatmul.mubr.bf16.gmra.mrb[0].mxu0 %v535
  %v1423 = vpop.f32.mrb[0].mxu0
  %v1424 = vadd.f32 %v1327, %v1423
  %v1425 = vpop.f32.mrb[0].mxu0
  %v1426 = vpop.f32.mrb[0].mxu0
  %v1427 = vadd.f32 %v1330, %v1426
  %v1428 = vpop.f32.mrb[0].mxu0
  %1429 = vdwg.mxu0
  %1430 = vmatprep.subr.bf16.mxu0 0
  %1431 = vmatpush1.bf16.msra.mxu0 %v962
  %1432 = vmatprep.subr.bf16.mxu0 0
  %1433 = vmatpush1.bf16.msra.mxu0 %v963
  %1434 = vmatprep.subr.bf16.mxu0 0
  %1435 = vmatpush1.bf16.msra.mxu0 %v964
  %1436 = vmatprep.subr.bf16.mxu0 0
  %1437 = vmatpush1.bf16.msra.mxu0 %v965
  %1438 = vmatprep.subr.bf16.mxu0 0
  %1439 = vmatpush1.bf16.msra.mxu0 %v966
  %1440 = vmatprep.subr.bf16.mxu0 0
  %1441 = vmatpush1.bf16.msra.mxu0 %v967
  %1442 = vmatprep.subr.bf16.mxu0 0
  %1443 = vmatpush1.bf16.msra.mxu0 %v968
  %1444 = vmatprep.subr.bf16.mxu0 0
  %1445 = vmatpush1.bf16.msra.mxu0 %v969
  %1446 = vmatprep.subr.bf16.mxu0 0
  %1447 = vmatpush1.bf16.msra.mxu0 0
  %1448 = vmatprep.subr.bf16.mxu0 0
  %1449 = vmatpush1.bf16.msra.mxu0 0
  %1450 = vmatprep.subr.bf16.mxu0 0
  %1451 = vmatpush1.bf16.msra.mxu0 0
  %1452 = vmatprep.subr.bf16.mxu0 0
  %1453 = vmatpush1.bf16.msra.mxu0 0
  %1454 = vmatprep.subr.bf16.mxu0 0
  %1455 = vmatpush1.bf16.msra.mxu0 0
  %1456 = vmatprep.subr.bf16.mxu0 0
  %1457 = vmatpush1.bf16.msra.mxu0 0
  %1458 = vmatprep.subr.bf16.mxu0 0
  %1459 = vmatpush1.bf16.msra.mxu0 0
  %1460 = vmatprep.subr.bf16.mxu0 0
  %1461 = vmatpush1.bf16.msra.mxu0 0
  %1462 = vmatprep.mubr.bf16.mxu0 0
  %1463 = vmatmul.mubr.bf16.gmra.mrb[0].mxu0 %v474
  %v1464 = vpop.f32.mrb[0].mxu0
  %v1465 = vadd.f32 %v1368, %v1464
  %v1466 = vpop.f32.mrb[0].mxu0
  %v1467 = vpop.f32.mrb[0].mxu0
  %v1468 = vadd.f32 %v1371, %v1467
  %v1469 = vpop.f32.mrb[0].mxu0
  %1470 = vmatprep.mubr.bf16.mxu0 0
  %1471 = vmatmul.mubr.bf16.gmra.mrb[0].mxu0 %v483
  %v1472 = vpop.f32.mrb[0].mxu0
  %v1473 = vadd.f32 %v1376, %v1472
  %v1474 = vpop.f32.mrb[0].mxu0
  %v1475 = vpop.f32.mrb[0].mxu0
  %v1476 = vadd.f32 %v1379, %v1475
  %v1477 = vpop.f32.mrb[0].mxu0
  %1478 = vmatprep.mubr.bf16.mxu0 0
  %1479 = vmatmul.mubr.bf16.gmra.mrb[0].mxu0 %v492
  %v1480 = vpop.f32.mrb[0].mxu0
  %v1481 = vadd.f32 %v1384, %v1480
  %v1482 = vpop.f32.mrb[0].mxu0
  %v1483 = vpop.f32.mrb[0].mxu0
  %v1484 = vadd.f32 %v1387, %v1483
  %v1485 = vpop.f32.mrb[0].mxu0
  %1486 = vmatprep.mubr.bf16.mxu0 0
  %1487 = vmatmul.mubr.bf16.gmra.mrb[0].mxu0 %v501
  %v1488 = vpop.f32.mrb[0].mxu0
  %v1489 = vadd.f32 %v1392, %v1488
  %v1490 = vpop.f32.mrb[0].mxu0
  %v1491 = vpop.f32.mrb[0].mxu0
  %v1492 = vadd.f32 %v1395, %v1491
  %v1493 = vpop.f32.mrb[0].mxu0
  %1494 = vmatprep.mubr.bf16.mxu0 0
  %1495 = vmatmul.mubr.bf16.gmra.mrb[0].mxu0 %v510
  %v1496 = vpop.f32.mrb[0].mxu0
  %v1497 = vadd.f32 %v1400, %v1496
  %v1498 = vpop.f32.mrb[0].mxu0
  %v1499 = vpop.f32.mrb[0].mxu0
  %v1500 = vadd.f32 %v1403, %v1499
  %v1501 = vpop.f32.mrb[0].mxu0
  %1502 = vmatprep.mubr.bf16.mxu0 0
  %1503 = vmatmul.mubr.bf16.gmra.mrb[0].mxu0 %v519
  %v1504 = vpop.f32.mrb[0].mxu0
  %v1505 = vadd.f32 %v1408, %v1504
  %v1506 = vpop.f32.mrb[0].mxu0
  %v1507 = vpop.f32.mrb[0].mxu0
  %v1508 = vadd.f32 %v1411, %v1507
  %v1509 = vpop.f32.mrb[0].mxu0
  %1510 = vmatprep.mubr.bf16.mxu0 0
  %1511 = vmatmul.mubr.bf16.gmra.mrb[0].mxu0 %v528
  %v1512 = vpop.f32.mrb[0].mxu0
  %v1513 = vadd.f32 %v1416, %v1512
  %v1514 = vpop.f32.mrb[0].mxu0
  %v1515 = vpop.f32.mrb[0].mxu0
  %v1516 = vadd.f32 %v1419, %v1515
  %v1517 = vpop.f32.mrb[0].mxu0
  %1518 = vmatprep.mubr.bf16.mxu0 0
  %1519 = vmatmul.mubr.bf16.gmra.mrb[0].mxu0 %v537
  %v1520 = vpop.f32.mrb[0].mxu0
  %v1521 = vadd.f32 %v1424, %v1520
  %v1522 = vpop.f32.mrb[0].mxu0
  %v1523 = vpop.f32.mrb[0].mxu0
  %v1524 = vadd.f32 %v1427, %v1523
  %v1525 = vpop.f32.mrb[0].mxu0
  %1526 = vdwg.mxu0
  %v1527 = vld [vmem:[%s2] sm:$0x1]
  %v1529 = vlaneseq
  %v1530 = vshrl.u32 %v1529, 7
  %v1531 = vsub.s32 0, %v1530
  %v1532 = vrot.slane %v1527, %v1531
  %v1534 = vmul.f32 %v1465, %v1532
  %v1535 = vmul.f32 %v1468, %v1532
  %v1536 = vmul.f32 %v1473, %v1532
  %v1537 = vmul.f32 %v1476, %v1532
  %v1538 = vmul.f32 %v1481, %v1532
  %v1539 = vmul.f32 %v1484, %v1532
  %v1540 = vmul.f32 %v1489, %v1532
  %v1541 = vmul.f32 %v1492, %v1532
  %v1542 = vmul.f32 %v1497, %v1532
  %v1543 = vmul.f32 %v1500, %v1532
  %v1544 = vmul.f32 %v1505, %v1532
  %v1545 = vmul.f32 %v1508, %v1532
  %v1546 = vmul.f32 %v1513, %v1532
  %v1547 = vmul.f32 %v1516, %v1532
  %v1548 = vmul.f32 %v1521, %v1532
  %v1549 = vmul.f32 %v1524, %v1532
  %v1550 = vld [vmem:[%s3] sm:$0x1]
  %v1552 = vlaneseq
  %v1553 = vshrl.u32 %v1552, 7
  %v1554 = vsub.s32 0, %v1553
  %v1555 = vrot.slane %v1550, %v1554
  %v1557 = vadd.f32 %v1534, %v1555
  %v1558 = vadd.f32 %v1535, %v1555
  %v1559 = vadd.f32 %v1536, %v1555
  %v1560 = vadd.f32 %v1537, %v1555
  %v1561 = vadd.f32 %v1538, %v1555
  %v1562 = vadd.f32 %v1539, %v1555
  %v1563 = vadd.f32 %v1540, %v1555
  %v1564 = vadd.f32 %v1541, %v1555
  %v1565 = vadd.f32 %v1542, %v1555
  %v1566 = vadd.f32 %v1543, %v1555
  %v1567 = vadd.f32 %v1544, %v1555
  %v1568 = vadd.f32 %v1545, %v1555
  %v1569 = vadd.f32 %v1546, %v1555
  %v1570 = vadd.f32 %v1547, %v1555
  %v1571 = vadd.f32 %v1548, %v1555
  %v1572 = vadd.f32 %v1549, %v1555
  %v1573 = vmax.f32 %v1557, 0.0
  %v1574 = vmax.f32 %v1558, 0.0
  %v1575 = vmax.f32 %v1559, 0.0
  %v1576 = vmax.f32 %v1560, 0.0
  %v1577 = vmax.f32 %v1561, 0.0
  %v1578 = vmax.f32 %v1562, 0.0
  %v1579 = vmax.f32 %v1563, 0.0
  %v1580 = vmax.f32 %v1564, 0.0
  %v1581 = vmax.f32 %v1565, 0.0
  %v1582 = vmax.f32 %v1566, 0.0
  %v1583 = vmax.f32 %v1567, 0.0
  %v1584 = vmax.f32 %v1568, 0.0
  %v1585 = vmax.f32 %v1569, 0.0
  %v1586 = vmax.f32 %v1570, 0.0
  %v1587 = vmax.f32 %v1571, 0.0
  %v1588 = vmax.f32 %v1572, 0.0
  %v1589 = vpack.c.bf16 %v1574, %v1573
  %v1590 = vpack.c.bf16 %v1576, %v1575
  %v1591 = vpack.c.bf16 %v1578, %v1577
  %v1592 = vpack.c.bf16 %v1580, %v1579
  %v1593 = vpack.c.bf16 %v1582, %v1581
  %v1594 = vpack.c.bf16 %v1584, %v1583
  %v1595 = vpack.c.bf16 %v1586, %v1585
  %v1596 = vpack.c.bf16 %v1588, %v1587
  %v1605 = vunpack.c.l.b16 %v1589
  %v1606 = vunpack.c.h.b16 %v1589
  %v1607 = vunpack.c.l.b16 %v1590
  %v1608 = vunpack.c.h.b16 %v1590
  %v1609 = vunpack.c.l.b16 %v1591
  %v1610 = vunpack.c.h.b16 %v1591
  %v1611 = vunpack.c.l.b16 %v1592
  %v1612 = vunpack.c.h.b16 %v1592
  %v1613 = vunpack.c.l.b16 %v1593
  %v1614 = vunpack.c.h.b16 %v1593
  %v1615 = vunpack.c.l.b16 %v1594
  %v1616 = vunpack.c.h.b16 %v1594
  %v1617 = vunpack.c.l.b16 %v1595
  %v1618 = vunpack.c.h.b16 %v1595
  %v1619 = vunpack.c.l.b16 %v1596
  %v1620 = vunpack.c.h.b16 %v1596
  %v1621 = vpack.c.b16 %v1605, %v1605
  %v1622 = vpack.c.b16 %v1606, %v1606
  %v1623 = vpack.c.b16 %v1607, %v1607
  %v1624 = vpack.c.b16 %v1608, %v1608
  %v1625 = vpack.c.b16 %v1609, %v1609
  %v1626 = vpack.c.b16 %v1610, %v1610
  %v1627 = vpack.c.b16 %v1611, %v1611
  %v1628 = vpack.c.b16 %v1612, %v1612
  %v1629 = vpack.c.b16 %v1613, %v1613
  %v1630 = vpack.c.b16 %v1614, %v1614
  %v1631 = vpack.c.b16 %v1615, %v1615
  %v1632 = vpack.c.b16 %v1616, %v1616
  %v1633 = vpack.c.b16 %v1617, %v1617
  %v1634 = vpack.c.b16 %v1618, %v1618
  %v1635 = vpack.c.b16 %v1619, %v1619
  %v1636 = vpack.c.b16 %v1620, %v1620
  %1653 = vst [vmem:[%s4] sm:$0xf] %v1621
  %1654 = vst [vmem:[%s4 + $0x4] sm:$0xf] %v1622
  %1655 = vst [vmem:[%s4 + $0x8] sm:$0xf] %v1623
  %1656 = vst [vmem:[%s4 + $0xc] sm:$0xf] %v1624
  %1657 = vst [vmem:[%s4 + $0x10] sm:$0xf] %v1625
  %1658 = vst [vmem:[%s4 + $0x14] sm:$0xf] %v1626
  %1659 = vst [vmem:[%s4 + $0x18] sm:$0xf] %v1627
  %1660 = vst [vmem:[%s4 + $0x1c] sm:$0xf] %v1628
  %1661 = vst [vmem:[%s4 + $0x20] sm:$0xf] %v1629
  %1662 = vst [vmem:[%s4 + $0x24] sm:$0xf] %v1630
  %1663 = vst [vmem:[%s4 + $0x28] sm:$0xf] %v1631
  %1664 = vst [vmem:[%s4 + $0x2c] sm:$0xf] %v1632
  %1665 = vst [vmem:[%s4 + $0x30] sm:$0xf] %v1633
  %1666 = vst [vmem:[%s4 + $0x34] sm:$0xf] %v1634
  %1667 = vst [vmem:[%s4 + $0x38] sm:$0xf] %v1635
  %1668 = vst [vmem:[%s4 + $0x3c] sm:$0xf] %v1636
  // Predicated region
  $region18: #{_lambda_.12} parent=0 // pred_check
    _
  $region19: #{_lambda_.12} parent=0 // pred_check_branch
    %1670 = sbr.rel (0) target = $region21
  $region20: #{_lambda_.12} parent=0 // pred_region
    _
  $region21: #{_lambda_.12} parent=0 // pred_fallthru
    _
  // Predicated region
  $region22: #{_lambda_.12} parent=0 // pred_check
    _
  $region23: #{_lambda_.12} parent=0 // pred_check_branch
    %1672 = sbr.rel (0) target = $region25
  $region24: #{_lambda_.12} parent=0 // pred_region
    _
  $region25: #{_lambda_.12} parent=0 // pred_fallthru
    _

// kernel: _lambda_.14
$region0: #{_lambda_.14}
  #allocation0 [shape = 'u32[]', space=smem, size = 0x4, offset = 0x4, fixed_abs, tag = 'smem constant byte address 0x4 - core index']
  #allocation1 [shape = 'u32[144,128]{1,0:T(1,128)}', space=vmem, size = 0x12000, scoped, tag = 'internal scratch']
  %s0 = inlined_call_operand.vmem [shape: bf16[32,1152], index: 0, kind: input, shape index: {}]
  %s1 = inlined_call_operand.vmem [shape: bf16[1152,128], index: 1, kind: input, shape index: {}]
  %s2 = inlined_call_operand.vmem [shape: f32[1,128], index: 2, kind: input, shape index: {}]
  %s3 = inlined_call_operand.vmem [shape: f32[1,128], index: 3, kind: input, shape index: {}]
  %s4 = inlined_call_operand.vmem [shape: bf16[32,128], index: 4, kind: output, shape index: {}]
  %s5 = sld [smem:[#allocation0]]
  $region26: #{_lambda_.14} parent=0
    _
  %s7 = ssub.s32 1, %s5
  %s8 = scalar_select 0, %s7, %s5
  // Predicated region
  $region2: #{_lambda_.14} parent=0 // pred_check
    _
  $region3: #{_lambda_.14} parent=0 // pred_check_branch
    %10 = sbr.rel (0) target = $region5
  $region4: #{_lambda_.14} parent=0 // pred_region
    _
  $region5: #{_lambda_.14} parent=0 // pred_fallthru
    _
  // Predicated region
  $region6: #{_lambda_.14} parent=0 // pred_check
    _
  $region7: #{_lambda_.14} parent=0 // pred_check_branch
    %12 = sbr.rel (0) target = $region9
  $region8: #{_lambda_.14} parent=0 // pred_region
    _
  $region9: #{_lambda_.14} parent=0 // pred_fallthru
    _
  // Predicated region
  $region10: #{_lambda_.14} parent=0 // pred_check
    _
  $region11: #{_lambda_.14} parent=0 // pred_check_branch
    %14 = sbr.rel (0) target = $region13
  $region12: #{_lambda_.14} parent=0 // pred_region
    _
  $region13: #{_lambda_.14} parent=0 // pred_fallthru
    _
  // Predicated region
  $region14: #{_lambda_.14} parent=0 // pred_check
    _
  $region15: #{_lambda_.14} parent=0 // pred_check_branch
    %16 = sbr.rel (0) target = $region17
  $region16: #{_lambda_.14} parent=0 // pred_region
    _
  $region17: #{_lambda_.14} parent=0 // pred_fallthru
    _
  %v18 = vld [vmem:[%s0] sm:$0xff]
  %v19 = vld [vmem:[%s0 + $0x8] sm:$0xff]
  %v20 = vld [vmem:[%s0 + $0x10] sm:$0xff]
  %v21 = vld [vmem:[%s0 + $0x18] sm:$0xff]
  %v22 = vld [vmem:[%s0 + $0x20] sm:$0xf]
  %v23 = vld [vmem:[%s0 + $0x24] sm:$0xff]
  %v24 = vld [vmem:[%s0 + $0x2c] sm:$0xff]
  %v25 = vld [vmem:[%s0 + $0x34] sm:$0xff]
  %v26 = vld [vmem:[%s0 + $0x3c] sm:$0xff]
  %v27 = vld [vmem:[%s0 + $0x44] sm:$0xf]
  %v28 = vld [vmem:[%s0 + $0x48] sm:$0xff]
  %v29 = vld [vmem:[%s0 + $0x50] sm:$0xff]
  %v30 = vld [vmem:[%s0 + $0x58] sm:$0xff]
  %v31 = vld [vmem:[%s0 + $0x60] sm:$0xff]
  %v32 = vld [vmem:[%s0 + $0x68] sm:$0xf]
  %v33 = vld [vmem:[%s0 + $0x6c] sm:$0xff]
  %v34 = vld [vmem:[%s0 + $0x74] sm:$0xff]
  %v35 = vld [vmem:[%s0 + $0x7c] sm:$0xff]
  %v36 = vld [vmem:[%s0 + $0x84] sm:$0xff]
  %v37 = vld [vmem:[%s0 + $0x8c] sm:$0xf]
  %v38 = vld [vmem:[%s1] sm:$0xf]
  %v39 = vld [vmem:[%s1 + $0x4] sm:$0xf]
  %v40 = vld [vmem:[%s1 + $0x8] sm:$0xf]
  %v41 = vld [vmem:[%s1 + $0xc] sm:$0xf]
  %v42 = vld [vmem:[%s1 + $0x10] sm:$0xf]
  %v43 = vld [vmem:[%s1 + $0x14] sm:$0xf]
  %v44 = vld [vmem:[%s1 + $0x18] sm:$0xf]
  %v45 = vld [vmem:[%s1 + $0x1c] sm:$0xf]
  %v46 = vld [vmem:[%s1 + $0x20] sm:$0xf]
  %v47 = vld [vmem:[%s1 + $0x24] sm:$0xf]
  %v48 = vld [vmem:[%s1 + $0x28] sm:$0xf]
  %v49 = vld [vmem:[%s1 + $0x2c] sm:$0xf]
  %v50 = vld [vmem:[%s1 + $0x30] sm:$0xf]
  %v51 = vld [vmem:[%s1 + $0x34] sm:$0xf]
  %v52 = vld [vmem:[%s1 + $0x38] sm:$0xf]
  %v53 = vld [vmem:[%s1 + $0x3c] sm:$0xf]
  %v54 = vld [vmem:[%s1 + $0x40] sm:$0xf]
  %v55 = vld [vmem:[%s1 + $0x44] sm:$0xf]
  %v56 = vld [vmem:[%s1 + $0x48] sm:$0xf]
  %v57 = vld [vmem:[%s1 + $0x4c] sm:$0xf]
  %v58 = vld [vmem:[%s1 + $0x50] sm:$0xf]
  %v59 = vld [vmem:[%s1 + $0x54] sm:$0xf]
  %v60 = vld [vmem:[%s1 + $0x58] sm:$0xf]
  %v61 = vld [vmem:[%s1 + $0x5c] sm:$0xf]
  %v62 = vld [vmem:[%s1 + $0x60] sm:$0xf]
  %v63 = vld [vmem:[%s1 + $0x64] sm:$0xf]
  %v64 = vld [vmem:[%s1 + $0x68] sm:$0xf]
  %v65 = vld [vmem:[%s1 + $0x6c] sm:$0xf]
  %v66 = vld [vmem:[%s1 + $0x70] sm:$0xf]
  %v67 = vld [vmem:[%s1 + $0x74] sm:$0xf]
  %v68 = vld [vmem:[%s1 + $0x78] sm:$0xf]
  %v69 = vld [vmem:[%s1 + $0x7c] sm:$0xf]
  %v70 = vld [vmem:[%s1 + $0x80] sm:$0xf]
  %v71 = vld [vmem:[%s1 + $0x84] sm:$0xf]
  %v72 = vld [vmem:[%s1 + $0x88] sm:$0xf]
  %v73 = vld [vmem:[%s1 + $0x8c] sm:$0xf]
  %v74 = vld [vmem:[%s1 + $0x90] sm:$0xf]
  %v75 = vld [vmem:[%s1 + $0x94] sm:$0xf]
  %v76 = vld [vmem:[%s1 + $0x98] sm:$0xf]
  %v77 = vld [vmem:[%s1 + $0x9c] sm:$0xf]
  %v78 = vld [vmem:[%s1 + $0xa0] sm:$0xf]
  %v79 = vld [vmem:[%s1 + $0xa4] sm:$0xf]
  %v80 = vld [vmem:[%s1 + $0xa8] sm:$0xf]
  %v81 = vld [vmem:[%s1 + $0xac] sm:$0xf]
  %v82 = vld [vmem:[%s1 + $0xb0] sm:$0xf]
  %v83 = vld [vmem:[%s1 + $0xb4] sm:$0xf]
  %v84 = vld [vmem:[%s1 + $0xb8] sm:$0xf]
  %v85 = vld [vmem:[%s1 + $0xbc] sm:$0xf]
  %v86 = vld [vmem:[%s1 + $0xc0] sm:$0xf]
  %v87 = vld [vmem:[%s1 + $0xc4] sm:$0xf]
  %v88 = vld [vmem:[%s1 + $0xc8] sm:$0xf]
  %v89 = vld [vmem:[%s1 + $0xcc] sm:$0xf]
  %v90 = vld [vmem:[%s1 + $0xd0] sm:$0xf]
  %v91 = vld [vmem:[%s1 + $0xd4] sm:$0xf]
  %v92 = vld [vmem:[%s1 + $0xd8] sm:$0xf]
  %v93 = vld [vmem:[%s1 + $0xdc] sm:$0xf]
  %v94 = vld [vmem:[%s1 + $0xe0] sm:$0xf]
  %v95 = vld [vmem:[%s1 + $0xe4] sm:$0xf]
  %v96 = vld [vmem:[%s1 + $0xe8] sm:$0xf]
  %v97 = vld [vmem:[%s1 + $0xec] sm:$0xf]
  %v98 = vld [vmem:[%s1 + $0xf0] sm:$0xf]
  %v99 = vld [vmem:[%s1 + $0xf4] sm:$0xf]
  %v100 = vld [vmem:[%s1 + $0xf8] sm:$0xf]
  %v101 = vld [vmem:[%s1 + $0xfc] sm:$0xf]
  %v102 = vld [vmem:[%s1 + $0x100] sm:$0xf]
  %v103 = vld [vmem:[%s1 + $0x104] sm:$0xf]
  %v104 = vld [vmem:[%s1 + $0x108] sm:$0xf]
  %v105 = vld [vmem:[%s1 + $0x10c] sm:$0xf]
  %v106 = vld [vmem:[%s1 + $0x110] sm:$0xf]
  %v107 = vld [vmem:[%s1 + $0x114] sm:$0xf]
  %v108 = vld [vmem:[%s1 + $0x118] sm:$0xf]
  %v109 = vld [vmem:[%s1 + $0x11c] sm:$0xf]
  %v110 = vld [vmem:[%s1 + $0x120] sm:$0xf]
  %v111 = vld [vmem:[%s1 + $0x124] sm:$0xf]
  %v112 = vld [vmem:[%s1 + $0x128] sm:$0xf]
  %v113 = vld [vmem:[%s1 + $0x12c] sm:$0xf]
  %v114 = vld [vmem:[%s1 + $0x130] sm:$0xf]
  %v115 = vld [vmem:[%s1 + $0x134] sm:$0xf]
  %v116 = vld [vmem:[%s1 + $0x138] sm:$0xf]
  %v117 = vld [vmem:[%s1 + $0x13c] sm:$0xf]
  %v118 = vld [vmem:[%s1 + $0x140] sm:$0xf]
  %v119 = vld [vmem:[%s1 + $0x144] sm:$0xf]
  %v120 = vld [vmem:[%s1 + $0x148] sm:$0xf]
  %v121 = vld [vmem:[%s1 + $0x14c] sm:$0xf]
  %v122 = vld [vmem:[%s1 + $0x150] sm:$0xf]
  %v123 = vld [vmem:[%s1 + $0x154] sm:$0xf]
  %v124 = vld [vmem:[%s1 + $0x158] sm:$0xf]
  %v125 = vld [vmem:[%s1 + $0x15c] sm:$0xf]
  %v126 = vld [vmem:[%s1 + $0x160] sm:$0xf]
  %v127 = vld [vmem:[%s1 + $0x164] sm:$0xf]
  %v128 = vld [vmem:[%s1 + $0x168] sm:$0xf]
  %v129 = vld [vmem:[%s1 + $0x16c] sm:$0xf]
  %v130 = vld [vmem:[%s1 + $0x170] sm:$0xf]
  %v131 = vld [vmem:[%s1 + $0x174] sm:$0xf]
  %v132 = vld [vmem:[%s1 + $0x178] sm:$0xf]
  %v133 = vld [vmem:[%s1 + $0x17c] sm:$0xf]
  %v134 = vld [vmem:[%s1 + $0x180] sm:$0xf]
  %v135 = vld [vmem:[%s1 + $0x184] sm:$0xf]
  %v136 = vld [vmem:[%s1 + $0x188] sm:$0xf]
  %v137 = vld [vmem:[%s1 + $0x18c] sm:$0xf]
  %v138 = vld [vmem:[%s1 + $0x190] sm:$0xf]
  %v139 = vld [vmem:[%s1 + $0x194] sm:$0xf]
  %v140 = vld [vmem:[%s1 + $0x198] sm:$0xf]
  %v141 = vld [vmem:[%s1 + $0x19c] sm:$0xf]
  %v142 = vld [vmem:[%s1 + $0x1a0] sm:$0xf]
  %v143 = vld [vmem:[%s1 + $0x1a4] sm:$0xf]
  %v144 = vld [vmem:[%s1 + $0x1a8] sm:$0xf]
  %v145 = vld [vmem:[%s1 + $0x1ac] sm:$0xf]
  %v146 = vld [vmem:[%s1 + $0x1b0] sm:$0xf]
  %v147 = vld [vmem:[%s1 + $0x1b4] sm:$0xf]
  %v148 = vld [vmem:[%s1 + $0x1b8] sm:$0xf]
  %v149 = vld [vmem:[%s1 + $0x1bc] sm:$0xf]
  %v150 = vld [vmem:[%s1 + $0x1c0] sm:$0xf]
  %v151 = vld [vmem:[%s1 + $0x1c4] sm:$0xf]
  %v152 = vld [vmem:[%s1 + $0x1c8] sm:$0xf]
  %v153 = vld [vmem:[%s1 + $0x1cc] sm:$0xf]
  %v154 = vld [vmem:[%s1 + $0x1d0] sm:$0xf]
  %v155 = vld [vmem:[%s1 + $0x1d4] sm:$0xf]
  %v156 = vld [vmem:[%s1 + $0x1d8] sm:$0xf]
  %v157 = vld [vmem:[%s1 + $0x1dc] sm:$0xf]
  %v158 = vld [vmem:[%s1 + $0x1e0] sm:$0xf]
  %v159 = vld [vmem:[%s1 + $0x1e4] sm:$0xf]
  %v160 = vld [vmem:[%s1 + $0x1e8] sm:$0xf]
  %v161 = vld [vmem:[%s1 + $0x1ec] sm:$0xf]
  %v162 = vld [vmem:[%s1 + $0x1f0] sm:$0xf]
  %v163 = vld [vmem:[%s1 + $0x1f4] sm:$0xf]
  %v164 = vld [vmem:[%s1 + $0x1f8] sm:$0xf]
  %v165 = vld [vmem:[%s1 + $0x1fc] sm:$0xf]
  %v166 = vld [vmem:[%s1 + $0x200] sm:$0xf]
  %v167 = vld [vmem:[%s1 + $0x204] sm:$0xf]
  %v168 = vld [vmem:[%s1 + $0x208] sm:$0xf]
  %v169 = vld [vmem:[%s1 + $0x20c] sm:$0xf]
  %v170 = vld [vmem:[%s1 + $0x210] sm:$0xf]
  %v171 = vld [vmem:[%s1 + $0x214] sm:$0xf]
  %v172 = vld [vmem:[%s1 + $0x218] sm:$0xf]
  %v173 = vld [vmem:[%s1 + $0x21c] sm:$0xf]
  %v174 = vld [vmem:[%s1 + $0x220] sm:$0xf]
  %v175 = vld [vmem:[%s1 + $0x224] sm:$0xf]
  %v176 = vld [vmem:[%s1 + $0x228] sm:$0xf]
  %v177 = vld [vmem:[%s1 + $0x22c] sm:$0xf]
  %v178 = vld [vmem:[%s1 + $0x230] sm:$0xf]
  %v179 = vld [vmem:[%s1 + $0x234] sm:$0xf]
  %v180 = vld [vmem:[%s1 + $0x238] sm:$0xf]
  %v181 = vld [vmem:[%s1 + $0x23c] sm:$0xf]
  %v202 = vunpack.c.l.b16 %v18
  %v203 = vunpack.c.h.b16 %v18
  %v204 = vunpack.c.l.b16 %v19
  %v205 = vunpack.c.h.b16 %v19
  %v206 = vunpack.c.l.b16 %v20
  %v207 = vunpack.c.h.b16 %v20
  %v208 = vunpack.c.l.b16 %v21
  %v209 = vunpack.c.h.b16 %v21
  %v210 = vunpack.c.l.b16 %v22
  %v211 = vunpack.c.l.b16 %v23
  %v212 = vunpack.c.h.b16 %v23
  %v213 = vunpack.c.l.b16 %v24
  %v214 = vunpack.c.h.b16 %v24
  %v215 = vunpack.c.l.b16 %v25
  %v216 = vunpack.c.h.b16 %v25
  %v217 = vunpack.c.l.b16 %v26
  %v218 = vunpack.c.h.b16 %v26
  %v219 = vunpack.c.l.b16 %v27
  %v220 = vunpack.c.l.b16 %v28
  %v221 = vunpack.c.h.b16 %v28
  %v222 = vunpack.c.l.b16 %v29
  %v223 = vunpack.c.h.b16 %v29
  %v224 = vunpack.c.l.b16 %v30
  %v225 = vunpack.c.h.b16 %v30
  %v226 = vunpack.c.l.b16 %v31
  %v227 = vunpack.c.h.b16 %v31
  %v228 = vunpack.c.l.b16 %v32
  %v229 = vunpack.c.l.b16 %v33
  %v230 = vunpack.c.h.b16 %v33
  %v231 = vunpack.c.l.b16 %v34
  %v232 = vunpack.c.h.b16 %v34
  %v233 = vunpack.c.l.b16 %v35
  %v234 = vunpack.c.h.b16 %v35
  %v235 = vunpack.c.l.b16 %v36
  %v236 = vunpack.c.h.b16 %v36
  %v237 = vunpack.c.l.b16 %v37
  %v238 = vpack.c.b16 %v211, %v202
  %v239 = vpack.c.b16 %v212, %v203
  %v240 = vpack.c.b16 %v213, %v204
  %v241 = vpack.c.b16 %v214, %v205
  %v242 = vpack.c.b16 %v215, %v206
  %v243 = vpack.c.b16 %v216, %v207
  %v244 = vpack.c.b16 %v217, %v208
  %v245 = vpack.c.b16 %v218, %v209
  %v246 = vpack.c.b16 %v219, %v210
  %v247 = vpack.c.b16 %v229, %v220
  %v248 = vpack.c.b16 %v230, %v221
  %v249 = vpack.c.b16 %v231, %v222
  %v250 = vpack.c.b16 %v232, %v223
  %v251 = vpack.c.b16 %v233, %v224
  %v252 = vpack.c.b16 %v234, %v225
  %v253 = vpack.c.b16 %v235, %v226
  %v254 = vpack.c.b16 %v236, %v227
  %v255 = vpack.c.b16 %v237, %v228
  %v418 = vunpack.c.l.b16 %v38
  %v419 = vunpack.c.l.b16 %v39
  %v420 = vunpack.c.l.b16 %v40
  %v421 = vunpack.c.l.b16 %v41
  %v422 = vunpack.c.l.b16 %v42
  %v423 = vunpack.c.l.b16 %v43
  %v424 = vunpack.c.l.b16 %v44
  %v425 = vunpack.c.l.b16 %v45
  %v426 = vunpack.c.l.b16 %v46
  %v427 = vunpack.c.l.b16 %v47
  %v428 = vunpack.c.l.b16 %v48
  %v429 = vunpack.c.l.b16 %v49
  %v430 = vunpack.c.l.b16 %v50
  %v431 = vunpack.c.l.b16 %v51
  %v432 = vunpack.c.l.b16 %v52
  %v433 = vunpack.c.l.b16 %v53
  %v434 = vunpack.c.l.b16 %v54
  %v435 = vunpack.c.l.b16 %v55
  %v436 = vunpack.c.l.b16 %v56
  %v437 = vunpack.c.l.b16 %v57
  %v438 = vunpack.c.l.b16 %v58
  %v439 = vunpack.c.l.b16 %v59
  %v440 = vunpack.c.l.b16 %v60
  %v441 = vunpack.c.l.b16 %v61
  %v442 = vunpack.c.l.b16 %v62
  %v443 = vunpack.c.l.b16 %v63
  %v444 = vunpack.c.l.b16 %v64
  %v445 = vunpack.c.l.b16 %v65
  %v446 = vunpack.c.l.b16 %v66
  %v447 = vunpack.c.l.b16 %v67
  %v448 = vunpack.c.l.b16 %v68
  %v449 = vunpack.c.l.b16 %v69
  %v450 = vunpack.c.l.b16 %v70
  %v451 = vunpack.c.l.b16 %v71
  %v452 = vunpack.c.l.b16 %v72
  %v453 = vunpack.c.l.b16 %v73
  %v454 = vunpack.c.l.b16 %v74
  %v455 = vunpack.c.l.b16 %v75
  %v456 = vunpack.c.l.b16 %v76
  %v457 = vunpack.c.l.b16 %v77
  %v458 = vunpack.c.l.b16 %v78
  %v459 = vunpack.c.l.b16 %v79
  %v460 = vunpack.c.l.b16 %v80
  %v461 = vunpack.c.l.b16 %v81
  %v462 = vunpack.c.l.b16 %v82
  %v463 = vunpack.c.l.b16 %v83
  %v464 = vunpack.c.l.b16 %v84
  %v465 = vunpack.c.l.b16 %v85
  %v466 = vunpack.c.l.b16 %v86
  %v467 = vunpack.c.l.b16 %v87
  %v468 = vunpack.c.l.b16 %v88
  %v469 = vunpack.c.l.b16 %v89
  %v470 = vunpack.c.l.b16 %v90
  %v471 = vunpack.c.l.b16 %v91
  %v472 = vunpack.c.l.b16 %v92
  %v473 = vunpack.c.l.b16 %v93
  %v474 = vunpack.c.l.b16 %v94
  %v475 = vunpack.c.l.b16 %v95
  %v476 = vunpack.c.l.b16 %v96
  %v477 = vunpack.c.l.b16 %v97
  %v478 = vunpack.c.l.b16 %v98
  %v479 = vunpack.c.l.b16 %v99
  %v480 = vunpack.c.l.b16 %v100
  %v481 = vunpack.c.l.b16 %v101
  %v482 = vunpack.c.l.b16 %v102
  %v483 = vunpack.c.l.b16 %v103
  %v484 = vunpack.c.l.b16 %v104
  %v485 = vunpack.c.l.b16 %v105
  %v486 = vunpack.c.l.b16 %v106
  %v487 = vunpack.c.l.b16 %v107
  %v488 = vunpack.c.l.b16 %v108
  %v489 = vunpack.c.l.b16 %v109
  %v490 = vunpack.c.l.b16 %v110
  %v491 = vunpack.c.l.b16 %v111
  %v492 = vunpack.c.l.b16 %v112
  %v493 = vunpack.c.l.b16 %v113
  %v494 = vunpack.c.l.b16 %v114
  %v495 = vunpack.c.l.b16 %v115
  %v496 = vunpack.c.l.b16 %v116
  %v497 = vunpack.c.l.b16 %v117
  %v498 = vunpack.c.l.b16 %v118
  %v499 = vunpack.c.l.b16 %v119
  %v500 = vunpack.c.l.b16 %v120
  %v501 = vunpack.c.l.b16 %v121
  %v502 = vunpack.c.l.b16 %v122
  %v503 = vunpack.c.l.b16 %v123
  %v504 = vunpack.c.l.b16 %v124
  %v505 = vunpack.c.l.b16 %v125
  %v506 = vunpack.c.l.b16 %v126
  %v507 = vunpack.c.l.b16 %v127
  %v508 = vunpack.c.l.b16 %v128
  %v509 = vunpack.c.l.b16 %v129
  %v510 = vunpack.c.l.b16 %v130
  %v511 = vunpack.c.l.b16 %v131
  %v512 = vunpack.c.l.b16 %v132
  %v513 = vunpack.c.l.b16 %v133
  %v514 = vunpack.c.l.b16 %v134
  %v515 = vunpack.c.l.b16 %v135
  %v516 = vunpack.c.l.b16 %v136
  %v517 = vunpack.c.l.b16 %v137
  %v518 = vunpack.c.l.b16 %v138
  %v519 = vunpack.c.l.b16 %v139
  %v520 = vunpack.c.l.b16 %v140
  %v521 = vunpack.c.l.b16 %v141
  %v522 = vunpack.c.l.b16 %v142
  %v523 = vunpack.c.l.b16 %v143
  %v524 = vunpack.c.l.b16 %v144
  %v525 = vunpack.c.l.b16 %v145
  %v526 = vunpack.c.l.b16 %v146
  %v527 = vunpack.c.l.b16 %v147
  %v528 = vunpack.c.l.b16 %v148
  %v529 = vunpack.c.l.b16 %v149
  %v530 = vunpack.c.l.b16 %v150
  %v531 = vunpack.c.l.b16 %v151
  %v532 = vunpack.c.l.b16 %v152
  %v533 = vunpack.c.l.b16 %v153
  %v534 = vunpack.c.l.b16 %v154
  %v535 = vunpack.c.l.b16 %v155
  %v536 = vunpack.c.l.b16 %v156
  %v537 = vunpack.c.l.b16 %v157
  %v538 = vunpack.c.l.b16 %v158
  %v539 = vunpack.c.l.b16 %v159
  %v540 = vunpack.c.l.b16 %v160
  %v541 = vunpack.c.l.b16 %v161
  %v542 = vunpack.c.l.b16 %v162
  %v543 = vunpack.c.l.b16 %v163
  %v544 = vunpack.c.l.b16 %v164
  %v545 = vunpack.c.l.b16 %v165
  %v546 = vunpack.c.l.b16 %v166
  %v547 = vunpack.c.l.b16 %v167
  %v548 = vunpack.c.l.b16 %v168
  %v549 = vunpack.c.l.b16 %v169
  %v550 = vunpack.c.l.b16 %v170
  %v551 = vunpack.c.l.b16 %v171
  %v552 = vunpack.c.l.b16 %v172
  %v553 = vunpack.c.l.b16 %v173
  %v554 = vunpack.c.l.b16 %v174
  %v555 = vunpack.c.l.b16 %v175
  %v556 = vunpack.c.l.b16 %v176
  %v557 = vunpack.c.l.b16 %v177
  %v558 = vunpack.c.l.b16 %v178
  %v559 = vunpack.c.l.b16 %v179
  %v560 = vunpack.c.l.b16 %v180
  %v561 = vunpack.c.l.b16 %v181
  %v562 = vpack.c.b16 %v419, %v418
  %v563 = vpack.c.b16 %v421, %v420
  %v564 = vpack.c.b16 %v423, %v422
  %v565 = vpack.c.b16 %v425, %v424
  %v566 = vpack.c.b16 %v427, %v426
  %v567 = vpack.c.b16 %v429, %v428
  %v568 = vpack.c.b16 %v431, %v430
  %v569 = vpack.c.b16 %v433, %v432
  %v570 = vpack.c.b16 %v435, %v434
  %v571 = vpack.c.b16 %v437, %v436
  %v572 = vpack.c.b16 %v439, %v438
  %v573 = vpack.c.b16 %v441, %v440
  %v574 = vpack.c.b16 %v443, %v442
  %v575 = vpack.c.b16 %v445, %v444
  %v576 = vpack.c.b16 %v447, %v446
  %v577 = vpack.c.b16 %v449, %v448
  %v578 = vpack.c.b16 %v451, %v450
  %v579 = vpack.c.b16 %v453, %v452
  %v580 = vpack.c.b16 %v455, %v454
  %v581 = vpack.c.b16 %v457, %v456
  %v582 = vpack.c.b16 %v459, %v458
  %v583 = vpack.c.b16 %v461, %v460
  %v584 = vpack.c.b16 %v463, %v462
  %v585 = vpack.c.b16 %v465, %v464
  %v586 = vpack.c.b16 %v467, %v466
  %v587 = vpack.c.b16 %v469, %v468
  %v588 = vpack.c.b16 %v471, %v470
  %v589 = vpack.c.b16 %v473, %v472
  %v590 = vpack.c.b16 %v475, %v474
  %v591 = vpack.c.b16 %v477, %v476
  %v592 = vpack.c.b16 %v479, %v478
  %v593 = vpack.c.b16 %v481, %v480
  %v594 = vpack.c.b16 %v483, %v482
  %v595 = vpack.c.b16 %v485, %v484
  %v596 = vpack.c.b16 %v487, %v486
  %v597 = vpack.c.b16 %v489, %v488
  %v598 = vpack.c.b16 %v491, %v490
  %v599 = vpack.c.b16 %v493, %v492
  %v600 = vpack.c.b16 %v495, %v494
  %v601 = vpack.c.b16 %v497, %v496
  %v602 = vpack.c.b16 %v499, %v498
  %v603 = vpack.c.b16 %v501, %v500
  %v604 = vpack.c.b16 %v503, %v502
  %v605 = vpack.c.b16 %v505, %v504
  %v606 = vpack.c.b16 %v507, %v506
  %v607 = vpack.c.b16 %v509, %v508
  %v608 = vpack.c.b16 %v511, %v510
  %v609 = vpack.c.b16 %v513, %v512
  %v610 = vpack.c.b16 %v515, %v514
  %v611 = vpack.c.b16 %v517, %v516
  %v612 = vpack.c.b16 %v519, %v518
  %v613 = vpack.c.b16 %v521, %v520
  %v614 = vpack.c.b16 %v523, %v522
  %v615 = vpack.c.b16 %v525, %v524
  %v616 = vpack.c.b16 %v527, %v526
  %v617 = vpack.c.b16 %v529, %v528
  %v618 = vpack.c.b16 %v531, %v530
  %v619 = vpack.c.b16 %v533, %v532
  %v620 = vpack.c.b16 %v535, %v534
  %v621 = vpack.c.b16 %v537, %v536
  %v622 = vpack.c.b16 %v539, %v538
  %v623 = vpack.c.b16 %v541, %v540
  %v624 = vpack.c.b16 %v543, %v542
  %v625 = vpack.c.b16 %v545, %v544
  %v626 = vpack.c.b16 %v547, %v546
  %v627 = vpack.c.b16 %v549, %v548
  %v628 = vpack.c.b16 %v551, %v550
  %v629 = vpack.c.b16 %v553, %v552
  %v630 = vpack.c.b16 %v555, %v554
  %v631 = vpack.c.b16 %v557, %v556
  %v632 = vpack.c.b16 %v559, %v558
  %v633 = vpack.c.b16 %v561, %v560
  %706 = vmatprep.subr.bf16.mxu0 0
  %707 = vmatpush1.bf16.msra.mxu0 %v562
  %708 = vmatprep.subr.bf16.mxu0 0
  %709 = vmatpush1.bf16.msra.mxu0 %v563
  %710 = vmatprep.subr.bf16.mxu0 0
  %711 = vmatpush1.bf16.msra.mxu0 %v564
  %712 = vmatprep.subr.bf16.mxu0 0
  %713 = vmatpush1.bf16.msra.mxu0 %v565
  %714 = vmatprep.subr.bf16.mxu0 0
  %715 = vmatpush1.bf16.msra.mxu0 %v566
  %716 = vmatprep.subr.bf16.mxu0 0
  %717 = vmatpush1.bf16.msra.mxu0 %v567
  %718 = vmatprep.subr.bf16.mxu0 0
  %719 = vmatpush1.bf16.msra.mxu0 %v568
  %720 = vmatprep.subr.bf16.mxu0 0
  %721 = vmatpush1.bf16.msra.mxu0 %v569
  %722 = vmatprep.subr.bf16.mxu0 0
  %723 = vmatpush1.bf16.msra.mxu0 %v570
  %724 = vmatprep.subr.bf16.mxu0 0
  %725 = vmatpush1.bf16.msra.mxu0 %v571
  %726 = vmatprep.subr.bf16.mxu0 0
  %727 = vmatpush1.bf16.msra.mxu0 %v572
  %728 = vmatprep.subr.bf16.mxu0 0
  %729 = vmatpush1.bf16.msra.mxu0 %v573
  %730 = vmatprep.subr.bf16.mxu0 0
  %731 = vmatpush1.bf16.msra.mxu0 %v574
  %732 = vmatprep.subr.bf16.mxu0 0
  %733 = vmatpush1.bf16.msra.mxu0 %v575
  %734 = vmatprep.subr.bf16.mxu0 0
  %735 = vmatpush1.bf16.msra.mxu0 %v576
  %736 = vmatprep.subr.bf16.mxu0 0
  %737 = vmatpush1.bf16.msra.mxu0 %v577
  %738 = vmatprep.mubr.bf16.mxu0 %v239
  %739 = vmatmul.mubr.bf16.gmra.mrb[0].mxu0 %v238
  %v740 = vpop.f32.mrb[0].mxu0
  %v741 = vadd.f32 0.0, %v740
  %v742 = vpop.f32.mrb[0].mxu0
  %v743 = vpop.f32.mrb[0].mxu0
  %v744 = vadd.f32 0.0, %v743
  %v745 = vpop.f32.mrb[0].mxu0
  %746 = vmatprep.mubr.bf16.mxu0 %v248
  %747 = vmatmul.mubr.bf16.gmra.mrb[0].mxu0 %v247
  %v748 = vpop.f32.mrb[0].mxu0
  %v749 = vadd.f32 0.0, %v748
  %v750 = vpop.f32.mrb[0].mxu0
  %v751 = vpop.f32.mrb[0].mxu0
  %v752 = vadd.f32 0.0, %v751
  %v753 = vpop.f32.mrb[0].mxu0
  %754 = vdwg.mxu0
  %755 = vmatprep.subr.bf16.mxu0 0
  %756 = vmatpush1.bf16.msra.mxu0 %v578
  %757 = vmatprep.subr.bf16.mxu0 0
  %758 = vmatpush1.bf16.msra.mxu0 %v579
  %759 = vmatprep.subr.bf16.mxu0 0
  %760 = vmatpush1.bf16.msra.mxu0 %v580
  %761 = vmatprep.subr.bf16.mxu0 0
  %762 = vmatpush1.bf16.msra.mxu0 %v581
  %763 = vmatprep.subr.bf16.mxu0 0
  %764 = vmatpush1.bf16.msra.mxu0 %v582
  %765 = vmatprep.subr.bf16.mxu0 0
  %766 = vmatpush1.bf16.msra.mxu0 %v583
  %767 = vmatprep.subr.bf16.mxu0 0
  %768 = vmatpush1.bf16.msra.mxu0 %v584
  %769 = vmatprep.subr.bf16.mxu0 0
  %770 = vmatpush1.bf16.msra.mxu0 %v585
  %771 = vmatprep.subr.bf16.mxu0 0
  %772 = vmatpush1.bf16.msra.mxu0 %v586
  %773 = vmatprep.subr.bf16.mxu0 0
  %774 = vmatpush1.bf16.msra.mxu0 %v587
  %775 = vmatprep.subr.bf16.mxu0 0
  %776 = vmatpush1.bf16.msra.mxu0 %v588
  %777 = vmatprep.subr.bf16.mxu0 0
  %778 = vmatpush1.bf16.msra.mxu0 %v589
  %779 = vmatprep.subr.bf16.mxu0 0
  %780 = vmatpush1.bf16.msra.mxu0 %v590
  %781 = vmatprep.subr.bf16.mxu0 0
  %782 = vmatpush1.bf16.msra.mxu0 %v591
  %783 = vmatprep.subr.bf16.mxu0 0
  %784 = vmatpush1.bf16.msra.mxu0 %v592
  %785 = vmatprep.subr.bf16.mxu0 0
  %786 = vmatpush1.bf16.msra.mxu0 %v593
  %787 = vmatprep.mubr.bf16.mxu0 %v241
  %788 = vmatmul.mubr.bf16.gmra.mrb[0].mxu0 %v240
  %v789 = vpop.f32.mrb[0].mxu0
  %v790 = vadd.f32 %v741, %v789
  %v791 = vpop.f32.mrb[0].mxu0
  %v792 = vpop.f32.mrb[0].mxu0
  %v793 = vadd.f32 %v744, %v792
  %v794 = vpop.f32.mrb[0].mxu0
  %795 = vmatprep.mubr.bf16.mxu0 %v250
  %796 = vmatmul.mubr.bf16.gmra.mrb[0].mxu0 %v249
  %v797 = vpop.f32.mrb[0].mxu0
  %v798 = vadd.f32 %v749, %v797
  %v799 = vpop.f32.mrb[0].mxu0
  %v800 = vpop.f32.mrb[0].mxu0
  %v801 = vadd.f32 %v752, %v800
  %v802 = vpop.f32.mrb[0].mxu0
  %803 = vdwg.mxu0
  %804 = vmatprep.subr.bf16.mxu0 0
  %805 = vmatpush1.bf16.msra.mxu0 %v594
  %806 = vmatprep.subr.bf16.mxu0 0
  %807 = vmatpush1.bf16.msra.mxu0 %v595
  %808 = vmatprep.subr.bf16.mxu0 0
  %809 = vmatpush1.bf16.msra.mxu0 %v596
  %810 = vmatprep.subr.bf16.mxu0 0
  %811 = vmatpush1.bf16.msra.mxu0 %v597
  %812 = vmatprep.subr.bf16.mxu0 0
  %813 = vmatpush1.bf16.msra.mxu0 %v598
  %814 = vmatprep.subr.bf16.mxu0 0
  %815 = vmatpush1.bf16.msra.mxu0 %v599
  %816 = vmatprep.subr.bf16.mxu0 0
  %817 = vmatpush1.bf16.msra.mxu0 %v600
  %818 = vmatprep.subr.bf16.mxu0 0
  %819 = vmatpush1.bf16.msra.mxu0 %v601
  %820 = vmatprep.subr.bf16.mxu0 0
  %821 = vmatpush1.bf16.msra.mxu0 %v602
  %822 = vmatprep.subr.bf16.mxu0 0
  %823 = vmatpush1.bf16.msra.mxu0 %v603
  %824 = vmatprep.subr.bf16.mxu0 0
  %825 = vmatpush1.bf16.msra.mxu0 %v604
  %826 = vmatprep.subr.bf16.mxu0 0
  %827 = vmatpush1.bf16.msra.mxu0 %v605
  %828 = vmatprep.subr.bf16.mxu0 0
  %829 = vmatpush1.bf16.msra.mxu0 %v606
  %830 = vmatprep.subr.bf16.mxu0 0
  %831 = vmatpush1.bf16.msra.mxu0 %v607
  %832 = vmatprep.subr.bf16.mxu0 0
  %833 = vmatpush1.bf16.msra.mxu0 %v608
  %834 = vmatprep.subr.bf16.mxu0 0
  %835 = vmatpush1.bf16.msra.mxu0 %v609
  %836 = vmatprep.mubr.bf16.mxu0 %v243
  %837 = vmatmul.mubr.bf16.gmra.mrb[0].mxu0 %v242
  %v838 = vpop.f32.mrb[0].mxu0
  %v839 = vadd.f32 %v790, %v838
  %v840 = vpop.f32.mrb[0].mxu0
  %v841 = vpop.f32.mrb[0].mxu0
  %v842 = vadd.f32 %v793, %v841
  %v843 = vpop.f32.mrb[0].mxu0
  %844 = vmatprep.mubr.bf16.mxu0 %v252
  %845 = vmatmul.mubr.bf16.gmra.mrb[0].mxu0 %v251
  %v846 = vpop.f32.mrb[0].mxu0
  %v847 = vadd.f32 %v798, %v846
  %v848 = vpop.f32.mrb[0].mxu0
  %v849 = vpop.f32.mrb[0].mxu0
  %v850 = vadd.f32 %v801, %v849
  %v851 = vpop.f32.mrb[0].mxu0
  %852 = vdwg.mxu0
  %853 = vmatprep.subr.bf16.mxu0 0
  %854 = vmatpush1.bf16.msra.mxu0 %v610
  %855 = vmatprep.subr.bf16.mxu0 0
  %856 = vmatpush1.bf16.msra.mxu0 %v611
  %857 = vmatprep.subr.bf16.mxu0 0
  %858 = vmatpush1.bf16.msra.mxu0 %v612
  %859 = vmatprep.subr.bf16.mxu0 0
  %860 = vmatpush1.bf16.msra.mxu0 %v613
  %861 = vmatprep.subr.bf16.mxu0 0
  %862 = vmatpush1.bf16.msra.mxu0 %v614
  %863 = vmatprep.subr.bf16.mxu0 0
  %864 = vmatpush1.bf16.msra.mxu0 %v615
  %865 = vmatprep.subr.bf16.mxu0 0
  %866 = vmatpush1.bf16.msra.mxu0 %v616
  %867 = vmatprep.subr.bf16.mxu0 0
  %868 = vmatpush1.bf16.msra.mxu0 %v617
  %869 = vmatprep.subr.bf16.mxu0 0
  %870 = vmatpush1.bf16.msra.mxu0 %v618
  %871 = vmatprep.subr.bf16.mxu0 0
  %872 = vmatpush1.bf16.msra.mxu0 %v619
  %873 = vmatprep.subr.bf16.mxu0 0
  %874 = vmatpush1.bf16.msra.mxu0 %v620
  %875 = vmatprep.subr.bf16.mxu0 0
  %876 = vmatpush1.bf16.msra.mxu0 %v621
  %877 = vmatprep.subr.bf16.mxu0 0
  %878 = vmatpush1.bf16.msra.mxu0 %v622
  %879 = vmatprep.subr.bf16.mxu0 0
  %880 = vmatpush1.bf16.msra.mxu0 %v623
  %881 = vmatprep.subr.bf16.mxu0 0
  %882 = vmatpush1.bf16.msra.mxu0 %v624
  %883 = vmatprep.subr.bf16.mxu0 0
  %884 = vmatpush1.bf16.msra.mxu0 %v625
  %885 = vmatprep.mubr.bf16.mxu0 %v245
  %886 = vmatmul.mubr.bf16.gmra.mrb[0].mxu0 %v244
  %v887 = vpop.f32.mrb[0].mxu0
  %v888 = vadd.f32 %v839, %v887
  %v889 = vpop.f32.mrb[0].mxu0
  %v890 = vpop.f32.mrb[0].mxu0
  %v891 = vadd.f32 %v842, %v890
  %v892 = vpop.f32.mrb[0].mxu0
  %893 = vmatprep.mubr.bf16.mxu0 %v254
  %894 = vmatmul.mubr.bf16.gmra.mrb[0].mxu0 %v253
  %v895 = vpop.f32.mrb[0].mxu0
  %v896 = vadd.f32 %v847, %v895
  %v897 = vpop.f32.mrb[0].mxu0
  %v898 = vpop.f32.mrb[0].mxu0
  %v899 = vadd.f32 %v850, %v898
  %v900 = vpop.f32.mrb[0].mxu0
  %901 = vdwg.mxu0
  %902 = vmatprep.subr.bf16.mxu0 0
  %903 = vmatpush1.bf16.msra.mxu0 %v626
  %904 = vmatprep.subr.bf16.mxu0 0
  %905 = vmatpush1.bf16.msra.mxu0 %v627
  %906 = vmatprep.subr.bf16.mxu0 0
  %907 = vmatpush1.bf16.msra.mxu0 %v628
  %908 = vmatprep.subr.bf16.mxu0 0
  %909 = vmatpush1.bf16.msra.mxu0 %v629
  %910 = vmatprep.subr.bf16.mxu0 0
  %911 = vmatpush1.bf16.msra.mxu0 %v630
  %912 = vmatprep.subr.bf16.mxu0 0
  %913 = vmatpush1.bf16.msra.mxu0 %v631
  %914 = vmatprep.subr.bf16.mxu0 0
  %915 = vmatpush1.bf16.msra.mxu0 %v632
  %916 = vmatprep.subr.bf16.mxu0 0
  %917 = vmatpush1.bf16.msra.mxu0 %v633
  %918 = vmatprep.subr.bf16.mxu0 0
  %919 = vmatpush1.bf16.msra.mxu0 0
  %920 = vmatprep.subr.bf16.mxu0 0
  %921 = vmatpush1.bf16.msra.mxu0 0
  %922 = vmatprep.subr.bf16.mxu0 0
  %923 = vmatpush1.bf16.msra.mxu0 0
  %924 = vmatprep.subr.bf16.mxu0 0
  %925 = vmatpush1.bf16.msra.mxu0 0
  %926 = vmatprep.subr.bf16.mxu0 0
  %927 = vmatpush1.bf16.msra.mxu0 0
  %928 = vmatprep.subr.bf16.mxu0 0
  %929 = vmatpush1.bf16.msra.mxu0 0
  %930 = vmatprep.subr.bf16.mxu0 0
  %931 = vmatpush1.bf16.msra.mxu0 0
  %932 = vmatprep.subr.bf16.mxu0 0
  %933 = vmatpush1.bf16.msra.mxu0 0
  %934 = vmatprep.mubr.bf16.mxu0 0
  %935 = vmatmul.mubr.bf16.gmra.mrb[0].mxu0 %v246
  %v936 = vpop.f32.mrb[0].mxu0
  %v937 = vadd.f32 %v888, %v936
  %v938 = vpop.f32.mrb[0].mxu0
  %v939 = vpop.f32.mrb[0].mxu0
  %v940 = vadd.f32 %v891, %v939
  %v941 = vpop.f32.mrb[0].mxu0
  %942 = vmatprep.mubr.bf16.mxu0 0
  %943 = vmatmul.mubr.bf16.gmra.mrb[0].mxu0 %v255
  %v944 = vpop.f32.mrb[0].mxu0
  %v945 = vadd.f32 %v896, %v944
  %v946 = vpop.f32.mrb[0].mxu0
  %v947 = vpop.f32.mrb[0].mxu0
  %v948 = vadd.f32 %v899, %v947
  %v949 = vpop.f32.mrb[0].mxu0
  %950 = vdwg.mxu0
  %v951 = vld [vmem:[%s2] sm:$0x1]
  %v953 = vlaneseq
  %v954 = vshrl.u32 %v953, 7
  %v955 = vsub.s32 0, %v954
  %v956 = vrot.slane %v951, %v955
  %v958 = vmul.f32 %v937, %v956
  %v959 = vmul.f32 %v940, %v956
  %v960 = vmul.f32 %v945, %v956
  %v961 = vmul.f32 %v948, %v956
  %v962 = vld [vmem:[%s3] sm:$0x1]
  %v964 = vlaneseq
  %v965 = vshrl.u32 %v964, 7
  %v966 = vsub.s32 0, %v965
  %v967 = vrot.slane %v962, %v966
  %v969 = vadd.f32 %v958, %v967
  %v970 = vadd.f32 %v959, %v967
  %v971 = vadd.f32 %v960, %v967
  %v972 = vadd.f32 %v961, %v967
  %v973 = vmax.f32 %v969, 0.0
  %v974 = vmax.f32 %v970, 0.0
  %v975 = vmax.f32 %v971, 0.0
  %v976 = vmax.f32 %v972, 0.0
  %v977 = vpack.c.bf16 %v974, %v973
  %v978 = vpack.c.bf16 %v976, %v975
  %v981 = vunpack.c.l.b16 %v977
  %v982 = vunpack.c.h.b16 %v977
  %v983 = vunpack.c.l.b16 %v978
  %v984 = vunpack.c.h.b16 %v978
  %v985 = vpack.c.b16 %v981, %v981
  %v986 = vpack.c.b16 %v982, %v982
  %v987 = vpack.c.b16 %v983, %v983
  %v988 = vpack.c.b16 %v984, %v984
  %993 = vst [vmem:[%s4] sm:$0xf] %v985
  %994 = vst [vmem:[%s4 + $0x4] sm:$0xf] %v986
  %995 = vst [vmem:[%s4 + $0x8] sm:$0xf] %v987
  %996 = vst [vmem:[%s4 + $0xc] sm:$0xf] %v988
  // Predicated region
  $region18: #{_lambda_.14} parent=0 // pred_check
    _
  $region19: #{_lambda_.14} parent=0 // pred_check_branch
    %998 = sbr.rel (0) target = $region21
  $region20: #{_lambda_.14} parent=0 // pred_region
    _
  $region21: #{_lambda_.14} parent=0 // pred_fallthru
    _
  // Predicated region
  $region22: #{_lambda_.14} parent=0 // pred_check
    _
  $region23: #{_lambda_.14} parent=0 // pred_check_branch
    %1000 = sbr.rel (0) target = $region25
  $region24: #{_lambda_.14} parent=0 // pred_region
    _
  $region25: #{_lambda_.14} parent=0 // pred_fallthru
    _

// kernel: _lambda_.15
$region0: #{_lambda_.15}
  #allocation0 [shape = 'u32[]', space=smem, size = 0x4, offset = 0x4, fixed_abs, tag = 'smem constant byte address 0x4 - core index']
  #allocation1 [shape = 'u32[144,128]{1,0:T(1,128)}', space=vmem, size = 0x12000, scoped, tag = 'internal scratch']
  %s0 = inlined_call_operand.vmem [shape: bf16[32,1152], index: 0, kind: input, shape index: {}]
  %s1 = inlined_call_operand.vmem [shape: bf16[1152,384], index: 1, kind: input, shape index: {}]
  %s2 = inlined_call_operand.vmem [shape: f32[1,384], index: 2, kind: input, shape index: {}]
  %s3 = inlined_call_operand.vmem [shape: f32[1,384], index: 3, kind: input, shape index: {}]
  %s4 = inlined_call_operand.vmem [shape: bf16[32,128], index: 4, kind: output, shape index: {}]
  %s5 = sld [smem:[#allocation0]]
  $region26: #{_lambda_.15} parent=0
    _
  %s7 = ssub.s32 1, %s5
  %s8 = scalar_select 0, %s7, %s5
  // Predicated region
  $region2: #{_lambda_.15} parent=0 // pred_check
    _
  $region3: #{_lambda_.15} parent=0 // pred_check_branch
    %10 = sbr.rel (0) target = $region5
  $region4: #{_lambda_.15} parent=0 // pred_region
    _
  $region5: #{_lambda_.15} parent=0 // pred_fallthru
    _
  // Predicated region
  $region6: #{_lambda_.15} parent=0 // pred_check
    _
  $region7: #{_lambda_.15} parent=0 // pred_check_branch
    %12 = sbr.rel (0) target = $region9
  $region8: #{_lambda_.15} parent=0 // pred_region
    _
  $region9: #{_lambda_.15} parent=0 // pred_fallthru
    _
  // Predicated region
  $region10: #{_lambda_.15} parent=0 // pred_check
    _
  $region11: #{_lambda_.15} parent=0 // pred_check_branch
    %14 = sbr.rel (0) target = $region13
  $region12: #{_lambda_.15} parent=0 // pred_region
    _
  $region13: #{_lambda_.15} parent=0 // pred_fallthru
    _
  // Predicated region
  $region14: #{_lambda_.15} parent=0 // pred_check
    _
  $region15: #{_lambda_.15} parent=0 // pred_check_branch
    %16 = sbr.rel (0) target = $region17
  $region16: #{_lambda_.15} parent=0 // pred_region
    _
  $region17: #{_lambda_.15} parent=0 // pred_fallthru
    _
  %v18 = vld [vmem:[%s0] sm:$0xff]
  %v19 = vld [vmem:[%s0 + $0x8] sm:$0xff]
  %v20 = vld [vmem:[%s0 + $0x10] sm:$0xff]
  %v21 = vld [vmem:[%s0 + $0x18] sm:$0xff]
  %v22 = vld [vmem:[%s0 + $0x20] sm:$0xf]
  %v23 = vld [vmem:[%s0 + $0x24] sm:$0xff]
  %v24 = vld [vmem:[%s0 + $0x2c] sm:$0xff]
  %v25 = vld [vmem:[%s0 + $0x34] sm:$0xff]
  %v26 = vld [vmem:[%s0 + $0x3c] sm:$0xff]
  %v27 = vld [vmem:[%s0 + $0x44] sm:$0xf]
  %v28 = vld [vmem:[%s0 + $0x48] sm:$0xff]
  %v29 = vld [vmem:[%s0 + $0x50] sm:$0xff]
  %v30 = vld [vmem:[%s0 + $0x58] sm:$0xff]
  %v31 = vld [vmem:[%s0 + $0x60] sm:$0xff]
  %v32 = vld [vmem:[%s0 + $0x68] sm:$0xf]
  %v33 = vld [vmem:[%s0 + $0x6c] sm:$0xff]
  %v34 = vld [vmem:[%s0 + $0x74] sm:$0xff]
  %v35 = vld [vmem:[%s0 + $0x7c] sm:$0xff]
  %v36 = vld [vmem:[%s0 + $0x84] sm:$0xff]
  %v37 = vld [vmem:[%s0 + $0x8c] sm:$0xf]
  %v38 = vld [vmem:[%s1] sm:$0xff]
  %v39 = vld [vmem:[%s1 + $0x8] sm:$0xf]
  %v40 = vld [vmem:[%s1 + $0xc] sm:$0xff]
  %v41 = vld [vmem:[%s1 + $0x14] sm:$0xf]
  %v42 = vld [vmem:[%s1 + $0x18] sm:$0xff]
  %v43 = vld [vmem:[%s1 + $0x20] sm:$0xf]
  %v44 = vld [vmem:[%s1 + $0x24] sm:$0xff]
  %v45 = vld [vmem:[%s1 + $0x2c] sm:$0xf]
  %v46 = vld [vmem:[%s1 + $0x30] sm:$0xff]
  %v47 = vld [vmem:[%s1 + $0x38] sm:$0xf]
  %v48 = vld [vmem:[%s1 + $0x3c] sm:$0xff]
  %v49 = vld [vmem:[%s1 + $0x44] sm:$0xf]
  %v50 = vld [vmem:[%s1 + $0x48] sm:$0xff]
  %v51 = vld [vmem:[%s1 + $0x50] sm:$0xf]
  %v52 = vld [vmem:[%s1 + $0x54] sm:$0xff]
  %v53 = vld [vmem:[%s1 + $0x5c] sm:$0xf]
  %v54 = vld [vmem:[%s1 + $0x60] sm:$0xff]
  %v55 = vld [vmem:[%s1 + $0x68] sm:$0xf]
  %v56 = vld [vmem:[%s1 + $0x6c] sm:$0xff]
  %v57 = vld [vmem:[%s1 + $0x74] sm:$0xf]
  %v58 = vld [vmem:[%s1 + $0x78] sm:$0xff]
  %v59 = vld [vmem:[%s1 + $0x80] sm:$0xf]
  %v60 = vld [vmem:[%s1 + $0x84] sm:$0xff]
  %v61 = vld [vmem:[%s1 + $0x8c] sm:$0xf]
  %v62 = vld [vmem:[%s1 + $0x90] sm:$0xff]
  %v63 = vld [vmem:[%s1 + $0x98] sm:$0xf]
  %v64 = vld [vmem:[%s1 + $0x9c] sm:$0xff]
  %v65 = vld [vmem:[%s1 + $0xa4] sm:$0xf]
  %v66 = vld [vmem:[%s1 + $0xa8] sm:$0xff]
  %v67 = vld [vmem:[%s1 + $0xb0] sm:$0xf]
  %v68 = vld [vmem:[%s1 + $0xb4] sm:$0xff]
  %v69 = vld [vmem:[%s1 + $0xbc] sm:$0xf]
  %v70 = vld [vmem:[%s1 + $0xc0] sm:$0xff]
  %v71 = vld [vmem:[%s1 + $0xc8] sm:$0xf]
  %v72 = vld [vmem:[%s1 + $0xcc] sm:$0xff]
  %v73 = vld [vmem:[%s1 + $0xd4] sm:$0xf]
  %v74 = vld [vmem:[%s1 + $0xd8] sm:$0xff]
  %v75 = vld [vmem:[%s1 + $0xe0] sm:$0xf]
  %v76 = vld [vmem:[%s1 + $0xe4] sm:$0xff]
  %v77 = vld [vmem:[%s1 + $0xec] sm:$0xf]
  %v78 = vld [vmem:[%s1 + $0xf0] sm:$0xff]
  %v79 = vld [vmem:[%s1 + $0xf8] sm:$0xf]
  %v80 = vld [vmem:[%s1 + $0xfc] sm:$0xff]
  %v81 = vld [vmem:[%s1 + $0x104] sm:$0xf]
  %v82 = vld [vmem:[%s1 + $0x108] sm:$0xff]
  %v83 = vld [vmem:[%s1 + $0x110] sm:$0xf]
  %v84 = vld [vmem:[%s1 + $0x114] sm:$0xff]
  %v85 = vld [vmem:[%s1 + $0x11c] sm:$0xf]
  %v86 = vld [vmem:[%s1 + $0x120] sm:$0xff]
  %v87 = vld [vmem:[%s1 + $0x128] sm:$0xf]
  %v88 = vld [vmem:[%s1 + $0x12c] sm:$0xff]
  %v89 = vld [vmem:[%s1 + $0x134] sm:$0xf]
  %v90 = vld [vmem:[%s1 + $0x138] sm:$0xff]
  %v91 = vld [vmem:[%s1 + $0x140] sm:$0xf]
  %v92 = vld [vmem:[%s1 + $0x144] sm:$0xff]
  %v93 = vld [vmem:[%s1 + $0x14c] sm:$0xf]
  %v94 = vld [vmem:[%s1 + $0x150] sm:$0xff]
  %v95 = vld [vmem:[%s1 + $0x158] sm:$0xf]
  %v96 = vld [vmem:[%s1 + $0x15c] sm:$0xff]
  %v97 = vld [vmem:[%s1 + $0x164] sm:$0xf]
  %v98 = vld [vmem:[%s1 + $0x168] sm:$0xff]
  %v99 = vld [vmem:[%s1 + $0x170] sm:$0xf]
  %v100 = vld [vmem:[%s1 + $0x174] sm:$0xff]
  %v101 = vld [vmem:[%s1 + $0x17c] sm:$0xf]
  %v102 = vld [vmem:[%s1 + $0x180] sm:$0xff]
  %v103 = vld [vmem:[%s1 + $0x188] sm:$0xf]
  %v104 = vld [vmem:[%s1 + $0x18c] sm:$0xff]
  %v105 = vld [vmem:[%s1 + $0x194] sm:$0xf]
  %v106 = vld [vmem:[%s1 + $0x198] sm:$0xff]
  %v107 = vld [vmem:[%s1 + $0x1a0] sm:$0xf]
  %v108 = vld [vmem:[%s1 + $0x1a4] sm:$0xff]
  %v109 = vld [vmem:[%s1 + $0x1ac] sm:$0xf]
  %v110 = vld [vmem:[%s1 + $0x1b0] sm:$0xff]
  %v111 = vld [vmem:[%s1 + $0x1b8] sm:$0xf]
  %v112 = vld [vmem:[%s1 + $0x1bc] sm:$0xff]
  %v113 = vld [vmem:[%s1 + $0x1c4] sm:$0xf]
  %v114 = vld [vmem:[%s1 + $0x1c8] sm:$0xff]
  %v115 = vld [vmem:[%s1 + $0x1d0] sm:$0xf]
  %v116 = vld [vmem:[%s1 + $0x1d4] sm:$0xff]
  %v117 = vld [vmem:[%s1 + $0x1dc] sm:$0xf]
  %v118 = vld [vmem:[%s1 + $0x1e0] sm:$0xff]
  %v119 = vld [vmem:[%s1 + $0x1e8] sm:$0xf]
  %v120 = vld [vmem:[%s1 + $0x1ec] sm:$0xff]
  %v121 = vld [vmem:[%s1 + $0x1f4] sm:$0xf]
  %v122 = vld [vmem:[%s1 + $0x1f8] sm:$0xff]
  %v123 = vld [vmem:[%s1 + $0x200] sm:$0xf]
  %v124 = vld [vmem:[%s1 + $0x204] sm:$0xff]
  %v125 = vld [vmem:[%s1 + $0x20c] sm:$0xf]
  %v126 = vld [vmem:[%s1 + $0x210] sm:$0xff]
  %v127 = vld [vmem:[%s1 + $0x218] sm:$0xf]
  %v128 = vld [vmem:[%s1 + $0x21c] sm:$0xff]
  %v129 = vld [vmem:[%s1 + $0x224] sm:$0xf]
  %v130 = vld [vmem:[%s1 + $0x228] sm:$0xff]
  %v131 = vld [vmem:[%s1 + $0x230] sm:$0xf]
  %v132 = vld [vmem:[%s1 + $0x234] sm:$0xff]
  %v133 = vld [vmem:[%s1 + $0x23c] sm:$0xf]
  %v134 = vld [vmem:[%s1 + $0x240] sm:$0xff]
  %v135 = vld [vmem:[%s1 + $0x248] sm:$0xf]
  %v136 = vld [vmem:[%s1 + $0x24c] sm:$0xff]
  %v137 = vld [vmem:[%s1 + $0x254] sm:$0xf]
  %v138 = vld [vmem:[%s1 + $0x258] sm:$0xff]
  %v139 = vld [vmem:[%s1 + $0x260] sm:$0xf]
  %v140 = vld [vmem:[%s1 + $0x264] sm:$0xff]
  %v141 = vld [vmem:[%s1 + $0x26c] sm:$0xf]
  %v142 = vld [vmem:[%s1 + $0x270] sm:$0xff]
  %v143 = vld [vmem:[%s1 + $0x278] sm:$0xf]
  %v144 = vld [vmem:[%s1 + $0x27c] sm:$0xff]
  %v145 = vld [vmem:[%s1 + $0x284] sm:$0xf]
  %v146 = vld [vmem:[%s1 + $0x288] sm:$0xff]
  %v147 = vld [vmem:[%s1 + $0x290] sm:$0xf]
  %v148 = vld [vmem:[%s1 + $0x294] sm:$0xff]
  %v149 = vld [vmem:[%s1 + $0x29c] sm:$0xf]
  %v150 = vld [vmem:[%s1 + $0x2a0] sm:$0xff]
  %v151 = vld [vmem:[%s1 + $0x2a8] sm:$0xf]
  %v152 = vld [vmem:[%s1 + $0x2ac] sm:$0xff]
  %v153 = vld [vmem:[%s1 + $0x2b4] sm:$0xf]
  %v154 = vld [vmem:[%s1 + $0x2b8] sm:$0xff]
  %v155 = vld [vmem:[%s1 + $0x2c0] sm:$0xf]
  %v156 = vld [vmem:[%s1 + $0x2c4] sm:$0xff]
  %v157 = vld [vmem:[%s1 + $0x2cc] sm:$0xf]
  %v158 = vld [vmem:[%s1 + $0x2d0] sm:$0xff]
  %v159 = vld [vmem:[%s1 + $0x2d8] sm:$0xf]
  %v160 = vld [vmem:[%s1 + $0x2dc] sm:$0xff]
  %v161 = vld [vmem:[%s1 + $0x2e4] sm:$0xf]
  %v162 = vld [vmem:[%s1 + $0x2e8] sm:$0xff]
  %v163 = vld [vmem:[%s1 + $0x2f0] sm:$0xf]
  %v164 = vld [vmem:[%s1 + $0x2f4] sm:$0xff]
  %v165 = vld [vmem:[%s1 + $0x2fc] sm:$0xf]
  %v166 = vld [vmem:[%s1 + $0x300] sm:$0xff]
  %v167 = vld [vmem:[%s1 + $0x308] sm:$0xf]
  %v168 = vld [vmem:[%s1 + $0x30c] sm:$0xff]
  %v169 = vld [vmem:[%s1 + $0x314] sm:$0xf]
  %v170 = vld [vmem:[%s1 + $0x318] sm:$0xff]
  %v171 = vld [vmem:[%s1 + $0x320] sm:$0xf]
  %v172 = vld [vmem:[%s1 + $0x324] sm:$0xff]
  %v173 = vld [vmem:[%s1 + $0x32c] sm:$0xf]
  %v174 = vld [vmem:[%s1 + $0x330] sm:$0xff]
  %v175 = vld [vmem:[%s1 + $0x338] sm:$0xf]
  %v176 = vld [vmem:[%s1 + $0x33c] sm:$0xff]
  %v177 = vld [vmem:[%s1 + $0x344] sm:$0xf]
  %v178 = vld [vmem:[%s1 + $0x348] sm:$0xff]
  %v179 = vld [vmem:[%s1 + $0x350] sm:$0xf]
  %v180 = vld [vmem:[%s1 + $0x354] sm:$0xff]
  %v181 = vld [vmem:[%s1 + $0x35c] sm:$0xf]
  %v182 = vld [vmem:[%s1 + $0x360] sm:$0xff]
  %v183 = vld [vmem:[%s1 + $0x368] sm:$0xf]
  %v184 = vld [vmem:[%s1 + $0x36c] sm:$0xff]
  %v185 = vld [vmem:[%s1 + $0x374] sm:$0xf]
  %v186 = vld [vmem:[%s1 + $0x378] sm:$0xff]
  %v187 = vld [vmem:[%s1 + $0x380] sm:$0xf]
  %v188 = vld [vmem:[%s1 + $0x384] sm:$0xff]
  %v189 = vld [vmem:[%s1 + $0x38c] sm:$0xf]
  %v190 = vld [vmem:[%s1 + $0x390] sm:$0xff]
  %v191 = vld [vmem:[%s1 + $0x398] sm:$0xf]
  %v192 = vld [vmem:[%s1 + $0x39c] sm:$0xff]
  %v193 = vld [vmem:[%s1 + $0x3a4] sm:$0xf]
  %v194 = vld [vmem:[%s1 + $0x3a8] sm:$0xff]
  %v195 = vld [vmem:[%s1 + $0x3b0] sm:$0xf]
  %v196 = vld [vmem:[%s1 + $0x3b4] sm:$0xff]
  %v197 = vld [vmem:[%s1 + $0x3bc] sm:$0xf]
  %v198 = vld [vmem:[%s1 + $0x3c0] sm:$0xff]
  %v199 = vld [vmem:[%s1 + $0x3c8] sm:$0xf]
  %v200 = vld [vmem:[%s1 + $0x3cc] sm:$0xff]
  %v201 = vld [vmem:[%s1 + $0x3d4] sm:$0xf]
  %v202 = vld [vmem:[%s1 + $0x3d8] sm:$0xff]
  %v203 = vld [vmem:[%s1 + $0x3e0] sm:$0xf]
  %v204 = vld [vmem:[%s1 + $0x3e4] sm:$0xff]
  %v205 = vld [vmem:[%s1 + $0x3ec] sm:$0xf]
  %v206 = vld [vmem:[%s1 + $0x3f0] sm:$0xff]
  %v207 = vld [vmem:[%s1 + $0x3f8] sm:$0xf]
  %v208 = vld [vmem:[%s1 + $0x3fc] sm:$0xff]
  %v209 = vld [vmem:[%s1 + $0x404] sm:$0xf]
  %v210 = vld [vmem:[%s1 + $0x408] sm:$0xff]
  %v211 = vld [vmem:[%s1 + $0x410] sm:$0xf]
  %v212 = vld [vmem:[%s1 + $0x414] sm:$0xff]
  %v213 = vld [vmem:[%s1 + $0x41c] sm:$0xf]
  %v214 = vld [vmem:[%s1 + $0x420] sm:$0xff]
  %v215 = vld [vmem:[%s1 + $0x428] sm:$0xf]
  %v216 = vld [vmem:[%s1 + $0x42c] sm:$0xff]
  %v217 = vld [vmem:[%s1 + $0x434] sm:$0xf]
  %v218 = vld [vmem:[%s1 + $0x438] sm:$0xff]
  %v219 = vld [vmem:[%s1 + $0x440] sm:$0xf]
  %v220 = vld [vmem:[%s1 + $0x444] sm:$0xff]
  %v221 = vld [vmem:[%s1 + $0x44c] sm:$0xf]
  %v222 = vld [vmem:[%s1 + $0x450] sm:$0xff]
  %v223 = vld [vmem:[%s1 + $0x458] sm:$0xf]
  %v224 = vld [vmem:[%s1 + $0x45c] sm:$0xff]
  %v225 = vld [vmem:[%s1 + $0x464] sm:$0xf]
  %v226 = vld [vmem:[%s1 + $0x468] sm:$0xff]
  %v227 = vld [vmem:[%s1 + $0x470] sm:$0xf]
  %v228 = vld [vmem:[%s1 + $0x474] sm:$0xff]
  %v229 = vld [vmem:[%s1 + $0x47c] sm:$0xf]
  %v230 = vld [vmem:[%s1 + $0x480] sm:$0xff]
  %v231 = vld [vmem:[%s1 + $0x488] sm:$0xf]
  %v232 = vld [vmem:[%s1 + $0x48c] sm:$0xff]
  %v233 = vld [vmem:[%s1 + $0x494] sm:$0xf]
  %v234 = vld [vmem:[%s1 + $0x498] sm:$0xff]
  %v235 = vld [vmem:[%s1 + $0x4a0] sm:$0xf]
  %v236 = vld [vmem:[%s1 + $0x4a4] sm:$0xff]
  %v237 = vld [vmem:[%s1 + $0x4ac] sm:$0xf]
  %v238 = vld [vmem:[%s1 + $0x4b0] sm:$0xff]
  %v239 = vld [vmem:[%s1 + $0x4b8] sm:$0xf]
  %v240 = vld [vmem:[%s1 + $0x4bc] sm:$0xff]
  %v241 = vld [vmem:[%s1 + $0x4c4] sm:$0xf]
  %v242 = vld [vmem:[%s1 + $0x4c8] sm:$0xff]
  %v243 = vld [vmem:[%s1 + $0x4d0] sm:$0xf]
  %v244 = vld [vmem:[%s1 + $0x4d4] sm:$0xff]
  %v245 = vld [vmem:[%s1 + $0x4dc] sm:$0xf]
  %v246 = vld [vmem:[%s1 + $0x4e0] sm:$0xff]
  %v247 = vld [vmem:[%s1 + $0x4e8] sm:$0xf]
  %v248 = vld [vmem:[%s1 + $0x4ec] sm:$0xff]
  %v249 = vld [vmem:[%s1 + $0x4f4] sm:$0xf]
  %v250 = vld [vmem:[%s1 + $0x4f8] sm:$0xff]
  %v251 = vld [vmem:[%s1 + $0x500] sm:$0xf]
  %v252 = vld [vmem:[%s1 + $0x504] sm:$0xff]
  %v253 = vld [vmem:[%s1 + $0x50c] sm:$0xf]
  %v254 = vld [vmem:[%s1 + $0x510] sm:$0xff]
  %v255 = vld [vmem:[%s1 + $0x518] sm:$0xf]
  %v256 = vld [vmem:[%s1 + $0x51c] sm:$0xff]
  %v257 = vld [vmem:[%s1 + $0x524] sm:$0xf]
  %v258 = vld [vmem:[%s1 + $0x528] sm:$0xff]
  %v259 = vld [vmem:[%s1 + $0x530] sm:$0xf]
  %v260 = vld [vmem:[%s1 + $0x534] sm:$0xff]
  %v261 = vld [vmem:[%s1 + $0x53c] sm:$0xf]
  %v262 = vld [vmem:[%s1 + $0x540] sm:$0xff]
  %v263 = vld [vmem:[%s1 + $0x548] sm:$0xf]
  %v264 = vld [vmem:[%s1 + $0x54c] sm:$0xff]
  %v265 = vld [vmem:[%s1 + $0x554] sm:$0xf]
  %v266 = vld [vmem:[%s1 + $0x558] sm:$0xff]
  %v267 = vld [vmem:[%s1 + $0x560] sm:$0xf]
  %v268 = vld [vmem:[%s1 + $0x564] sm:$0xff]
  %v269 = vld [vmem:[%s1 + $0x56c] sm:$0xf]
  %v270 = vld [vmem:[%s1 + $0x570] sm:$0xff]
  %v271 = vld [vmem:[%s1 + $0x578] sm:$0xf]
  %v272 = vld [vmem:[%s1 + $0x57c] sm:$0xff]
  %v273 = vld [vmem:[%s1 + $0x584] sm:$0xf]
  %v274 = vld [vmem:[%s1 + $0x588] sm:$0xff]
  %v275 = vld [vmem:[%s1 + $0x590] sm:$0xf]
  %v276 = vld [vmem:[%s1 + $0x594] sm:$0xff]
  %v277 = vld [vmem:[%s1 + $0x59c] sm:$0xf]
  %v278 = vld [vmem:[%s1 + $0x5a0] sm:$0xff]
  %v279 = vld [vmem:[%s1 + $0x5a8] sm:$0xf]
  %v280 = vld [vmem:[%s1 + $0x5ac] sm:$0xff]
  %v281 = vld [vmem:[%s1 + $0x5b4] sm:$0xf]
  %v282 = vld [vmem:[%s1 + $0x5b8] sm:$0xff]
  %v283 = vld [vmem:[%s1 + $0x5c0] sm:$0xf]
  %v284 = vld [vmem:[%s1 + $0x5c4] sm:$0xff]
  %v285 = vld [vmem:[%s1 + $0x5cc] sm:$0xf]
  %v286 = vld [vmem:[%s1 + $0x5d0] sm:$0xff]
  %v287 = vld [vmem:[%s1 + $0x5d8] sm:$0xf]
  %v288 = vld [vmem:[%s1 + $0x5dc] sm:$0xff]
  %v289 = vld [vmem:[%s1 + $0x5e4] sm:$0xf]
  %v290 = vld [vmem:[%s1 + $0x5e8] sm:$0xff]
  %v291 = vld [vmem:[%s1 + $0x5f0] sm:$0xf]
  %v292 = vld [vmem:[%s1 + $0x5f4] sm:$0xff]
  %v293 = vld [vmem:[%s1 + $0x5fc] sm:$0xf]
  %v294 = vld [vmem:[%s1 + $0x600] sm:$0xff]
  %v295 = vld [vmem:[%s1 + $0x608] sm:$0xf]
  %v296 = vld [vmem:[%s1 + $0x60c] sm:$0xff]
  %v297 = vld [vmem:[%s1 + $0x614] sm:$0xf]
  %v298 = vld [vmem:[%s1 + $0x618] sm:$0xff]
  %v299 = vld [vmem:[%s1 + $0x620] sm:$0xf]
  %v300 = vld [vmem:[%s1 + $0x624] sm:$0xff]
  %v301 = vld [vmem:[%s1 + $0x62c] sm:$0xf]
  %v302 = vld [vmem:[%s1 + $0x630] sm:$0xff]
  %v303 = vld [vmem:[%s1 + $0x638] sm:$0xf]
  %v304 = vld [vmem:[%s1 + $0x63c] sm:$0xff]
  %v305 = vld [vmem:[%s1 + $0x644] sm:$0xf]
  %v306 = vld [vmem:[%s1 + $0x648] sm:$0xff]
  %v307 = vld [vmem:[%s1 + $0x650] sm:$0xf]
  %v308 = vld [vmem:[%s1 + $0x654] sm:$0xff]
  %v309 = vld [vmem:[%s1 + $0x65c] sm:$0xf]
  %v310 = vld [vmem:[%s1 + $0x660] sm:$0xff]
  %v311 = vld [vmem:[%s1 + $0x668] sm:$0xf]
  %v312 = vld [vmem:[%s1 + $0x66c] sm:$0xff]
  %v313 = vld [vmem:[%s1 + $0x674] sm:$0xf]
  %v314 = vld [vmem:[%s1 + $0x678] sm:$0xff]
  %v315 = vld [vmem:[%s1 + $0x680] sm:$0xf]
  %v316 = vld [vmem:[%s1 + $0x684] sm:$0xff]
  %v317 = vld [vmem:[%s1 + $0x68c] sm:$0xf]
  %v318 = vld [vmem:[%s1 + $0x690] sm:$0xff]
  %v319 = vld [vmem:[%s1 + $0x698] sm:$0xf]
  %v320 = vld [vmem:[%s1 + $0x69c] sm:$0xff]
  %v321 = vld [vmem:[%s1 + $0x6a4] sm:$0xf]
  %v322 = vld [vmem:[%s1 + $0x6a8] sm:$0xff]
  %v323 = vld [vmem:[%s1 + $0x6b0] sm:$0xf]
  %v324 = vld [vmem:[%s1 + $0x6b4] sm:$0xff]
  %v325 = vld [vmem:[%s1 + $0x6bc] sm:$0xf]
  %v346 = vunpack.c.l.b16 %v18
  %v347 = vunpack.c.h.b16 %v18
  %v348 = vunpack.c.l.b16 %v19
  %v349 = vunpack.c.h.b16 %v19
  %v350 = vunpack.c.l.b16 %v20
  %v351 = vunpack.c.h.b16 %v20
  %v352 = vunpack.c.l.b16 %v21
  %v353 = vunpack.c.h.b16 %v21
  %v354 = vunpack.c.l.b16 %v22
  %v355 = vunpack.c.l.b16 %v23
  %v356 = vunpack.c.h.b16 %v23
  %v357 = vunpack.c.l.b16 %v24
  %v358 = vunpack.c.h.b16 %v24
  %v359 = vunpack.c.l.b16 %v25
  %v360 = vunpack.c.h.b16 %v25
  %v361 = vunpack.c.l.b16 %v26
  %v362 = vunpack.c.h.b16 %v26
  %v363 = vunpack.c.l.b16 %v27
  %v364 = vunpack.c.l.b16 %v28
  %v365 = vunpack.c.h.b16 %v28
  %v366 = vunpack.c.l.b16 %v29
  %v367 = vunpack.c.h.b16 %v29
  %v368 = vunpack.c.l.b16 %v30
  %v369 = vunpack.c.h.b16 %v30
  %v370 = vunpack.c.l.b16 %v31
  %v371 = vunpack.c.h.b16 %v31
  %v372 = vunpack.c.l.b16 %v32
  %v373 = vunpack.c.l.b16 %v33
  %v374 = vunpack.c.h.b16 %v33
  %v375 = vunpack.c.l.b16 %v34
  %v376 = vunpack.c.h.b16 %v34
  %v377 = vunpack.c.l.b16 %v35
  %v378 = vunpack.c.h.b16 %v35
  %v379 = vunpack.c.l.b16 %v36
  %v380 = vunpack.c.h.b16 %v36
  %v381 = vunpack.c.l.b16 %v37
  %v382 = vpack.c.b16 %v355, %v346
  %v383 = vpack.c.b16 %v356, %v347
  %v384 = vpack.c.b16 %v357, %v348
  %v385 = vpack.c.b16 %v358, %v349
  %v386 = vpack.c.b16 %v359, %v350
  %v387 = vpack.c.b16 %v360, %v351
  %v388 = vpack.c.b16 %v361, %v352
  %v389 = vpack.c.b16 %v362, %v353
  %v390 = vpack.c.b16 %v363, %v354
  %v391 = vpack.c.b16 %v373, %v364
  %v392 = vpack.c.b16 %v374, %v365
  %v393 = vpack.c.b16 %v375, %v366
  %v394 = vpack.c.b16 %v376, %v367
  %v395 = vpack.c.b16 %v377, %v368
  %v396 = vpack.c.b16 %v378, %v369
  %v397 = vpack.c.b16 %v379, %v370
  %v398 = vpack.c.b16 %v380, %v371
  %v399 = vpack.c.b16 %v381, %v372
  %v706 = vunpack.c.l.b16 %v38
  %v707 = vunpack.c.h.b16 %v38
  %v708 = vunpack.c.l.b16 %v39
  %v709 = vunpack.c.l.b16 %v40
  %v710 = vunpack.c.h.b16 %v40
  %v711 = vunpack.c.l.b16 %v41
  %v712 = vunpack.c.l.b16 %v42
  %v713 = vunpack.c.h.b16 %v42
  %v714 = vunpack.c.l.b16 %v43
  %v715 = vunpack.c.l.b16 %v44
  %v716 = vunpack.c.h.b16 %v44
  %v717 = vunpack.c.l.b16 %v45
  %v718 = vunpack.c.l.b16 %v46
  %v719 = vunpack.c.h.b16 %v46
  %v720 = vunpack.c.l.b16 %v47
  %v721 = vunpack.c.l.b16 %v48
  %v722 = vunpack.c.h.b16 %v48
  %v723 = vunpack.c.l.b16 %v49
  %v724 = vunpack.c.l.b16 %v50
  %v725 = vunpack.c.h.b16 %v50
  %v726 = vunpack.c.l.b16 %v51
  %v727 = vunpack.c.l.b16 %v52
  %v728 = vunpack.c.h.b16 %v52
  %v729 = vunpack.c.l.b16 %v53
  %v730 = vunpack.c.l.b16 %v54
  %v731 = vunpack.c.h.b16 %v54
  %v732 = vunpack.c.l.b16 %v55
  %v733 = vunpack.c.l.b16 %v56
  %v734 = vunpack.c.h.b16 %v56
  %v735 = vunpack.c.l.b16 %v57
  %v736 = vunpack.c.l.b16 %v58
  %v737 = vunpack.c.h.b16 %v58
  %v738 = vunpack.c.l.b16 %v59
  %v739 = vunpack.c.l.b16 %v60
  %v740 = vunpack.c.h.b16 %v60
  %v741 = vunpack.c.l.b16 %v61
  %v742 = vunpack.c.l.b16 %v62
  %v743 = vunpack.c.h.b16 %v62
  %v744 = vunpack.c.l.b16 %v63
  %v745 = vunpack.c.l.b16 %v64
  %v746 = vunpack.c.h.b16 %v64
  %v747 = vunpack.c.l.b16 %v65
  %v748 = vunpack.c.l.b16 %v66
  %v749 = vunpack.c.h.b16 %v66
  %v750 = vunpack.c.l.b16 %v67
  %v751 = vunpack.c.l.b16 %v68
  %v752 = vunpack.c.h.b16 %v68
  %v753 = vunpack.c.l.b16 %v69
  %v754 = vunpack.c.l.b16 %v70
  %v755 = vunpack.c.h.b16 %v70
  %v756 = vunpack.c.l.b16 %v71
  %v757 = vunpack.c.l.b16 %v72
  %v758 = vunpack.c.h.b16 %v72
  %v759 = vunpack.c.l.b16 %v73
  %v760 = vunpack.c.l.b16 %v74
  %v761 = vunpack.c.h.b16 %v74
  %v762 = vunpack.c.l.b16 %v75
  %v763 = vunpack.c.l.b16 %v76
  %v764 = vunpack.c.h.b16 %v76
  %v765 = vunpack.c.l.b16 %v77
  %v766 = vunpack.c.l.b16 %v78
  %v767 = vunpack.c.h.b16 %v78
  %v768 = vunpack.c.l.b16 %v79
  %v769 = vunpack.c.l.b16 %v80
  %v770 = vunpack.c.h.b16 %v80
  %v771 = vunpack.c.l.b16 %v81
  %v772 = vunpack.c.l.b16 %v82
  %v773 = vunpack.c.h.b16 %v82
  %v774 = vunpack.c.l.b16 %v83
  %v775 = vunpack.c.l.b16 %v84
  %v776 = vunpack.c.h.b16 %v84
  %v777 = vunpack.c.l.b16 %v85
  %v778 = vunpack.c.l.b16 %v86
  %v779 = vunpack.c.h.b16 %v86
  %v780 = vunpack.c.l.b16 %v87
  %v781 = vunpack.c.l.b16 %v88
  %v782 = vunpack.c.h.b16 %v88
  %v783 = vunpack.c.l.b16 %v89
  %v784 = vunpack.c.l.b16 %v90
  %v785 = vunpack.c.h.b16 %v90
  %v786 = vunpack.c.l.b16 %v91
  %v787 = vunpack.c.l.b16 %v92
  %v788 = vunpack.c.h.b16 %v92
  %v789 = vunpack.c.l.b16 %v93
  %v790 = vunpack.c.l.b16 %v94
  %v791 = vunpack.c.h.b16 %v94
  %v792 = vunpack.c.l.b16 %v95
  %v793 = vunpack.c.l.b16 %v96
  %v794 = vunpack.c.h.b16 %v96
  %v795 = vunpack.c.l.b16 %v97
  %v796 = vunpack.c.l.b16 %v98
  %v797 = vunpack.c.h.b16 %v98
  %v798 = vunpack.c.l.b16 %v99
  %v799 = vunpack.c.l.b16 %v100
  %v800 = vunpack.c.h.b16 %v100
  %v801 = vunpack.c.l.b16 %v101
  %v802 = vunpack.c.l.b16 %v102
  %v803 = vunpack.c.h.b16 %v102
  %v804 = vunpack.c.l.b16 %v103
  %v805 = vunpack.c.l.b16 %v104
  %v806 = vunpack.c.h.b16 %v104
  %v807 = vunpack.c.l.b16 %v105
  %v808 = vunpack.c.l.b16 %v106
  %v809 = vunpack.c.h.b16 %v106
  %v810 = vunpack.c.l.b16 %v107
  %v811 = vunpack.c.l.b16 %v108
  %v812 = vunpack.c.h.b16 %v108
  %v813 = vunpack.c.l.b16 %v109
  %v814 = vunpack.c.l.b16 %v110
  %v815 = vunpack.c.h.b16 %v110
  %v816 = vunpack.c.l.b16 %v111
  %v817 = vunpack.c.l.b16 %v112
  %v818 = vunpack.c.h.b16 %v112
  %v819 = vunpack.c.l.b16 %v113
  %v820 = vunpack.c.l.b16 %v114
  %v821 = vunpack.c.h.b16 %v114
  %v822 = vunpack.c.l.b16 %v115
  %v823 = vunpack.c.l.b16 %v116
  %v824 = vunpack.c.h.b16 %v116
  %v825 = vunpack.c.l.b16 %v117
  %v826 = vunpack.c.l.b16 %v118
  %v827 = vunpack.c.h.b16 %v118
  %v828 = vunpack.c.l.b16 %v119
  %v829 = vunpack.c.l.b16 %v120
  %v830 = vunpack.c.h.b16 %v120
  %v831 = vunpack.c.l.b16 %v121
  %v832 = vunpack.c.l.b16 %v122
  %v833 = vunpack.c.h.b16 %v122
  %v834 = vunpack.c.l.b16 %v123
  %v835 = vunpack.c.l.b16 %v124
  %v836 = vunpack.c.h.b16 %v124
  %v837 = vunpack.c.l.b16 %v125
  %v838 = vunpack.c.l.b16 %v126
  %v839 = vunpack.c.h.b16 %v126
  %v840 = vunpack.c.l.b16 %v127
  %v841 = vunpack.c.l.b16 %v128
  %v842 = vunpack.c.h.b16 %v128
  %v843 = vunpack.c.l.b16 %v129
  %v844 = vunpack.c.l.b16 %v130
  %v845 = vunpack.c.h.b16 %v130
  %v846 = vunpack.c.l.b16 %v131
  %v847 = vunpack.c.l.b16 %v132
  %v848 = vunpack.c.h.b16 %v132
  %v849 = vunpack.c.l.b16 %v133
  %v850 = vunpack.c.l.b16 %v134
  %v851 = vunpack.c.h.b16 %v134
  %v852 = vunpack.c.l.b16 %v135
  %v853 = vunpack.c.l.b16 %v136
  %v854 = vunpack.c.h.b16 %v136
  %v855 = vunpack.c.l.b16 %v137
  %v856 = vunpack.c.l.b16 %v138
  %v857 = vunpack.c.h.b16 %v138
  %v858 = vunpack.c.l.b16 %v139
  %v859 = vunpack.c.l.b16 %v140
  %v860 = vunpack.c.h.b16 %v140
  %v861 = vunpack.c.l.b16 %v141
  %v862 = vunpack.c.l.b16 %v142
  %v863 = vunpack.c.h.b16 %v142
  %v864 = vunpack.c.l.b16 %v143
  %v865 = vunpack.c.l.b16 %v144
  %v866 = vunpack.c.h.b16 %v144
  %v867 = vunpack.c.l.b16 %v145
  %v868 = vunpack.c.l.b16 %v146
  %v869 = vunpack.c.h.b16 %v146
  %v870 = vunpack.c.l.b16 %v147
  %v871 = vunpack.c.l.b16 %v148
  %v872 = vunpack.c.h.b16 %v148
  %v873 = vunpack.c.l.b16 %v149
  %v874 = vunpack.c.l.b16 %v150
  %v875 = vunpack.c.h.b16 %v150
  %v876 = vunpack.c.l.b16 %v151
  %v877 = vunpack.c.l.b16 %v152
  %v878 = vunpack.c.h.b16 %v152
  %v879 = vunpack.c.l.b16 %v153
  %v880 = vunpack.c.l.b16 %v154
  %v881 = vunpack.c.h.b16 %v154
  %v882 = vunpack.c.l.b16 %v155
  %v883 = vunpack.c.l.b16 %v156
  %v884 = vunpack.c.h.b16 %v156
  %v885 = vunpack.c.l.b16 %v157
  %v886 = vunpack.c.l.b16 %v158
  %v887 = vunpack.c.h.b16 %v158
  %v888 = vunpack.c.l.b16 %v159
  %v889 = vunpack.c.l.b16 %v160
  %v890 = vunpack.c.h.b16 %v160
  %v891 = vunpack.c.l.b16 %v161
  %v892 = vunpack.c.l.b16 %v162
  %v893 = vunpack.c.h.b16 %v162
  %v894 = vunpack.c.l.b16 %v163
  %v895 = vunpack.c.l.b16 %v164
  %v896 = vunpack.c.h.b16 %v164
  %v897 = vunpack.c.l.b16 %v165
  %v898 = vunpack.c.l.b16 %v166
  %v899 = vunpack.c.h.b16 %v166
  %v900 = vunpack.c.l.b16 %v167
  %v901 = vunpack.c.l.b16 %v168
  %v902 = vunpack.c.h.b16 %v168
  %v903 = vunpack.c.l.b16 %v169
  %v904 = vunpack.c.l.b16 %v170
  %v905 = vunpack.c.h.b16 %v170
  %v906 = vunpack.c.l.b16 %v171
  %v907 = vunpack.c.l.b16 %v172
  %v908 = vunpack.c.h.b16 %v172
  %v909 = vunpack.c.l.b16 %v173
  %v910 = vunpack.c.l.b16 %v174
  %v911 = vunpack.c.h.b16 %v174
  %v912 = vunpack.c.l.b16 %v175
  %v913 = vunpack.c.l.b16 %v176
  %v914 = vunpack.c.h.b16 %v176
  %v915 = vunpack.c.l.b16 %v177
  %v916 = vunpack.c.l.b16 %v178
  %v917 = vunpack.c.h.b16 %v178
  %v918 = vunpack.c.l.b16 %v179
  %v919 = vunpack.c.l.b16 %v180
  %v920 = vunpack.c.h.b16 %v180
  %v921 = vunpack.c.l.b16 %v181
  %v922 = vunpack.c.l.b16 %v182
  %v923 = vunpack.c.h.b16 %v182
  %v924 = vunpack.c.l.b16 %v183
  %v925 = vunpack.c.l.b16 %v184
  %v926 = vunpack.c.h.b16 %v184
  %v927 = vunpack.c.l.b16 %v185
  %v928 = vunpack.c.l.b16 %v186
  %v929 = vunpack.c.h.b16 %v186
  %v930 = vunpack.c.l.b16 %v187
  %v931 = vunpack.c.l.b16 %v188
  %v932 = vunpack.c.h.b16 %v188
  %v933 = vunpack.c.l.b16 %v189
  %v934 = vunpack.c.l.b16 %v190
  %v935 = vunpack.c.h.b16 %v190
  %v936 = vunpack.c.l.b16 %v191
  %v937 = vunpack.c.l.b16 %v192
  %v938 = vunpack.c.h.b16 %v192
  %v939 = vunpack.c.l.b16 %v193
  %v940 = vunpack.c.l.b16 %v194
  %v941 = vunpack.c.h.b16 %v194
  %v942 = vunpack.c.l.b16 %v195
  %v943 = vunpack.c.l.b16 %v196
  %v944 = vunpack.c.h.b16 %v196
  %v945 = vunpack.c.l.b16 %v197
  %v946 = vunpack.c.l.b16 %v198
  %v947 = vunpack.c.h.b16 %v198
  %v948 = vunpack.c.l.b16 %v199
  %v949 = vunpack.c.l.b16 %v200
  %v950 = vunpack.c.h.b16 %v200
  %v951 = vunpack.c.l.b16 %v201
  %v952 = vunpack.c.l.b16 %v202
  %v953 = vunpack.c.h.b16 %v202
  %v954 = vunpack.c.l.b16 %v203
  %v955 = vunpack.c.l.b16 %v204
  %v956 = vunpack.c.h.b16 %v204
  %v957 = vunpack.c.l.b16 %v205
  %v958 = vunpack.c.l.b16 %v206
  %v959 = vunpack.c.h.b16 %v206
  %v960 = vunpack.c.l.b16 %v207
  %v961 = vunpack.c.l.b16 %v208
  %v962 = vunpack.c.h.b16 %v208
  %v963 = vunpack.c.l.b16 %v209
  %v964 = vunpack.c.l.b16 %v210
  %v965 = vunpack.c.h.b16 %v210
  %v966 = vunpack.c.l.b16 %v211
  %v967 = vunpack.c.l.b16 %v212
  %v968 = vunpack.c.h.b16 %v212
  %v969 = vunpack.c.l.b16 %v213
  %v970 = vunpack.c.l.b16 %v214
  %v971 = vunpack.c.h.b16 %v214
  %v972 = vunpack.c.l.b16 %v215
  %v973 = vunpack.c.l.b16 %v216
  %v974 = vunpack.c.h.b16 %v216
  %v975 = vunpack.c.l.b16 %v217
  %v976 = vunpack.c.l.b16 %v218
  %v977 = vunpack.c.h.b16 %v218
  %v978 = vunpack.c.l.b16 %v219
  %v979 = vunpack.c.l.b16 %v220
  %v980 = vunpack.c.h.b16 %v220
  %v981 = vunpack.c.l.b16 %v221
  %v982 = vunpack.c.l.b16 %v222
  %v983 = vunpack.c.h.b16 %v222
  %v984 = vunpack.c.l.b16 %v223
  %v985 = vunpack.c.l.b16 %v224
  %v986 = vunpack.c.h.b16 %v224
  %v987 = vunpack.c.l.b16 %v225
  %v988 = vunpack.c.l.b16 %v226
  %v989 = vunpack.c.h.b16 %v226
  %v990 = vunpack.c.l.b16 %v227
  %v991 = vunpack.c.l.b16 %v228
  %v992 = vunpack.c.h.b16 %v228
  %v993 = vunpack.c.l.b16 %v229
  %v994 = vunpack.c.l.b16 %v230
  %v995 = vunpack.c.h.b16 %v230
  %v996 = vunpack.c.l.b16 %v231
  %v997 = vunpack.c.l.b16 %v232
  %v998 = vunpack.c.h.b16 %v232
  %v999 = vunpack.c.l.b16 %v233
  %v1000 = vunpack.c.l.b16 %v234
  %v1001 = vunpack.c.h.b16 %v234
  %v1002 = vunpack.c.l.b16 %v235
  %v1003 = vunpack.c.l.b16 %v236
  %v1004 = vunpack.c.h.b16 %v236
  %v1005 = vunpack.c.l.b16 %v237
  %v1006 = vunpack.c.l.b16 %v238
  %v1007 = vunpack.c.h.b16 %v238
  %v1008 = vunpack.c.l.b16 %v239
  %v1009 = vunpack.c.l.b16 %v240
  %v1010 = vunpack.c.h.b16 %v240
  %v1011 = vunpack.c.l.b16 %v241
  %v1012 = vunpack.c.l.b16 %v242
  %v1013 = vunpack.c.h.b16 %v242
  %v1014 = vunpack.c.l.b16 %v243
  %v1015 = vunpack.c.l.b16 %v244
  %v1016 = vunpack.c.h.b16 %v244
  %v1017 = vunpack.c.l.b16 %v245
  %v1018 = vunpack.c.l.b16 %v246
  %v1019 = vunpack.c.h.b16 %v246
  %v1020 = vunpack.c.l.b16 %v247
  %v1021 = vunpack.c.l.b16 %v248
  %v1022 = vunpack.c.h.b16 %v248
  %v1023 = vunpack.c.l.b16 %v249
  %v1024 = vunpack.c.l.b16 %v250
  %v1025 = vunpack.c.h.b16 %v250
  %v1026 = vunpack.c.l.b16 %v251
  %v1027 = vunpack.c.l.b16 %v252
  %v1028 = vunpack.c.h.b16 %v252
  %v1029 = vunpack.c.l.b16 %v253
  %v1030 = vunpack.c.l.b16 %v254
  %v1031 = vunpack.c.h.b16 %v254
  %v1032 = vunpack.c.l.b16 %v255
  %v1033 = vunpack.c.l.b16 %v256
  %v1034 = vunpack.c.h.b16 %v256
  %v1035 = vunpack.c.l.b16 %v257
  %v1036 = vunpack.c.l.b16 %v258
  %v1037 = vunpack.c.h.b16 %v258
  %v1038 = vunpack.c.l.b16 %v259
  %v1039 = vunpack.c.l.b16 %v260
  %v1040 = vunpack.c.h.b16 %v260
  %v1041 = vunpack.c.l.b16 %v261
  %v1042 = vunpack.c.l.b16 %v262
  %v1043 = vunpack.c.h.b16 %v262
  %v1044 = vunpack.c.l.b16 %v263
  %v1045 = vunpack.c.l.b16 %v264
  %v1046 = vunpack.c.h.b16 %v264
  %v1047 = vunpack.c.l.b16 %v265
  %v1048 = vunpack.c.l.b16 %v266
  %v1049 = vunpack.c.h.b16 %v266
  %v1050 = vunpack.c.l.b16 %v267
  %v1051 = vunpack.c.l.b16 %v268
  %v1052 = vunpack.c.h.b16 %v268
  %v1053 = vunpack.c.l.b16 %v269
  %v1054 = vunpack.c.l.b16 %v270
  %v1055 = vunpack.c.h.b16 %v270
  %v1056 = vunpack.c.l.b16 %v271
  %v1057 = vunpack.c.l.b16 %v272
  %v1058 = vunpack.c.h.b16 %v272
  %v1059 = vunpack.c.l.b16 %v273
  %v1060 = vunpack.c.l.b16 %v274
  %v1061 = vunpack.c.h.b16 %v274
  %v1062 = vunpack.c.l.b16 %v275
  %v1063 = vunpack.c.l.b16 %v276
  %v1064 = vunpack.c.h.b16 %v276
  %v1065 = vunpack.c.l.b16 %v277
  %v1066 = vunpack.c.l.b16 %v278
  %v1067 = vunpack.c.h.b16 %v278
  %v1068 = vunpack.c.l.b16 %v279
  %v1069 = vunpack.c.l.b16 %v280
  %v1070 = vunpack.c.h.b16 %v280
  %v1071 = vunpack.c.l.b16 %v281
  %v1072 = vunpack.c.l.b16 %v282
  %v1073 = vunpack.c.h.b16 %v282
  %v1074 = vunpack.c.l.b16 %v283
  %v1075 = vunpack.c.l.b16 %v284
  %v1076 = vunpack.c.h.b16 %v284
  %v1077 = vunpack.c.l.b16 %v285
  %v1078 = vunpack.c.l.b16 %v286
  %v1079 = vunpack.c.h.b16 %v286
  %v1080 = vunpack.c.l.b16 %v287
  %v1081 = vunpack.c.l.b16 %v288
  %v1082 = vunpack.c.h.b16 %v288
  %v1083 = vunpack.c.l.b16 %v289
  %v1084 = vunpack.c.l.b16 %v290
  %v1085 = vunpack.c.h.b16 %v290
  %v1086 = vunpack.c.l.b16 %v291
  %v1087 = vunpack.c.l.b16 %v292
  %v1088 = vunpack.c.h.b16 %v292
  %v1089 = vunpack.c.l.b16 %v293
  %v1090 = vunpack.c.l.b16 %v294
  %v1091 = vunpack.c.h.b16 %v294
  %v1092 = vunpack.c.l.b16 %v295
  %v1093 = vunpack.c.l.b16 %v296
  %v1094 = vunpack.c.h.b16 %v296
  %v1095 = vunpack.c.l.b16 %v297
  %v1096 = vunpack.c.l.b16 %v298
  %v1097 = vunpack.c.h.b16 %v298
  %v1098 = vunpack.c.l.b16 %v299
  %v1099 = vunpack.c.l.b16 %v300
  %v1100 = vunpack.c.h.b16 %v300
  %v1101 = vunpack.c.l.b16 %v301
  %v1102 = vunpack.c.l.b16 %v302
  %v1103 = vunpack.c.h.b16 %v302
  %v1104 = vunpack.c.l.b16 %v303
  %v1105 = vunpack.c.l.b16 %v304
  %v1106 = vunpack.c.h.b16 %v304
  %v1107 = vunpack.c.l.b16 %v305
  %v1108 = vunpack.c.l.b16 %v306
  %v1109 = vunpack.c.h.b16 %v306
  %v1110 = vunpack.c.l.b16 %v307
  %v1111 = vunpack.c.l.b16 %v308
  %v1112 = vunpack.c.h.b16 %v308
  %v1113 = vunpack.c.l.b16 %v309
  %v1114 = vunpack.c.l.b16 %v310
  %v1115 = vunpack.c.h.b16 %v310
  %v1116 = vunpack.c.l.b16 %v311
  %v1117 = vunpack.c.l.b16 %v312
  %v1118 = vunpack.c.h.b16 %v312
  %v1119 = vunpack.c.l.b16 %v313
  %v1120 = vunpack.c.l.b16 %v314
  %v1121 = vunpack.c.h.b16 %v314
  %v1122 = vunpack.c.l.b16 %v315
  %v1123 = vunpack.c.l.b16 %v316
  %v1124 = vunpack.c.h.b16 %v316
  %v1125 = vunpack.c.l.b16 %v317
  %v1126 = vunpack.c.l.b16 %v318
  %v1127 = vunpack.c.h.b16 %v318
  %v1128 = vunpack.c.l.b16 %v319
  %v1129 = vunpack.c.l.b16 %v320
  %v1130 = vunpack.c.h.b16 %v320
  %v1131 = vunpack.c.l.b16 %v321
  %v1132 = vunpack.c.l.b16 %v322
  %v1133 = vunpack.c.h.b16 %v322
  %v1134 = vunpack.c.l.b16 %v323
  %v1135 = vunpack.c.l.b16 %v324
  %v1136 = vunpack.c.h.b16 %v324
  %v1137 = vunpack.c.l.b16 %v325
  %v1138 = vpack.c.b16 %v709, %v706
  %v1139 = vpack.c.b16 %v710, %v707
  %v1140 = vpack.c.b16 %v711, %v708
  %v1141 = vpack.c.b16 %v715, %v712
  %v1142 = vpack.c.b16 %v716, %v713
  %v1143 = vpack.c.b16 %v717, %v714
  %v1144 = vpack.c.b16 %v721, %v718
  %v1145 = vpack.c.b16 %v722, %v719
  %v1146 = vpack.c.b16 %v723, %v720
  %v1147 = vpack.c.b16 %v727, %v724
  %v1148 = vpack.c.b16 %v728, %v725
  %v1149 = vpack.c.b16 %v729, %v726
  %v1150 = vpack.c.b16 %v733, %v730
  %v1151 = vpack.c.b16 %v734, %v731
  %v1152 = vpack.c.b16 %v735, %v732
  %v1153 = vpack.c.b16 %v739, %v736
  %v1154 = vpack.c.b16 %v740, %v737
  %v1155 = vpack.c.b16 %v741, %v738
  %v1156 = vpack.c.b16 %v745, %v742
  %v1157 = vpack.c.b16 %v746, %v743
  %v1158 = vpack.c.b16 %v747, %v744
  %v1159 = vpack.c.b16 %v751, %v748
  %v1160 = vpack.c.b16 %v752, %v749
  %v1161 = vpack.c.b16 %v753, %v750
  %v1162 = vpack.c.b16 %v757, %v754
  %v1163 = vpack.c.b16 %v758, %v755
  %v1164 = vpack.c.b16 %v759, %v756
  %v1165 = vpack.c.b16 %v763, %v760
  %v1166 = vpack.c.b16 %v764, %v761
  %v1167 = vpack.c.b16 %v765, %v762
  %v1168 = vpack.c.b16 %v769, %v766
  %v1169 = vpack.c.b16 %v770, %v767
  %v1170 = vpack.c.b16 %v771, %v768
  %v1171 = vpack.c.b16 %v775, %v772
  %v1172 = vpack.c.b16 %v776, %v773
  %v1173 = vpack.c.b16 %v777, %v774
  %v1174 = vpack.c.b16 %v781, %v778
  %v1175 = vpack.c.b16 %v782, %v779
  %v1176 = vpack.c.b16 %v783, %v780
  %v1177 = vpack.c.b16 %v787, %v784
  %v1178 = vpack.c.b16 %v788, %v785
  %v1179 = vpack.c.b16 %v789, %v786
  %v1180 = vpack.c.b16 %v793, %v790
  %v1181 = vpack.c.b16 %v794, %v791
  %v1182 = vpack.c.b16 %v795, %v792
  %v1183 = vpack.c.b16 %v799, %v796
  %v1184 = vpack.c.b16 %v800, %v797
  %v1185 = vpack.c.b16 %v801, %v798
  %v1186 = vpack.c.b16 %v805, %v802
  %v1187 = vpack.c.b16 %v806, %v803
  %v1188 = vpack.c.b16 %v807, %v804
  %v1189 = vpack.c.b16 %v811, %v808
  %v1190 = vpack.c.b16 %v812, %v809
  %v1191 = vpack.c.b16 %v813, %v810
  %v1192 = vpack.c.b16 %v817, %v814
  %v1193 = vpack.c.b16 %v818, %v815
  %v1194 = vpack.c.b16 %v819, %v816
  %v1195 = vpack.c.b16 %v823, %v820
  %v1196 = vpack.c.b16 %v824, %v821
  %v1197 = vpack.c.b16 %v825, %v822
  %v1198 = vpack.c.b16 %v829, %v826
  %v1199 = vpack.c.b16 %v830, %v827
  %v1200 = vpack.c.b16 %v831, %v828
  %v1201 = vpack.c.b16 %v835, %v832
  %v1202 = vpack.c.b16 %v836, %v833
  %v1203 = vpack.c.b16 %v837, %v834
  %v1204 = vpack.c.b16 %v841, %v838
  %v1205 = vpack.c.b16 %v842, %v839
  %v1206 = vpack.c.b16 %v843, %v840
  %v1207 = vpack.c.b16 %v847, %v844
  %v1208 = vpack.c.b16 %v848, %v845
  %v1209 = vpack.c.b16 %v849, %v846
  %v1210 = vpack.c.b16 %v853, %v850
  %v1211 = vpack.c.b16 %v854, %v851
  %v1212 = vpack.c.b16 %v855, %v852
  %v1213 = vpack.c.b16 %v859, %v856
  %v1214 = vpack.c.b16 %v860, %v857
  %v1215 = vpack.c.b16 %v861, %v858
  %v1216 = vpack.c.b16 %v865, %v862
  %v1217 = vpack.c.b16 %v866, %v863
  %v1218 = vpack.c.b16 %v867, %v864
  %v1219 = vpack.c.b16 %v871, %v868
  %v1220 = vpack.c.b16 %v872, %v869
  %v1221 = vpack.c.b16 %v873, %v870
  %v1222 = vpack.c.b16 %v877, %v874
  %v1223 = vpack.c.b16 %v878, %v875
  %v1224 = vpack.c.b16 %v879, %v876
  %v1225 = vpack.c.b16 %v883, %v880
  %v1226 = vpack.c.b16 %v884, %v881
  %v1227 = vpack.c.b16 %v885, %v882
  %v1228 = vpack.c.b16 %v889, %v886
  %v1229 = vpack.c.b16 %v890, %v887
  %v1230 = vpack.c.b16 %v891, %v888
  %v1231 = vpack.c.b16 %v895, %v892
  %v1232 = vpack.c.b16 %v896, %v893
  %v1233 = vpack.c.b16 %v897, %v894
  %v1234 = vpack.c.b16 %v901, %v898
  %v1235 = vpack.c.b16 %v902, %v899
  %v1236 = vpack.c.b16 %v903, %v900
  %v1237 = vpack.c.b16 %v907, %v904
  %v1238 = vpack.c.b16 %v908, %v905
  %v1239 = vpack.c.b16 %v909, %v906
  %v1240 = vpack.c.b16 %v913, %v910
  %v1241 = vpack.c.b16 %v914, %v911
  %v1242 = vpack.c.b16 %v915, %v912
  %v1243 = vpack.c.b16 %v919, %v916
  %v1244 = vpack.c.b16 %v920, %v917
  %v1245 = vpack.c.b16 %v921, %v918
  %v1246 = vpack.c.b16 %v925, %v922
  %v1247 = vpack.c.b16 %v926, %v923
  %v1248 = vpack.c.b16 %v927, %v924
  %v1249 = vpack.c.b16 %v931, %v928
  %v1250 = vpack.c.b16 %v932, %v929
  %v1251 = vpack.c.b16 %v933, %v930
  %v1252 = vpack.c.b16 %v937, %v934
  %v1253 = vpack.c.b16 %v938, %v935
  %v1254 = vpack.c.b16 %v939, %v936
  %v1255 = vpack.c.b16 %v943, %v940
  %v1256 = vpack.c.b16 %v944, %v941
  %v1257 = vpack.c.b16 %v945, %v942
  %v1258 = vpack.c.b16 %v949, %v946
  %v1259 = vpack.c.b16 %v950, %v947
  %v1260 = vpack.c.b16 %v951, %v948
  %v1261 = vpack.c.b16 %v955, %v952
  %v1262 = vpack.c.b16 %v956, %v953
  %v1263 = vpack.c.b16 %v957, %v954
  %v1264 = vpack.c.b16 %v961, %v958
  %v1265 = vpack.c.b16 %v962, %v959
  %v1266 = vpack.c.b16 %v963, %v960
  %v1267 = vpack.c.b16 %v967, %v964
  %v1268 = vpack.c.b16 %v968, %v965
  %v1269 = vpack.c.b16 %v969, %v966
  %v1270 = vpack.c.b16 %v973, %v970
  %v1271 = vpack.c.b16 %v974, %v971
  %v1272 = vpack.c.b16 %v975, %v972
  %v1273 = vpack.c.b16 %v979, %v976
  %v1274 = vpack.c.b16 %v980, %v977
  %v1275 = vpack.c.b16 %v981, %v978
  %v1276 = vpack.c.b16 %v985, %v982
  %v1277 = vpack.c.b16 %v986, %v983
  %v1278 = vpack.c.b16 %v987, %v984
  %v1279 = vpack.c.b16 %v991, %v988
  %v1280 = vpack.c.b16 %v992, %v989
  %v1281 = vpack.c.b16 %v993, %v990
  %v1282 = vpack.c.b16 %v997, %v994
  %v1283 = vpack.c.b16 %v998, %v995
  %v1284 = vpack.c.b16 %v999, %v996
  %v1285 = vpack.c.b16 %v1003, %v1000
  %v1286 = vpack.c.b16 %v1004, %v1001
  %v1287 = vpack.c.b16 %v1005, %v1002
  %v1288 = vpack.c.b16 %v1009, %v1006
  %v1289 = vpack.c.b16 %v1010, %v1007
  %v1290 = vpack.c.b16 %v1011, %v1008
  %v1291 = vpack.c.b16 %v1015, %v1012
  %v1292 = vpack.c.b16 %v1016, %v1013
  %v1293 = vpack.c.b16 %v1017, %v1014
  %v1294 = vpack.c.b16 %v1021, %v1018
  %v1295 = vpack.c.b16 %v1022, %v1019
  %v1296 = vpack.c.b16 %v1023, %v1020
  %v1297 = vpack.c.b16 %v1027, %v1024
  %v1298 = vpack.c.b16 %v1028, %v1025
  %v1299 = vpack.c.b16 %v1029, %v1026
  %v1300 = vpack.c.b16 %v1033, %v1030
  %v1301 = vpack.c.b16 %v1034, %v1031
  %v1302 = vpack.c.b16 %v1035, %v1032
  %v1303 = vpack.c.b16 %v1039, %v1036
  %v1304 = vpack.c.b16 %v1040, %v1037
  %v1305 = vpack.c.b16 %v1041, %v1038
  %v1306 = vpack.c.b16 %v1045, %v1042
  %v1307 = vpack.c.b16 %v1046, %v1043
  %v1308 = vpack.c.b16 %v1047, %v1044
  %v1309 = vpack.c.b16 %v1051, %v1048
  %v1310 = vpack.c.b16 %v1052, %v1049
  %v1311 = vpack.c.b16 %v1053, %v1050
  %v1312 = vpack.c.b16 %v1057, %v1054
  %v1313 = vpack.c.b16 %v1058, %v1055
  %v1314 = vpack.c.b16 %v1059, %v1056
  %v1315 = vpack.c.b16 %v1063, %v1060
  %v1316 = vpack.c.b16 %v1064, %v1061
  %v1317 = vpack.c.b16 %v1065, %v1062
  %v1318 = vpack.c.b16 %v1069, %v1066
  %v1319 = vpack.c.b16 %v1070, %v1067
  %v1320 = vpack.c.b16 %v1071, %v1068
  %v1321 = vpack.c.b16 %v1075, %v1072
  %v1322 = vpack.c.b16 %v1076, %v1073
  %v1323 = vpack.c.b16 %v1077, %v1074
  %v1324 = vpack.c.b16 %v1081, %v1078
  %v1325 = vpack.c.b16 %v1082, %v1079
  %v1326 = vpack.c.b16 %v1083, %v1080
  %v1327 = vpack.c.b16 %v1087, %v1084
  %v1328 = vpack.c.b16 %v1088, %v1085
  %v1329 = vpack.c.b16 %v1089, %v1086
  %v1330 = vpack.c.b16 %v1093, %v1090
  %v1331 = vpack.c.b16 %v1094, %v1091
  %v1332 = vpack.c.b16 %v1095, %v1092
  %v1333 = vpack.c.b16 %v1099, %v1096
  %v1334 = vpack.c.b16 %v1100, %v1097
  %v1335 = vpack.c.b16 %v1101, %v1098
  %v1336 = vpack.c.b16 %v1105, %v1102
  %v1337 = vpack.c.b16 %v1106, %v1103
  %v1338 = vpack.c.b16 %v1107, %v1104
  %v1339 = vpack.c.b16 %v1111, %v1108
  %v1340 = vpack.c.b16 %v1112, %v1109
  %v1341 = vpack.c.b16 %v1113, %v1110
  %v1342 = vpack.c.b16 %v1117, %v1114
  %v1343 = vpack.c.b16 %v1118, %v1115
  %v1344 = vpack.c.b16 %v1119, %v1116
  %v1345 = vpack.c.b16 %v1123, %v1120
  %v1346 = vpack.c.b16 %v1124, %v1121
  %v1347 = vpack.c.b16 %v1125, %v1122
  %v1348 = vpack.c.b16 %v1129, %v1126
  %v1349 = vpack.c.b16 %v1130, %v1127
  %v1350 = vpack.c.b16 %v1131, %v1128
  %v1351 = vpack.c.b16 %v1135, %v1132
  %v1352 = vpack.c.b16 %v1136, %v1133
  %v1353 = vpack.c.b16 %v1137, %v1134
  %1570 = vmatprep.subr.bf16.mxu0 %v1139
  %1571 = vmatpush1.bf16.msra.mxu0 %v1138
  %1572 = vmatprep.subr.bf16.mxu0 %v1142
  %1573 = vmatpush1.bf16.msra.mxu0 %v1141
  %1574 = vmatprep.subr.bf16.mxu0 %v1145
  %1575 = vmatpush1.bf16.msra.mxu0 %v1144
  %1576 = vmatprep.subr.bf16.mxu0 %v1148
  %1577 = vmatpush1.bf16.msra.mxu0 %v1147
  %1578 = vmatprep.subr.bf16.mxu0 %v1151
  %1579 = vmatpush1.bf16.msra.mxu0 %v1150
  %1580 = vmatprep.subr.bf16.mxu0 %v1154
  %1581 = vmatpush1.bf16.msra.mxu0 %v1153
  %1582 = vmatprep.subr.bf16.mxu0 %v1157
  %1583 = vmatpush1.bf16.msra.mxu0 %v1156
  %1584 = vmatprep.subr.bf16.mxu0 %v1160
  %1585 = vmatpush1.bf16.msra.mxu0 %v1159
  %1586 = vmatprep.subr.bf16.mxu0 %v1163
  %1587 = vmatpush1.bf16.msra.mxu0 %v1162
  %1588 = vmatprep.subr.bf16.mxu0 %v1166
  %1589 = vmatpush1.bf16.msra.mxu0 %v1165
  %1590 = vmatprep.subr.bf16.mxu0 %v1169
  %1591 = vmatpush1.bf16.msra.mxu0 %v1168
  %1592 = vmatprep.subr.bf16.mxu0 %v1172
  %1593 = vmatpush1.bf16.msra.mxu0 %v1171
  %1594 = vmatprep.subr.bf16.mxu0 %v1175
  %1595 = vmatpush1.bf16.msra.mxu0 %v1174
  %1596 = vmatprep.subr.bf16.mxu0 %v1178
  %1597 = vmatpush1.bf16.msra.mxu0 %v1177
  %1598 = vmatprep.subr.bf16.mxu0 %v1181
  %1599 = vmatpush1.bf16.msra.mxu0 %v1180
  %1600 = vmatprep.subr.bf16.mxu0 %v1184
  %1601 = vmatpush1.bf16.msra.mxu0 %v1183
  %1602 = vmatprep.mubr.bf16.mxu0 %v383
  %1603 = vmatmul.mubr.bf16.gmra.mrb[0].mxu0 %v382
  %v1604 = vpop.f32.mrb[0].mxu0
  %v1605 = vadd.f32 0.0, %v1604
  %v1606 = vpop.f32.mrb[0].mxu0
  %v1607 = vadd.f32 0.0, %v1606
  %v1608 = vpop.f32.mrb[0].mxu0
  %v1609 = vadd.f32 0.0, %v1608
  %v1610 = vpop.f32.mrb[0].mxu0
  %v1611 = vadd.f32 0.0, %v1610
  %1612 = vmatprep.mubr.bf16.mxu0 %v392
  %1613 = vmatmul.mubr.bf16.gmra.mrb[0].mxu0 %v391
  %v1614 = vpop.f32.mrb[0].mxu0
  %v1615 = vadd.f32 0.0, %v1614
  %v1616 = vpop.f32.mrb[0].mxu0
  %v1617 = vadd.f32 0.0, %v1616
  %v1618 = vpop.f32.mrb[0].mxu0
  %v1619 = vadd.f32 0.0, %v1618
  %v1620 = vpop.f32.mrb[0].mxu0
  %v1621 = vadd.f32 0.0, %v1620
  %1622 = vdwg.mxu0
  %1623 = vmatprep.subr.bf16.mxu0 %v1187
  %1624 = vmatpush1.bf16.msra.mxu0 %v1186
  %1625 = vmatprep.subr.bf16.mxu0 %v1190
  %1626 = vmatpush1.bf16.msra.mxu0 %v1189
  %1627 = vmatprep.subr.bf16.mxu0 %v1193
  %1628 = vmatpush1.bf16.msra.mxu0 %v1192
  %1629 = vmatprep.subr.bf16.mxu0 %v1196
  %1630 = vmatpush1.bf16.msra.mxu0 %v1195
  %1631 = vmatprep.subr.bf16.mxu0 %v1199
  %1632 = vmatpush1.bf16.msra.mxu0 %v1198
  %1633 = vmatprep.subr.bf16.mxu0 %v1202
  %1634 = vmatpush1.bf16.msra.mxu0 %v1201
  %1635 = vmatprep.subr.bf16.mxu0 %v1205
  %1636 = vmatpush1.bf16.msra.mxu0 %v1204
  %1637 = vmatprep.subr.bf16.mxu0 %v1208
  %1638 = vmatpush1.bf16.msra.mxu0 %v1207
  %1639 = vmatprep.subr.bf16.mxu0 %v1211
  %1640 = vmatpush1.bf16.msra.mxu0 %v1210
  %1641 = vmatprep.subr.bf16.mxu0 %v1214
  %1642 = vmatpush1.bf16.msra.mxu0 %v1213
  %1643 = vmatprep.subr.bf16.mxu0 %v1217
  %1644 = vmatpush1.bf16.msra.mxu0 %v1216
  %1645 = vmatprep.subr.bf16.mxu0 %v1220
  %1646 = vmatpush1.bf16.msra.mxu0 %v1219
  %1647 = vmatprep.subr.bf16.mxu0 %v1223
  %1648 = vmatpush1.bf16.msra.mxu0 %v1222
  %1649 = vmatprep.subr.bf16.mxu0 %v1226
  %1650 = vmatpush1.bf16.msra.mxu0 %v1225
  %1651 = vmatprep.subr.bf16.mxu0 %v1229
  %1652 = vmatpush1.bf16.msra.mxu0 %v1228
  %1653 = vmatprep.subr.bf16.mxu0 %v1232
  %1654 = vmatpush1.bf16.msra.mxu0 %v1231
  %1655 = vmatprep.mubr.bf16.mxu0 %v385
  %1656 = vmatmul.mubr.bf16.gmra.mrb[0].mxu0 %v384
  %v1657 = vpop.f32.mrb[0].mxu0
  %v1658 = vadd.f32 %v1605, %v1657
  %v1659 = vpop.f32.mrb[0].mxu0
  %v1660 = vadd.f32 %v1607, %v1659
  %v1661 = vpop.f32.mrb[0].mxu0
  %v1662 = vadd.f32 %v1609, %v1661
  %v1663 = vpop.f32.mrb[0].mxu0
  %v1664 = vadd.f32 %v1611, %v1663
  %1665 = vmatprep.mubr.bf16.mxu0 %v394
  %1666 = vmatmul.mubr.bf16.gmra.mrb[0].mxu0 %v393
  %v1667 = vpop.f32.mrb[0].mxu0
  %v1668 = vadd.f32 %v1615, %v1667
  %v1669 = vpop.f32.mrb[0].mxu0
  %v1670 = vadd.f32 %v1617, %v1669
  %v1671 = vpop.f32.mrb[0].mxu0
  %v1672 = vadd.f32 %v1619, %v1671
  %v1673 = vpop.f32.mrb[0].mxu0
  %v1674 = vadd.f32 %v1621, %v1673
  %1675 = vdwg.mxu0
  %1676 = vmatprep.subr.bf16.mxu0 %v1235
  %1677 = vmatpush1.bf16.msra.mxu0 %v1234
  %1678 = vmatprep.subr.bf16.mxu0 %v1238
  %1679 = vmatpush1.bf16.msra.mxu0 %v1237
  %1680 = vmatprep.subr.bf16.mxu0 %v1241
  %1681 = vmatpush1.bf16.msra.mxu0 %v1240
  %1682 = vmatprep.subr.bf16.mxu0 %v1244
  %1683 = vmatpush1.bf16.msra.mxu0 %v1243
  %1684 = vmatprep.subr.bf16.mxu0 %v1247
  %1685 = vmatpush1.bf16.msra.mxu0 %v1246
  %1686 = vmatprep.subr.bf16.mxu0 %v1250
  %1687 = vmatpush1.bf16.msra.mxu0 %v1249
  %1688 = vmatprep.subr.bf16.mxu0 %v1253
  %1689 = vmatpush1.bf16.msra.mxu0 %v1252
  %1690 = vmatprep.subr.bf16.mxu0 %v1256
  %1691 = vmatpush1.bf16.msra.mxu0 %v1255
  %1692 = vmatprep.subr.bf16.mxu0 %v1259
  %1693 = vmatpush1.bf16.msra.mxu0 %v1258
  %1694 = vmatprep.subr.bf16.mxu0 %v1262
  %1695 = vmatpush1.bf16.msra.mxu0 %v1261
  %1696 = vmatprep.subr.bf16.mxu0 %v1265
  %1697 = vmatpush1.bf16.msra.mxu0 %v1264
  %1698 = vmatprep.subr.bf16.mxu0 %v1268
  %1699 = vmatpush1.bf16.msra.mxu0 %v1267
  %1700 = vmatprep.subr.bf16.mxu0 %v1271
  %1701 = vmatpush1.bf16.msra.mxu0 %v1270
  %1702 = vmatprep.subr.bf16.mxu0 %v1274
  %1703 = vmatpush1.bf16.msra.mxu0 %v1273
  %1704 = vmatprep.subr.bf16.mxu0 %v1277
  %1705 = vmatpush1.bf16.msra.mxu0 %v1276
  %1706 = vmatprep.subr.bf16.mxu0 %v1280
  %1707 = vmatpush1.bf16.msra.mxu0 %v1279
  %1708 = vmatprep.mubr.bf16.mxu0 %v387
  %1709 = vmatmul.mubr.bf16.gmra.mrb[0].mxu0 %v386
  %v1710 = vpop.f32.mrb[0].mxu0
  %v1711 = vadd.f32 %v1658, %v1710
  %v1712 = vpop.f32.mrb[0].mxu0
  %v1713 = vadd.f32 %v1660, %v1712
  %v1714 = vpop.f32.mrb[0].mxu0
  %v1715 = vadd.f32 %v1662, %v1714
  %v1716 = vpop.f32.mrb[0].mxu0
  %v1717 = vadd.f32 %v1664, %v1716
  %1718 = vmatprep.mubr.bf16.mxu0 %v396
  %1719 = vmatmul.mubr.bf16.gmra.mrb[0].mxu0 %v395
  %v1720 = vpop.f32.mrb[0].mxu0
  %v1721 = vadd.f32 %v1668, %v1720
  %v1722 = vpop.f32.mrb[0].mxu0
  %v1723 = vadd.f32 %v1670, %v1722
  %v1724 = vpop.f32.mrb[0].mxu0
  %v1725 = vadd.f32 %v1672, %v1724
  %v1726 = vpop.f32.mrb[0].mxu0
  %v1727 = vadd.f32 %v1674, %v1726
  %1728 = vdwg.mxu0
  %1729 = vmatprep.subr.bf16.mxu0 %v1283
  %1730 = vmatpush1.bf16.msra.mxu0 %v1282
  %1731 = vmatprep.subr.bf16.mxu0 %v1286
  %1732 = vmatpush1.bf16.msra.mxu0 %v1285
  %1733 = vmatprep.subr.bf16.mxu0 %v1289
  %1734 = vmatpush1.bf16.msra.mxu0 %v1288
  %1735 = vmatprep.subr.bf16.mxu0 %v1292
  %1736 = vmatpush1.bf16.msra.mxu0 %v1291
  %1737 = vmatprep.subr.bf16.mxu0 %v1295
  %1738 = vmatpush1.bf16.msra.mxu0 %v1294
  %1739 = vmatprep.subr.bf16.mxu0 %v1298
  %1740 = vmatpush1.bf16.msra.mxu0 %v1297
  %1741 = vmatprep.subr.bf16.mxu0 %v1301
  %1742 = vmatpush1.bf16.msra.mxu0 %v1300
  %1743 = vmatprep.subr.bf16.mxu0 %v1304
  %1744 = vmatpush1.bf16.msra.mxu0 %v1303
  %1745 = vmatprep.subr.bf16.mxu0 %v1307
  %1746 = vmatpush1.bf16.msra.mxu0 %v1306
  %1747 = vmatprep.subr.bf16.mxu0 %v1310
  %1748 = vmatpush1.bf16.msra.mxu0 %v1309
  %1749 = vmatprep.subr.bf16.mxu0 %v1313
  %1750 = vmatpush1.bf16.msra.mxu0 %v1312
  %1751 = vmatprep.subr.bf16.mxu0 %v1316
  %1752 = vmatpush1.bf16.msra.mxu0 %v1315
  %1753 = vmatprep.subr.bf16.mxu0 %v1319
  %1754 = vmatpush1.bf16.msra.mxu0 %v1318
  %1755 = vmatprep.subr.bf16.mxu0 %v1322
  %1756 = vmatpush1.bf16.msra.mxu0 %v1321
  %1757 = vmatprep.subr.bf16.mxu0 %v1325
  %1758 = vmatpush1.bf16.msra.mxu0 %v1324
  %1759 = vmatprep.subr.bf16.mxu0 %v1328
  %1760 = vmatpush1.bf16.msra.mxu0 %v1327
  %1761 = vmatprep.mubr.bf16.mxu0 %v389
  %1762 = vmatmul.mubr.bf16.gmra.mrb[0].mxu0 %v388
  %v1763 = vpop.f32.mrb[0].mxu0
  %v1764 = vadd.f32 %v1711, %v1763
  %v1765 = vpop.f32.mrb[0].mxu0
  %v1766 = vadd.f32 %v1713, %v1765
  %v1767 = vpop.f32.mrb[0].mxu0
  %v1768 = vadd.f32 %v1715, %v1767
  %v1769 = vpop.f32.mrb[0].mxu0
  %v1770 = vadd.f32 %v1717, %v1769
  %1771 = vmatprep.mubr.bf16.mxu0 %v398
  %1772 = vmatmul.mubr.bf16.gmra.mrb[0].mxu0 %v397
  %v1773 = vpop.f32.mrb[0].mxu0
  %v1774 = vadd.f32 %v1721, %v1773
  %v1775 = vpop.f32.mrb[0].mxu0
  %v1776 = vadd.f32 %v1723, %v1775
  %v1777 = vpop.f32.mrb[0].mxu0
  %v1778 = vadd.f32 %v1725, %v1777
  %v1779 = vpop.f32.mrb[0].mxu0
  %v1780 = vadd.f32 %v1727, %v1779
  %1781 = vdwg.mxu0
  %1782 = vmatprep.subr.bf16.mxu0 %v1331
  %1783 = vmatpush1.bf16.msra.mxu0 %v1330
  %1784 = vmatprep.subr.bf16.mxu0 %v1334
  %1785 = vmatpush1.bf16.msra.mxu0 %v1333
  %1786 = vmatprep.subr.bf16.mxu0 %v1337
  %1787 = vmatpush1.bf16.msra.mxu0 %v1336
  %1788 = vmatprep.subr.bf16.mxu0 %v1340
  %1789 = vmatpush1.bf16.msra.mxu0 %v1339
  %1790 = vmatprep.subr.bf16.mxu0 %v1343
  %1791 = vmatpush1.bf16.msra.mxu0 %v1342
  %1792 = vmatprep.subr.bf16.mxu0 %v1346
  %1793 = vmatpush1.bf16.msra.mxu0 %v1345
  %1794 = vmatprep.subr.bf16.mxu0 %v1349
  %1795 = vmatpush1.bf16.msra.mxu0 %v1348
  %1796 = vmatprep.subr.bf16.mxu0 %v1352
  %1797 = vmatpush1.bf16.msra.mxu0 %v1351
  %1798 = vmatprep.subr.bf16.mxu0 0
  %1799 = vmatpush1.bf16.msra.mxu0 0
  %1800 = vmatprep.subr.bf16.mxu0 0
  %1801 = vmatpush1.bf16.msra.mxu0 0
  %1802 = vmatprep.subr.bf16.mxu0 0
  %1803 = vmatpush1.bf16.msra.mxu0 0
  %1804 = vmatprep.subr.bf16.mxu0 0
  %1805 = vmatpush1.bf16.msra.mxu0 0
  %1806 = vmatprep.subr.bf16.mxu0 0
  %1807 = vmatpush1.bf16.msra.mxu0 0
  %1808 = vmatprep.subr.bf16.mxu0 0
  %1809 = vmatpush1.bf16.msra.mxu0 0
  %1810 = vmatprep.subr.bf16.mxu0 0
  %1811 = vmatpush1.bf16.msra.mxu0 0
  %1812 = vmatprep.subr.bf16.mxu0 0
  %1813 = vmatpush1.bf16.msra.mxu0 0
  %1814 = vmatprep.mubr.bf16.mxu0 0
  %1815 = vmatmul.mubr.bf16.gmra.mrb[0].mxu0 %v390
  %v1816 = vpop.f32.mrb[0].mxu0
  %v1817 = vadd.f32 %v1764, %v1816
  %v1818 = vpop.f32.mrb[0].mxu0
  %v1819 = vadd.f32 %v1766, %v1818
  %v1820 = vpop.f32.mrb[0].mxu0
  %v1821 = vadd.f32 %v1768, %v1820
  %v1822 = vpop.f32.mrb[0].mxu0
  %v1823 = vadd.f32 %v1770, %v1822
  %1824 = vmatprep.mubr.bf16.mxu0 0
  %1825 = vmatmul.mubr.bf16.gmra.mrb[0].mxu0 %v399
  %v1826 = vpop.f32.mrb[0].mxu0
  %v1827 = vadd.f32 %v1774, %v1826
  %v1828 = vpop.f32.mrb[0].mxu0
  %v1829 = vadd.f32 %v1776, %v1828
  %v1830 = vpop.f32.mrb[0].mxu0
  %v1831 = vadd.f32 %v1778, %v1830
  %v1832 = vpop.f32.mrb[0].mxu0
  %v1833 = vadd.f32 %v1780, %v1832
  %1834 = vdwg.mxu0
  %1835 = vmatprep.subr.bf16.mxu0 0
  %1836 = vmatpush1.bf16.msra.mxu0 %v1140
  %1837 = vmatprep.subr.bf16.mxu0 0
  %1838 = vmatpush1.bf16.msra.mxu0 %v1143
  %1839 = vmatprep.subr.bf16.mxu0 0
  %1840 = vmatpush1.bf16.msra.mxu0 %v1146
  %1841 = vmatprep.subr.bf16.mxu0 0
  %1842 = vmatpush1.bf16.msra.mxu0 %v1149
  %1843 = vmatprep.subr.bf16.mxu0 0
  %1844 = vmatpush1.bf16.msra.mxu0 %v1152
  %1845 = vmatprep.subr.bf16.mxu0 0
  %1846 = vmatpush1.bf16.msra.mxu0 %v1155
  %1847 = vmatprep.subr.bf16.mxu0 0
  %1848 = vmatpush1.bf16.msra.mxu0 %v1158
  %1849 = vmatprep.subr.bf16.mxu0 0
  %1850 = vmatpush1.bf16.msra.mxu0 %v1161
  %1851 = vmatprep.subr.bf16.mxu0 0
  %1852 = vmatpush1.bf16.msra.mxu0 %v1164
  %1853 = vmatprep.subr.bf16.mxu0 0
  %1854 = vmatpush1.bf16.msra.mxu0 %v1167
  %1855 = vmatprep.subr.bf16.mxu0 0
  %1856 = vmatpush1.bf16.msra.mxu0 %v1170
  %1857 = vmatprep.subr.bf16.mxu0 0
  %1858 = vmatpush1.bf16.msra.mxu0 %v1173
  %1859 = vmatprep.subr.bf16.mxu0 0
  %1860 = vmatpush1.bf16.msra.mxu0 %v1176
  %1861 = vmatprep.subr.bf16.mxu0 0
  %1862 = vmatpush1.bf16.msra.mxu0 %v1179
  %1863 = vmatprep.subr.bf16.mxu0 0
  %1864 = vmatpush1.bf16.msra.mxu0 %v1182
  %1865 = vmatprep.subr.bf16.mxu0 0
  %1866 = vmatpush1.bf16.msra.mxu0 %v1185
  %1867 = vmatprep.mubr.bf16.mxu0 %v383
  %1868 = vmatmul.mubr.bf16.gmra.mrb[0].mxu0 %v382
  %v1869 = vpop.f32.mrb[0].mxu0
  %v1870 = vadd.f32 0.0, %v1869
  %v1871 = vpop.f32.mrb[0].mxu0
  %v1872 = vpop.f32.mrb[0].mxu0
  %v1873 = vadd.f32 0.0, %v1872
  %v1874 = vpop.f32.mrb[0].mxu0
  %1875 = vmatprep.mubr.bf16.mxu0 %v392
  %1876 = vmatmul.mubr.bf16.gmra.mrb[0].mxu0 %v391
  %v1877 = vpop.f32.mrb[0].mxu0
  %v1878 = vadd.f32 0.0, %v1877
  %v1879 = vpop.f32.mrb[0].mxu0
  %v1880 = vpop.f32.mrb[0].mxu0
  %v1881 = vadd.f32 0.0, %v1880
  %v1882 = vpop.f32.mrb[0].mxu0
  %1883 = vdwg.mxu0
  %1884 = vmatprep.subr.bf16.mxu0 0
  %1885 = vmatpush1.bf16.msra.mxu0 %v1188
  %1886 = vmatprep.subr.bf16.mxu0 0
  %1887 = vmatpush1.bf16.msra.mxu0 %v1191
  %1888 = vmatprep.subr.bf16.mxu0 0
  %1889 = vmatpush1.bf16.msra.mxu0 %v1194
  %1890 = vmatprep.subr.bf16.mxu0 0
  %1891 = vmatpush1.bf16.msra.mxu0 %v1197
  %1892 = vmatprep.subr.bf16.mxu0 0
  %1893 = vmatpush1.bf16.msra.mxu0 %v1200
  %1894 = vmatprep.subr.bf16.mxu0 0
  %1895 = vmatpush1.bf16.msra.mxu0 %v1203
  %1896 = vmatprep.subr.bf16.mxu0 0
  %1897 = vmatpush1.bf16.msra.mxu0 %v1206
  %1898 = vmatprep.subr.bf16.mxu0 0
  %1899 = vmatpush1.bf16.msra.mxu0 %v1209
  %1900 = vmatprep.subr.bf16.mxu0 0
  %1901 = vmatpush1.bf16.msra.mxu0 %v1212
  %1902 = vmatprep.subr.bf16.mxu0 0
  %1903 = vmatpush1.bf16.msra.mxu0 %v1215
  %1904 = vmatprep.subr.bf16.mxu0 0
  %1905 = vmatpush1.bf16.msra.mxu0 %v1218
  %1906 = vmatprep.subr.bf16.mxu0 0
  %1907 = vmatpush1.bf16.msra.mxu0 %v1221
  %1908 = vmatprep.subr.bf16.mxu0 0
  %1909 = vmatpush1.bf16.msra.mxu0 %v1224
  %1910 = vmatprep.subr.bf16.mxu0 0
  %1911 = vmatpush1.bf16.msra.mxu0 %v1227
  %1912 = vmatprep.subr.bf16.mxu0 0
  %1913 = vmatpush1.bf16.msra.mxu0 %v1230
  %1914 = vmatprep.subr.bf16.mxu0 0
  %1915 = vmatpush1.bf16.msra.mxu0 %v1233
  %1916 = vmatprep.mubr.bf16.mxu0 %v385
  %1917 = vmatmul.mubr.bf16.gmra.mrb[0].mxu0 %v384
  %v1918 = vpop.f32.mrb[0].mxu0
  %v1919 = vadd.f32 %v1870, %v1918
  %v1920 = vpop.f32.mrb[0].mxu0
  %v1921 = vpop.f32.mrb[0].mxu0
  %v1922 = vadd.f32 %v1873, %v1921
  %v1923 = vpop.f32.mrb[0].mxu0
  %1924 = vmatprep.mubr.bf16.mxu0 %v394
  %1925 = vmatmul.mubr.bf16.gmra.mrb[0].mxu0 %v393
  %v1926 = vpop.f32.mrb[0].mxu0
  %v1927 = vadd.f32 %v1878, %v1926
  %v1928 = vpop.f32.mrb[0].mxu0
  %v1929 = vpop.f32.mrb[0].mxu0
  %v1930 = vadd.f32 %v1881, %v1929
  %v1931 = vpop.f32.mrb[0].mxu0
  %1932 = vdwg.mxu0
  %1933 = vmatprep.subr.bf16.mxu0 0
  %1934 = vmatpush1.bf16.msra.mxu0 %v1236
  %1935 = vmatprep.subr.bf16.mxu0 0
  %1936 = vmatpush1.bf16.msra.mxu0 %v1239
  %1937 = vmatprep.subr.bf16.mxu0 0
  %1938 = vmatpush1.bf16.msra.mxu0 %v1242
  %1939 = vmatprep.subr.bf16.mxu0 0
  %1940 = vmatpush1.bf16.msra.mxu0 %v1245
  %1941 = vmatprep.subr.bf16.mxu0 0
  %1942 = vmatpush1.bf16.msra.mxu0 %v1248
  %1943 = vmatprep.subr.bf16.mxu0 0
  %1944 = vmatpush1.bf16.msra.mxu0 %v1251
  %1945 = vmatprep.subr.bf16.mxu0 0
  %1946 = vmatpush1.bf16.msra.mxu0 %v1254
  %1947 = vmatprep.subr.bf16.mxu0 0
  %1948 = vmatpush1.bf16.msra.mxu0 %v1257
  %1949 = vmatprep.subr.bf16.mxu0 0
  %1950 = vmatpush1.bf16.msra.mxu0 %v1260
  %1951 = vmatprep.subr.bf16.mxu0 0
  %1952 = vmatpush1.bf16.msra.mxu0 %v1263
  %1953 = vmatprep.subr.bf16.mxu0 0
  %1954 = vmatpush1.bf16.msra.mxu0 %v1266
  %1955 = vmatprep.subr.bf16.mxu0 0
  %1956 = vmatpush1.bf16.msra.mxu0 %v1269
  %1957 = vmatprep.subr.bf16.mxu0 0
  %1958 = vmatpush1.bf16.msra.mxu0 %v1272
  %1959 = vmatprep.subr.bf16.mxu0 0
  %1960 = vmatpush1.bf16.msra.mxu0 %v1275
  %1961 = vmatprep.subr.bf16.mxu0 0
  %1962 = vmatpush1.bf16.msra.mxu0 %v1278
  %1963 = vmatprep.subr.bf16.mxu0 0
  %1964 = vmatpush1.bf16.msra.mxu0 %v1281
  %1965 = vmatprep.mubr.bf16.mxu0 %v387
  %1966 = vmatmul.mubr.bf16.gmra.mrb[0].mxu0 %v386
  %v1967 = vpop.f32.mrb[0].mxu0
  %v1968 = vadd.f32 %v1919, %v1967
  %v1969 = vpop.f32.mrb[0].mxu0
  %v1970 = vpop.f32.mrb[0].mxu0
  %v1971 = vadd.f32 %v1922, %v1970
  %v1972 = vpop.f32.mrb[0].mxu0
  %1973 = vmatprep.mubr.bf16.mxu0 %v396
  %1974 = vmatmul.mubr.bf16.gmra.mrb[0].mxu0 %v395
  %v1975 = vpop.f32.mrb[0].mxu0
  %v1976 = vadd.f32 %v1927, %v1975
  %v1977 = vpop.f32.mrb[0].mxu0
  %v1978 = vpop.f32.mrb[0].mxu0
  %v1979 = vadd.f32 %v1930, %v1978
  %v1980 = vpop.f32.mrb[0].mxu0
  %1981 = vdwg.mxu0
  %1982 = vmatprep.subr.bf16.mxu0 0
  %1983 = vmatpush1.bf16.msra.mxu0 %v1284
  %1984 = vmatprep.subr.bf16.mxu0 0
  %1985 = vmatpush1.bf16.msra.mxu0 %v1287
  %1986 = vmatprep.subr.bf16.mxu0 0
  %1987 = vmatpush1.bf16.msra.mxu0 %v1290
  %1988 = vmatprep.subr.bf16.mxu0 0
  %1989 = vmatpush1.bf16.msra.mxu0 %v1293
  %1990 = vmatprep.subr.bf16.mxu0 0
  %1991 = vmatpush1.bf16.msra.mxu0 %v1296
  %1992 = vmatprep.subr.bf16.mxu0 0
  %1993 = vmatpush1.bf16.msra.mxu0 %v1299
  %1994 = vmatprep.subr.bf16.mxu0 0
  %1995 = vmatpush1.bf16.msra.mxu0 %v1302
  %1996 = vmatprep.subr.bf16.mxu0 0
  %1997 = vmatpush1.bf16.msra.mxu0 %v1305
  %1998 = vmatprep.subr.bf16.mxu0 0
  %1999 = vmatpush1.bf16.msra.mxu0 %v1308
  %2000 = vmatprep.subr.bf16.mxu0 0
  %2001 = vmatpush1.bf16.msra.mxu0 %v1311
  %2002 = vmatprep.subr.bf16.mxu0 0
  %2003 = vmatpush1.bf16.msra.mxu0 %v1314
  %2004 = vmatprep.subr.bf16.mxu0 0
  %2005 = vmatpush1.bf16.msra.mxu0 %v1317
  %2006 = vmatprep.subr.bf16.mxu0 0
  %2007 = vmatpush1.bf16.msra.mxu0 %v1320
  %2008 = vmatprep.subr.bf16.mxu0 0
  %2009 = vmatpush1.bf16.msra.mxu0 %v1323
  %2010 = vmatprep.subr.bf16.mxu0 0
  %2011 = vmatpush1.bf16.msra.mxu0 %v1326
  %2012 = vmatprep.subr.bf16.mxu0 0
  %2013 = vmatpush1.bf16.msra.mxu0 %v1329
  %2014 = vmatprep.mubr.bf16.mxu0 %v389
  %2015 = vmatmul.mubr.bf16.gmra.mrb[0].mxu0 %v388
  %v2016 = vpop.f32.mrb[0].mxu0
  %v2017 = vadd.f32 %v1968, %v2016
  %v2018 = vpop.f32.mrb[0].mxu0
  %v2019 = vpop.f32.mrb[0].mxu0
  %v2020 = vadd.f32 %v1971, %v2019
  %v2021 = vpop.f32.mrb[0].mxu0
  %2022 = vmatprep.mubr.bf16.mxu0 %v398
  %2023 = vmatmul.mubr.bf16.gmra.mrb[0].mxu0 %v397
  %v2024 = vpop.f32.mrb[0].mxu0
  %v2025 = vadd.f32 %v1976, %v2024
  %v2026 = vpop.f32.mrb[0].mxu0
  %v2027 = vpop.f32.mrb[0].mxu0
  %v2028 = vadd.f32 %v1979, %v2027
  %v2029 = vpop.f32.mrb[0].mxu0
  %2030 = vdwg.mxu0
  %2031 = vmatprep.subr.bf16.mxu0 0
  %2032 = vmatpush1.bf16.msra.mxu0 %v1332
  %2033 = vmatprep.subr.bf16.mxu0 0
  %2034 = vmatpush1.bf16.msra.mxu0 %v1335
  %2035 = vmatprep.subr.bf16.mxu0 0
  %2036 = vmatpush1.bf16.msra.mxu0 %v1338
  %2037 = vmatprep.subr.bf16.mxu0 0
  %2038 = vmatpush1.bf16.msra.mxu0 %v1341
  %2039 = vmatprep.subr.bf16.mxu0 0
  %2040 = vmatpush1.bf16.msra.mxu0 %v1344
  %2041 = vmatprep.subr.bf16.mxu0 0
  %2042 = vmatpush1.bf16.msra.mxu0 %v1347
  %2043 = vmatprep.subr.bf16.mxu0 0
  %2044 = vmatpush1.bf16.msra.mxu0 %v1350
  %2045 = vmatprep.subr.bf16.mxu0 0
  %2046 = vmatpush1.bf16.msra.mxu0 %v1353
  %2047 = vmatprep.subr.bf16.mxu0 0
  %2048 = vmatpush1.bf16.msra.mxu0 0
  %2049 = vmatprep.subr.bf16.mxu0 0
  %2050 = vmatpush1.bf16.msra.mxu0 0
  %2051 = vmatprep.subr.bf16.mxu0 0
  %2052 = vmatpush1.bf16.msra.mxu0 0
  %2053 = vmatprep.subr.bf16.mxu0 0
  %2054 = vmatpush1.bf16.msra.mxu0 0
  %2055 = vmatprep.subr.bf16.mxu0 0
  %2056 = vmatpush1.bf16.msra.mxu0 0
  %2057 = vmatprep.subr.bf16.mxu0 0
  %2058 = vmatpush1.bf16.msra.mxu0 0
  %2059 = vmatprep.subr.bf16.mxu0 0
  %2060 = vmatpush1.bf16.msra.mxu0 0
  %2061 = vmatprep.subr.bf16.mxu0 0
  %2062 = vmatpush1.bf16.msra.mxu0 0
  %2063 = vmatprep.mubr.bf16.mxu0 0
  %2064 = vmatmul.mubr.bf16.gmra.mrb[0].mxu0 %v390
  %v2065 = vpop.f32.mrb[0].mxu0
  %v2066 = vadd.f32 %v2017, %v2065
  %v2067 = vpop.f32.mrb[0].mxu0
  %v2068 = vpop.f32.mrb[0].mxu0
  %v2069 = vadd.f32 %v2020, %v2068
  %v2070 = vpop.f32.mrb[0].mxu0
  %2071 = vmatprep.mubr.bf16.mxu0 0
  %2072 = vmatmul.mubr.bf16.gmra.mrb[0].mxu0 %v399
  %v2073 = vpop.f32.mrb[0].mxu0
  %v2074 = vadd.f32 %v2025, %v2073
  %v2075 = vpop.f32.mrb[0].mxu0
  %v2076 = vpop.f32.mrb[0].mxu0
  %v2077 = vadd.f32 %v2028, %v2076
  %v2078 = vpop.f32.mrb[0].mxu0
  %2079 = vdwg.mxu0
  %v2080 = vld [vmem:[%s2] sm:$0x7]
  %v2082 = vlaneseq
  %v2083 = vshrl.u32 %v2082, 7
  %v2084 = vsub.s32 0, %v2083
  %v2085 = vrot.slane %v2080, %v2084
  %v2086 = vlaneseq
  %v2087 = vshrl.u32 %v2086, 7
  %v2088 = vsub.s32 1, %v2087
  %v2089 = vrot.slane %v2080, %v2088
  %v2090 = vlaneseq
  %v2091 = vshrl.u32 %v2090, 7
  %v2092 = vsub.s32 2, %v2091
  %v2093 = vrot.slane %v2080, %v2092
  %v2097 = vmul.f32 %v1817, %v2085
  %v2098 = vmul.f32 %v1819, %v2089
  %v2099 = vmul.f32 %v2066, %v2093
  %v2100 = vmul.f32 %v1821, %v2085
  %v2101 = vmul.f32 %v1823, %v2089
  %v2102 = vmul.f32 %v2069, %v2093
  %v2103 = vmul.f32 %v1827, %v2085
  %v2104 = vmul.f32 %v1829, %v2089
  %v2105 = vmul.f32 %v2074, %v2093
  %v2106 = vmul.f32 %v1831, %v2085
  %v2107 = vmul.f32 %v1833, %v2089
  %v2108 = vmul.f32 %v2077, %v2093
  %v2109 = vld [vmem:[%s3] sm:$0x7]
  %v2111 = vlaneseq
  %v2112 = vshrl.u32 %v2111, 7
  %v2113 = vsub.s32 0, %v2112
  %v2114 = vrot.slane %v2109, %v2113
  %v2115 = vlaneseq
  %v2116 = vshrl.u32 %v2115, 7
  %v2117 = vsub.s32 1, %v2116
  %v2118 = vrot.slane %v2109, %v2117
  %v2119 = vlaneseq
  %v2120 = vshrl.u32 %v2119, 7
  %v2121 = vsub.s32 2, %v2120
  %v2122 = vrot.slane %v2109, %v2121
  %v2126 = vadd.f32 %v2097, %v2114
  %v2127 = vadd.f32 %v2098, %v2118
  %v2128 = vadd.f32 %v2099, %v2122
  %v2129 = vadd.f32 %v2100, %v2114
  %v2130 = vadd.f32 %v2101, %v2118
  %v2131 = vadd.f32 %v2102, %v2122
  %v2132 = vadd.f32 %v2103, %v2114
  %v2133 = vadd.f32 %v2104, %v2118
  %v2134 = vadd.f32 %v2105, %v2122
  %v2135 = vadd.f32 %v2106, %v2114
  %v2136 = vadd.f32 %v2107, %v2118
  %v2137 = vadd.f32 %v2108, %v2122
  %v2138 = vmax.f32 %v2126, 0.0
  %v2139 = vmax.f32 %v2127, 0.0
  %v2140 = vmax.f32 %v2128, 0.0
  %v2141 = vmax.f32 %v2129, 0.0
  %v2142 = vmax.f32 %v2130, 0.0
  %v2143 = vmax.f32 %v2131, 0.0
  %v2144 = vmax.f32 %v2132, 0.0
  %v2145 = vmax.f32 %v2133, 0.0
  %v2146 = vmax.f32 %v2134, 0.0
  %v2147 = vmax.f32 %v2135, 0.0
  %v2148 = vmax.f32 %v2136, 0.0
  %v2149 = vmax.f32 %v2137, 0.0
  %v2150 = vadd.f32 %v2138, %v2139
  %v2151 = vadd.f32 %v2141, %v2142
  %v2152 = vadd.f32 %v2144, %v2145
  %v2153 = vadd.f32 %v2147, %v2148
  %v2154 = vadd.f32 %v2150, %v2140
  %v2155 = vadd.f32 %v2151, %v2143
  %v2156 = vadd.f32 %v2152, %v2146
  %v2157 = vadd.f32 %v2153, %v2149
  %v2158 = vpack.c.bf16 %v2155, %v2154
  %v2159 = vpack.c.bf16 %v2157, %v2156
  %v2162 = vunpack.c.l.b16 %v2158
  %v2163 = vunpack.c.h.b16 %v2158
  %v2164 = vunpack.c.l.b16 %v2159
  %v2165 = vunpack.c.h.b16 %v2159
  %v2166 = vpack.c.b16 %v2162, %v2162
  %v2167 = vpack.c.b16 %v2163, %v2163
  %v2168 = vpack.c.b16 %v2164, %v2164
  %v2169 = vpack.c.b16 %v2165, %v2165
  %2174 = vst [vmem:[%s4] sm:$0xf] %v2166
  %2175 = vst [vmem:[%s4 + $0x4] sm:$0xf] %v2167
  %2176 = vst [vmem:[%s4 + $0x8] sm:$0xf] %v2168
  %2177 = vst [vmem:[%s4 + $0xc] sm:$0xf] %v2169
  // Predicated region
  $region18: #{_lambda_.15} parent=0 // pred_check
    _
  $region19: #{_lambda_.15} parent=0 // pred_check_branch
    %2179 = sbr.rel (0) target = $region21
  $region20: #{_lambda_.15} parent=0 // pred_region
    _
  $region21: #{_lambda_.15} parent=0 // pred_fallthru
    _
  // Predicated region
  $region22: #{_lambda_.15} parent=0 // pred_check
    _
  $region23: #{_lambda_.15} parent=0 // pred_check_branch
    %2181 = sbr.rel (0) target = $region25
  $region24: #{_lambda_.15} parent=0 // pred_region
    _
  $region25: #{_lambda_.15} parent=0 // pred_fallthru
    _

// kernel: _lambda_.19
$region0: #{_lambda_.19}
  #allocation0 [shape = 'u32[]', space=smem, size = 0x4, offset = 0x4, fixed_abs, tag = 'smem constant byte address 0x4 - core index']
  #allocation1 [shape = 'u32[144,128]{1,0:T(1,128)}', space=vmem, size = 0x12000, scoped, tag = 'internal scratch']
  %s0 = inlined_call_operand.vmem [shape: bf16[16,1152], index: 0, kind: input, shape index: {}]
  %s1 = inlined_call_operand.vmem [shape: bf16[1152,384], index: 1, kind: input, shape index: {}]
  %s2 = inlined_call_operand.vmem [shape: f32[1,384], index: 2, kind: input, shape index: {}]
  %s3 = inlined_call_operand.vmem [shape: f32[1,384], index: 3, kind: input, shape index: {}]
  %s4 = inlined_call_operand.vmem [shape: bf16[16,128], index: 4, kind: output, shape index: {}]
  %s5 = sld [smem:[#allocation0]]
  $region26: #{_lambda_.19} parent=0
    _
  %s7 = ssub.s32 1, %s5
  %s8 = scalar_select 0, %s7, %s5
  // Predicated region
  $region2: #{_lambda_.19} parent=0 // pred_check
    _
  $region3: #{_lambda_.19} parent=0 // pred_check_branch
    %10 = sbr.rel (0) target = $region5
  $region4: #{_lambda_.19} parent=0 // pred_region
    _
  $region5: #{_lambda_.19} parent=0 // pred_fallthru
    _
  // Predicated region
  $region6: #{_lambda_.19} parent=0 // pred_check
    _
  $region7: #{_lambda_.19} parent=0 // pred_check_branch
    %12 = sbr.rel (0) target = $region9
  $region8: #{_lambda_.19} parent=0 // pred_region
    _
  $region9: #{_lambda_.19} parent=0 // pred_fallthru
    _
  // Predicated region
  $region10: #{_lambda_.19} parent=0 // pred_check
    _
  $region11: #{_lambda_.19} parent=0 // pred_check_branch
    %14 = sbr.rel (0) target = $region13
  $region12: #{_lambda_.19} parent=0 // pred_region
    _
  $region13: #{_lambda_.19} parent=0 // pred_fallthru
    _
  // Predicated region
  $region14: #{_lambda_.19} parent=0 // pred_check
    _
  $region15: #{_lambda_.19} parent=0 // pred_check_branch
    %16 = sbr.rel (0) target = $region17
  $region16: #{_lambda_.19} parent=0 // pred_region
    _
  $region17: #{_lambda_.19} parent=0 // pred_fallthru
    _
  %v18 = vld [vmem:[%s0] sm:$0xff]
  %v19 = vld [vmem:[%s0 + $0x8] sm:$0xff]
  %v20 = vld [vmem:[%s0 + $0x10] sm:$0xff]
  %v21 = vld [vmem:[%s0 + $0x18] sm:$0xff]
  %v22 = vld [vmem:[%s0 + $0x20] sm:$0xf]
  %v23 = vld [vmem:[%s0 + $0x24] sm:$0xff]
  %v24 = vld [vmem:[%s0 + $0x2c] sm:$0xff]
  %v25 = vld [vmem:[%s0 + $0x34] sm:$0xff]
  %v26 = vld [vmem:[%s0 + $0x3c] sm:$0xff]
  %v27 = vld [vmem:[%s0 + $0x44] sm:$0xf]
  %v28 = vld [vmem:[%s1] sm:$0xff]
  %v29 = vld [vmem:[%s1 + $0x8] sm:$0xf]
  %v30 = vld [vmem:[%s1 + $0xc] sm:$0xff]
  %v31 = vld [vmem:[%s1 + $0x14] sm:$0xf]
  %v32 = vld [vmem:[%s1 + $0x18] sm:$0xff]
  %v33 = vld [vmem:[%s1 + $0x20] sm:$0xf]
  %v34 = vld [vmem:[%s1 + $0x24] sm:$0xff]
  %v35 = vld [vmem:[%s1 + $0x2c] sm:$0xf]
  %v36 = vld [vmem:[%s1 + $0x30] sm:$0xff]
  %v37 = vld [vmem:[%s1 + $0x38] sm:$0xf]
  %v38 = vld [vmem:[%s1 + $0x3c] sm:$0xff]
  %v39 = vld [vmem:[%s1 + $0x44] sm:$0xf]
  %v40 = vld [vmem:[%s1 + $0x48] sm:$0xff]
  %v41 = vld [vmem:[%s1 + $0x50] sm:$0xf]
  %v42 = vld [vmem:[%s1 + $0x54] sm:$0xff]
  %v43 = vld [vmem:[%s1 + $0x5c] sm:$0xf]
  %v44 = vld [vmem:[%s1 + $0x60] sm:$0xff]
  %v45 = vld [vmem:[%s1 + $0x68] sm:$0xf]
  %v46 = vld [vmem:[%s1 + $0x6c] sm:$0xff]
  %v47 = vld [vmem:[%s1 + $0x74] sm:$0xf]
  %v48 = vld [vmem:[%s1 + $0x78] sm:$0xff]
  %v49 = vld [vmem:[%s1 + $0x80] sm:$0xf]
  %v50 = vld [vmem:[%s1 + $0x84] sm:$0xff]
  %v51 = vld [vmem:[%s1 + $0x8c] sm:$0xf]
  %v52 = vld [vmem:[%s1 + $0x90] sm:$0xff]
  %v53 = vld [vmem:[%s1 + $0x98] sm:$0xf]
  %v54 = vld [vmem:[%s1 + $0x9c] sm:$0xff]
  %v55 = vld [vmem:[%s1 + $0xa4] sm:$0xf]
  %v56 = vld [vmem:[%s1 + $0xa8] sm:$0xff]
  %v57 = vld [vmem:[%s1 + $0xb0] sm:$0xf]
  %v58 = vld [vmem:[%s1 + $0xb4] sm:$0xff]
  %v59 = vld [vmem:[%s1 + $0xbc] sm:$0xf]
  %v60 = vld [vmem:[%s1 + $0xc0] sm:$0xff]
  %v61 = vld [vmem:[%s1 + $0xc8] sm:$0xf]
  %v62 = vld [vmem:[%s1 + $0xcc] sm:$0xff]
  %v63 = vld [vmem:[%s1 + $0xd4] sm:$0xf]
  %v64 = vld [vmem:[%s1 + $0xd8] sm:$0xff]
  %v65 = vld [vmem:[%s1 + $0xe0] sm:$0xf]
  %v66 = vld [vmem:[%s1 + $0xe4] sm:$0xff]
  %v67 = vld [vmem:[%s1 + $0xec] sm:$0xf]
  %v68 = vld [vmem:[%s1 + $0xf0] sm:$0xff]
  %v69 = vld [vmem:[%s1 + $0xf8] sm:$0xf]
  %v70 = vld [vmem:[%s1 + $0xfc] sm:$0xff]
  %v71 = vld [vmem:[%s1 + $0x104] sm:$0xf]
  %v72 = vld [vmem:[%s1 + $0x108] sm:$0xff]
  %v73 = vld [vmem:[%s1 + $0x110] sm:$0xf]
  %v74 = vld [vmem:[%s1 + $0x114] sm:$0xff]
  %v75 = vld [vmem:[%s1 + $0x11c] sm:$0xf]
  %v76 = vld [vmem:[%s1 + $0x120] sm:$0xff]
  %v77 = vld [vmem:[%s1 + $0x128] sm:$0xf]
  %v78 = vld [vmem:[%s1 + $0x12c] sm:$0xff]
  %v79 = vld [vmem:[%s1 + $0x134] sm:$0xf]
  %v80 = vld [vmem:[%s1 + $0x138] sm:$0xff]
  %v81 = vld [vmem:[%s1 + $0x140] sm:$0xf]
  %v82 = vld [vmem:[%s1 + $0x144] sm:$0xff]
  %v83 = vld [vmem:[%s1 + $0x14c] sm:$0xf]
  %v84 = vld [vmem:[%s1 + $0x150] sm:$0xff]
  %v85 = vld [vmem:[%s1 + $0x158] sm:$0xf]
  %v86 = vld [vmem:[%s1 + $0x15c] sm:$0xff]
  %v87 = vld [vmem:[%s1 + $0x164] sm:$0xf]
  %v88 = vld [vmem:[%s1 + $0x168] sm:$0xff]
  %v89 = vld [vmem:[%s1 + $0x170] sm:$0xf]
  %v90 = vld [vmem:[%s1 + $0x174] sm:$0xff]
  %v91 = vld [vmem:[%s1 + $0x17c] sm:$0xf]
  %v92 = vld [vmem:[%s1 + $0x180] sm:$0xff]
  %v93 = vld [vmem:[%s1 + $0x188] sm:$0xf]
  %v94 = vld [vmem:[%s1 + $0x18c] sm:$0xff]
  %v95 = vld [vmem:[%s1 + $0x194] sm:$0xf]
  %v96 = vld [vmem:[%s1 + $0x198] sm:$0xff]
  %v97 = vld [vmem:[%s1 + $0x1a0] sm:$0xf]
  %v98 = vld [vmem:[%s1 + $0x1a4] sm:$0xff]
  %v99 = vld [vmem:[%s1 + $0x1ac] sm:$0xf]
  %v100 = vld [vmem:[%s1 + $0x1b0] sm:$0xff]
  %v101 = vld [vmem:[%s1 + $0x1b8] sm:$0xf]
  %v102 = vld [vmem:[%s1 + $0x1bc] sm:$0xff]
  %v103 = vld [vmem:[%s1 + $0x1c4] sm:$0xf]
  %v104 = vld [vmem:[%s1 + $0x1c8] sm:$0xff]
  %v105 = vld [vmem:[%s1 + $0x1d0] sm:$0xf]
  %v106 = vld [vmem:[%s1 + $0x1d4] sm:$0xff]
  %v107 = vld [vmem:[%s1 + $0x1dc] sm:$0xf]
  %v108 = vld [vmem:[%s1 + $0x1e0] sm:$0xff]
  %v109 = vld [vmem:[%s1 + $0x1e8] sm:$0xf]
  %v110 = vld [vmem:[%s1 + $0x1ec] sm:$0xff]
  %v111 = vld [vmem:[%s1 + $0x1f4] sm:$0xf]
  %v112 = vld [vmem:[%s1 + $0x1f8] sm:$0xff]
  %v113 = vld [vmem:[%s1 + $0x200] sm:$0xf]
  %v114 = vld [vmem:[%s1 + $0x204] sm:$0xff]
  %v115 = vld [vmem:[%s1 + $0x20c] sm:$0xf]
  %v116 = vld [vmem:[%s1 + $0x210] sm:$0xff]
  %v117 = vld [vmem:[%s1 + $0x218] sm:$0xf]
  %v118 = vld [vmem:[%s1 + $0x21c] sm:$0xff]
  %v119 = vld [vmem:[%s1 + $0x224] sm:$0xf]
  %v120 = vld [vmem:[%s1 + $0x228] sm:$0xff]
  %v121 = vld [vmem:[%s1 + $0x230] sm:$0xf]
  %v122 = vld [vmem:[%s1 + $0x234] sm:$0xff]
  %v123 = vld [vmem:[%s1 + $0x23c] sm:$0xf]
  %v124 = vld [vmem:[%s1 + $0x240] sm:$0xff]
  %v125 = vld [vmem:[%s1 + $0x248] sm:$0xf]
  %v126 = vld [vmem:[%s1 + $0x24c] sm:$0xff]
  %v127 = vld [vmem:[%s1 + $0x254] sm:$0xf]
  %v128 = vld [vmem:[%s1 + $0x258] sm:$0xff]
  %v129 = vld [vmem:[%s1 + $0x260] sm:$0xf]
  %v130 = vld [vmem:[%s1 + $0x264] sm:$0xff]
  %v131 = vld [vmem:[%s1 + $0x26c] sm:$0xf]
  %v132 = vld [vmem:[%s1 + $0x270] sm:$0xff]
  %v133 = vld [vmem:[%s1 + $0x278] sm:$0xf]
  %v134 = vld [vmem:[%s1 + $0x27c] sm:$0xff]
  %v135 = vld [vmem:[%s1 + $0x284] sm:$0xf]
  %v136 = vld [vmem:[%s1 + $0x288] sm:$0xff]
  %v137 = vld [vmem:[%s1 + $0x290] sm:$0xf]
  %v138 = vld [vmem:[%s1 + $0x294] sm:$0xff]
  %v139 = vld [vmem:[%s1 + $0x29c] sm:$0xf]
  %v140 = vld [vmem:[%s1 + $0x2a0] sm:$0xff]
  %v141 = vld [vmem:[%s1 + $0x2a8] sm:$0xf]
  %v142 = vld [vmem:[%s1 + $0x2ac] sm:$0xff]
  %v143 = vld [vmem:[%s1 + $0x2b4] sm:$0xf]
  %v144 = vld [vmem:[%s1 + $0x2b8] sm:$0xff]
  %v145 = vld [vmem:[%s1 + $0x2c0] sm:$0xf]
  %v146 = vld [vmem:[%s1 + $0x2c4] sm:$0xff]
  %v147 = vld [vmem:[%s1 + $0x2cc] sm:$0xf]
  %v148 = vld [vmem:[%s1 + $0x2d0] sm:$0xff]
  %v149 = vld [vmem:[%s1 + $0x2d8] sm:$0xf]
  %v150 = vld [vmem:[%s1 + $0x2dc] sm:$0xff]
  %v151 = vld [vmem:[%s1 + $0x2e4] sm:$0xf]
  %v152 = vld [vmem:[%s1 + $0x2e8] sm:$0xff]
  %v153 = vld [vmem:[%s1 + $0x2f0] sm:$0xf]
  %v154 = vld [vmem:[%s1 + $0x2f4] sm:$0xff]
  %v155 = vld [vmem:[%s1 + $0x2fc] sm:$0xf]
  %v156 = vld [vmem:[%s1 + $0x300] sm:$0xff]
  %v157 = vld [vmem:[%s1 + $0x308] sm:$0xf]
  %v158 = vld [vmem:[%s1 + $0x30c] sm:$0xff]
  %v159 = vld [vmem:[%s1 + $0x314] sm:$0xf]
  %v160 = vld [vmem:[%s1 + $0x318] sm:$0xff]
  %v161 = vld [vmem:[%s1 + $0x320] sm:$0xf]
  %v162 = vld [vmem:[%s1 + $0x324] sm:$0xff]
  %v163 = vld [vmem:[%s1 + $0x32c] sm:$0xf]
  %v164 = vld [vmem:[%s1 + $0x330] sm:$0xff]
  %v165 = vld [vmem:[%s1 + $0x338] sm:$0xf]
  %v166 = vld [vmem:[%s1 + $0x33c] sm:$0xff]
  %v167 = vld [vmem:[%s1 + $0x344] sm:$0xf]
  %v168 = vld [vmem:[%s1 + $0x348] sm:$0xff]
  %v169 = vld [vmem:[%s1 + $0x350] sm:$0xf]
  %v170 = vld [vmem:[%s1 + $0x354] sm:$0xff]
  %v171 = vld [vmem:[%s1 + $0x35c] sm:$0xf]
  %v172 = vld [vmem:[%s1 + $0x360] sm:$0xff]
  %v173 = vld [vmem:[%s1 + $0x368] sm:$0xf]
  %v174 = vld [vmem:[%s1 + $0x36c] sm:$0xff]
  %v175 = vld [vmem:[%s1 + $0x374] sm:$0xf]
  %v176 = vld [vmem:[%s1 + $0x378] sm:$0xff]
  %v177 = vld [vmem:[%s1 + $0x380] sm:$0xf]
  %v178 = vld [vmem:[%s1 + $0x384] sm:$0xff]
  %v179 = vld [vmem:[%s1 + $0x38c] sm:$0xf]
  %v180 = vld [vmem:[%s1 + $0x390] sm:$0xff]
  %v181 = vld [vmem:[%s1 + $0x398] sm:$0xf]
  %v182 = vld [vmem:[%s1 + $0x39c] sm:$0xff]
  %v183 = vld [vmem:[%s1 + $0x3a4] sm:$0xf]
  %v184 = vld [vmem:[%s1 + $0x3a8] sm:$0xff]
  %v185 = vld [vmem:[%s1 + $0x3b0] sm:$0xf]
  %v186 = vld [vmem:[%s1 + $0x3b4] sm:$0xff]
  %v187 = vld [vmem:[%s1 + $0x3bc] sm:$0xf]
  %v188 = vld [vmem:[%s1 + $0x3c0] sm:$0xff]
  %v189 = vld [vmem:[%s1 + $0x3c8] sm:$0xf]
  %v190 = vld [vmem:[%s1 + $0x3cc] sm:$0xff]
  %v191 = vld [vmem:[%s1 + $0x3d4] sm:$0xf]
  %v192 = vld [vmem:[%s1 + $0x3d8] sm:$0xff]
  %v193 = vld [vmem:[%s1 + $0x3e0] sm:$0xf]
  %v194 = vld [vmem:[%s1 + $0x3e4] sm:$0xff]
  %v195 = vld [vmem:[%s1 + $0x3ec] sm:$0xf]
  %v196 = vld [vmem:[%s1 + $0x3f0] sm:$0xff]
  %v197 = vld [vmem:[%s1 + $0x3f8] sm:$0xf]
  %v198 = vld [vmem:[%s1 + $0x3fc] sm:$0xff]
  %v199 = vld [vmem:[%s1 + $0x404] sm:$0xf]
  %v200 = vld [vmem:[%s1 + $0x408] sm:$0xff]
  %v201 = vld [vmem:[%s1 + $0x410] sm:$0xf]
  %v202 = vld [vmem:[%s1 + $0x414] sm:$0xff]
  %v203 = vld [vmem:[%s1 + $0x41c] sm:$0xf]
  %v204 = vld [vmem:[%s1 + $0x420] sm:$0xff]
  %v205 = vld [vmem:[%s1 + $0x428] sm:$0xf]
  %v206 = vld [vmem:[%s1 + $0x42c] sm:$0xff]
  %v207 = vld [vmem:[%s1 + $0x434] sm:$0xf]
  %v208 = vld [vmem:[%s1 + $0x438] sm:$0xff]
  %v209 = vld [vmem:[%s1 + $0x440] sm:$0xf]
  %v210 = vld [vmem:[%s1 + $0x444] sm:$0xff]
  %v211 = vld [vmem:[%s1 + $0x44c] sm:$0xf]
  %v212 = vld [vmem:[%s1 + $0x450] sm:$0xff]
  %v213 = vld [vmem:[%s1 + $0x458] sm:$0xf]
  %v214 = vld [vmem:[%s1 + $0x45c] sm:$0xff]
  %v215 = vld [vmem:[%s1 + $0x464] sm:$0xf]
  %v216 = vld [vmem:[%s1 + $0x468] sm:$0xff]
  %v217 = vld [vmem:[%s1 + $0x470] sm:$0xf]
  %v218 = vld [vmem:[%s1 + $0x474] sm:$0xff]
  %v219 = vld [vmem:[%s1 + $0x47c] sm:$0xf]
  %v220 = vld [vmem:[%s1 + $0x480] sm:$0xff]
  %v221 = vld [vmem:[%s1 + $0x488] sm:$0xf]
  %v222 = vld [vmem:[%s1 + $0x48c] sm:$0xff]
  %v223 = vld [vmem:[%s1 + $0x494] sm:$0xf]
  %v224 = vld [vmem:[%s1 + $0x498] sm:$0xff]
  %v225 = vld [vmem:[%s1 + $0x4a0] sm:$0xf]
  %v226 = vld [vmem:[%s1 + $0x4a4] sm:$0xff]
  %v227 = vld [vmem:[%s1 + $0x4ac] sm:$0xf]
  %v228 = vld [vmem:[%s1 + $0x4b0] sm:$0xff]
  %v229 = vld [vmem:[%s1 + $0x4b8] sm:$0xf]
  %v230 = vld [vmem:[%s1 + $0x4bc] sm:$0xff]
  %v231 = vld [vmem:[%s1 + $0x4c4] sm:$0xf]
  %v232 = vld [vmem:[%s1 + $0x4c8] sm:$0xff]
  %v233 = vld [vmem:[%s1 + $0x4d0] sm:$0xf]
  %v234 = vld [vmem:[%s1 + $0x4d4] sm:$0xff]
  %v235 = vld [vmem:[%s1 + $0x4dc] sm:$0xf]
  %v236 = vld [vmem:[%s1 + $0x4e0] sm:$0xff]
  %v237 = vld [vmem:[%s1 + $0x4e8] sm:$0xf]
  %v238 = vld [vmem:[%s1 + $0x4ec] sm:$0xff]
  %v239 = vld [vmem:[%s1 + $0x4f4] sm:$0xf]
  %v240 = vld [vmem:[%s1 + $0x4f8] sm:$0xff]
  %v241 = vld [vmem:[%s1 + $0x500] sm:$0xf]
  %v242 = vld [vmem:[%s1 + $0x504] sm:$0xff]
  %v243 = vld [vmem:[%s1 + $0x50c] sm:$0xf]
  %v244 = vld [vmem:[%s1 + $0x510] sm:$0xff]
  %v245 = vld [vmem:[%s1 + $0x518] sm:$0xf]
  %v246 = vld [vmem:[%s1 + $0x51c] sm:$0xff]
  %v247 = vld [vmem:[%s1 + $0x524] sm:$0xf]
  %v248 = vld [vmem:[%s1 + $0x528] sm:$0xff]
  %v249 = vld [vmem:[%s1 + $0x530] sm:$0xf]
  %v250 = vld [vmem:[%s1 + $0x534] sm:$0xff]
  %v251 = vld [vmem:[%s1 + $0x53c] sm:$0xf]
  %v252 = vld [vmem:[%s1 + $0x540] sm:$0xff]
  %v253 = vld [vmem:[%s1 + $0x548] sm:$0xf]
  %v254 = vld [vmem:[%s1 + $0x54c] sm:$0xff]
  %v255 = vld [vmem:[%s1 + $0x554] sm:$0xf]
  %v256 = vld [vmem:[%s1 + $0x558] sm:$0xff]
  %v257 = vld [vmem:[%s1 + $0x560] sm:$0xf]
  %v258 = vld [vmem:[%s1 + $0x564] sm:$0xff]
  %v259 = vld [vmem:[%s1 + $0x56c] sm:$0xf]
  %v260 = vld [vmem:[%s1 + $0x570] sm:$0xff]
  %v261 = vld [vmem:[%s1 + $0x578] sm:$0xf]
  %v262 = vld [vmem:[%s1 + $0x57c] sm:$0xff]
  %v263 = vld [vmem:[%s1 + $0x584] sm:$0xf]
  %v264 = vld [vmem:[%s1 + $0x588] sm:$0xff]
  %v265 = vld [vmem:[%s1 + $0x590] sm:$0xf]
  %v266 = vld [vmem:[%s1 + $0x594] sm:$0xff]
  %v267 = vld [vmem:[%s1 + $0x59c] sm:$0xf]
  %v268 = vld [vmem:[%s1 + $0x5a0] sm:$0xff]
  %v269 = vld [vmem:[%s1 + $0x5a8] sm:$0xf]
  %v270 = vld [vmem:[%s1 + $0x5ac] sm:$0xff]
  %v271 = vld [vmem:[%s1 + $0x5b4] sm:$0xf]
  %v272 = vld [vmem:[%s1 + $0x5b8] sm:$0xff]
  %v273 = vld [vmem:[%s1 + $0x5c0] sm:$0xf]
  %v274 = vld [vmem:[%s1 + $0x5c4] sm:$0xff]
  %v275 = vld [vmem:[%s1 + $0x5cc] sm:$0xf]
  %v276 = vld [vmem:[%s1 + $0x5d0] sm:$0xff]
  %v277 = vld [vmem:[%s1 + $0x5d8] sm:$0xf]
  %v278 = vld [vmem:[%s1 + $0x5dc] sm:$0xff]
  %v279 = vld [vmem:[%s1 + $0x5e4] sm:$0xf]
  %v280 = vld [vmem:[%s1 + $0x5e8] sm:$0xff]
  %v281 = vld [vmem:[%s1 + $0x5f0] sm:$0xf]
  %v282 = vld [vmem:[%s1 + $0x5f4] sm:$0xff]
  %v283 = vld [vmem:[%s1 + $0x5fc] sm:$0xf]
  %v284 = vld [vmem:[%s1 + $0x600] sm:$0xff]
  %v285 = vld [vmem:[%s1 + $0x608] sm:$0xf]
  %v286 = vld [vmem:[%s1 + $0x60c] sm:$0xff]
  %v287 = vld [vmem:[%s1 + $0x614] sm:$0xf]
  %v288 = vld [vmem:[%s1 + $0x618] sm:$0xff]
  %v289 = vld [vmem:[%s1 + $0x620] sm:$0xf]
  %v290 = vld [vmem:[%s1 + $0x624] sm:$0xff]
  %v291 = vld [vmem:[%s1 + $0x62c] sm:$0xf]
  %v292 = vld [vmem:[%s1 + $0x630] sm:$0xff]
  %v293 = vld [vmem:[%s1 + $0x638] sm:$0xf]
  %v294 = vld [vmem:[%s1 + $0x63c] sm:$0xff]
  %v295 = vld [vmem:[%s1 + $0x644] sm:$0xf]
  %v296 = vld [vmem:[%s1 + $0x648] sm:$0xff]
  %v297 = vld [vmem:[%s1 + $0x650] sm:$0xf]
  %v298 = vld [vmem:[%s1 + $0x654] sm:$0xff]
  %v299 = vld [vmem:[%s1 + $0x65c] sm:$0xf]
  %v300 = vld [vmem:[%s1 + $0x660] sm:$0xff]
  %v301 = vld [vmem:[%s1 + $0x668] sm:$0xf]
  %v302 = vld [vmem:[%s1 + $0x66c] sm:$0xff]
  %v303 = vld [vmem:[%s1 + $0x674] sm:$0xf]
  %v304 = vld [vmem:[%s1 + $0x678] sm:$0xff]
  %v305 = vld [vmem:[%s1 + $0x680] sm:$0xf]
  %v306 = vld [vmem:[%s1 + $0x684] sm:$0xff]
  %v307 = vld [vmem:[%s1 + $0x68c] sm:$0xf]
  %v308 = vld [vmem:[%s1 + $0x690] sm:$0xff]
  %v309 = vld [vmem:[%s1 + $0x698] sm:$0xf]
  %v310 = vld [vmem:[%s1 + $0x69c] sm:$0xff]
  %v311 = vld [vmem:[%s1 + $0x6a4] sm:$0xf]
  %v312 = vld [vmem:[%s1 + $0x6a8] sm:$0xff]
  %v313 = vld [vmem:[%s1 + $0x6b0] sm:$0xf]
  %v314 = vld [vmem:[%s1 + $0x6b4] sm:$0xff]
  %v315 = vld [vmem:[%s1 + $0x6bc] sm:$0xf]
  %v326 = vunpack.c.l.b16 %v18
  %v327 = vunpack.c.h.b16 %v18
  %v328 = vunpack.c.l.b16 %v19
  %v329 = vunpack.c.h.b16 %v19
  %v330 = vunpack.c.l.b16 %v20
  %v331 = vunpack.c.h.b16 %v20
  %v332 = vunpack.c.l.b16 %v21
  %v333 = vunpack.c.h.b16 %v21
  %v334 = vunpack.c.l.b16 %v22
  %v335 = vunpack.c.l.b16 %v23
  %v336 = vunpack.c.h.b16 %v23
  %v337 = vunpack.c.l.b16 %v24
  %v338 = vunpack.c.h.b16 %v24
  %v339 = vunpack.c.l.b16 %v25
  %v340 = vunpack.c.h.b16 %v25
  %v341 = vunpack.c.l.b16 %v26
  %v342 = vunpack.c.h.b16 %v26
  %v343 = vunpack.c.l.b16 %v27
  %v344 = vpack.c.b16 %v335, %v326
  %v345 = vpack.c.b16 %v336, %v327
  %v346 = vpack.c.b16 %v337, %v328
  %v347 = vpack.c.b16 %v338, %v329
  %v348 = vpack.c.b16 %v339, %v330
  %v349 = vpack.c.b16 %v340, %v331
  %v350 = vpack.c.b16 %v341, %v332
  %v351 = vpack.c.b16 %v342, %v333
  %v352 = vpack.c.b16 %v343, %v334
  %v650 = vunpack.c.l.b16 %v28
  %v651 = vunpack.c.h.b16 %v28
  %v652 = vunpack.c.l.b16 %v29
  %v653 = vunpack.c.l.b16 %v30
  %v654 = vunpack.c.h.b16 %v30
  %v655 = vunpack.c.l.b16 %v31
  %v656 = vunpack.c.l.b16 %v32
  %v657 = vunpack.c.h.b16 %v32
  %v658 = vunpack.c.l.b16 %v33
  %v659 = vunpack.c.l.b16 %v34
  %v660 = vunpack.c.h.b16 %v34
  %v661 = vunpack.c.l.b16 %v35
  %v662 = vunpack.c.l.b16 %v36
  %v663 = vunpack.c.h.b16 %v36
  %v664 = vunpack.c.l.b16 %v37
  %v665 = vunpack.c.l.b16 %v38
  %v666 = vunpack.c.h.b16 %v38
  %v667 = vunpack.c.l.b16 %v39
  %v668 = vunpack.c.l.b16 %v40
  %v669 = vunpack.c.h.b16 %v40
  %v670 = vunpack.c.l.b16 %v41
  %v671 = vunpack.c.l.b16 %v42
  %v672 = vunpack.c.h.b16 %v42
  %v673 = vunpack.c.l.b16 %v43
  %v674 = vunpack.c.l.b16 %v44
  %v675 = vunpack.c.h.b16 %v44
  %v676 = vunpack.c.l.b16 %v45
  %v677 = vunpack.c.l.b16 %v46
  %v678 = vunpack.c.h.b16 %v46
  %v679 = vunpack.c.l.b16 %v47
  %v680 = vunpack.c.l.b16 %v48
  %v681 = vunpack.c.h.b16 %v48
  %v682 = vunpack.c.l.b16 %v49
  %v683 = vunpack.c.l.b16 %v50
  %v684 = vunpack.c.h.b16 %v50
  %v685 = vunpack.c.l.b16 %v51
  %v686 = vunpack.c.l.b16 %v52
  %v687 = vunpack.c.h.b16 %v52
  %v688 = vunpack.c.l.b16 %v53
  %v689 = vunpack.c.l.b16 %v54
  %v690 = vunpack.c.h.b16 %v54
  %v691 = vunpack.c.l.b16 %v55
  %v692 = vunpack.c.l.b16 %v56
  %v693 = vunpack.c.h.b16 %v56
  %v694 = vunpack.c.l.b16 %v57
  %v695 = vunpack.c.l.b16 %v58
  %v696 = vunpack.c.h.b16 %v58
  %v697 = vunpack.c.l.b16 %v59
  %v698 = vunpack.c.l.b16 %v60
  %v699 = vunpack.c.h.b16 %v60
  %v700 = vunpack.c.l.b16 %v61
  %v701 = vunpack.c.l.b16 %v62
  %v702 = vunpack.c.h.b16 %v62
  %v703 = vunpack.c.l.b16 %v63
  %v704 = vunpack.c.l.b16 %v64
  %v705 = vunpack.c.h.b16 %v64
  %v706 = vunpack.c.l.b16 %v65
  %v707 = vunpack.c.l.b16 %v66
  %v708 = vunpack.c.h.b16 %v66
  %v709 = vunpack.c.l.b16 %v67
  %v710 = vunpack.c.l.b16 %v68
  %v711 = vunpack.c.h.b16 %v68
  %v712 = vunpack.c.l.b16 %v69
  %v713 = vunpack.c.l.b16 %v70
  %v714 = vunpack.c.h.b16 %v70
  %v715 = vunpack.c.l.b16 %v71
  %v716 = vunpack.c.l.b16 %v72
  %v717 = vunpack.c.h.b16 %v72
  %v718 = vunpack.c.l.b16 %v73
  %v719 = vunpack.c.l.b16 %v74
  %v720 = vunpack.c.h.b16 %v74
  %v721 = vunpack.c.l.b16 %v75
  %v722 = vunpack.c.l.b16 %v76
  %v723 = vunpack.c.h.b16 %v76
  %v724 = vunpack.c.l.b16 %v77
  %v725 = vunpack.c.l.b16 %v78
  %v726 = vunpack.c.h.b16 %v78
  %v727 = vunpack.c.l.b16 %v79
  %v728 = vunpack.c.l.b16 %v80
  %v729 = vunpack.c.h.b16 %v80
  %v730 = vunpack.c.l.b16 %v81
  %v731 = vunpack.c.l.b16 %v82
  %v732 = vunpack.c.h.b16 %v82
  %v733 = vunpack.c.l.b16 %v83
  %v734 = vunpack.c.l.b16 %v84
  %v735 = vunpack.c.h.b16 %v84
  %v736 = vunpack.c.l.b16 %v85
  %v737 = vunpack.c.l.b16 %v86
  %v738 = vunpack.c.h.b16 %v86
  %v739 = vunpack.c.l.b16 %v87
  %v740 = vunpack.c.l.b16 %v88
  %v741 = vunpack.c.h.b16 %v88
  %v742 = vunpack.c.l.b16 %v89
  %v743 = vunpack.c.l.b16 %v90
  %v744 = vunpack.c.h.b16 %v90
  %v745 = vunpack.c.l.b16 %v91
  %v746 = vunpack.c.l.b16 %v92
  %v747 = vunpack.c.h.b16 %v92
  %v748 = vunpack.c.l.b16 %v93
  %v749 = vunpack.c.l.b16 %v94
  %v750 = vunpack.c.h.b16 %v94
  %v751 = vunpack.c.l.b16 %v95
  %v752 = vunpack.c.l.b16 %v96
  %v753 = vunpack.c.h.b16 %v96
  %v754 = vunpack.c.l.b16 %v97
  %v755 = vunpack.c.l.b16 %v98
  %v756 = vunpack.c.h.b16 %v98
  %v757 = vunpack.c.l.b16 %v99
  %v758 = vunpack.c.l.b16 %v100
  %v759 = vunpack.c.h.b16 %v100
  %v760 = vunpack.c.l.b16 %v101
  %v761 = vunpack.c.l.b16 %v102
  %v762 = vunpack.c.h.b16 %v102
  %v763 = vunpack.c.l.b16 %v103
  %v764 = vunpack.c.l.b16 %v104
  %v765 = vunpack.c.h.b16 %v104
  %v766 = vunpack.c.l.b16 %v105
  %v767 = vunpack.c.l.b16 %v106
  %v768 = vunpack.c.h.b16 %v106
  %v769 = vunpack.c.l.b16 %v107
  %v770 = vunpack.c.l.b16 %v108
  %v771 = vunpack.c.h.b16 %v108
  %v772 = vunpack.c.l.b16 %v109
  %v773 = vunpack.c.l.b16 %v110
  %v774 = vunpack.c.h.b16 %v110
  %v775 = vunpack.c.l.b16 %v111
  %v776 = vunpack.c.l.b16 %v112
  %v777 = vunpack.c.h.b16 %v112
  %v778 = vunpack.c.l.b16 %v113
  %v779 = vunpack.c.l.b16 %v114
  %v780 = vunpack.c.h.b16 %v114
  %v781 = vunpack.c.l.b16 %v115
  %v782 = vunpack.c.l.b16 %v116
  %v783 = vunpack.c.h.b16 %v116
  %v784 = vunpack.c.l.b16 %v117
  %v785 = vunpack.c.l.b16 %v118
  %v786 = vunpack.c.h.b16 %v118
  %v787 = vunpack.c.l.b16 %v119
  %v788 = vunpack.c.l.b16 %v120
  %v789 = vunpack.c.h.b16 %v120
  %v790 = vunpack.c.l.b16 %v121
  %v791 = vunpack.c.l.b16 %v122
  %v792 = vunpack.c.h.b16 %v122
  %v793 = vunpack.c.l.b16 %v123
  %v794 = vunpack.c.l.b16 %v124
  %v795 = vunpack.c.h.b16 %v124
  %v796 = vunpack.c.l.b16 %v125
  %v797 = vunpack.c.l.b16 %v126
  %v798 = vunpack.c.h.b16 %v126
  %v799 = vunpack.c.l.b16 %v127
  %v800 = vunpack.c.l.b16 %v128
  %v801 = vunpack.c.h.b16 %v128
  %v802 = vunpack.c.l.b16 %v129
  %v803 = vunpack.c.l.b16 %v130
  %v804 = vunpack.c.h.b16 %v130
  %v805 = vunpack.c.l.b16 %v131
  %v806 = vunpack.c.l.b16 %v132
  %v807 = vunpack.c.h.b16 %v132
  %v808 = vunpack.c.l.b16 %v133
  %v809 = vunpack.c.l.b16 %v134
  %v810 = vunpack.c.h.b16 %v134
  %v811 = vunpack.c.l.b16 %v135
  %v812 = vunpack.c.l.b16 %v136
  %v813 = vunpack.c.h.b16 %v136
  %v814 = vunpack.c.l.b16 %v137
  %v815 = vunpack.c.l.b16 %v138
  %v816 = vunpack.c.h.b16 %v138
  %v817 = vunpack.c.l.b16 %v139
  %v818 = vunpack.c.l.b16 %v140
  %v819 = vunpack.c.h.b16 %v140
  %v820 = vunpack.c.l.b16 %v141
  %v821 = vunpack.c.l.b16 %v142
  %v822 = vunpack.c.h.b16 %v142
  %v823 = vunpack.c.l.b16 %v143
  %v824 = vunpack.c.l.b16 %v144
  %v825 = vunpack.c.h.b16 %v144
  %v826 = vunpack.c.l.b16 %v145
  %v827 = vunpack.c.l.b16 %v146
  %v828 = vunpack.c.h.b16 %v146
  %v829 = vunpack.c.l.b16 %v147
  %v830 = vunpack.c.l.b16 %v148
  %v831 = vunpack.c.h.b16 %v148
  %v832 = vunpack.c.l.b16 %v149
  %v833 = vunpack.c.l.b16 %v150
  %v834 = vunpack.c.h.b16 %v150
  %v835 = vunpack.c.l.b16 %v151
  %v836 = vunpack.c.l.b16 %v152
  %v837 = vunpack.c.h.b16 %v152
  %v838 = vunpack.c.l.b16 %v153
  %v839 = vunpack.c.l.b16 %v154
  %v840 = vunpack.c.h.b16 %v154
  %v841 = vunpack.c.l.b16 %v155
  %v842 = vunpack.c.l.b16 %v156
  %v843 = vunpack.c.h.b16 %v156
  %v844 = vunpack.c.l.b16 %v157
  %v845 = vunpack.c.l.b16 %v158
  %v846 = vunpack.c.h.b16 %v158
  %v847 = vunpack.c.l.b16 %v159
  %v848 = vunpack.c.l.b16 %v160
  %v849 = vunpack.c.h.b16 %v160
  %v850 = vunpack.c.l.b16 %v161
  %v851 = vunpack.c.l.b16 %v162
  %v852 = vunpack.c.h.b16 %v162
  %v853 = vunpack.c.l.b16 %v163
  %v854 = vunpack.c.l.b16 %v164
  %v855 = vunpack.c.h.b16 %v164
  %v856 = vunpack.c.l.b16 %v165
  %v857 = vunpack.c.l.b16 %v166
  %v858 = vunpack.c.h.b16 %v166
  %v859 = vunpack.c.l.b16 %v167
  %v860 = vunpack.c.l.b16 %v168
  %v861 = vunpack.c.h.b16 %v168
  %v862 = vunpack.c.l.b16 %v169
  %v863 = vunpack.c.l.b16 %v170
  %v864 = vunpack.c.h.b16 %v170
  %v865 = vunpack.c.l.b16 %v171
  %v866 = vunpack.c.l.b16 %v172
  %v867 = vunpack.c.h.b16 %v172
  %v868 = vunpack.c.l.b16 %v173
  %v869 = vunpack.c.l.b16 %v174
  %v870 = vunpack.c.h.b16 %v174
  %v871 = vunpack.c.l.b16 %v175
  %v872 = vunpack.c.l.b16 %v176
  %v873 = vunpack.c.h.b16 %v176
  %v874 = vunpack.c.l.b16 %v177
  %v875 = vunpack.c.l.b16 %v178
  %v876 = vunpack.c.h.b16 %v178
  %v877 = vunpack.c.l.b16 %v179
  %v878 = vunpack.c.l.b16 %v180
  %v879 = vunpack.c.h.b16 %v180
  %v880 = vunpack.c.l.b16 %v181
  %v881 = vunpack.c.l.b16 %v182
  %v882 = vunpack.c.h.b16 %v182
  %v883 = vunpack.c.l.b16 %v183
  %v884 = vunpack.c.l.b16 %v184
  %v885 = vunpack.c.h.b16 %v184
  %v886 = vunpack.c.l.b16 %v185
  %v887 = vunpack.c.l.b16 %v186
  %v888 = vunpack.c.h.b16 %v186
  %v889 = vunpack.c.l.b16 %v187
  %v890 = vunpack.c.l.b16 %v188
  %v891 = vunpack.c.h.b16 %v188
  %v892 = vunpack.c.l.b16 %v189
  %v893 = vunpack.c.l.b16 %v190
  %v894 = vunpack.c.h.b16 %v190
  %v895 = vunpack.c.l.b16 %v191
  %v896 = vunpack.c.l.b16 %v192
  %v897 = vunpack.c.h.b16 %v192
  %v898 = vunpack.c.l.b16 %v193
  %v899 = vunpack.c.l.b16 %v194
  %v900 = vunpack.c.h.b16 %v194
  %v901 = vunpack.c.l.b16 %v195
  %v902 = vunpack.c.l.b16 %v196
  %v903 = vunpack.c.h.b16 %v196
  %v904 = vunpack.c.l.b16 %v197
  %v905 = vunpack.c.l.b16 %v198
  %v906 = vunpack.c.h.b16 %v198
  %v907 = vunpack.c.l.b16 %v199
  %v908 = vunpack.c.l.b16 %v200
  %v909 = vunpack.c.h.b16 %v200
  %v910 = vunpack.c.l.b16 %v201
  %v911 = vunpack.c.l.b16 %v202
  %v912 = vunpack.c.h.b16 %v202
  %v913 = vunpack.c.l.b16 %v203
  %v914 = vunpack.c.l.b16 %v204
  %v915 = vunpack.c.h.b16 %v204
  %v916 = vunpack.c.l.b16 %v205
  %v917 = vunpack.c.l.b16 %v206
  %v918 = vunpack.c.h.b16 %v206
  %v919 = vunpack.c.l.b16 %v207
  %v920 = vunpack.c.l.b16 %v208
  %v921 = vunpack.c.h.b16 %v208
  %v922 = vunpack.c.l.b16 %v209
  %v923 = vunpack.c.l.b16 %v210
  %v924 = vunpack.c.h.b16 %v210
  %v925 = vunpack.c.l.b16 %v211
  %v926 = vunpack.c.l.b16 %v212
  %v927 = vunpack.c.h.b16 %v212
  %v928 = vunpack.c.l.b16 %v213
  %v929 = vunpack.c.l.b16 %v214
  %v930 = vunpack.c.h.b16 %v214
  %v931 = vunpack.c.l.b16 %v215
  %v932 = vunpack.c.l.b16 %v216
  %v933 = vunpack.c.h.b16 %v216
  %v934 = vunpack.c.l.b16 %v217
  %v935 = vunpack.c.l.b16 %v218
  %v936 = vunpack.c.h.b16 %v218
  %v937 = vunpack.c.l.b16 %v219
  %v938 = vunpack.c.l.b16 %v220
  %v939 = vunpack.c.h.b16 %v220
  %v940 = vunpack.c.l.b16 %v221
  %v941 = vunpack.c.l.b16 %v222
  %v942 = vunpack.c.h.b16 %v222
  %v943 = vunpack.c.l.b16 %v223
  %v944 = vunpack.c.l.b16 %v224
  %v945 = vunpack.c.h.b16 %v224
  %v946 = vunpack.c.l.b16 %v225
  %v947 = vunpack.c.l.b16 %v226
  %v948 = vunpack.c.h.b16 %v226
  %v949 = vunpack.c.l.b16 %v227
  %v950 = vunpack.c.l.b16 %v228
  %v951 = vunpack.c.h.b16 %v228
  %v952 = vunpack.c.l.b16 %v229
  %v953 = vunpack.c.l.b16 %v230
  %v954 = vunpack.c.h.b16 %v230
  %v955 = vunpack.c.l.b16 %v231
  %v956 = vunpack.c.l.b16 %v232
  %v957 = vunpack.c.h.b16 %v232
  %v958 = vunpack.c.l.b16 %v233
  %v959 = vunpack.c.l.b16 %v234
  %v960 = vunpack.c.h.b16 %v234
  %v961 = vunpack.c.l.b16 %v235
  %v962 = vunpack.c.l.b16 %v236
  %v963 = vunpack.c.h.b16 %v236
  %v964 = vunpack.c.l.b16 %v237
  %v965 = vunpack.c.l.b16 %v238
  %v966 = vunpack.c.h.b16 %v238
  %v967 = vunpack.c.l.b16 %v239
  %v968 = vunpack.c.l.b16 %v240
  %v969 = vunpack.c.h.b16 %v240
  %v970 = vunpack.c.l.b16 %v241
  %v971 = vunpack.c.l.b16 %v242
  %v972 = vunpack.c.h.b16 %v242
  %v973 = vunpack.c.l.b16 %v243
  %v974 = vunpack.c.l.b16 %v244
  %v975 = vunpack.c.h.b16 %v244
  %v976 = vunpack.c.l.b16 %v245
  %v977 = vunpack.c.l.b16 %v246
  %v978 = vunpack.c.h.b16 %v246
  %v979 = vunpack.c.l.b16 %v247
  %v980 = vunpack.c.l.b16 %v248
  %v981 = vunpack.c.h.b16 %v248
  %v982 = vunpack.c.l.b16 %v249
  %v983 = vunpack.c.l.b16 %v250
  %v984 = vunpack.c.h.b16 %v250
  %v985 = vunpack.c.l.b16 %v251
  %v986 = vunpack.c.l.b16 %v252
  %v987 = vunpack.c.h.b16 %v252
  %v988 = vunpack.c.l.b16 %v253
  %v989 = vunpack.c.l.b16 %v254
  %v990 = vunpack.c.h.b16 %v254
  %v991 = vunpack.c.l.b16 %v255
  %v992 = vunpack.c.l.b16 %v256
  %v993 = vunpack.c.h.b16 %v256
  %v994 = vunpack.c.l.b16 %v257
  %v995 = vunpack.c.l.b16 %v258
  %v996 = vunpack.c.h.b16 %v258
  %v997 = vunpack.c.l.b16 %v259
  %v998 = vunpack.c.l.b16 %v260
  %v999 = vunpack.c.h.b16 %v260
  %v1000 = vunpack.c.l.b16 %v261
  %v1001 = vunpack.c.l.b16 %v262
  %v1002 = vunpack.c.h.b16 %v262
  %v1003 = vunpack.c.l.b16 %v263
  %v1004 = vunpack.c.l.b16 %v264
  %v1005 = vunpack.c.h.b16 %v264
  %v1006 = vunpack.c.l.b16 %v265
  %v1007 = vunpack.c.l.b16 %v266
  %v1008 = vunpack.c.h.b16 %v266
  %v1009 = vunpack.c.l.b16 %v267
  %v1010 = vunpack.c.l.b16 %v268
  %v1011 = vunpack.c.h.b16 %v268
  %v1012 = vunpack.c.l.b16 %v269
  %v1013 = vunpack.c.l.b16 %v270
  %v1014 = vunpack.c.h.b16 %v270
  %v1015 = vunpack.c.l.b16 %v271
  %v1016 = vunpack.c.l.b16 %v272
  %v1017 = vunpack.c.h.b16 %v272
  %v1018 = vunpack.c.l.b16 %v273
  %v1019 = vunpack.c.l.b16 %v274
  %v1020 = vunpack.c.h.b16 %v274
  %v1021 = vunpack.c.l.b16 %v275
  %v1022 = vunpack.c.l.b16 %v276
  %v1023 = vunpack.c.h.b16 %v276
  %v1024 = vunpack.c.l.b16 %v277
  %v1025 = vunpack.c.l.b16 %v278
  %v1026 = vunpack.c.h.b16 %v278
  %v1027 = vunpack.c.l.b16 %v279
  %v1028 = vunpack.c.l.b16 %v280
  %v1029 = vunpack.c.h.b16 %v280
  %v1030 = vunpack.c.l.b16 %v281
  %v1031 = vunpack.c.l.b16 %v282
  %v1032 = vunpack.c.h.b16 %v282
  %v1033 = vunpack.c.l.b16 %v283
  %v1034 = vunpack.c.l.b16 %v284
  %v1035 = vunpack.c.h.b16 %v284
  %v1036 = vunpack.c.l.b16 %v285
  %v1037 = vunpack.c.l.b16 %v286
  %v1038 = vunpack.c.h.b16 %v286
  %v1039 = vunpack.c.l.b16 %v287
  %v1040 = vunpack.c.l.b16 %v288
  %v1041 = vunpack.c.h.b16 %v288
  %v1042 = vunpack.c.l.b16 %v289
  %v1043 = vunpack.c.l.b16 %v290
  %v1044 = vunpack.c.h.b16 %v290
  %v1045 = vunpack.c.l.b16 %v291
  %v1046 = vunpack.c.l.b16 %v292
  %v1047 = vunpack.c.h.b16 %v292
  %v1048 = vunpack.c.l.b16 %v293
  %v1049 = vunpack.c.l.b16 %v294
  %v1050 = vunpack.c.h.b16 %v294
  %v1051 = vunpack.c.l.b16 %v295
  %v1052 = vunpack.c.l.b16 %v296
  %v1053 = vunpack.c.h.b16 %v296
  %v1054 = vunpack.c.l.b16 %v297
  %v1055 = vunpack.c.l.b16 %v298
  %v1056 = vunpack.c.h.b16 %v298
  %v1057 = vunpack.c.l.b16 %v299
  %v1058 = vunpack.c.l.b16 %v300
  %v1059 = vunpack.c.h.b16 %v300
  %v1060 = vunpack.c.l.b16 %v301
  %v1061 = vunpack.c.l.b16 %v302
  %v1062 = vunpack.c.h.b16 %v302
  %v1063 = vunpack.c.l.b16 %v303
  %v1064 = vunpack.c.l.b16 %v304
  %v1065 = vunpack.c.h.b16 %v304
  %v1066 = vunpack.c.l.b16 %v305
  %v1067 = vunpack.c.l.b16 %v306
  %v1068 = vunpack.c.h.b16 %v306
  %v1069 = vunpack.c.l.b16 %v307
  %v1070 = vunpack.c.l.b16 %v308
  %v1071 = vunpack.c.h.b16 %v308
  %v1072 = vunpack.c.l.b16 %v309
  %v1073 = vunpack.c.l.b16 %v310
  %v1074 = vunpack.c.h.b16 %v310
  %v1075 = vunpack.c.l.b16 %v311
  %v1076 = vunpack.c.l.b16 %v312
  %v1077 = vunpack.c.h.b16 %v312
  %v1078 = vunpack.c.l.b16 %v313
  %v1079 = vunpack.c.l.b16 %v314
  %v1080 = vunpack.c.h.b16 %v314
  %v1081 = vunpack.c.l.b16 %v315
  %v1082 = vpack.c.b16 %v653, %v650
  %v1083 = vpack.c.b16 %v654, %v651
  %v1084 = vpack.c.b16 %v655, %v652
  %v1085 = vpack.c.b16 %v659, %v656
  %v1086 = vpack.c.b16 %v660, %v657
  %v1087 = vpack.c.b16 %v661, %v658
  %v1088 = vpack.c.b16 %v665, %v662
  %v1089 = vpack.c.b16 %v666, %v663
  %v1090 = vpack.c.b16 %v667, %v664
  %v1091 = vpack.c.b16 %v671, %v668
  %v1092 = vpack.c.b16 %v672, %v669
  %v1093 = vpack.c.b16 %v673, %v670
  %v1094 = vpack.c.b16 %v677, %v674
  %v1095 = vpack.c.b16 %v678, %v675
  %v1096 = vpack.c.b16 %v679, %v676
  %v1097 = vpack.c.b16 %v683, %v680
  %v1098 = vpack.c.b16 %v684, %v681
  %v1099 = vpack.c.b16 %v685, %v682
  %v1100 = vpack.c.b16 %v689, %v686
  %v1101 = vpack.c.b16 %v690, %v687
  %v1102 = vpack.c.b16 %v691, %v688
  %v1103 = vpack.c.b16 %v695, %v692
  %v1104 = vpack.c.b16 %v696, %v693
  %v1105 = vpack.c.b16 %v697, %v694
  %v1106 = vpack.c.b16 %v701, %v698
  %v1107 = vpack.c.b16 %v702, %v699
  %v1108 = vpack.c.b16 %v703, %v700
  %v1109 = vpack.c.b16 %v707, %v704
  %v1110 = vpack.c.b16 %v708, %v705
  %v1111 = vpack.c.b16 %v709, %v706
  %v1112 = vpack.c.b16 %v713, %v710
  %v1113 = vpack.c.b16 %v714, %v711
  %v1114 = vpack.c.b16 %v715, %v712
  %v1115 = vpack.c.b16 %v719, %v716
  %v1116 = vpack.c.b16 %v720, %v717
  %v1117 = vpack.c.b16 %v721, %v718
  %v1118 = vpack.c.b16 %v725, %v722
  %v1119 = vpack.c.b16 %v726, %v723
  %v1120 = vpack.c.b16 %v727, %v724
  %v1121 = vpack.c.b16 %v731, %v728
  %v1122 = vpack.c.b16 %v732, %v729
  %v1123 = vpack.c.b16 %v733, %v730
  %v1124 = vpack.c.b16 %v737, %v734
  %v1125 = vpack.c.b16 %v738, %v735
  %v1126 = vpack.c.b16 %v739, %v736
  %v1127 = vpack.c.b16 %v743, %v740
  %v1128 = vpack.c.b16 %v744, %v741
  %v1129 = vpack.c.b16 %v745, %v742
  %v1130 = vpack.c.b16 %v749, %v746
  %v1131 = vpack.c.b16 %v750, %v747
  %v1132 = vpack.c.b16 %v751, %v748
  %v1133 = vpack.c.b16 %v755, %v752
  %v1134 = vpack.c.b16 %v756, %v753
  %v1135 = vpack.c.b16 %v757, %v754
  %v1136 = vpack.c.b16 %v761, %v758
  %v1137 = vpack.c.b16 %v762, %v759
  %v1138 = vpack.c.b16 %v763, %v760
  %v1139 = vpack.c.b16 %v767, %v764
  %v1140 = vpack.c.b16 %v768, %v765
  %v1141 = vpack.c.b16 %v769, %v766
  %v1142 = vpack.c.b16 %v773, %v770
  %v1143 = vpack.c.b16 %v774, %v771
  %v1144 = vpack.c.b16 %v775, %v772
  %v1145 = vpack.c.b16 %v779, %v776
  %v1146 = vpack.c.b16 %v780, %v777
  %v1147 = vpack.c.b16 %v781, %v778
  %v1148 = vpack.c.b16 %v785, %v782
  %v1149 = vpack.c.b16 %v786, %v783
  %v1150 = vpack.c.b16 %v787, %v784
  %v1151 = vpack.c.b16 %v791, %v788
  %v1152 = vpack.c.b16 %v792, %v789
  %v1153 = vpack.c.b16 %v793, %v790
  %v1154 = vpack.c.b16 %v797, %v794
  %v1155 = vpack.c.b16 %v798, %v795
  %v1156 = vpack.c.b16 %v799, %v796
  %v1157 = vpack.c.b16 %v803, %v800
  %v1158 = vpack.c.b16 %v804, %v801
  %v1159 = vpack.c.b16 %v805, %v802
  %v1160 = vpack.c.b16 %v809, %v806
  %v1161 = vpack.c.b16 %v810, %v807
  %v1162 = vpack.c.b16 %v811, %v808
  %v1163 = vpack.c.b16 %v815, %v812
  %v1164 = vpack.c.b16 %v816, %v813
  %v1165 = vpack.c.b16 %v817, %v814
  %v1166 = vpack.c.b16 %v821, %v818
  %v1167 = vpack.c.b16 %v822, %v819
  %v1168 = vpack.c.b16 %v823, %v820
  %v1169 = vpack.c.b16 %v827, %v824
  %v1170 = vpack.c.b16 %v828, %v825
  %v1171 = vpack.c.b16 %v829, %v826
  %v1172 = vpack.c.b16 %v833, %v830
  %v1173 = vpack.c.b16 %v834, %v831
  %v1174 = vpack.c.b16 %v835, %v832
  %v1175 = vpack.c.b16 %v839, %v836
  %v1176 = vpack.c.b16 %v840, %v837
  %v1177 = vpack.c.b16 %v841, %v838
  %v1178 = vpack.c.b16 %v845, %v842
  %v1179 = vpack.c.b16 %v846, %v843
  %v1180 = vpack.c.b16 %v847, %v844
  %v1181 = vpack.c.b16 %v851, %v848
  %v1182 = vpack.c.b16 %v852, %v849
  %v1183 = vpack.c.b16 %v853, %v850
  %v1184 = vpack.c.b16 %v857, %v854
  %v1185 = vpack.c.b16 %v858, %v855
  %v1186 = vpack.c.b16 %v859, %v856
  %v1187 = vpack.c.b16 %v863, %v860
  %v1188 = vpack.c.b16 %v864, %v861
  %v1189 = vpack.c.b16 %v865, %v862
  %v1190 = vpack.c.b16 %v869, %v866
  %v1191 = vpack.c.b16 %v870, %v867
  %v1192 = vpack.c.b16 %v871, %v868
  %v1193 = vpack.c.b16 %v875, %v872
  %v1194 = vpack.c.b16 %v876, %v873
  %v1195 = vpack.c.b16 %v877, %v874
  %v1196 = vpack.c.b16 %v881, %v878
  %v1197 = vpack.c.b16 %v882, %v879
  %v1198 = vpack.c.b16 %v883, %v880
  %v1199 = vpack.c.b16 %v887, %v884
  %v1200 = vpack.c.b16 %v888, %v885
  %v1201 = vpack.c.b16 %v889, %v886
  %v1202 = vpack.c.b16 %v893, %v890
  %v1203 = vpack.c.b16 %v894, %v891
  %v1204 = vpack.c.b16 %v895, %v892
  %v1205 = vpack.c.b16 %v899, %v896
  %v1206 = vpack.c.b16 %v900, %v897
  %v1207 = vpack.c.b16 %v901, %v898
  %v1208 = vpack.c.b16 %v905, %v902
  %v1209 = vpack.c.b16 %v906, %v903
  %v1210 = vpack.c.b16 %v907, %v904
  %v1211 = vpack.c.b16 %v911, %v908
  %v1212 = vpack.c.b16 %v912, %v909
  %v1213 = vpack.c.b16 %v913, %v910
  %v1214 = vpack.c.b16 %v917, %v914
  %v1215 = vpack.c.b16 %v918, %v915
  %v1216 = vpack.c.b16 %v919, %v916
  %v1217 = vpack.c.b16 %v923, %v920
  %v1218 = vpack.c.b16 %v924, %v921
  %v1219 = vpack.c.b16 %v925, %v922
  %v1220 = vpack.c.b16 %v929, %v926
  %v1221 = vpack.c.b16 %v930, %v927
  %v1222 = vpack.c.b16 %v931, %v928
  %v1223 = vpack.c.b16 %v935, %v932
  %v1224 = vpack.c.b16 %v936, %v933
  %v1225 = vpack.c.b16 %v937, %v934
  %v1226 = vpack.c.b16 %v941, %v938
  %v1227 = vpack.c.b16 %v942, %v939
  %v1228 = vpack.c.b16 %v943, %v940
  %v1229 = vpack.c.b16 %v947, %v944
  %v1230 = vpack.c.b16 %v948, %v945
  %v1231 = vpack.c.b16 %v949, %v946
  %v1232 = vpack.c.b16 %v953, %v950
  %v1233 = vpack.c.b16 %v954, %v951
  %v1234 = vpack.c.b16 %v955, %v952
  %v1235 = vpack.c.b16 %v959, %v956
  %v1236 = vpack.c.b16 %v960, %v957
  %v1237 = vpack.c.b16 %v961, %v958
  %v1238 = vpack.c.b16 %v965, %v962
  %v1239 = vpack.c.b16 %v966, %v963
  %v1240 = vpack.c.b16 %v967, %v964
  %v1241 = vpack.c.b16 %v971, %v968
  %v1242 = vpack.c.b16 %v972, %v969
  %v1243 = vpack.c.b16 %v973, %v970
  %v1244 = vpack.c.b16 %v977, %v974
  %v1245 = vpack.c.b16 %v978, %v975
  %v1246 = vpack.c.b16 %v979, %v976
  %v1247 = vpack.c.b16 %v983, %v980
  %v1248 = vpack.c.b16 %v984, %v981
  %v1249 = vpack.c.b16 %v985, %v982
  %v1250 = vpack.c.b16 %v989, %v986
  %v1251 = vpack.c.b16 %v990, %v987
  %v1252 = vpack.c.b16 %v991, %v988
  %v1253 = vpack.c.b16 %v995, %v992
  %v1254 = vpack.c.b16 %v996, %v993
  %v1255 = vpack.c.b16 %v997, %v994
  %v1256 = vpack.c.b16 %v1001, %v998
  %v1257 = vpack.c.b16 %v1002, %v999
  %v1258 = vpack.c.b16 %v1003, %v1000
  %v1259 = vpack.c.b16 %v1007, %v1004
  %v1260 = vpack.c.b16 %v1008, %v1005
  %v1261 = vpack.c.b16 %v1009, %v1006
  %v1262 = vpack.c.b16 %v1013, %v1010
  %v1263 = vpack.c.b16 %v1014, %v1011
  %v1264 = vpack.c.b16 %v1015, %v1012
  %v1265 = vpack.c.b16 %v1019, %v1016
  %v1266 = vpack.c.b16 %v1020, %v1017
  %v1267 = vpack.c.b16 %v1021, %v1018
  %v1268 = vpack.c.b16 %v1025, %v1022
  %v1269 = vpack.c.b16 %v1026, %v1023
  %v1270 = vpack.c.b16 %v1027, %v1024
  %v1271 = vpack.c.b16 %v1031, %v1028
  %v1272 = vpack.c.b16 %v1032, %v1029
  %v1273 = vpack.c.b16 %v1033, %v1030
  %v1274 = vpack.c.b16 %v1037, %v1034
  %v1275 = vpack.c.b16 %v1038, %v1035
  %v1276 = vpack.c.b16 %v1039, %v1036
  %v1277 = vpack.c.b16 %v1043, %v1040
  %v1278 = vpack.c.b16 %v1044, %v1041
  %v1279 = vpack.c.b16 %v1045, %v1042
  %v1280 = vpack.c.b16 %v1049, %v1046
  %v1281 = vpack.c.b16 %v1050, %v1047
  %v1282 = vpack.c.b16 %v1051, %v1048
  %v1283 = vpack.c.b16 %v1055, %v1052
  %v1284 = vpack.c.b16 %v1056, %v1053
  %v1285 = vpack.c.b16 %v1057, %v1054
  %v1286 = vpack.c.b16 %v1061, %v1058
  %v1287 = vpack.c.b16 %v1062, %v1059
  %v1288 = vpack.c.b16 %v1063, %v1060
  %v1289 = vpack.c.b16 %v1067, %v1064
  %v1290 = vpack.c.b16 %v1068, %v1065
  %v1291 = vpack.c.b16 %v1069, %v1066
  %v1292 = vpack.c.b16 %v1073, %v1070
  %v1293 = vpack.c.b16 %v1074, %v1071
  %v1294 = vpack.c.b16 %v1075, %v1072
  %v1295 = vpack.c.b16 %v1079, %v1076
  %v1296 = vpack.c.b16 %v1080, %v1077
  %v1297 = vpack.c.b16 %v1081, %v1078
  %1514 = vmatprep.subr.bf16.mxu0 %v1083
  %1515 = vmatpush1.bf16.msra.mxu0 %v1082
  %1516 = vmatprep.subr.bf16.mxu0 %v1086
  %1517 = vmatpush1.bf16.msra.mxu0 %v1085
  %1518 = vmatprep.subr.bf16.mxu0 %v1089
  %1519 = vmatpush1.bf16.msra.mxu0 %v1088
  %1520 = vmatprep.subr.bf16.mxu0 %v1092
  %1521 = vmatpush1.bf16.msra.mxu0 %v1091
  %1522 = vmatprep.subr.bf16.mxu0 %v1095
  %1523 = vmatpush1.bf16.msra.mxu0 %v1094
  %1524 = vmatprep.subr.bf16.mxu0 %v1098
  %1525 = vmatpush1.bf16.msra.mxu0 %v1097
  %1526 = vmatprep.subr.bf16.mxu0 %v1101
  %1527 = vmatpush1.bf16.msra.mxu0 %v1100
  %1528 = vmatprep.subr.bf16.mxu0 %v1104
  %1529 = vmatpush1.bf16.msra.mxu0 %v1103
  %1530 = vmatprep.subr.bf16.mxu0 %v1107
  %1531 = vmatpush1.bf16.msra.mxu0 %v1106
  %1532 = vmatprep.subr.bf16.mxu0 %v1110
  %1533 = vmatpush1.bf16.msra.mxu0 %v1109
  %1534 = vmatprep.subr.bf16.mxu0 %v1113
  %1535 = vmatpush1.bf16.msra.mxu0 %v1112
  %1536 = vmatprep.subr.bf16.mxu0 %v1116
  %1537 = vmatpush1.bf16.msra.mxu0 %v1115
  %1538 = vmatprep.subr.bf16.mxu0 %v1119
  %1539 = vmatpush1.bf16.msra.mxu0 %v1118
  %1540 = vmatprep.subr.bf16.mxu0 %v1122
  %1541 = vmatpush1.bf16.msra.mxu0 %v1121
  %1542 = vmatprep.subr.bf16.mxu0 %v1125
  %1543 = vmatpush1.bf16.msra.mxu0 %v1124
  %1544 = vmatprep.subr.bf16.mxu0 %v1128
  %1545 = vmatpush1.bf16.msra.mxu0 %v1127
  %1546 = vmatprep.mubr.bf16.mxu0 %v345
  %1547 = vmatmul.mubr.bf16.gmra.mrb[0].mxu0 %v344
  %v1548 = vpop.f32.mrb[0].mxu0
  %v1549 = vadd.f32 0.0, %v1548
  %v1550 = vpop.f32.mrb[0].mxu0
  %v1551 = vadd.f32 0.0, %v1550
  %v1552 = vpop.f32.mrb[0].mxu0
  %v1553 = vadd.f32 0.0, %v1552
  %v1554 = vpop.f32.mrb[0].mxu0
  %v1555 = vadd.f32 0.0, %v1554
  %1556 = vdwg.mxu0
  %1557 = vmatprep.subr.bf16.mxu0 %v1131
  %1558 = vmatpush1.bf16.msra.mxu0 %v1130
  %1559 = vmatprep.subr.bf16.mxu0 %v1134
  %1560 = vmatpush1.bf16.msra.mxu0 %v1133
  %1561 = vmatprep.subr.bf16.mxu0 %v1137
  %1562 = vmatpush1.bf16.msra.mxu0 %v1136
  %1563 = vmatprep.subr.bf16.mxu0 %v1140
  %1564 = vmatpush1.bf16.msra.mxu0 %v1139
  %1565 = vmatprep.subr.bf16.mxu0 %v1143
  %1566 = vmatpush1.bf16.msra.mxu0 %v1142
  %1567 = vmatprep.subr.bf16.mxu0 %v1146
  %1568 = vmatpush1.bf16.msra.mxu0 %v1145
  %1569 = vmatprep.subr.bf16.mxu0 %v1149
  %1570 = vmatpush1.bf16.msra.mxu0 %v1148
  %1571 = vmatprep.subr.bf16.mxu0 %v1152
  %1572 = vmatpush1.bf16.msra.mxu0 %v1151
  %1573 = vmatprep.subr.bf16.mxu0 %v1155
  %1574 = vmatpush1.bf16.msra.mxu0 %v1154
  %1575 = vmatprep.subr.bf16.mxu0 %v1158
  %1576 = vmatpush1.bf16.msra.mxu0 %v1157
  %1577 = vmatprep.subr.bf16.mxu0 %v1161
  %1578 = vmatpush1.bf16.msra.mxu0 %v1160
  %1579 = vmatprep.subr.bf16.mxu0 %v1164
  %1580 = vmatpush1.bf16.msra.mxu0 %v1163
  %1581 = vmatprep.subr.bf16.mxu0 %v1167
  %1582 = vmatpush1.bf16.msra.mxu0 %v1166
  %1583 = vmatprep.subr.bf16.mxu0 %v1170
  %1584 = vmatpush1.bf16.msra.mxu0 %v1169
  %1585 = vmatprep.subr.bf16.mxu0 %v1173
  %1586 = vmatpush1.bf16.msra.mxu0 %v1172
  %1587 = vmatprep.subr.bf16.mxu0 %v1176
  %1588 = vmatpush1.bf16.msra.mxu0 %v1175
  %1589 = vmatprep.mubr.bf16.mxu0 %v347
  %1590 = vmatmul.mubr.bf16.gmra.mrb[0].mxu0 %v346
  %v1591 = vpop.f32.mrb[0].mxu0
  %v1592 = vadd.f32 %v1549, %v1591
  %v1593 = vpop.f32.mrb[0].mxu0
  %v1594 = vadd.f32 %v1551, %v1593
  %v1595 = vpop.f32.mrb[0].mxu0
  %v1596 = vadd.f32 %v1553, %v1595
  %v1597 = vpop.f32.mrb[0].mxu0
  %v1598 = vadd.f32 %v1555, %v1597
  %1599 = vdwg.mxu0
  %1600 = vmatprep.subr.bf16.mxu0 %v1179
  %1601 = vmatpush1.bf16.msra.mxu0 %v1178
  %1602 = vmatprep.subr.bf16.mxu0 %v1182
  %1603 = vmatpush1.bf16.msra.mxu0 %v1181
  %1604 = vmatprep.subr.bf16.mxu0 %v1185
  %1605 = vmatpush1.bf16.msra.mxu0 %v1184
  %1606 = vmatprep.subr.bf16.mxu0 %v1188
  %1607 = vmatpush1.bf16.msra.mxu0 %v1187
  %1608 = vmatprep.subr.bf16.mxu0 %v1191
  %1609 = vmatpush1.bf16.msra.mxu0 %v1190
  %1610 = vmatprep.subr.bf16.mxu0 %v1194
  %1611 = vmatpush1.bf16.msra.mxu0 %v1193
  %1612 = vmatprep.subr.bf16.mxu0 %v1197
  %1613 = vmatpush1.bf16.msra.mxu0 %v1196
  %1614 = vmatprep.subr.bf16.mxu0 %v1200
  %1615 = vmatpush1.bf16.msra.mxu0 %v1199
  %1616 = vmatprep.subr.bf16.mxu0 %v1203
  %1617 = vmatpush1.bf16.msra.mxu0 %v1202
  %1618 = vmatprep.subr.bf16.mxu0 %v1206
  %1619 = vmatpush1.bf16.msra.mxu0 %v1205
  %1620 = vmatprep.subr.bf16.mxu0 %v1209
  %1621 = vmatpush1.bf16.msra.mxu0 %v1208
  %1622 = vmatprep.subr.bf16.mxu0 %v1212
  %1623 = vmatpush1.bf16.msra.mxu0 %v1211
  %1624 = vmatprep.subr.bf16.mxu0 %v1215
  %1625 = vmatpush1.bf16.msra.mxu0 %v1214
  %1626 = vmatprep.subr.bf16.mxu0 %v1218
  %1627 = vmatpush1.bf16.msra.mxu0 %v1217
  %1628 = vmatprep.subr.bf16.mxu0 %v1221
  %1629 = vmatpush1.bf16.msra.mxu0 %v1220
  %1630 = vmatprep.subr.bf16.mxu0 %v1224
  %1631 = vmatpush1.bf16.msra.mxu0 %v1223
  %1632 = vmatprep.mubr.bf16.mxu0 %v349
  %1633 = vmatmul.mubr.bf16.gmra.mrb[0].mxu0 %v348
  %v1634 = vpop.f32.mrb[0].mxu0
  %v1635 = vadd.f32 %v1592, %v1634
  %v1636 = vpop.f32.mrb[0].mxu0
  %v1637 = vadd.f32 %v1594, %v1636
  %v1638 = vpop.f32.mrb[0].mxu0
  %v1639 = vadd.f32 %v1596, %v1638
  %v1640 = vpop.f32.mrb[0].mxu0
  %v1641 = vadd.f32 %v1598, %v1640
  %1642 = vdwg.mxu0
  %1643 = vmatprep.subr.bf16.mxu0 %v1227
  %1644 = vmatpush1.bf16.msra.mxu0 %v1226
  %1645 = vmatprep.subr.bf16.mxu0 %v1230
  %1646 = vmatpush1.bf16.msra.mxu0 %v1229
  %1647 = vmatprep.subr.bf16.mxu0 %v1233
  %1648 = vmatpush1.bf16.msra.mxu0 %v1232
  %1649 = vmatprep.subr.bf16.mxu0 %v1236
  %1650 = vmatpush1.bf16.msra.mxu0 %v1235
  %1651 = vmatprep.subr.bf16.mxu0 %v1239
  %1652 = vmatpush1.bf16.msra.mxu0 %v1238
  %1653 = vmatprep.subr.bf16.mxu0 %v1242
  %1654 = vmatpush1.bf16.msra.mxu0 %v1241
  %1655 = vmatprep.subr.bf16.mxu0 %v1245
  %1656 = vmatpush1.bf16.msra.mxu0 %v1244
  %1657 = vmatprep.subr.bf16.mxu0 %v1248
  %1658 = vmatpush1.bf16.msra.mxu0 %v1247
  %1659 = vmatprep.subr.bf16.mxu0 %v1251
  %1660 = vmatpush1.bf16.msra.mxu0 %v1250
  %1661 = vmatprep.subr.bf16.mxu0 %v1254
  %1662 = vmatpush1.bf16.msra.mxu0 %v1253
  %1663 = vmatprep.subr.bf16.mxu0 %v1257
  %1664 = vmatpush1.bf16.msra.mxu0 %v1256
  %1665 = vmatprep.subr.bf16.mxu0 %v1260
  %1666 = vmatpush1.bf16.msra.mxu0 %v1259
  %1667 = vmatprep.subr.bf16.mxu0 %v1263
  %1668 = vmatpush1.bf16.msra.mxu0 %v1262
  %1669 = vmatprep.subr.bf16.mxu0 %v1266
  %1670 = vmatpush1.bf16.msra.mxu0 %v1265
  %1671 = vmatprep.subr.bf16.mxu0 %v1269
  %1672 = vmatpush1.bf16.msra.mxu0 %v1268
  %1673 = vmatprep.subr.bf16.mxu0 %v1272
  %1674 = vmatpush1.bf16.msra.mxu0 %v1271
  %1675 = vmatprep.mubr.bf16.mxu0 %v351
  %1676 = vmatmul.mubr.bf16.gmra.mrb[0].mxu0 %v350
  %v1677 = vpop.f32.mrb[0].mxu0
  %v1678 = vadd.f32 %v1635, %v1677
  %v1679 = vpop.f32.mrb[0].mxu0
  %v1680 = vadd.f32 %v1637, %v1679
  %v1681 = vpop.f32.mrb[0].mxu0
  %v1682 = vadd.f32 %v1639, %v1681
  %v1683 = vpop.f32.mrb[0].mxu0
  %v1684 = vadd.f32 %v1641, %v1683
  %1685 = vdwg.mxu0
  %1686 = vmatprep.subr.bf16.mxu0 %v1275
  %1687 = vmatpush1.bf16.msra.mxu0 %v1274
  %1688 = vmatprep.subr.bf16.mxu0 %v1278
  %1689 = vmatpush1.bf16.msra.mxu0 %v1277
  %1690 = vmatprep.subr.bf16.mxu0 %v1281
  %1691 = vmatpush1.bf16.msra.mxu0 %v1280
  %1692 = vmatprep.subr.bf16.mxu0 %v1284
  %1693 = vmatpush1.bf16.msra.mxu0 %v1283
  %1694 = vmatprep.subr.bf16.mxu0 %v1287
  %1695 = vmatpush1.bf16.msra.mxu0 %v1286
  %1696 = vmatprep.subr.bf16.mxu0 %v1290
  %1697 = vmatpush1.bf16.msra.mxu0 %v1289
  %1698 = vmatprep.subr.bf16.mxu0 %v1293
  %1699 = vmatpush1.bf16.msra.mxu0 %v1292
  %1700 = vmatprep.subr.bf16.mxu0 %v1296
  %1701 = vmatpush1.bf16.msra.mxu0 %v1295
  %1702 = vmatprep.subr.bf16.mxu0 0
  %1703 = vmatpush1.bf16.msra.mxu0 0
  %1704 = vmatprep.subr.bf16.mxu0 0
  %1705 = vmatpush1.bf16.msra.mxu0 0
  %1706 = vmatprep.subr.bf16.mxu0 0
  %1707 = vmatpush1.bf16.msra.mxu0 0
  %1708 = vmatprep.subr.bf16.mxu0 0
  %1709 = vmatpush1.bf16.msra.mxu0 0
  %1710 = vmatprep.subr.bf16.mxu0 0
  %1711 = vmatpush1.bf16.msra.mxu0 0
  %1712 = vmatprep.subr.bf16.mxu0 0
  %1713 = vmatpush1.bf16.msra.mxu0 0
  %1714 = vmatprep.subr.bf16.mxu0 0
  %1715 = vmatpush1.bf16.msra.mxu0 0
  %1716 = vmatprep.subr.bf16.mxu0 0
  %1717 = vmatpush1.bf16.msra.mxu0 0
  %1718 = vmatprep.mubr.bf16.mxu0 0
  %1719 = vmatmul.mubr.bf16.gmra.mrb[0].mxu0 %v352
  %v1720 = vpop.f32.mrb[0].mxu0
  %v1721 = vadd.f32 %v1678, %v1720
  %v1722 = vpop.f32.mrb[0].mxu0
  %v1723 = vadd.f32 %v1680, %v1722
  %v1724 = vpop.f32.mrb[0].mxu0
  %v1725 = vadd.f32 %v1682, %v1724
  %v1726 = vpop.f32.mrb[0].mxu0
  %v1727 = vadd.f32 %v1684, %v1726
  %1728 = vdwg.mxu0
  %1729 = vmatprep.subr.bf16.mxu0 0
  %1730 = vmatpush1.bf16.msra.mxu0 %v1084
  %1731 = vmatprep.subr.bf16.mxu0 0
  %1732 = vmatpush1.bf16.msra.mxu0 %v1087
  %1733 = vmatprep.subr.bf16.mxu0 0
  %1734 = vmatpush1.bf16.msra.mxu0 %v1090
  %1735 = vmatprep.subr.bf16.mxu0 0
  %1736 = vmatpush1.bf16.msra.mxu0 %v1093
  %1737 = vmatprep.subr.bf16.mxu0 0
  %1738 = vmatpush1.bf16.msra.mxu0 %v1096
  %1739 = vmatprep.subr.bf16.mxu0 0
  %1740 = vmatpush1.bf16.msra.mxu0 %v1099
  %1741 = vmatprep.subr.bf16.mxu0 0
  %1742 = vmatpush1.bf16.msra.mxu0 %v1102
  %1743 = vmatprep.subr.bf16.mxu0 0
  %1744 = vmatpush1.bf16.msra.mxu0 %v1105
  %1745 = vmatprep.subr.bf16.mxu0 0
  %1746 = vmatpush1.bf16.msra.mxu0 %v1108
  %1747 = vmatprep.subr.bf16.mxu0 0
  %1748 = vmatpush1.bf16.msra.mxu0 %v1111
  %1749 = vmatprep.subr.bf16.mxu0 0
  %1750 = vmatpush1.bf16.msra.mxu0 %v1114
  %1751 = vmatprep.subr.bf16.mxu0 0
  %1752 = vmatpush1.bf16.msra.mxu0 %v1117
  %1753 = vmatprep.subr.bf16.mxu0 0
  %1754 = vmatpush1.bf16.msra.mxu0 %v1120
  %1755 = vmatprep.subr.bf16.mxu0 0
  %1756 = vmatpush1.bf16.msra.mxu0 %v1123
  %1757 = vmatprep.subr.bf16.mxu0 0
  %1758 = vmatpush1.bf16.msra.mxu0 %v1126
  %1759 = vmatprep.subr.bf16.mxu0 0
  %1760 = vmatpush1.bf16.msra.mxu0 %v1129
  %1761 = vmatprep.mubr.bf16.mxu0 %v345
  %1762 = vmatmul.mubr.bf16.gmra.mrb[0].mxu0 %v344
  %v1763 = vpop.f32.mrb[0].mxu0
  %v1764 = vadd.f32 0.0, %v1763
  %v1765 = vpop.f32.mrb[0].mxu0
  %v1766 = vpop.f32.mrb[0].mxu0
  %v1767 = vadd.f32 0.0, %v1766
  %v1768 = vpop.f32.mrb[0].mxu0
  %1769 = vdwg.mxu0
  %1770 = vmatprep.subr.bf16.mxu0 0
  %1771 = vmatpush1.bf16.msra.mxu0 %v1132
  %1772 = vmatprep.subr.bf16.mxu0 0
  %1773 = vmatpush1.bf16.msra.mxu0 %v1135
  %1774 = vmatprep.subr.bf16.mxu0 0
  %1775 = vmatpush1.bf16.msra.mxu0 %v1138
  %1776 = vmatprep.subr.bf16.mxu0 0
  %1777 = vmatpush1.bf16.msra.mxu0 %v1141
  %1778 = vmatprep.subr.bf16.mxu0 0
  %1779 = vmatpush1.bf16.msra.mxu0 %v1144
  %1780 = vmatprep.subr.bf16.mxu0 0
  %1781 = vmatpush1.bf16.msra.mxu0 %v1147
  %1782 = vmatprep.subr.bf16.mxu0 0
  %1783 = vmatpush1.bf16.msra.mxu0 %v1150
  %1784 = vmatprep.subr.bf16.mxu0 0
  %1785 = vmatpush1.bf16.msra.mxu0 %v1153
  %1786 = vmatprep.subr.bf16.mxu0 0
  %1787 = vmatpush1.bf16.msra.mxu0 %v1156
  %1788 = vmatprep.subr.bf16.mxu0 0
  %1789 = vmatpush1.bf16.msra.mxu0 %v1159
  %1790 = vmatprep.subr.bf16.mxu0 0
  %1791 = vmatpush1.bf16.msra.mxu0 %v1162
  %1792 = vmatprep.subr.bf16.mxu0 0
  %1793 = vmatpush1.bf16.msra.mxu0 %v1165
  %1794 = vmatprep.subr.bf16.mxu0 0
  %1795 = vmatpush1.bf16.msra.mxu0 %v1168
  %1796 = vmatprep.subr.bf16.mxu0 0
  %1797 = vmatpush1.bf16.msra.mxu0 %v1171
  %1798 = vmatprep.subr.bf16.mxu0 0
  %1799 = vmatpush1.bf16.msra.mxu0 %v1174
  %1800 = vmatprep.subr.bf16.mxu0 0
  %1801 = vmatpush1.bf16.msra.mxu0 %v1177
  %1802 = vmatprep.mubr.bf16.mxu0 %v347
  %1803 = vmatmul.mubr.bf16.gmra.mrb[0].mxu0 %v346
  %v1804 = vpop.f32.mrb[0].mxu0
  %v1805 = vadd.f32 %v1764, %v1804
  %v1806 = vpop.f32.mrb[0].mxu0
  %v1807 = vpop.f32.mrb[0].mxu0
  %v1808 = vadd.f32 %v1767, %v1807
  %v1809 = vpop.f32.mrb[0].mxu0
  %1810 = vdwg.mxu0
  %1811 = vmatprep.subr.bf16.mxu0 0
  %1812 = vmatpush1.bf16.msra.mxu0 %v1180
  %1813 = vmatprep.subr.bf16.mxu0 0
  %1814 = vmatpush1.bf16.msra.mxu0 %v1183
  %1815 = vmatprep.subr.bf16.mxu0 0
  %1816 = vmatpush1.bf16.msra.mxu0 %v1186
  %1817 = vmatprep.subr.bf16.mxu0 0
  %1818 = vmatpush1.bf16.msra.mxu0 %v1189
  %1819 = vmatprep.subr.bf16.mxu0 0
  %1820 = vmatpush1.bf16.msra.mxu0 %v1192
  %1821 = vmatprep.subr.bf16.mxu0 0
  %1822 = vmatpush1.bf16.msra.mxu0 %v1195
  %1823 = vmatprep.subr.bf16.mxu0 0
  %1824 = vmatpush1.bf16.msra.mxu0 %v1198
  %1825 = vmatprep.subr.bf16.mxu0 0
  %1826 = vmatpush1.bf16.msra.mxu0 %v1201
  %1827 = vmatprep.subr.bf16.mxu0 0
  %1828 = vmatpush1.bf16.msra.mxu0 %v1204
  %1829 = vmatprep.subr.bf16.mxu0 0
  %1830 = vmatpush1.bf16.msra.mxu0 %v1207
  %1831 = vmatprep.subr.bf16.mxu0 0
  %1832 = vmatpush1.bf16.msra.mxu0 %v1210
  %1833 = vmatprep.subr.bf16.mxu0 0
  %1834 = vmatpush1.bf16.msra.mxu0 %v1213
  %1835 = vmatprep.subr.bf16.mxu0 0
  %1836 = vmatpush1.bf16.msra.mxu0 %v1216
  %1837 = vmatprep.subr.bf16.mxu0 0
  %1838 = vmatpush1.bf16.msra.mxu0 %v1219
  %1839 = vmatprep.subr.bf16.mxu0 0
  %1840 = vmatpush1.bf16.msra.mxu0 %v1222
  %1841 = vmatprep.subr.bf16.mxu0 0
  %1842 = vmatpush1.bf16.msra.mxu0 %v1225
  %1843 = vmatprep.mubr.bf16.mxu0 %v349
  %1844 = vmatmul.mubr.bf16.gmra.mrb[0].mxu0 %v348
  %v1845 = vpop.f32.mrb[0].mxu0
  %v1846 = vadd.f32 %v1805, %v1845
  %v1847 = vpop.f32.mrb[0].mxu0
  %v1848 = vpop.f32.mrb[0].mxu0
  %v1849 = vadd.f32 %v1808, %v1848
  %v1850 = vpop.f32.mrb[0].mxu0
  %1851 = vdwg.mxu0
  %1852 = vmatprep.subr.bf16.mxu0 0
  %1853 = vmatpush1.bf16.msra.mxu0 %v1228
  %1854 = vmatprep.subr.bf16.mxu0 0
  %1855 = vmatpush1.bf16.msra.mxu0 %v1231
  %1856 = vmatprep.subr.bf16.mxu0 0
  %1857 = vmatpush1.bf16.msra.mxu0 %v1234
  %1858 = vmatprep.subr.bf16.mxu0 0
  %1859 = vmatpush1.bf16.msra.mxu0 %v1237
  %1860 = vmatprep.subr.bf16.mxu0 0
  %1861 = vmatpush1.bf16.msra.mxu0 %v1240
  %1862 = vmatprep.subr.bf16.mxu0 0
  %1863 = vmatpush1.bf16.msra.mxu0 %v1243
  %1864 = vmatprep.subr.bf16.mxu0 0
  %1865 = vmatpush1.bf16.msra.mxu0 %v1246
  %1866 = vmatprep.subr.bf16.mxu0 0
  %1867 = vmatpush1.bf16.msra.mxu0 %v1249
  %1868 = vmatprep.subr.bf16.mxu0 0
  %1869 = vmatpush1.bf16.msra.mxu0 %v1252
  %1870 = vmatprep.subr.bf16.mxu0 0
  %1871 = vmatpush1.bf16.msra.mxu0 %v1255
  %1872 = vmatprep.subr.bf16.mxu0 0
  %1873 = vmatpush1.bf16.msra.mxu0 %v1258
  %1874 = vmatprep.subr.bf16.mxu0 0
  %1875 = vmatpush1.bf16.msra.mxu0 %v1261
  %1876 = vmatprep.subr.bf16.mxu0 0
  %1877 = vmatpush1.bf16.msra.mxu0 %v1264
  %1878 = vmatprep.subr.bf16.mxu0 0
  %1879 = vmatpush1.bf16.msra.mxu0 %v1267
  %1880 = vmatprep.subr.bf16.mxu0 0
  %1881 = vmatpush1.bf16.msra.mxu0 %v1270
  %1882 = vmatprep.subr.bf16.mxu0 0
  %1883 = vmatpush1.bf16.msra.mxu0 %v1273
  %1884 = vmatprep.mubr.bf16.mxu0 %v351
  %1885 = vmatmul.mubr.bf16.gmra.mrb[0].mxu0 %v350
  %v1886 = vpop.f32.mrb[0].mxu0
  %v1887 = vadd.f32 %v1846, %v1886
  %v1888 = vpop.f32.mrb[0].mxu0
  %v1889 = vpop.f32.mrb[0].mxu0
  %v1890 = vadd.f32 %v1849, %v1889
  %v1891 = vpop.f32.mrb[0].mxu0
  %1892 = vdwg.mxu0
  %1893 = vmatprep.subr.bf16.mxu0 0
  %1894 = vmatpush1.bf16.msra.mxu0 %v1276
  %1895 = vmatprep.subr.bf16.mxu0 0
  %1896 = vmatpush1.bf16.msra.mxu0 %v1279
  %1897 = vmatprep.subr.bf16.mxu0 0
  %1898 = vmatpush1.bf16.msra.mxu0 %v1282
  %1899 = vmatprep.subr.bf16.mxu0 0
  %1900 = vmatpush1.bf16.msra.mxu0 %v1285
  %1901 = vmatprep.subr.bf16.mxu0 0
  %1902 = vmatpush1.bf16.msra.mxu0 %v1288
  %1903 = vmatprep.subr.bf16.mxu0 0
  %1904 = vmatpush1.bf16.msra.mxu0 %v1291
  %1905 = vmatprep.subr.bf16.mxu0 0
  %1906 = vmatpush1.bf16.msra.mxu0 %v1294
  %1907 = vmatprep.subr.bf16.mxu0 0
  %1908 = vmatpush1.bf16.msra.mxu0 %v1297
  %1909 = vmatprep.subr.bf16.mxu0 0
  %1910 = vmatpush1.bf16.msra.mxu0 0
  %1911 = vmatprep.subr.bf16.mxu0 0
  %1912 = vmatpush1.bf16.msra.mxu0 0
  %1913 = vmatprep.subr.bf16.mxu0 0
  %1914 = vmatpush1.bf16.msra.mxu0 0
  %1915 = vmatprep.subr.bf16.mxu0 0
  %1916 = vmatpush1.bf16.msra.mxu0 0
  %1917 = vmatprep.subr.bf16.mxu0 0
  %1918 = vmatpush1.bf16.msra.mxu0 0
  %1919 = vmatprep.subr.bf16.mxu0 0
  %1920 = vmatpush1.bf16.msra.mxu0 0
  %1921 = vmatprep.subr.bf16.mxu0 0
  %1922 = vmatpush1.bf16.msra.mxu0 0
  %1923 = vmatprep.subr.bf16.mxu0 0
  %1924 = vmatpush1.bf16.msra.mxu0 0
  %1925 = vmatprep.mubr.bf16.mxu0 0
  %1926 = vmatmul.mubr.bf16.gmra.mrb[0].mxu0 %v352
  %v1927 = vpop.f32.mrb[0].mxu0
  %v1928 = vadd.f32 %v1887, %v1927
  %v1929 = vpop.f32.mrb[0].mxu0
  %v1930 = vpop.f32.mrb[0].mxu0
  %v1931 = vadd.f32 %v1890, %v1930
  %v1932 = vpop.f32.mrb[0].mxu0
  %1933 = vdwg.mxu0
  %v1934 = vld [vmem:[%s2] sm:$0x7]
  %v1936 = vlaneseq
  %v1937 = vshrl.u32 %v1936, 7
  %v1938 = vsub.s32 0, %v1937
  %v1939 = vrot.slane %v1934, %v1938
  %v1940 = vlaneseq
  %v1941 = vshrl.u32 %v1940, 7
  %v1942 = vsub.s32 1, %v1941
  %v1943 = vrot.slane %v1934, %v1942
  %v1944 = vlaneseq
  %v1945 = vshrl.u32 %v1944, 7
  %v1946 = vsub.s32 2, %v1945
  %v1947 = vrot.slane %v1934, %v1946
  %v1951 = vmul.f32 %v1721, %v1939
  %v1952 = vmul.f32 %v1723, %v1943
  %v1953 = vmul.f32 %v1928, %v1947
  %v1954 = vmul.f32 %v1725, %v1939
  %v1955 = vmul.f32 %v1727, %v1943
  %v1956 = vmul.f32 %v1931, %v1947
  %v1957 = vld [vmem:[%s3] sm:$0x7]
  %v1959 = vlaneseq
  %v1960 = vshrl.u32 %v1959, 7
  %v1961 = vsub.s32 0, %v1960
  %v1962 = vrot.slane %v1957, %v1961
  %v1963 = vlaneseq
  %v1964 = vshrl.u32 %v1963, 7
  %v1965 = vsub.s32 1, %v1964
  %v1966 = vrot.slane %v1957, %v1965
  %v1967 = vlaneseq
  %v1968 = vshrl.u32 %v1967, 7
  %v1969 = vsub.s32 2, %v1968
  %v1970 = vrot.slane %v1957, %v1969
  %v1974 = vadd.f32 %v1951, %v1962
  %v1975 = vadd.f32 %v1952, %v1966
  %v1976 = vadd.f32 %v1953, %v1970
  %v1977 = vadd.f32 %v1954, %v1962
  %v1978 = vadd.f32 %v1955, %v1966
  %v1979 = vadd.f32 %v1956, %v1970
  %v1980 = vmax.f32 %v1974, 0.0
  %v1981 = vmax.f32 %v1975, 0.0
  %v1982 = vmax.f32 %v1976, 0.0
  %v1983 = vmax.f32 %v1977, 0.0
  %v1984 = vmax.f32 %v1978, 0.0
  %v1985 = vmax.f32 %v1979, 0.0
  %v1986 = vadd.f32 %v1980, %v1981
  %v1987 = vadd.f32 %v1983, %v1984
  %v1988 = vadd.f32 %v1986, %v1982
  %v1989 = vadd.f32 %v1987, %v1985
  %v1990 = vpack.c.bf16 %v1989, %v1988
  %v1992 = vunpack.c.l.b16 %v1990
  %v1993 = vunpack.c.h.b16 %v1990
  %v1994 = vpack.c.b16 %v1992, %v1992
  %v1995 = vpack.c.b16 %v1993, %v1993
  %1998 = vst [vmem:[%s4] sm:$0xf] %v1994
  %1999 = vst [vmem:[%s4 + $0x4] sm:$0xf] %v1995
  // Predicated region
  $region18: #{_lambda_.19} parent=0 // pred_check
    _
  $region19: #{_lambda_.19} parent=0 // pred_check_branch
    %2001 = sbr.rel (0) target = $region21
  $region20: #{_lambda_.19} parent=0 // pred_region
    _
  $region21: #{_lambda_.19} parent=0 // pred_fallthru
    _
  // Predicated region
  $region22: #{_lambda_.19} parent=0 // pred_check
    _
  $region23: #{_lambda_.19} parent=0 // pred_check_branch
    %2003 = sbr.rel (0) target = $region25
  $region24: #{_lambda_.19} parent=0 // pred_region
    _
  $region25: #{_lambda_.19} parent=0 // pred_fallthru
    _

// kernel: _lambda_.23
$region0: #{_lambda_.23}
  #allocation0 [shape = 'u32[]', space=smem, size = 0x4, offset = 0x4, fixed_abs, tag = 'smem constant byte address 0x4 - core index']
  #allocation1 [shape = 'u32[144,128]{1,0:T(1,128)}', space=vmem, size = 0x12000, scoped, tag = 'internal scratch']
  %s0 = inlined_call_operand.vmem [shape: bf16[32,256], index: 0, kind: input, shape index: {}]
  %s1 = inlined_call_operand.vmem [shape: bf16[256,128], index: 1, kind: input, shape index: {}]
  %s2 = inlined_call_operand.vmem [shape: f32[1,128], index: 2, kind: input, shape index: {}]
  %s3 = inlined_call_operand.vmem [shape: f32[1,128], index: 3, kind: input, shape index: {}]
  %s4 = inlined_call_operand.vmem [shape: f32[32,128], index: 4, kind: output, shape index: {}]
  %s5 = sld [smem:[#allocation0]]
  $region26: #{_lambda_.23} parent=0
    _
  %s7 = ssub.s32 1, %s5
  %s8 = scalar_select 0, %s7, %s5
  // Predicated region
  $region2: #{_lambda_.23} parent=0 // pred_check
    _
  $region3: #{_lambda_.23} parent=0 // pred_check_branch
    %10 = sbr.rel (0) target = $region5
  $region4: #{_lambda_.23} parent=0 // pred_region
    _
  $region5: #{_lambda_.23} parent=0 // pred_fallthru
    _
  // Predicated region
  $region6: #{_lambda_.23} parent=0 // pred_check
    _
  $region7: #{_lambda_.23} parent=0 // pred_check_branch
    %12 = sbr.rel (0) target = $region9
  $region8: #{_lambda_.23} parent=0 // pred_region
    _
  $region9: #{_lambda_.23} parent=0 // pred_fallthru
    _
  // Predicated region
  $region10: #{_lambda_.23} parent=0 // pred_check
    _
  $region11: #{_lambda_.23} parent=0 // pred_check_branch
    %14 = sbr.rel (0) target = $region13
  $region12: #{_lambda_.23} parent=0 // pred_region
    _
  $region13: #{_lambda_.23} parent=0 // pred_fallthru
    _
  // Predicated region
  $region14: #{_lambda_.23} parent=0 // pred_check
    _
  $region15: #{_lambda_.23} parent=0 // pred_check_branch
    %16 = sbr.rel (0) target = $region17
  $region16: #{_lambda_.23} parent=0 // pred_region
    _
  $region17: #{_lambda_.23} parent=0 // pred_fallthru
    _
  %v18 = vld [vmem:[%s0] sm:$0xff]
  %v19 = vld [vmem:[%s0 + $0x8] sm:$0xff]
  %v20 = vld [vmem:[%s0 + $0x10] sm:$0xff]
  %v21 = vld [vmem:[%s0 + $0x18] sm:$0xff]
  %v22 = vld [vmem:[%s1] sm:$0xf]
  %v23 = vld [vmem:[%s1 + $0x4] sm:$0xf]
  %v24 = vld [vmem:[%s1 + $0x8] sm:$0xf]
  %v25 = vld [vmem:[%s1 + $0xc] sm:$0xf]
  %v26 = vld [vmem:[%s1 + $0x10] sm:$0xf]
  %v27 = vld [vmem:[%s1 + $0x14] sm:$0xf]
  %v28 = vld [vmem:[%s1 + $0x18] sm:$0xf]
  %v29 = vld [vmem:[%s1 + $0x1c] sm:$0xf]
  %v30 = vld [vmem:[%s1 + $0x20] sm:$0xf]
  %v31 = vld [vmem:[%s1 + $0x24] sm:$0xf]
  %v32 = vld [vmem:[%s1 + $0x28] sm:$0xf]
  %v33 = vld [vmem:[%s1 + $0x2c] sm:$0xf]
  %v34 = vld [vmem:[%s1 + $0x30] sm:$0xf]
  %v35 = vld [vmem:[%s1 + $0x34] sm:$0xf]
  %v36 = vld [vmem:[%s1 + $0x38] sm:$0xf]
  %v37 = vld [vmem:[%s1 + $0x3c] sm:$0xf]
  %v38 = vld [vmem:[%s1 + $0x40] sm:$0xf]
  %v39 = vld [vmem:[%s1 + $0x44] sm:$0xf]
  %v40 = vld [vmem:[%s1 + $0x48] sm:$0xf]
  %v41 = vld [vmem:[%s1 + $0x4c] sm:$0xf]
  %v42 = vld [vmem:[%s1 + $0x50] sm:$0xf]
  %v43 = vld [vmem:[%s1 + $0x54] sm:$0xf]
  %v44 = vld [vmem:[%s1 + $0x58] sm:$0xf]
  %v45 = vld [vmem:[%s1 + $0x5c] sm:$0xf]
  %v46 = vld [vmem:[%s1 + $0x60] sm:$0xf]
  %v47 = vld [vmem:[%s1 + $0x64] sm:$0xf]
  %v48 = vld [vmem:[%s1 + $0x68] sm:$0xf]
  %v49 = vld [vmem:[%s1 + $0x6c] sm:$0xf]
  %v50 = vld [vmem:[%s1 + $0x70] sm:$0xf]
  %v51 = vld [vmem:[%s1 + $0x74] sm:$0xf]
  %v52 = vld [vmem:[%s1 + $0x78] sm:$0xf]
  %v53 = vld [vmem:[%s1 + $0x7c] sm:$0xf]
  %v58 = vunpack.c.l.b16 %v18
  %v59 = vunpack.c.h.b16 %v18
  %v60 = vunpack.c.l.b16 %v19
  %v61 = vunpack.c.h.b16 %v19
  %v62 = vunpack.c.l.b16 %v20
  %v63 = vunpack.c.h.b16 %v20
  %v64 = vunpack.c.l.b16 %v21
  %v65 = vunpack.c.h.b16 %v21
  %v66 = vpack.c.b16 %v60, %v58
  %v67 = vpack.c.b16 %v61, %v59
  %v68 = vpack.c.b16 %v64, %v62
  %v69 = vpack.c.b16 %v65, %v63
  %v106 = vunpack.c.l.b16 %v22
  %v107 = vunpack.c.l.b16 %v23
  %v108 = vunpack.c.l.b16 %v24
  %v109 = vunpack.c.l.b16 %v25
  %v110 = vunpack.c.l.b16 %v26
  %v111 = vunpack.c.l.b16 %v27
  %v112 = vunpack.c.l.b16 %v28
  %v113 = vunpack.c.l.b16 %v29
  %v114 = vunpack.c.l.b16 %v30
  %v115 = vunpack.c.l.b16 %v31
  %v116 = vunpack.c.l.b16 %v32
  %v117 = vunpack.c.l.b16 %v33
  %v118 = vunpack.c.l.b16 %v34
  %v119 = vunpack.c.l.b16 %v35
  %v120 = vunpack.c.l.b16 %v36
  %v121 = vunpack.c.l.b16 %v37
  %v122 = vunpack.c.l.b16 %v38
  %v123 = vunpack.c.l.b16 %v39
  %v124 = vunpack.c.l.b16 %v40
  %v125 = vunpack.c.l.b16 %v41
  %v126 = vunpack.c.l.b16 %v42
  %v127 = vunpack.c.l.b16 %v43
  %v128 = vunpack.c.l.b16 %v44
  %v129 = vunpack.c.l.b16 %v45
  %v130 = vunpack.c.l.b16 %v46
  %v131 = vunpack.c.l.b16 %v47
  %v132 = vunpack.c.l.b16 %v48
  %v133 = vunpack.c.l.b16 %v49
  %v134 = vunpack.c.l.b16 %v50
  %v135 = vunpack.c.l.b16 %v51
  %v136 = vunpack.c.l.b16 %v52
  %v137 = vunpack.c.l.b16 %v53
  %v138 = vpack.c.b16 %v107, %v106
  %v139 = vpack.c.b16 %v109, %v108
  %v140 = vpack.c.b16 %v111, %v110
  %v141 = vpack.c.b16 %v113, %v112
  %v142 = vpack.c.b16 %v115, %v114
  %v143 = vpack.c.b16 %v117, %v116
  %v144 = vpack.c.b16 %v119, %v118
  %v145 = vpack.c.b16 %v121, %v120
  %v146 = vpack.c.b16 %v123, %v122
  %v147 = vpack.c.b16 %v125, %v124
  %v148 = vpack.c.b16 %v127, %v126
  %v149 = vpack.c.b16 %v129, %v128
  %v150 = vpack.c.b16 %v131, %v130
  %v151 = vpack.c.b16 %v133, %v132
  %v152 = vpack.c.b16 %v135, %v134
  %v153 = vpack.c.b16 %v137, %v136
  %170 = vmatprep.subr.bf16.mxu0 0
  %171 = vmatpush1.bf16.msra.mxu0 %v138
  %172 = vmatprep.subr.bf16.mxu0 0
  %173 = vmatpush1.bf16.msra.mxu0 %v139
  %174 = vmatprep.subr.bf16.mxu0 0
  %175 = vmatpush1.bf16.msra.mxu0 %v140
  %176 = vmatprep.subr.bf16.mxu0 0
  %177 = vmatpush1.bf16.msra.mxu0 %v141
  %178 = vmatprep.subr.bf16.mxu0 0
  %179 = vmatpush1.bf16.msra.mxu0 %v142
  %180 = vmatprep.subr.bf16.mxu0 0
  %181 = vmatpush1.bf16.msra.mxu0 %v143
  %182 = vmatprep.subr.bf16.mxu0 0
  %183 = vmatpush1.bf16.msra.mxu0 %v144
  %184 = vmatprep.subr.bf16.mxu0 0
  %185 = vmatpush1.bf16.msra.mxu0 %v145
  %186 = vmatprep.subr.bf16.mxu0 0
  %187 = vmatpush1.bf16.msra.mxu0 %v146
  %188 = vmatprep.subr.bf16.mxu0 0
  %189 = vmatpush1.bf16.msra.mxu0 %v147
  %190 = vmatprep.subr.bf16.mxu0 0
  %191 = vmatpush1.bf16.msra.mxu0 %v148
  %192 = vmatprep.subr.bf16.mxu0 0
  %193 = vmatpush1.bf16.msra.mxu0 %v149
  %194 = vmatprep.subr.bf16.mxu0 0
  %195 = vmatpush1.bf16.msra.mxu0 %v150
  %196 = vmatprep.subr.bf16.mxu0 0
  %197 = vmatpush1.bf16.msra.mxu0 %v151
  %198 = vmatprep.subr.bf16.mxu0 0
  %199 = vmatpush1.bf16.msra.mxu0 %v152
  %200 = vmatprep.subr.bf16.mxu0 0
  %201 = vmatpush1.bf16.msra.mxu0 %v153
  %202 = vmatprep.mubr.bf16.mxu0 %v67
  %203 = vmatmul.mubr.bf16.gmra.mrb[0].mxu0 %v66
  %v204 = vpop.f32.mrb[0].mxu0
  %v205 = vadd.f32 0.0, %v204
  %v206 = vpop.f32.mrb[0].mxu0
  %v207 = vpop.f32.mrb[0].mxu0
  %v208 = vadd.f32 0.0, %v207
  %v209 = vpop.f32.mrb[0].mxu0
  %210 = vmatprep.mubr.bf16.mxu0 %v69
  %211 = vmatmul.mubr.bf16.gmra.mrb[0].mxu0 %v68
  %v212 = vpop.f32.mrb[0].mxu0
  %v213 = vadd.f32 0.0, %v212
  %v214 = vpop.f32.mrb[0].mxu0
  %v215 = vpop.f32.mrb[0].mxu0
  %v216 = vadd.f32 0.0, %v215
  %v217 = vpop.f32.mrb[0].mxu0
  %218 = vdwg.mxu0
  %v219 = vld [vmem:[%s2] sm:$0x1]
  %v221 = vlaneseq
  %v222 = vshrl.u32 %v221, 7
  %v223 = vsub.s32 0, %v222
  %v224 = vrot.slane %v219, %v223
  %v226 = vmul.f32 %v205, %v224
  %v227 = vmul.f32 %v208, %v224
  %v228 = vmul.f32 %v213, %v224
  %v229 = vmul.f32 %v216, %v224
  %v230 = vld [vmem:[%s3] sm:$0x1]
  %v232 = vlaneseq
  %v233 = vshrl.u32 %v232, 7
  %v234 = vsub.s32 0, %v233
  %v235 = vrot.slane %v230, %v234
  %v237 = vadd.f32 %v226, %v235
  %v238 = vadd.f32 %v227, %v235
  %v239 = vadd.f32 %v228, %v235
  %v240 = vadd.f32 %v229, %v235
  %241 = vst [vmem:[%s4] sm:$0xff] %v237
  %242 = vst [vmem:[%s4 + $0x8] sm:$0xff] %v238
  %243 = vst [vmem:[%s4 + $0x10] sm:$0xff] %v239
  %244 = vst [vmem:[%s4 + $0x18] sm:$0xff] %v240
  // Predicated region
  $region18: #{_lambda_.23} parent=0 // pred_check
    _
  $region19: #{_lambda_.23} parent=0 // pred_check_branch
    %246 = sbr.rel (0) target = $region21
  $region20: #{_lambda_.23} parent=0 // pred_region
    _
  $region21: #{_lambda_.23} parent=0 // pred_fallthru
    _
  // Predicated region
  $region22: #{_lambda_.23} parent=0 // pred_check
    _
  $region23: #{_lambda_.23} parent=0 // pred_check_branch
    %248 = sbr.rel (0) target = $region25
  $region24: #{_lambda_.23} parent=0 // pred_region
    _
  $region25: #{_lambda_.23} parent=0 // pred_fallthru
    _

// kernel: _lambda_.21
$region0: #{_lambda_.21}
  #allocation0 [shape = 'u32[]', space=smem, size = 0x4, offset = 0x4, fixed_abs, tag = 'smem constant byte address 0x4 - core index']
  #allocation1 [shape = 'u32[144,128]{1,0:T(1,128)}', space=vmem, size = 0x12000, scoped, tag = 'internal scratch']
  %s0 = inlined_call_operand.vmem [shape: bf16[32,2304], index: 0, kind: input, shape index: {}]
  %s1 = inlined_call_operand.vmem [shape: bf16[2304,256], index: 1, kind: input, shape index: {}]
  %s2 = inlined_call_operand.vmem [shape: f32[1,256], index: 2, kind: input, shape index: {}]
  %s3 = inlined_call_operand.vmem [shape: f32[1,256], index: 3, kind: input, shape index: {}]
  %s4 = inlined_call_operand.vmem [shape: bf16[32,256], index: 4, kind: output, shape index: {}]
  %s5 = sld [smem:[#allocation0]]
  $region26: #{_lambda_.21} parent=0
    _
  %s7 = ssub.s32 1, %s5
  %s8 = scalar_select 0, %s7, %s5
  // Predicated region
  $region2: #{_lambda_.21} parent=0 // pred_check
    _
  $region3: #{_lambda_.21} parent=0 // pred_check_branch
    %10 = sbr.rel (0) target = $region5
  $region4: #{_lambda_.21} parent=0 // pred_region
    _
  $region5: #{_lambda_.21} parent=0 // pred_fallthru
    _
  // Predicated region
  $region6: #{_lambda_.21} parent=0 // pred_check
    _
  $region7: #{_lambda_.21} parent=0 // pred_check_branch
    %12 = sbr.rel (0) target = $region9
  $region8: #{_lambda_.21} parent=0 // pred_region
    _
  $region9: #{_lambda_.21} parent=0 // pred_fallthru
    _
  // Predicated region
  $region10: #{_lambda_.21} parent=0 // pred_check
    _
  $region11: #{_lambda_.21} parent=0 // pred_check_branch
    %14 = sbr.rel (0) target = $region13
  $region12: #{_lambda_.21} parent=0 // pred_region
    _
  $region13: #{_lambda_.21} parent=0 // pred_fallthru
    _
  // Predicated region
  $region14: #{_lambda_.21} parent=0 // pred_check
    _
  $region15: #{_lambda_.21} parent=0 // pred_check_branch
    %16 = sbr.rel (0) target = $region17
  $region16: #{_lambda_.21} parent=0 // pred_region
    _
  $region17: #{_lambda_.21} parent=0 // pred_fallthru
    _
  %v17 = vld [vmem:[%s0] sm:$0xff]
  %v18 = vld [vmem:[%s0 + $0x8] sm:$0xff]
  %v19 = vld [vmem:[%s0 + $0x10] sm:$0xff]
  %v20 = vld [vmem:[%s0 + $0x18] sm:$0xff]
  %v21 = vld [vmem:[%s0 + $0x20] sm:$0xff]
  %v22 = vld [vmem:[%s0 + $0x28] sm:$0xff]
  %v23 = vld [vmem:[%s0 + $0x30] sm:$0xff]
  %v24 = vld [vmem:[%s0 + $0x38] sm:$0xff]
  %v25 = vld [vmem:[%s0 + $0x40] sm:$0xff]
  %v26 = vld [vmem:[%s0 + $0x48] sm:$0xff]
  %v27 = vld [vmem:[%s0 + $0x50] sm:$0xff]
  %v28 = vld [vmem:[%s0 + $0x58] sm:$0xff]
  %v29 = vld [vmem:[%s0 + $0x60] sm:$0xff]
  %v30 = vld [vmem:[%s0 + $0x68] sm:$0xff]
  %v31 = vld [vmem:[%s0 + $0x70] sm:$0xff]
  %v32 = vld [vmem:[%s0 + $0x78] sm:$0xff]
  %v33 = vld [vmem:[%s0 + $0x80] sm:$0xff]
  %v34 = vld [vmem:[%s0 + $0x88] sm:$0xff]
  %v35 = vld [vmem:[%s0 + $0x90] sm:$0xff]
  %v36 = vld [vmem:[%s0 + $0x98] sm:$0xff]
  %v37 = vld [vmem:[%s0 + $0xa0] sm:$0xff]
  %v38 = vld [vmem:[%s0 + $0xa8] sm:$0xff]
  %v39 = vld [vmem:[%s0 + $0xb0] sm:$0xff]
  %v40 = vld [vmem:[%s0 + $0xb8] sm:$0xff]
  %v41 = vld [vmem:[%s0 + $0xc0] sm:$0xff]
  %v42 = vld [vmem:[%s0 + $0xc8] sm:$0xff]
  %v43 = vld [vmem:[%s0 + $0xd0] sm:$0xff]
  %v44 = vld [vmem:[%s0 + $0xd8] sm:$0xff]
  %v45 = vld [vmem:[%s0 + $0xe0] sm:$0xff]
  %v46 = vld [vmem:[%s0 + $0xe8] sm:$0xff]
  %v47 = vld [vmem:[%s0 + $0xf0] sm:$0xff]
  %v48 = vld [vmem:[%s0 + $0xf8] sm:$0xff]
  %v49 = vld [vmem:[%s0 + $0x100] sm:$0xff]
  %v50 = vld [vmem:[%s0 + $0x108] sm:$0xff]
  %v51 = vld [vmem:[%s0 + $0x110] sm:$0xff]
  %v52 = vld [vmem:[%s0 + $0x118] sm:$0xff]
  %v53 = vld [vmem:[%s1] sm:$0xff]
  %v54 = vld [vmem:[%s1 + $0x8] sm:$0xff]
  %v55 = vld [vmem:[%s1 + $0x10] sm:$0xff]
  %v56 = vld [vmem:[%s1 + $0x18] sm:$0xff]
  %v57 = vld [vmem:[%s1 + $0x20] sm:$0xff]
  %v58 = vld [vmem:[%s1 + $0x28] sm:$0xff]
  %v59 = vld [vmem:[%s1 + $0x30] sm:$0xff]
  %v60 = vld [vmem:[%s1 + $0x38] sm:$0xff]
  %v61 = vld [vmem:[%s1 + $0x40] sm:$0xff]
  %v62 = vld [vmem:[%s1 + $0x48] sm:$0xff]
  %v63 = vld [vmem:[%s1 + $0x50] sm:$0xff]
  %v64 = vld [vmem:[%s1 + $0x58] sm:$0xff]
  %v65 = vld [vmem:[%s1 + $0x60] sm:$0xff]
  %v66 = vld [vmem:[%s1 + $0x68] sm:$0xff]
  %v67 = vld [vmem:[%s1 + $0x70] sm:$0xff]
  %v68 = vld [vmem:[%s1 + $0x78] sm:$0xff]
  %v69 = vld [vmem:[%s1 + $0x80] sm:$0xff]
  %v70 = vld [vmem:[%s1 + $0x88] sm:$0xff]
  %v71 = vld [vmem:[%s1 + $0x90] sm:$0xff]
  %v72 = vld [vmem:[%s1 + $0x98] sm:$0xff]
  %v73 = vld [vmem:[%s1 + $0xa0] sm:$0xff]
  %v74 = vld [vmem:[%s1 + $0xa8] sm:$0xff]
  %v75 = vld [vmem:[%s1 + $0xb0] sm:$0xff]
  %v76 = vld [vmem:[%s1 + $0xb8] sm:$0xff]
  %v77 = vld [vmem:[%s1 + $0xc0] sm:$0xff]
  %v78 = vld [vmem:[%s1 + $0xc8] sm:$0xff]
  %v79 = vld [vmem:[%s1 + $0xd0] sm:$0xff]
  %v80 = vld [vmem:[%s1 + $0xd8] sm:$0xff]
  %v81 = vld [vmem:[%s1 + $0xe0] sm:$0xff]
  %v82 = vld [vmem:[%s1 + $0xe8] sm:$0xff]
  %v83 = vld [vmem:[%s1 + $0xf0] sm:$0xff]
  %v84 = vld [vmem:[%s1 + $0xf8] sm:$0xff]
  %v85 = vld [vmem:[%s1 + $0x100] sm:$0xff]
  %v86 = vld [vmem:[%s1 + $0x108] sm:$0xff]
  %v87 = vld [vmem:[%s1 + $0x110] sm:$0xff]
  %v88 = vld [vmem:[%s1 + $0x118] sm:$0xff]
  %v89 = vld [vmem:[%s1 + $0x120] sm:$0xff]
  %v90 = vld [vmem:[%s1 + $0x128] sm:$0xff]
  %v91 = vld [vmem:[%s1 + $0x130] sm:$0xff]
  %v92 = vld [vmem:[%s1 + $0x138] sm:$0xff]
  %v93 = vld [vmem:[%s1 + $0x140] sm:$0xff]
  %v94 = vld [vmem:[%s1 + $0x148] sm:$0xff]
  %v95 = vld [vmem:[%s1 + $0x150] sm:$0xff]
  %v96 = vld [vmem:[%s1 + $0x158] sm:$0xff]
  %v97 = vld [vmem:[%s1 + $0x160] sm:$0xff]
  %v98 = vld [vmem:[%s1 + $0x168] sm:$0xff]
  %v99 = vld [vmem:[%s1 + $0x170] sm:$0xff]
  %v100 = vld [vmem:[%s1 + $0x178] sm:$0xff]
  %v101 = vld [vmem:[%s1 + $0x180] sm:$0xff]
  %v102 = vld [vmem:[%s1 + $0x188] sm:$0xff]
  %v103 = vld [vmem:[%s1 + $0x190] sm:$0xff]
  %v104 = vld [vmem:[%s1 + $0x198] sm:$0xff]
  %v105 = vld [vmem:[%s1 + $0x1a0] sm:$0xff]
  %v106 = vld [vmem:[%s1 + $0x1a8] sm:$0xff]
  %v107 = vld [vmem:[%s1 + $0x1b0] sm:$0xff]
  %v108 = vld [vmem:[%s1 + $0x1b8] sm:$0xff]
  %v109 = vld [vmem:[%s1 + $0x1c0] sm:$0xff]
  %v110 = vld [vmem:[%s1 + $0x1c8] sm:$0xff]
  %v111 = vld [vmem:[%s1 + $0x1d0] sm:$0xff]
  %v112 = vld [vmem:[%s1 + $0x1d8] sm:$0xff]
  %v113 = vld [vmem:[%s1 + $0x1e0] sm:$0xff]
  %v114 = vld [vmem:[%s1 + $0x1e8] sm:$0xff]
  %v115 = vld [vmem:[%s1 + $0x1f0] sm:$0xff]
  %v116 = vld [vmem:[%s1 + $0x1f8] sm:$0xff]
  %v117 = vld [vmem:[%s1 + $0x200] sm:$0xff]
  %v118 = vld [vmem:[%s1 + $0x208] sm:$0xff]
  %v119 = vld [vmem:[%s1 + $0x210] sm:$0xff]
  %v120 = vld [vmem:[%s1 + $0x218] sm:$0xff]
  %v121 = vld [vmem:[%s1 + $0x220] sm:$0xff]
  %v122 = vld [vmem:[%s1 + $0x228] sm:$0xff]
  %v123 = vld [vmem:[%s1 + $0x230] sm:$0xff]
  %v124 = vld [vmem:[%s1 + $0x238] sm:$0xff]
  %v125 = vld [vmem:[%s1 + $0x240] sm:$0xff]
  %v126 = vld [vmem:[%s1 + $0x248] sm:$0xff]
  %v127 = vld [vmem:[%s1 + $0x250] sm:$0xff]
  %v128 = vld [vmem:[%s1 + $0x258] sm:$0xff]
  %v129 = vld [vmem:[%s1 + $0x260] sm:$0xff]
  %v130 = vld [vmem:[%s1 + $0x268] sm:$0xff]
  %v131 = vld [vmem:[%s1 + $0x270] sm:$0xff]
  %v132 = vld [vmem:[%s1 + $0x278] sm:$0xff]
  %v133 = vld [vmem:[%s1 + $0x280] sm:$0xff]
  %v134 = vld [vmem:[%s1 + $0x288] sm:$0xff]
  %v135 = vld [vmem:[%s1 + $0x290] sm:$0xff]
  %v136 = vld [vmem:[%s1 + $0x298] sm:$0xff]
  %v137 = vld [vmem:[%s1 + $0x2a0] sm:$0xff]
  %v138 = vld [vmem:[%s1 + $0x2a8] sm:$0xff]
  %v139 = vld [vmem:[%s1 + $0x2b0] sm:$0xff]
  %v140 = vld [vmem:[%s1 + $0x2b8] sm:$0xff]
  %v141 = vld [vmem:[%s1 + $0x2c0] sm:$0xff]
  %v142 = vld [vmem:[%s1 + $0x2c8] sm:$0xff]
  %v143 = vld [vmem:[%s1 + $0x2d0] sm:$0xff]
  %v144 = vld [vmem:[%s1 + $0x2d8] sm:$0xff]
  %v145 = vld [vmem:[%s1 + $0x2e0] sm:$0xff]
  %v146 = vld [vmem:[%s1 + $0x2e8] sm:$0xff]
  %v147 = vld [vmem:[%s1 + $0x2f0] sm:$0xff]
  %v148 = vld [vmem:[%s1 + $0x2f8] sm:$0xff]
  %v149 = vld [vmem:[%s1 + $0x300] sm:$0xff]
  %v150 = vld [vmem:[%s1 + $0x308] sm:$0xff]
  %v151 = vld [vmem:[%s1 + $0x310] sm:$0xff]
  %v152 = vld [vmem:[%s1 + $0x318] sm:$0xff]
  %v153 = vld [vmem:[%s1 + $0x320] sm:$0xff]
  %v154 = vld [vmem:[%s1 + $0x328] sm:$0xff]
  %v155 = vld [vmem:[%s1 + $0x330] sm:$0xff]
  %v156 = vld [vmem:[%s1 + $0x338] sm:$0xff]
  %v157 = vld [vmem:[%s1 + $0x340] sm:$0xff]
  %v158 = vld [vmem:[%s1 + $0x348] sm:$0xff]
  %v159 = vld [vmem:[%s1 + $0x350] sm:$0xff]
  %v160 = vld [vmem:[%s1 + $0x358] sm:$0xff]
  %v161 = vld [vmem:[%s1 + $0x360] sm:$0xff]
  %v162 = vld [vmem:[%s1 + $0x368] sm:$0xff]
  %v163 = vld [vmem:[%s1 + $0x370] sm:$0xff]
  %v164 = vld [vmem:[%s1 + $0x378] sm:$0xff]
  %v165 = vld [vmem:[%s1 + $0x380] sm:$0xff]
  %v166 = vld [vmem:[%s1 + $0x388] sm:$0xff]
  %v167 = vld [vmem:[%s1 + $0x390] sm:$0xff]
  %v168 = vld [vmem:[%s1 + $0x398] sm:$0xff]
  %v169 = vld [vmem:[%s1 + $0x3a0] sm:$0xff]
  %v170 = vld [vmem:[%s1 + $0x3a8] sm:$0xff]
  %v171 = vld [vmem:[%s1 + $0x3b0] sm:$0xff]
  %v172 = vld [vmem:[%s1 + $0x3b8] sm:$0xff]
  %v173 = vld [vmem:[%s1 + $0x3c0] sm:$0xff]
  %v174 = vld [vmem:[%s1 + $0x3c8] sm:$0xff]
  %v175 = vld [vmem:[%s1 + $0x3d0] sm:$0xff]
  %v176 = vld [vmem:[%s1 + $0x3d8] sm:$0xff]
  %v177 = vld [vmem:[%s1 + $0x3e0] sm:$0xff]
  %v178 = vld [vmem:[%s1 + $0x3e8] sm:$0xff]
  %v179 = vld [vmem:[%s1 + $0x3f0] sm:$0xff]
  %v180 = vld [vmem:[%s1 + $0x3f8] sm:$0xff]
  %v181 = vld [vmem:[%s1 + $0x400] sm:$0xff]
  %v182 = vld [vmem:[%s1 + $0x408] sm:$0xff]
  %v183 = vld [vmem:[%s1 + $0x410] sm:$0xff]
  %v184 = vld [vmem:[%s1 + $0x418] sm:$0xff]
  %v185 = vld [vmem:[%s1 + $0x420] sm:$0xff]
  %v186 = vld [vmem:[%s1 + $0x428] sm:$0xff]
  %v187 = vld [vmem:[%s1 + $0x430] sm:$0xff]
  %v188 = vld [vmem:[%s1 + $0x438] sm:$0xff]
  %v189 = vld [vmem:[%s1 + $0x440] sm:$0xff]
  %v190 = vld [vmem:[%s1 + $0x448] sm:$0xff]
  %v191 = vld [vmem:[%s1 + $0x450] sm:$0xff]
  %v192 = vld [vmem:[%s1 + $0x458] sm:$0xff]
  %v193 = vld [vmem:[%s1 + $0x460] sm:$0xff]
  %v194 = vld [vmem:[%s1 + $0x468] sm:$0xff]
  %v195 = vld [vmem:[%s1 + $0x470] sm:$0xff]
  %v196 = vld [vmem:[%s1 + $0x478] sm:$0xff]
  %v197 = vld [vmem:[%s1 + $0x480] sm:$0xff]
  %v198 = vld [vmem:[%s1 + $0x488] sm:$0xff]
  %v199 = vld [vmem:[%s1 + $0x490] sm:$0xff]
  %v200 = vld [vmem:[%s1 + $0x498] sm:$0xff]
  %v201 = vld [vmem:[%s1 + $0x4a0] sm:$0xff]
  %v202 = vld [vmem:[%s1 + $0x4a8] sm:$0xff]
  %v203 = vld [vmem:[%s1 + $0x4b0] sm:$0xff]
  %v204 = vld [vmem:[%s1 + $0x4b8] sm:$0xff]
  %v205 = vld [vmem:[%s1 + $0x4c0] sm:$0xff]
  %v206 = vld [vmem:[%s1 + $0x4c8] sm:$0xff]
  %v207 = vld [vmem:[%s1 + $0x4d0] sm:$0xff]
  %v208 = vld [vmem:[%s1 + $0x4d8] sm:$0xff]
  %v209 = vld [vmem:[%s1 + $0x4e0] sm:$0xff]
  %v210 = vld [vmem:[%s1 + $0x4e8] sm:$0xff]
  %v211 = vld [vmem:[%s1 + $0x4f0] sm:$0xff]
  %v212 = vld [vmem:[%s1 + $0x4f8] sm:$0xff]
  %v213 = vld [vmem:[%s1 + $0x500] sm:$0xff]
  %v214 = vld [vmem:[%s1 + $0x508] sm:$0xff]
  %v215 = vld [vmem:[%s1 + $0x510] sm:$0xff]
  %v216 = vld [vmem:[%s1 + $0x518] sm:$0xff]
  %v217 = vld [vmem:[%s1 + $0x520] sm:$0xff]
  %v218 = vld [vmem:[%s1 + $0x528] sm:$0xff]
  %v219 = vld [vmem:[%s1 + $0x530] sm:$0xff]
  %v220 = vld [vmem:[%s1 + $0x538] sm:$0xff]
  %v221 = vld [vmem:[%s1 + $0x540] sm:$0xff]
  %v222 = vld [vmem:[%s1 + $0x548] sm:$0xff]
  %v223 = vld [vmem:[%s1 + $0x550] sm:$0xff]
  %v224 = vld [vmem:[%s1 + $0x558] sm:$0xff]
  %v225 = vld [vmem:[%s1 + $0x560] sm:$0xff]
  %v226 = vld [vmem:[%s1 + $0x568] sm:$0xff]
  %v227 = vld [vmem:[%s1 + $0x570] sm:$0xff]
  %v228 = vld [vmem:[%s1 + $0x578] sm:$0xff]
  %v229 = vld [vmem:[%s1 + $0x580] sm:$0xff]
  %v230 = vld [vmem:[%s1 + $0x588] sm:$0xff]
  %v231 = vld [vmem:[%s1 + $0x590] sm:$0xff]
  %v232 = vld [vmem:[%s1 + $0x598] sm:$0xff]
  %v233 = vld [vmem:[%s1 + $0x5a0] sm:$0xff]
  %v234 = vld [vmem:[%s1 + $0x5a8] sm:$0xff]
  %v235 = vld [vmem:[%s1 + $0x5b0] sm:$0xff]
  %v236 = vld [vmem:[%s1 + $0x5b8] sm:$0xff]
  %v237 = vld [vmem:[%s1 + $0x5c0] sm:$0xff]
  %v238 = vld [vmem:[%s1 + $0x5c8] sm:$0xff]
  %v239 = vld [vmem:[%s1 + $0x5d0] sm:$0xff]
  %v240 = vld [vmem:[%s1 + $0x5d8] sm:$0xff]
  %v241 = vld [vmem:[%s1 + $0x5e0] sm:$0xff]
  %v242 = vld [vmem:[%s1 + $0x5e8] sm:$0xff]
  %v243 = vld [vmem:[%s1 + $0x5f0] sm:$0xff]
  %v244 = vld [vmem:[%s1 + $0x5f8] sm:$0xff]
  %v245 = vld [vmem:[%s1 + $0x600] sm:$0xff]
  %v246 = vld [vmem:[%s1 + $0x608] sm:$0xff]
  %v247 = vld [vmem:[%s1 + $0x610] sm:$0xff]
  %v248 = vld [vmem:[%s1 + $0x618] sm:$0xff]
  %v249 = vld [vmem:[%s1 + $0x620] sm:$0xff]
  %v250 = vld [vmem:[%s1 + $0x628] sm:$0xff]
  %v251 = vld [vmem:[%s1 + $0x630] sm:$0xff]
  %v252 = vld [vmem:[%s1 + $0x638] sm:$0xff]
  %v253 = vld [vmem:[%s1 + $0x640] sm:$0xff]
  %v254 = vld [vmem:[%s1 + $0x648] sm:$0xff]
  %v255 = vld [vmem:[%s1 + $0x650] sm:$0xff]
  %v256 = vld [vmem:[%s1 + $0x658] sm:$0xff]
  %v257 = vld [vmem:[%s1 + $0x660] sm:$0xff]
  %v258 = vld [vmem:[%s1 + $0x668] sm:$0xff]
  %v259 = vld [vmem:[%s1 + $0x670] sm:$0xff]
  %v260 = vld [vmem:[%s1 + $0x678] sm:$0xff]
  %v261 = vld [vmem:[%s1 + $0x680] sm:$0xff]
  %v262 = vld [vmem:[%s1 + $0x688] sm:$0xff]
  %v263 = vld [vmem:[%s1 + $0x690] sm:$0xff]
  %v264 = vld [vmem:[%s1 + $0x698] sm:$0xff]
  %v265 = vld [vmem:[%s1 + $0x6a0] sm:$0xff]
  %v266 = vld [vmem:[%s1 + $0x6a8] sm:$0xff]
  %v267 = vld [vmem:[%s1 + $0x6b0] sm:$0xff]
  %v268 = vld [vmem:[%s1 + $0x6b8] sm:$0xff]
  %v269 = vld [vmem:[%s1 + $0x6c0] sm:$0xff]
  %v270 = vld [vmem:[%s1 + $0x6c8] sm:$0xff]
  %v271 = vld [vmem:[%s1 + $0x6d0] sm:$0xff]
  %v272 = vld [vmem:[%s1 + $0x6d8] sm:$0xff]
  %v273 = vld [vmem:[%s1 + $0x6e0] sm:$0xff]
  %v274 = vld [vmem:[%s1 + $0x6e8] sm:$0xff]
  %v275 = vld [vmem:[%s1 + $0x6f0] sm:$0xff]
  %v276 = vld [vmem:[%s1 + $0x6f8] sm:$0xff]
  %v277 = vld [vmem:[%s1 + $0x700] sm:$0xff]
  %v278 = vld [vmem:[%s1 + $0x708] sm:$0xff]
  %v279 = vld [vmem:[%s1 + $0x710] sm:$0xff]
  %v280 = vld [vmem:[%s1 + $0x718] sm:$0xff]
  %v281 = vld [vmem:[%s1 + $0x720] sm:$0xff]
  %v282 = vld [vmem:[%s1 + $0x728] sm:$0xff]
  %v283 = vld [vmem:[%s1 + $0x730] sm:$0xff]
  %v284 = vld [vmem:[%s1 + $0x738] sm:$0xff]
  %v285 = vld [vmem:[%s1 + $0x740] sm:$0xff]
  %v286 = vld [vmem:[%s1 + $0x748] sm:$0xff]
  %v287 = vld [vmem:[%s1 + $0x750] sm:$0xff]
  %v288 = vld [vmem:[%s1 + $0x758] sm:$0xff]
  %v289 = vld [vmem:[%s1 + $0x760] sm:$0xff]
  %v290 = vld [vmem:[%s1 + $0x768] sm:$0xff]
  %v291 = vld [vmem:[%s1 + $0x770] sm:$0xff]
  %v292 = vld [vmem:[%s1 + $0x778] sm:$0xff]
  %v293 = vld [vmem:[%s1 + $0x780] sm:$0xff]
  %v294 = vld [vmem:[%s1 + $0x788] sm:$0xff]
  %v295 = vld [vmem:[%s1 + $0x790] sm:$0xff]
  %v296 = vld [vmem:[%s1 + $0x798] sm:$0xff]
  %v297 = vld [vmem:[%s1 + $0x7a0] sm:$0xff]
  %v298 = vld [vmem:[%s1 + $0x7a8] sm:$0xff]
  %v299 = vld [vmem:[%s1 + $0x7b0] sm:$0xff]
  %v300 = vld [vmem:[%s1 + $0x7b8] sm:$0xff]
  %v301 = vld [vmem:[%s1 + $0x7c0] sm:$0xff]
  %v302 = vld [vmem:[%s1 + $0x7c8] sm:$0xff]
  %v303 = vld [vmem:[%s1 + $0x7d0] sm:$0xff]
  %v304 = vld [vmem:[%s1 + $0x7d8] sm:$0xff]
  %v305 = vld [vmem:[%s1 + $0x7e0] sm:$0xff]
  %v306 = vld [vmem:[%s1 + $0x7e8] sm:$0xff]
  %v307 = vld [vmem:[%s1 + $0x7f0] sm:$0xff]
  %v308 = vld [vmem:[%s1 + $0x7f8] sm:$0xff]
  %v309 = vld [vmem:[%s1 + $0x800] sm:$0xff]
  %v310 = vld [vmem:[%s1 + $0x808] sm:$0xff]
  %v311 = vld [vmem:[%s1 + $0x810] sm:$0xff]
  %v312 = vld [vmem:[%s1 + $0x818] sm:$0xff]
  %v313 = vld [vmem:[%s1 + $0x820] sm:$0xff]
  %v314 = vld [vmem:[%s1 + $0x828] sm:$0xff]
  %v315 = vld [vmem:[%s1 + $0x830] sm:$0xff]
  %v316 = vld [vmem:[%s1 + $0x838] sm:$0xff]
  %v317 = vld [vmem:[%s1 + $0x840] sm:$0xff]
  %v318 = vld [vmem:[%s1 + $0x848] sm:$0xff]
  %v319 = vld [vmem:[%s1 + $0x850] sm:$0xff]
  %v320 = vld [vmem:[%s1 + $0x858] sm:$0xff]
  %v321 = vld [vmem:[%s1 + $0x860] sm:$0xff]
  %v322 = vld [vmem:[%s1 + $0x868] sm:$0xff]
  %v323 = vld [vmem:[%s1 + $0x870] sm:$0xff]
  %v324 = vld [vmem:[%s1 + $0x878] sm:$0xff]
  %v325 = vld [vmem:[%s1 + $0x880] sm:$0xff]
  %v326 = vld [vmem:[%s1 + $0x888] sm:$0xff]
  %v327 = vld [vmem:[%s1 + $0x890] sm:$0xff]
  %v328 = vld [vmem:[%s1 + $0x898] sm:$0xff]
  %v329 = vld [vmem:[%s1 + $0x8a0] sm:$0xff]
  %v330 = vld [vmem:[%s1 + $0x8a8] sm:$0xff]
  %v331 = vld [vmem:[%s1 + $0x8b0] sm:$0xff]
  %v332 = vld [vmem:[%s1 + $0x8b8] sm:$0xff]
  %v333 = vld [vmem:[%s1 + $0x8c0] sm:$0xff]
  %v334 = vld [vmem:[%s1 + $0x8c8] sm:$0xff]
  %v335 = vld [vmem:[%s1 + $0x8d0] sm:$0xff]
  %v336 = vld [vmem:[%s1 + $0x8d8] sm:$0xff]
  %v337 = vld [vmem:[%s1 + $0x8e0] sm:$0xff]
  %v338 = vld [vmem:[%s1 + $0x8e8] sm:$0xff]
  %v339 = vld [vmem:[%s1 + $0x8f0] sm:$0xff]
  %v340 = vld [vmem:[%s1 + $0x8f8] sm:$0xff]
  %v377 = vunpack.c.l.b16 %v17
  %v378 = vunpack.c.h.b16 %v17
  %v379 = vunpack.c.l.b16 %v18
  %v380 = vunpack.c.h.b16 %v18
  %v381 = vunpack.c.l.b16 %v19
  %v382 = vunpack.c.h.b16 %v19
  %v383 = vunpack.c.l.b16 %v20
  %v384 = vunpack.c.h.b16 %v20
  %v385 = vunpack.c.l.b16 %v21
  %v386 = vunpack.c.h.b16 %v21
  %v387 = vunpack.c.l.b16 %v22
  %v388 = vunpack.c.h.b16 %v22
  %v389 = vunpack.c.l.b16 %v23
  %v390 = vunpack.c.h.b16 %v23
  %v391 = vunpack.c.l.b16 %v24
  %v392 = vunpack.c.h.b16 %v24
  %v393 = vunpack.c.l.b16 %v25
  %v394 = vunpack.c.h.b16 %v25
  %v395 = vunpack.c.l.b16 %v26
  %v396 = vunpack.c.h.b16 %v26
  %v397 = vunpack.c.l.b16 %v27
  %v398 = vunpack.c.h.b16 %v27
  %v399 = vunpack.c.l.b16 %v28
  %v400 = vunpack.c.h.b16 %v28
  %v401 = vunpack.c.l.b16 %v29
  %v402 = vunpack.c.h.b16 %v29
  %v403 = vunpack.c.l.b16 %v30
  %v404 = vunpack.c.h.b16 %v30
  %v405 = vunpack.c.l.b16 %v31
  %v406 = vunpack.c.h.b16 %v31
  %v407 = vunpack.c.l.b16 %v32
  %v408 = vunpack.c.h.b16 %v32
  %v409 = vunpack.c.l.b16 %v33
  %v410 = vunpack.c.h.b16 %v33
  %v411 = vunpack.c.l.b16 %v34
  %v412 = vunpack.c.h.b16 %v34
  %v413 = vunpack.c.l.b16 %v35
  %v414 = vunpack.c.h.b16 %v35
  %v415 = vunpack.c.l.b16 %v36
  %v416 = vunpack.c.h.b16 %v36
  %v417 = vunpack.c.l.b16 %v37
  %v418 = vunpack.c.h.b16 %v37
  %v419 = vunpack.c.l.b16 %v38
  %v420 = vunpack.c.h.b16 %v38
  %v421 = vunpack.c.l.b16 %v39
  %v422 = vunpack.c.h.b16 %v39
  %v423 = vunpack.c.l.b16 %v40
  %v424 = vunpack.c.h.b16 %v40
  %v425 = vunpack.c.l.b16 %v41
  %v426 = vunpack.c.h.b16 %v41
  %v427 = vunpack.c.l.b16 %v42
  %v428 = vunpack.c.h.b16 %v42
  %v429 = vunpack.c.l.b16 %v43
  %v430 = vunpack.c.h.b16 %v43
  %v431 = vunpack.c.l.b16 %v44
  %v432 = vunpack.c.h.b16 %v44
  %v433 = vunpack.c.l.b16 %v45
  %v434 = vunpack.c.h.b16 %v45
  %v435 = vunpack.c.l.b16 %v46
  %v436 = vunpack.c.h.b16 %v46
  %v437 = vunpack.c.l.b16 %v47
  %v438 = vunpack.c.h.b16 %v47
  %v439 = vunpack.c.l.b16 %v48
  %v440 = vunpack.c.h.b16 %v48
  %v441 = vunpack.c.l.b16 %v49
  %v442 = vunpack.c.h.b16 %v49
  %v443 = vunpack.c.l.b16 %v50
  %v444 = vunpack.c.h.b16 %v50
  %v445 = vunpack.c.l.b16 %v51
  %v446 = vunpack.c.h.b16 %v51
  %v447 = vunpack.c.l.b16 %v52
  %v448 = vunpack.c.h.b16 %v52
  %v449 = vpack.c.b16 %v395, %v377
  %v450 = vpack.c.b16 %v396, %v378
  %v451 = vpack.c.b16 %v397, %v379
  %v452 = vpack.c.b16 %v398, %v380
  %v453 = vpack.c.b16 %v399, %v381
  %v454 = vpack.c.b16 %v400, %v382
  %v455 = vpack.c.b16 %v401, %v383
  %v456 = vpack.c.b16 %v402, %v384
  %v457 = vpack.c.b16 %v403, %v385
  %v458 = vpack.c.b16 %v404, %v386
  %v459 = vpack.c.b16 %v405, %v387
  %v460 = vpack.c.b16 %v406, %v388
  %v461 = vpack.c.b16 %v407, %v389
  %v462 = vpack.c.b16 %v408, %v390
  %v463 = vpack.c.b16 %v409, %v391
  %v464 = vpack.c.b16 %v410, %v392
  %v465 = vpack.c.b16 %v411, %v393
  %v466 = vpack.c.b16 %v412, %v394
  %v467 = vpack.c.b16 %v431, %v413
  %v468 = vpack.c.b16 %v432, %v414
  %v469 = vpack.c.b16 %v433, %v415
  %v470 = vpack.c.b16 %v434, %v416
  %v471 = vpack.c.b16 %v435, %v417
  %v472 = vpack.c.b16 %v436, %v418
  %v473 = vpack.c.b16 %v437, %v419
  %v474 = vpack.c.b16 %v438, %v420
  %v475 = vpack.c.b16 %v439, %v421
  %v476 = vpack.c.b16 %v440, %v422
  %v477 = vpack.c.b16 %v441, %v423
  %v478 = vpack.c.b16 %v442, %v424
  %v479 = vpack.c.b16 %v443, %v425
  %v480 = vpack.c.b16 %v444, %v426
  %v481 = vpack.c.b16 %v445, %v427
  %v482 = vpack.c.b16 %v446, %v428
  %v483 = vpack.c.b16 %v447, %v429
  %v484 = vpack.c.b16 %v448, %v430
  %v809 = vunpack.c.l.b16 %v53
  %v810 = vunpack.c.h.b16 %v53
  %v811 = vunpack.c.l.b16 %v54
  %v812 = vunpack.c.h.b16 %v54
  %v813 = vunpack.c.l.b16 %v55
  %v814 = vunpack.c.h.b16 %v55
  %v815 = vunpack.c.l.b16 %v56
  %v816 = vunpack.c.h.b16 %v56
  %v817 = vunpack.c.l.b16 %v57
  %v818 = vunpack.c.h.b16 %v57
  %v819 = vunpack.c.l.b16 %v58
  %v820 = vunpack.c.h.b16 %v58
  %v821 = vunpack.c.l.b16 %v59
  %v822 = vunpack.c.h.b16 %v59
  %v823 = vunpack.c.l.b16 %v60
  %v824 = vunpack.c.h.b16 %v60
  %v825 = vunpack.c.l.b16 %v61
  %v826 = vunpack.c.h.b16 %v61
  %v827 = vunpack.c.l.b16 %v62
  %v828 = vunpack.c.h.b16 %v62
  %v829 = vunpack.c.l.b16 %v63
  %v830 = vunpack.c.h.b16 %v63
  %v831 = vunpack.c.l.b16 %v64
  %v832 = vunpack.c.h.b16 %v64
  %v833 = vunpack.c.l.b16 %v65
  %v834 = vunpack.c.h.b16 %v65
  %v835 = vunpack.c.l.b16 %v66
  %v836 = vunpack.c.h.b16 %v66
  %v837 = vunpack.c.l.b16 %v67
  %v838 = vunpack.c.h.b16 %v67
  %v839 = vunpack.c.l.b16 %v68
  %v840 = vunpack.c.h.b16 %v68
  %v841 = vunpack.c.l.b16 %v69
  %v842 = vunpack.c.h.b16 %v69
  %v843 = vunpack.c.l.b16 %v70
  %v844 = vunpack.c.h.b16 %v70
  %v845 = vunpack.c.l.b16 %v71
  %v846 = vunpack.c.h.b16 %v71
  %v847 = vunpack.c.l.b16 %v72
  %v848 = vunpack.c.h.b16 %v72
  %v849 = vunpack.c.l.b16 %v73
  %v850 = vunpack.c.h.b16 %v73
  %v851 = vunpack.c.l.b16 %v74
  %v852 = vunpack.c.h.b16 %v74
  %v853 = vunpack.c.l.b16 %v75
  %v854 = vunpack.c.h.b16 %v75
  %v855 = vunpack.c.l.b16 %v76
  %v856 = vunpack.c.h.b16 %v76
  %v857 = vunpack.c.l.b16 %v77
  %v858 = vunpack.c.h.b16 %v77
  %v859 = vunpack.c.l.b16 %v78
  %v860 = vunpack.c.h.b16 %v78
  %v861 = vunpack.c.l.b16 %v79
  %v862 = vunpack.c.h.b16 %v79
  %v863 = vunpack.c.l.b16 %v80
  %v864 = vunpack.c.h.b16 %v80
  %v865 = vunpack.c.l.b16 %v81
  %v866 = vunpack.c.h.b16 %v81
  %v867 = vunpack.c.l.b16 %v82
  %v868 = vunpack.c.h.b16 %v82
  %v869 = vunpack.c.l.b16 %v83
  %v870 = vunpack.c.h.b16 %v83
  %v871 = vunpack.c.l.b16 %v84
  %v872 = vunpack.c.h.b16 %v84
  %v873 = vunpack.c.l.b16 %v85
  %v874 = vunpack.c.h.b16 %v85
  %v875 = vunpack.c.l.b16 %v86
  %v876 = vunpack.c.h.b16 %v86
  %v877 = vunpack.c.l.b16 %v87
  %v878 = vunpack.c.h.b16 %v87
  %v879 = vunpack.c.l.b16 %v88
  %v880 = vunpack.c.h.b16 %v88
  %v881 = vunpack.c.l.b16 %v89
  %v882 = vunpack.c.h.b16 %v89
  %v883 = vunpack.c.l.b16 %v90
  %v884 = vunpack.c.h.b16 %v90
  %v885 = vunpack.c.l.b16 %v91
  %v886 = vunpack.c.h.b16 %v91
  %v887 = vunpack.c.l.b16 %v92
  %v888 = vunpack.c.h.b16 %v92
  %v889 = vunpack.c.l.b16 %v93
  %v890 = vunpack.c.h.b16 %v93
  %v891 = vunpack.c.l.b16 %v94
  %v892 = vunpack.c.h.b16 %v94
  %v893 = vunpack.c.l.b16 %v95
  %v894 = vunpack.c.h.b16 %v95
  %v895 = vunpack.c.l.b16 %v96
  %v896 = vunpack.c.h.b16 %v96
  %v897 = vunpack.c.l.b16 %v97
  %v898 = vunpack.c.h.b16 %v97
  %v899 = vunpack.c.l.b16 %v98
  %v900 = vunpack.c.h.b16 %v98
  %v901 = vunpack.c.l.b16 %v99
  %v902 = vunpack.c.h.b16 %v99
  %v903 = vunpack.c.l.b16 %v100
  %v904 = vunpack.c.h.b16 %v100
  %v905 = vunpack.c.l.b16 %v101
  %v906 = vunpack.c.h.b16 %v101
  %v907 = vunpack.c.l.b16 %v102
  %v908 = vunpack.c.h.b16 %v102
  %v909 = vunpack.c.l.b16 %v103
  %v910 = vunpack.c.h.b16 %v103
  %v911 = vunpack.c.l.b16 %v104
  %v912 = vunpack.c.h.b16 %v104
  %v913 = vunpack.c.l.b16 %v105
  %v914 = vunpack.c.h.b16 %v105
  %v915 = vunpack.c.l.b16 %v106
  %v916 = vunpack.c.h.b16 %v106
  %v917 = vunpack.c.l.b16 %v107
  %v918 = vunpack.c.h.b16 %v107
  %v919 = vunpack.c.l.b16 %v108
  %v920 = vunpack.c.h.b16 %v108
  %v921 = vunpack.c.l.b16 %v109
  %v922 = vunpack.c.h.b16 %v109
  %v923 = vunpack.c.l.b16 %v110
  %v924 = vunpack.c.h.b16 %v110
  %v925 = vunpack.c.l.b16 %v111
  %v926 = vunpack.c.h.b16 %v111
  %v927 = vunpack.c.l.b16 %v112
  %v928 = vunpack.c.h.b16 %v112
  %v929 = vunpack.c.l.b16 %v113
  %v930 = vunpack.c.h.b16 %v113
  %v931 = vunpack.c.l.b16 %v114
  %v932 = vunpack.c.h.b16 %v114
  %v933 = vunpack.c.l.b16 %v115
  %v934 = vunpack.c.h.b16 %v115
  %v935 = vunpack.c.l.b16 %v116
  %v936 = vunpack.c.h.b16 %v116
  %v937 = vunpack.c.l.b16 %v117
  %v938 = vunpack.c.h.b16 %v117
  %v939 = vunpack.c.l.b16 %v118
  %v940 = vunpack.c.h.b16 %v118
  %v941 = vunpack.c.l.b16 %v119
  %v942 = vunpack.c.h.b16 %v119
  %v943 = vunpack.c.l.b16 %v120
  %v944 = vunpack.c.h.b16 %v120
  %v945 = vunpack.c.l.b16 %v121
  %v946 = vunpack.c.h.b16 %v121
  %v947 = vunpack.c.l.b16 %v122
  %v948 = vunpack.c.h.b16 %v122
  %v949 = vunpack.c.l.b16 %v123
  %v950 = vunpack.c.h.b16 %v123
  %v951 = vunpack.c.l.b16 %v124
  %v952 = vunpack.c.h.b16 %v124
  %v953 = vunpack.c.l.b16 %v125
  %v954 = vunpack.c.h.b16 %v125
  %v955 = vunpack.c.l.b16 %v126
  %v956 = vunpack.c.h.b16 %v126
  %v957 = vunpack.c.l.b16 %v127
  %v958 = vunpack.c.h.b16 %v127
  %v959 = vunpack.c.l.b16 %v128
  %v960 = vunpack.c.h.b16 %v128
  %v961 = vunpack.c.l.b16 %v129
  %v962 = vunpack.c.h.b16 %v129
  %v963 = vunpack.c.l.b16 %v130
  %v964 = vunpack.c.h.b16 %v130
  %v965 = vunpack.c.l.b16 %v131
  %v966 = vunpack.c.h.b16 %v131
  %v967 = vunpack.c.l.b16 %v132
  %v968 = vunpack.c.h.b16 %v132
  %v969 = vunpack.c.l.b16 %v133
  %v970 = vunpack.c.h.b16 %v133
  %v971 = vunpack.c.l.b16 %v134
  %v972 = vunpack.c.h.b16 %v134
  %v973 = vunpack.c.l.b16 %v135
  %v974 = vunpack.c.h.b16 %v135
  %v975 = vunpack.c.l.b16 %v136
  %v976 = vunpack.c.h.b16 %v136
  %v977 = vunpack.c.l.b16 %v137
  %v978 = vunpack.c.h.b16 %v137
  %v979 = vunpack.c.l.b16 %v138
  %v980 = vunpack.c.h.b16 %v138
  %v981 = vunpack.c.l.b16 %v139
  %v982 = vunpack.c.h.b16 %v139
  %v983 = vunpack.c.l.b16 %v140
  %v984 = vunpack.c.h.b16 %v140
  %v985 = vunpack.c.l.b16 %v141
  %v986 = vunpack.c.h.b16 %v141
  %v987 = vunpack.c.l.b16 %v142
  %v988 = vunpack.c.h.b16 %v142
  %v989 = vunpack.c.l.b16 %v143
  %v990 = vunpack.c.h.b16 %v143
  %v991 = vunpack.c.l.b16 %v144
  %v992 = vunpack.c.h.b16 %v144
  %v993 = vunpack.c.l.b16 %v145
  %v994 = vunpack.c.h.b16 %v145
  %v995 = vunpack.c.l.b16 %v146
  %v996 = vunpack.c.h.b16 %v146
  %v997 = vunpack.c.l.b16 %v147
  %v998 = vunpack.c.h.b16 %v147
  %v999 = vunpack.c.l.b16 %v148
  %v1000 = vunpack.c.h.b16 %v148
  %v1001 = vunpack.c.l.b16 %v149
  %v1002 = vunpack.c.h.b16 %v149
  %v1003 = vunpack.c.l.b16 %v150
  %v1004 = vunpack.c.h.b16 %v150
  %v1005 = vunpack.c.l.b16 %v151
  %v1006 = vunpack.c.h.b16 %v151
  %v1007 = vunpack.c.l.b16 %v152
  %v1008 = vunpack.c.h.b16 %v152
  %v1009 = vunpack.c.l.b16 %v153
  %v1010 = vunpack.c.h.b16 %v153
  %v1011 = vunpack.c.l.b16 %v154
  %v1012 = vunpack.c.h.b16 %v154
  %v1013 = vunpack.c.l.b16 %v155
  %v1014 = vunpack.c.h.b16 %v155
  %v1015 = vunpack.c.l.b16 %v156
  %v1016 = vunpack.c.h.b16 %v156
  %v1017 = vunpack.c.l.b16 %v157
  %v1018 = vunpack.c.h.b16 %v157
  %v1019 = vunpack.c.l.b16 %v158
  %v1020 = vunpack.c.h.b16 %v158
  %v1021 = vunpack.c.l.b16 %v159
  %v1022 = vunpack.c.h.b16 %v159
  %v1023 = vunpack.c.l.b16 %v160
  %v1024 = vunpack.c.h.b16 %v160
  %v1025 = vunpack.c.l.b16 %v161
  %v1026 = vunpack.c.h.b16 %v161
  %v1027 = vunpack.c.l.b16 %v162
  %v1028 = vunpack.c.h.b16 %v162
  %v1029 = vunpack.c.l.b16 %v163
  %v1030 = vunpack.c.h.b16 %v163
  %v1031 = vunpack.c.l.b16 %v164
  %v1032 = vunpack.c.h.b16 %v164
  %v1033 = vunpack.c.l.b16 %v165
  %v1034 = vunpack.c.h.b16 %v165
  %v1035 = vunpack.c.l.b16 %v166
  %v1036 = vunpack.c.h.b16 %v166
  %v1037 = vunpack.c.l.b16 %v167
  %v1038 = vunpack.c.h.b16 %v167
  %v1039 = vunpack.c.l.b16 %v168
  %v1040 = vunpack.c.h.b16 %v168
  %v1041 = vunpack.c.l.b16 %v169
  %v1042 = vunpack.c.h.b16 %v169
  %v1043 = vunpack.c.l.b16 %v170
  %v1044 = vunpack.c.h.b16 %v170
  %v1045 = vunpack.c.l.b16 %v171
  %v1046 = vunpack.c.h.b16 %v171
  %v1047 = vunpack.c.l.b16 %v172
  %v1048 = vunpack.c.h.b16 %v172
  %v1049 = vunpack.c.l.b16 %v173
  %v1050 = vunpack.c.h.b16 %v173
  %v1051 = vunpack.c.l.b16 %v174
  %v1052 = vunpack.c.h.b16 %v174
  %v1053 = vunpack.c.l.b16 %v175
  %v1054 = vunpack.c.h.b16 %v175
  %v1055 = vunpack.c.l.b16 %v176
  %v1056 = vunpack.c.h.b16 %v176
  %v1057 = vunpack.c.l.b16 %v177
  %v1058 = vunpack.c.h.b16 %v177
  %v1059 = vunpack.c.l.b16 %v178
  %v1060 = vunpack.c.h.b16 %v178
  %v1061 = vunpack.c.l.b16 %v179
  %v1062 = vunpack.c.h.b16 %v179
  %v1063 = vunpack.c.l.b16 %v180
  %v1064 = vunpack.c.h.b16 %v180
  %v1065 = vunpack.c.l.b16 %v181
  %v1066 = vunpack.c.h.b16 %v181
  %v1067 = vunpack.c.l.b16 %v182
  %v1068 = vunpack.c.h.b16 %v182
  %v1069 = vunpack.c.l.b16 %v183
  %v1070 = vunpack.c.h.b16 %v183
  %v1071 = vunpack.c.l.b16 %v184
  %v1072 = vunpack.c.h.b16 %v184
  %v1073 = vunpack.c.l.b16 %v185
  %v1074 = vunpack.c.h.b16 %v185
  %v1075 = vunpack.c.l.b16 %v186
  %v1076 = vunpack.c.h.b16 %v186
  %v1077 = vunpack.c.l.b16 %v187
  %v1078 = vunpack.c.h.b16 %v187
  %v1079 = vunpack.c.l.b16 %v188
  %v1080 = vunpack.c.h.b16 %v188
  %v1081 = vunpack.c.l.b16 %v189
  %v1082 = vunpack.c.h.b16 %v189
  %v1083 = vunpack.c.l.b16 %v190
  %v1084 = vunpack.c.h.b16 %v190
  %v1085 = vunpack.c.l.b16 %v191
  %v1086 = vunpack.c.h.b16 %v191
  %v1087 = vunpack.c.l.b16 %v192
  %v1088 = vunpack.c.h.b16 %v192
  %v1089 = vunpack.c.l.b16 %v193
  %v1090 = vunpack.c.h.b16 %v193
  %v1091 = vunpack.c.l.b16 %v194
  %v1092 = vunpack.c.h.b16 %v194
  %v1093 = vunpack.c.l.b16 %v195
  %v1094 = vunpack.c.h.b16 %v195
  %v1095 = vunpack.c.l.b16 %v196
  %v1096 = vunpack.c.h.b16 %v196
  %v1097 = vunpack.c.l.b16 %v197
  %v1098 = vunpack.c.h.b16 %v197
  %v1099 = vunpack.c.l.b16 %v198
  %v1100 = vunpack.c.h.b16 %v198
  %v1101 = vunpack.c.l.b16 %v199
  %v1102 = vunpack.c.h.b16 %v199
  %v1103 = vunpack.c.l.b16 %v200
  %v1104 = vunpack.c.h.b16 %v200
  %v1105 = vunpack.c.l.b16 %v201
  %v1106 = vunpack.c.h.b16 %v201
  %v1107 = vunpack.c.l.b16 %v202
  %v1108 = vunpack.c.h.b16 %v202
  %v1109 = vunpack.c.l.b16 %v203
  %v1110 = vunpack.c.h.b16 %v203
  %v1111 = vunpack.c.l.b16 %v204
  %v1112 = vunpack.c.h.b16 %v204
  %v1113 = vunpack.c.l.b16 %v205
  %v1114 = vunpack.c.h.b16 %v205
  %v1115 = vunpack.c.l.b16 %v206
  %v1116 = vunpack.c.h.b16 %v206
  %v1117 = vunpack.c.l.b16 %v207
  %v1118 = vunpack.c.h.b16 %v207
  %v1119 = vunpack.c.l.b16 %v208
  %v1120 = vunpack.c.h.b16 %v208
  %v1121 = vunpack.c.l.b16 %v209
  %v1122 = vunpack.c.h.b16 %v209
  %v1123 = vunpack.c.l.b16 %v210
  %v1124 = vunpack.c.h.b16 %v210
  %v1125 = vunpack.c.l.b16 %v211
  %v1126 = vunpack.c.h.b16 %v211
  %v1127 = vunpack.c.l.b16 %v212
  %v1128 = vunpack.c.h.b16 %v212
  %v1129 = vunpack.c.l.b16 %v213
  %v1130 = vunpack.c.h.b16 %v213
  %v1131 = vunpack.c.l.b16 %v214
  %v1132 = vunpack.c.h.b16 %v214
  %v1133 = vunpack.c.l.b16 %v215
  %v1134 = vunpack.c.h.b16 %v215
  %v1135 = vunpack.c.l.b16 %v216
  %v1136 = vunpack.c.h.b16 %v216
  %v1137 = vunpack.c.l.b16 %v217
  %v1138 = vunpack.c.h.b16 %v217
  %v1139 = vunpack.c.l.b16 %v218
  %v1140 = vunpack.c.h.b16 %v218
  %v1141 = vunpack.c.l.b16 %v219
  %v1142 = vunpack.c.h.b16 %v219
  %v1143 = vunpack.c.l.b16 %v220
  %v1144 = vunpack.c.h.b16 %v220
  %v1145 = vunpack.c.l.b16 %v221
  %v1146 = vunpack.c.h.b16 %v221
  %v1147 = vunpack.c.l.b16 %v222
  %v1148 = vunpack.c.h.b16 %v222
  %v1149 = vunpack.c.l.b16 %v223
  %v1150 = vunpack.c.h.b16 %v223
  %v1151 = vunpack.c.l.b16 %v224
  %v1152 = vunpack.c.h.b16 %v224
  %v1153 = vunpack.c.l.b16 %v225
  %v1154 = vunpack.c.h.b16 %v225
  %v1155 = vunpack.c.l.b16 %v226
  %v1156 = vunpack.c.h.b16 %v226
  %v1157 = vunpack.c.l.b16 %v227
  %v1158 = vunpack.c.h.b16 %v227
  %v1159 = vunpack.c.l.b16 %v228
  %v1160 = vunpack.c.h.b16 %v228
  %v1161 = vunpack.c.l.b16 %v229
  %v1162 = vunpack.c.h.b16 %v229
  %v1163 = vunpack.c.l.b16 %v230
  %v1164 = vunpack.c.h.b16 %v230
  %v1165 = vunpack.c.l.b16 %v231
  %v1166 = vunpack.c.h.b16 %v231
  %v1167 = vunpack.c.l.b16 %v232
  %v1168 = vunpack.c.h.b16 %v232
  %v1169 = vunpack.c.l.b16 %v233
  %v1170 = vunpack.c.h.b16 %v233
  %v1171 = vunpack.c.l.b16 %v234
  %v1172 = vunpack.c.h.b16 %v234
  %v1173 = vunpack.c.l.b16 %v235
  %v1174 = vunpack.c.h.b16 %v235
  %v1175 = vunpack.c.l.b16 %v236
  %v1176 = vunpack.c.h.b16 %v236
  %v1177 = vunpack.c.l.b16 %v237
  %v1178 = vunpack.c.h.b16 %v237
  %v1179 = vunpack.c.l.b16 %v238
  %v1180 = vunpack.c.h.b16 %v238
  %v1181 = vunpack.c.l.b16 %v239
  %v1182 = vunpack.c.h.b16 %v239
  %v1183 = vunpack.c.l.b16 %v240
  %v1184 = vunpack.c.h.b16 %v240
  %v1185 = vunpack.c.l.b16 %v241
  %v1186 = vunpack.c.h.b16 %v241
  %v1187 = vunpack.c.l.b16 %v242
  %v1188 = vunpack.c.h.b16 %v242
  %v1189 = vunpack.c.l.b16 %v243
  %v1190 = vunpack.c.h.b16 %v243
  %v1191 = vunpack.c.l.b16 %v244
  %v1192 = vunpack.c.h.b16 %v244
  %v1193 = vunpack.c.l.b16 %v245
  %v1194 = vunpack.c.h.b16 %v245
  %v1195 = vunpack.c.l.b16 %v246
  %v1196 = vunpack.c.h.b16 %v246
  %v1197 = vunpack.c.l.b16 %v247
  %v1198 = vunpack.c.h.b16 %v247
  %v1199 = vunpack.c.l.b16 %v248
  %v1200 = vunpack.c.h.b16 %v248
  %v1201 = vunpack.c.l.b16 %v249
  %v1202 = vunpack.c.h.b16 %v249
  %v1203 = vunpack.c.l.b16 %v250
  %v1204 = vunpack.c.h.b16 %v250
  %v1205 = vunpack.c.l.b16 %v251
  %v1206 = vunpack.c.h.b16 %v251
  %v1207 = vunpack.c.l.b16 %v252
  %v1208 = vunpack.c.h.b16 %v252
  %v1209 = vunpack.c.l.b16 %v253
  %v1210 = vunpack.c.h.b16 %v253
  %v1211 = vunpack.c.l.b16 %v254
  %v1212 = vunpack.c.h.b16 %v254
  %v1213 = vunpack.c.l.b16 %v255
  %v1214 = vunpack.c.h.b16 %v255
  %v1215 = vunpack.c.l.b16 %v256
  %v1216 = vunpack.c.h.b16 %v256
  %v1217 = vunpack.c.l.b16 %v257
  %v1218 = vunpack.c.h.b16 %v257
  %v1219 = vunpack.c.l.b16 %v258
  %v1220 = vunpack.c.h.b16 %v258
  %v1221 = vunpack.c.l.b16 %v259
  %v1222 = vunpack.c.h.b16 %v259
  %v1223 = vunpack.c.l.b16 %v260
  %v1224 = vunpack.c.h.b16 %v260
  %v1225 = vunpack.c.l.b16 %v261
  %v1226 = vunpack.c.h.b16 %v261
  %v1227 = vunpack.c.l.b16 %v262
  %v1228 = vunpack.c.h.b16 %v262
  %v1229 = vunpack.c.l.b16 %v263
  %v1230 = vunpack.c.h.b16 %v263
  %v1231 = vunpack.c.l.b16 %v264
  %v1232 = vunpack.c.h.b16 %v264
  %v1233 = vunpack.c.l.b16 %v265
  %v1234 = vunpack.c.h.b16 %v265
  %v1235 = vunpack.c.l.b16 %v266
  %v1236 = vunpack.c.h.b16 %v266
  %v1237 = vunpack.c.l.b16 %v267
  %v1238 = vunpack.c.h.b16 %v267
  %v1239 = vunpack.c.l.b16 %v268
  %v1240 = vunpack.c.h.b16 %v268
  %v1241 = vunpack.c.l.b16 %v269
  %v1242 = vunpack.c.h.b16 %v269
  %v1243 = vunpack.c.l.b16 %v270
  %v1244 = vunpack.c.h.b16 %v270
  %v1245 = vunpack.c.l.b16 %v271
  %v1246 = vunpack.c.h.b16 %v271
  %v1247 = vunpack.c.l.b16 %v272
  %v1248 = vunpack.c.h.b16 %v272
  %v1249 = vunpack.c.l.b16 %v273
  %v1250 = vunpack.c.h.b16 %v273
  %v1251 = vunpack.c.l.b16 %v274
  %v1252 = vunpack.c.h.b16 %v274
  %v1253 = vunpack.c.l.b16 %v275
  %v1254 = vunpack.c.h.b16 %v275
  %v1255 = vunpack.c.l.b16 %v276
  %v1256 = vunpack.c.h.b16 %v276
  %v1257 = vunpack.c.l.b16 %v277
  %v1258 = vunpack.c.h.b16 %v277
  %v1259 = vunpack.c.l.b16 %v278
  %v1260 = vunpack.c.h.b16 %v278
  %v1261 = vunpack.c.l.b16 %v279
  %v1262 = vunpack.c.h.b16 %v279
  %v1263 = vunpack.c.l.b16 %v280
  %v1264 = vunpack.c.h.b16 %v280
  %v1265 = vunpack.c.l.b16 %v281
  %v1266 = vunpack.c.h.b16 %v281
  %v1267 = vunpack.c.l.b16 %v282
  %v1268 = vunpack.c.h.b16 %v282
  %v1269 = vunpack.c.l.b16 %v283
  %v1270 = vunpack.c.h.b16 %v283
  %v1271 = vunpack.c.l.b16 %v284
  %v1272 = vunpack.c.h.b16 %v284
  %v1273 = vunpack.c.l.b16 %v285
  %v1274 = vunpack.c.h.b16 %v285
  %v1275 = vunpack.c.l.b16 %v286
  %v1276 = vunpack.c.h.b16 %v286
  %v1277 = vunpack.c.l.b16 %v287
  %v1278 = vunpack.c.h.b16 %v287
  %v1279 = vunpack.c.l.b16 %v288
  %v1280 = vunpack.c.h.b16 %v288
  %v1281 = vunpack.c.l.b16 %v289
  %v1282 = vunpack.c.h.b16 %v289
  %v1283 = vunpack.c.l.b16 %v290
  %v1284 = vunpack.c.h.b16 %v290
  %v1285 = vunpack.c.l.b16 %v291
  %v1286 = vunpack.c.h.b16 %v291
  %v1287 = vunpack.c.l.b16 %v292
  %v1288 = vunpack.c.h.b16 %v292
  %v1289 = vunpack.c.l.b16 %v293
  %v1290 = vunpack.c.h.b16 %v293
  %v1291 = vunpack.c.l.b16 %v294
  %v1292 = vunpack.c.h.b16 %v294
  %v1293 = vunpack.c.l.b16 %v295
  %v1294 = vunpack.c.h.b16 %v295
  %v1295 = vunpack.c.l.b16 %v296
  %v1296 = vunpack.c.h.b16 %v296
  %v1297 = vunpack.c.l.b16 %v297
  %v1298 = vunpack.c.h.b16 %v297
  %v1299 = vunpack.c.l.b16 %v298
  %v1300 = vunpack.c.h.b16 %v298
  %v1301 = vunpack.c.l.b16 %v299
  %v1302 = vunpack.c.h.b16 %v299
  %v1303 = vunpack.c.l.b16 %v300
  %v1304 = vunpack.c.h.b16 %v300
  %v1305 = vunpack.c.l.b16 %v301
  %v1306 = vunpack.c.h.b16 %v301
  %v1307 = vunpack.c.l.b16 %v302
  %v1308 = vunpack.c.h.b16 %v302
  %v1309 = vunpack.c.l.b16 %v303
  %v1310 = vunpack.c.h.b16 %v303
  %v1311 = vunpack.c.l.b16 %v304
  %v1312 = vunpack.c.h.b16 %v304
  %v1313 = vunpack.c.l.b16 %v305
  %v1314 = vunpack.c.h.b16 %v305
  %v1315 = vunpack.c.l.b16 %v306
  %v1316 = vunpack.c.h.b16 %v306
  %v1317 = vunpack.c.l.b16 %v307
  %v1318 = vunpack.c.h.b16 %v307
  %v1319 = vunpack.c.l.b16 %v308
  %v1320 = vunpack.c.h.b16 %v308
  %v1321 = vunpack.c.l.b16 %v309
  %v1322 = vunpack.c.h.b16 %v309
  %v1323 = vunpack.c.l.b16 %v310
  %v1324 = vunpack.c.h.b16 %v310
  %v1325 = vunpack.c.l.b16 %v311
  %v1326 = vunpack.c.h.b16 %v311
  %v1327 = vunpack.c.l.b16 %v312
  %v1328 = vunpack.c.h.b16 %v312
  %v1329 = vunpack.c.l.b16 %v313
  %v1330 = vunpack.c.h.b16 %v313
  %v1331 = vunpack.c.l.b16 %v314
  %v1332 = vunpack.c.h.b16 %v314
  %v1333 = vunpack.c.l.b16 %v315
  %v1334 = vunpack.c.h.b16 %v315
  %v1335 = vunpack.c.l.b16 %v316
  %v1336 = vunpack.c.h.b16 %v316
  %v1337 = vunpack.c.l.b16 %v317
  %v1338 = vunpack.c.h.b16 %v317
  %v1339 = vunpack.c.l.b16 %v318
  %v1340 = vunpack.c.h.b16 %v318
  %v1341 = vunpack.c.l.b16 %v319
  %v1342 = vunpack.c.h.b16 %v319
  %v1343 = vunpack.c.l.b16 %v320
  %v1344 = vunpack.c.h.b16 %v320
  %v1345 = vunpack.c.l.b16 %v321
  %v1346 = vunpack.c.h.b16 %v321
  %v1347 = vunpack.c.l.b16 %v322
  %v1348 = vunpack.c.h.b16 %v322
  %v1349 = vunpack.c.l.b16 %v323
  %v1350 = vunpack.c.h.b16 %v323
  %v1351 = vunpack.c.l.b16 %v324
  %v1352 = vunpack.c.h.b16 %v324
  %v1353 = vunpack.c.l.b16 %v325
  %v1354 = vunpack.c.h.b16 %v325
  %v1355 = vunpack.c.l.b16 %v326
  %v1356 = vunpack.c.h.b16 %v326
  %v1357 = vunpack.c.l.b16 %v327
  %v1358 = vunpack.c.h.b16 %v327
  %v1359 = vunpack.c.l.b16 %v328
  %v1360 = vunpack.c.h.b16 %v328
  %v1361 = vunpack.c.l.b16 %v329
  %v1362 = vunpack.c.h.b16 %v329
  %v1363 = vunpack.c.l.b16 %v330
  %v1364 = vunpack.c.h.b16 %v330
  %v1365 = vunpack.c.l.b16 %v331
  %v1366 = vunpack.c.h.b16 %v331
  %v1367 = vunpack.c.l.b16 %v332
  %v1368 = vunpack.c.h.b16 %v332
  %v1369 = vunpack.c.l.b16 %v333
  %v1370 = vunpack.c.h.b16 %v333
  %v1371 = vunpack.c.l.b16 %v334
  %v1372 = vunpack.c.h.b16 %v334
  %v1373 = vunpack.c.l.b16 %v335
  %v1374 = vunpack.c.h.b16 %v335
  %v1375 = vunpack.c.l.b16 %v336
  %v1376 = vunpack.c.h.b16 %v336
  %v1377 = vunpack.c.l.b16 %v337
  %v1378 = vunpack.c.h.b16 %v337
  %v1379 = vunpack.c.l.b16 %v338
  %v1380 = vunpack.c.h.b16 %v338
  %v1381 = vunpack.c.l.b16 %v339
  %v1382 = vunpack.c.h.b16 %v339
  %v1383 = vunpack.c.l.b16 %v340
  %v1384 = vunpack.c.h.b16 %v340
  %v1385 = vpack.c.b16 %v811, %v809
  %v1386 = vpack.c.b16 %v812, %v810
  %v1387 = vpack.c.b16 %v815, %v813
  %v1388 = vpack.c.b16 %v816, %v814
  %v1389 = vpack.c.b16 %v819, %v817
  %v1390 = vpack.c.b16 %v820, %v818
  %v1391 = vpack.c.b16 %v823, %v821
  %v1392 = vpack.c.b16 %v824, %v822
  %v1393 = vpack.c.b16 %v827, %v825
  %v1394 = vpack.c.b16 %v828, %v826
  %v1395 = vpack.c.b16 %v831, %v829
  %v1396 = vpack.c.b16 %v832, %v830
  %v1397 = vpack.c.b16 %v835, %v833
  %v1398 = vpack.c.b16 %v836, %v834
  %v1399 = vpack.c.b16 %v839, %v837
  %v1400 = vpack.c.b16 %v840, %v838
  %v1401 = vpack.c.b16 %v843, %v841
  %v1402 = vpack.c.b16 %v844, %v842
  %v1403 = vpack.c.b16 %v847, %v845
  %v1404 = vpack.c.b16 %v848, %v846
  %v1405 = vpack.c.b16 %v851, %v849
  %v1406 = vpack.c.b16 %v852, %v850
  %v1407 = vpack.c.b16 %v855, %v853
  %v1408 = vpack.c.b16 %v856, %v854
  %v1409 = vpack.c.b16 %v859, %v857
  %v1410 = vpack.c.b16 %v860, %v858
  %v1411 = vpack.c.b16 %v863, %v861
  %v1412 = vpack.c.b16 %v864, %v862
  %v1413 = vpack.c.b16 %v867, %v865
  %v1414 = vpack.c.b16 %v868, %v866
  %v1415 = vpack.c.b16 %v871, %v869
  %v1416 = vpack.c.b16 %v872, %v870
  %v1417 = vpack.c.b16 %v875, %v873
  %v1418 = vpack.c.b16 %v876, %v874
  %v1419 = vpack.c.b16 %v879, %v877
  %v1420 = vpack.c.b16 %v880, %v878
  %v1421 = vpack.c.b16 %v883, %v881
  %v1422 = vpack.c.b16 %v884, %v882
  %v1423 = vpack.c.b16 %v887, %v885
  %v1424 = vpack.c.b16 %v888, %v886
  %v1425 = vpack.c.b16 %v891, %v889
  %v1426 = vpack.c.b16 %v892, %v890
  %v1427 = vpack.c.b16 %v895, %v893
  %v1428 = vpack.c.b16 %v896, %v894
  %v1429 = vpack.c.b16 %v899, %v897
  %v1430 = vpack.c.b16 %v900, %v898
  %v1431 = vpack.c.b16 %v903, %v901
  %v1432 = vpack.c.b16 %v904, %v902
  %v1433 = vpack.c.b16 %v907, %v905
  %v1434 = vpack.c.b16 %v908, %v906
  %v1435 = vpack.c.b16 %v911, %v909
  %v1436 = vpack.c.b16 %v912, %v910
  %v1437 = vpack.c.b16 %v915, %v913
  %v1438 = vpack.c.b16 %v916, %v914
  %v1439 = vpack.c.b16 %v919, %v917
  %v1440 = vpack.c.b16 %v920, %v918
  %v1441 = vpack.c.b16 %v923, %v921
  %v1442 = vpack.c.b16 %v924, %v922
  %v1443 = vpack.c.b16 %v927, %v925
  %v1444 = vpack.c.b16 %v928, %v926
  %v1445 = vpack.c.b16 %v931, %v929
  %v1446 = vpack.c.b16 %v932, %v930
  %v1447 = vpack.c.b16 %v935, %v933
  %v1448 = vpack.c.b16 %v936, %v934
  %v1449 = vpack.c.b16 %v939, %v937
  %v1450 = vpack.c.b16 %v940, %v938
  %v1451 = vpack.c.b16 %v943, %v941
  %v1452 = vpack.c.b16 %v944, %v942
  %v1453 = vpack.c.b16 %v947, %v945
  %v1454 = vpack.c.b16 %v948, %v946
  %v1455 = vpack.c.b16 %v951, %v949
  %v1456 = vpack.c.b16 %v952, %v950
  %v1457 = vpack.c.b16 %v955, %v953
  %v1458 = vpack.c.b16 %v956, %v954
  %v1459 = vpack.c.b16 %v959, %v957
  %v1460 = vpack.c.b16 %v960, %v958
  %v1461 = vpack.c.b16 %v963, %v961
  %v1462 = vpack.c.b16 %v964, %v962
  %v1463 = vpack.c.b16 %v967, %v965
  %v1464 = vpack.c.b16 %v968, %v966
  %v1465 = vpack.c.b16 %v971, %v969
  %v1466 = vpack.c.b16 %v972, %v970
  %v1467 = vpack.c.b16 %v975, %v973
  %v1468 = vpack.c.b16 %v976, %v974
  %v1469 = vpack.c.b16 %v979, %v977
  %v1470 = vpack.c.b16 %v980, %v978
  %v1471 = vpack.c.b16 %v983, %v981
  %v1472 = vpack.c.b16 %v984, %v982
  %v1473 = vpack.c.b16 %v987, %v985
  %v1474 = vpack.c.b16 %v988, %v986
  %v1475 = vpack.c.b16 %v991, %v989
  %v1476 = vpack.c.b16 %v992, %v990
  %v1477 = vpack.c.b16 %v995, %v993
  %v1478 = vpack.c.b16 %v996, %v994
  %v1479 = vpack.c.b16 %v999, %v997
  %v1480 = vpack.c.b16 %v1000, %v998
  %v1481 = vpack.c.b16 %v1003, %v1001
  %v1482 = vpack.c.b16 %v1004, %v1002
  %v1483 = vpack.c.b16 %v1007, %v1005
  %v1484 = vpack.c.b16 %v1008, %v1006
  %v1485 = vpack.c.b16 %v1011, %v1009
  %v1486 = vpack.c.b16 %v1012, %v1010
  %v1487 = vpack.c.b16 %v1015, %v1013
  %v1488 = vpack.c.b16 %v1016, %v1014
  %v1489 = vpack.c.b16 %v1019, %v1017
  %v1490 = vpack.c.b16 %v1020, %v1018
  %v1491 = vpack.c.b16 %v1023, %v1021
  %v1492 = vpack.c.b16 %v1024, %v1022
  %v1493 = vpack.c.b16 %v1027, %v1025
  %v1494 = vpack.c.b16 %v1028, %v1026
  %v1495 = vpack.c.b16 %v1031, %v1029
  %v1496 = vpack.c.b16 %v1032, %v1030
  %v1497 = vpack.c.b16 %v1035, %v1033
  %v1498 = vpack.c.b16 %v1036, %v1034
  %v1499 = vpack.c.b16 %v1039, %v1037
  %v1500 = vpack.c.b16 %v1040, %v1038
  %v1501 = vpack.c.b16 %v1043, %v1041
  %v1502 = vpack.c.b16 %v1044, %v1042
  %v1503 = vpack.c.b16 %v1047, %v1045
  %v1504 = vpack.c.b16 %v1048, %v1046
  %v1505 = vpack.c.b16 %v1051, %v1049
  %v1506 = vpack.c.b16 %v1052, %v1050
  %v1507 = vpack.c.b16 %v1055, %v1053
  %v1508 = vpack.c.b16 %v1056, %v1054
  %v1509 = vpack.c.b16 %v1059, %v1057
  %v1510 = vpack.c.b16 %v1060, %v1058
  %v1511 = vpack.c.b16 %v1063, %v1061
  %v1512 = vpack.c.b16 %v1064, %v1062
  %v1513 = vpack.c.b16 %v1067, %v1065
  %v1514 = vpack.c.b16 %v1068, %v1066
  %v1515 = vpack.c.b16 %v1071, %v1069
  %v1516 = vpack.c.b16 %v1072, %v1070
  %v1517 = vpack.c.b16 %v1075, %v1073
  %v1518 = vpack.c.b16 %v1076, %v1074
  %v1519 = vpack.c.b16 %v1079, %v1077
  %v1520 = vpack.c.b16 %v1080, %v1078
  %v1521 = vpack.c.b16 %v1083, %v1081
  %v1522 = vpack.c.b16 %v1084, %v1082
  %v1523 = vpack.c.b16 %v1087, %v1085
  %v1524 = vpack.c.b16 %v1088, %v1086
  %v1525 = vpack.c.b16 %v1091, %v1089
  %v1526 = vpack.c.b16 %v1092, %v1090
  %v1527 = vpack.c.b16 %v1095, %v1093
  %v1528 = vpack.c.b16 %v1096, %v1094
  %v1529 = vpack.c.b16 %v1099, %v1097
  %v1530 = vpack.c.b16 %v1100, %v1098
  %v1531 = vpack.c.b16 %v1103, %v1101
  %v1532 = vpack.c.b16 %v1104, %v1102
  %v1533 = vpack.c.b16 %v1107, %v1105
  %v1534 = vpack.c.b16 %v1108, %v1106
  %v1535 = vpack.c.b16 %v1111, %v1109
  %v1536 = vpack.c.b16 %v1112, %v1110
  %v1537 = vpack.c.b16 %v1115, %v1113
  %v1538 = vpack.c.b16 %v1116, %v1114
  %v1539 = vpack.c.b16 %v1119, %v1117
  %v1540 = vpack.c.b16 %v1120, %v1118
  %v1541 = vpack.c.b16 %v1123, %v1121
  %v1542 = vpack.c.b16 %v1124, %v1122
  %v1543 = vpack.c.b16 %v1127, %v1125
  %v1544 = vpack.c.b16 %v1128, %v1126
  %v1545 = vpack.c.b16 %v1131, %v1129
  %v1546 = vpack.c.b16 %v1132, %v1130
  %v1547 = vpack.c.b16 %v1135, %v1133
  %v1548 = vpack.c.b16 %v1136, %v1134
  %v1549 = vpack.c.b16 %v1139, %v1137
  %v1550 = vpack.c.b16 %v1140, %v1138
  %v1551 = vpack.c.b16 %v1143, %v1141
  %v1552 = vpack.c.b16 %v1144, %v1142
  %v1553 = vpack.c.b16 %v1147, %v1145
  %v1554 = vpack.c.b16 %v1148, %v1146
  %v1555 = vpack.c.b16 %v1151, %v1149
  %v1556 = vpack.c.b16 %v1152, %v1150
  %v1557 = vpack.c.b16 %v1155, %v1153
  %v1558 = vpack.c.b16 %v1156, %v1154
  %v1559 = vpack.c.b16 %v1159, %v1157
  %v1560 = vpack.c.b16 %v1160, %v1158
  %v1561 = vpack.c.b16 %v1163, %v1161
  %v1562 = vpack.c.b16 %v1164, %v1162
  %v1563 = vpack.c.b16 %v1167, %v1165
  %v1564 = vpack.c.b16 %v1168, %v1166
  %v1565 = vpack.c.b16 %v1171, %v1169
  %v1566 = vpack.c.b16 %v1172, %v1170
  %v1567 = vpack.c.b16 %v1175, %v1173
  %v1568 = vpack.c.b16 %v1176, %v1174
  %v1569 = vpack.c.b16 %v1179, %v1177
  %v1570 = vpack.c.b16 %v1180, %v1178
  %v1571 = vpack.c.b16 %v1183, %v1181
  %v1572 = vpack.c.b16 %v1184, %v1182
  %v1573 = vpack.c.b16 %v1187, %v1185
  %v1574 = vpack.c.b16 %v1188, %v1186
  %v1575 = vpack.c.b16 %v1191, %v1189
  %v1576 = vpack.c.b16 %v1192, %v1190
  %v1577 = vpack.c.b16 %v1195, %v1193
  %v1578 = vpack.c.b16 %v1196, %v1194
  %v1579 = vpack.c.b16 %v1199, %v1197
  %v1580 = vpack.c.b16 %v1200, %v1198
  %v1581 = vpack.c.b16 %v1203, %v1201
  %v1582 = vpack.c.b16 %v1204, %v1202
  %v1583 = vpack.c.b16 %v1207, %v1205
  %v1584 = vpack.c.b16 %v1208, %v1206
  %v1585 = vpack.c.b16 %v1211, %v1209
  %v1586 = vpack.c.b16 %v1212, %v1210
  %v1587 = vpack.c.b16 %v1215, %v1213
  %v1588 = vpack.c.b16 %v1216, %v1214
  %v1589 = vpack.c.b16 %v1219, %v1217
  %v1590 = vpack.c.b16 %v1220, %v1218
  %v1591 = vpack.c.b16 %v1223, %v1221
  %v1592 = vpack.c.b16 %v1224, %v1222
  %v1593 = vpack.c.b16 %v1227, %v1225
  %v1594 = vpack.c.b16 %v1228, %v1226
  %v1595 = vpack.c.b16 %v1231, %v1229
  %v1596 = vpack.c.b16 %v1232, %v1230
  %v1597 = vpack.c.b16 %v1235, %v1233
  %v1598 = vpack.c.b16 %v1236, %v1234
  %v1599 = vpack.c.b16 %v1239, %v1237
  %v1600 = vpack.c.b16 %v1240, %v1238
  %v1601 = vpack.c.b16 %v1243, %v1241
  %v1602 = vpack.c.b16 %v1244, %v1242
  %v1603 = vpack.c.b16 %v1247, %v1245
  %v1604 = vpack.c.b16 %v1248, %v1246
  %v1605 = vpack.c.b16 %v1251, %v1249
  %v1606 = vpack.c.b16 %v1252, %v1250
  %v1607 = vpack.c.b16 %v1255, %v1253
  %v1608 = vpack.c.b16 %v1256, %v1254
  %v1609 = vpack.c.b16 %v1259, %v1257
  %v1610 = vpack.c.b16 %v1260, %v1258
  %v1611 = vpack.c.b16 %v1263, %v1261
  %v1612 = vpack.c.b16 %v1264, %v1262
  %v1613 = vpack.c.b16 %v1267, %v1265
  %v1614 = vpack.c.b16 %v1268, %v1266
  %v1615 = vpack.c.b16 %v1271, %v1269
  %v1616 = vpack.c.b16 %v1272, %v1270
  %v1617 = vpack.c.b16 %v1275, %v1273
  %v1618 = vpack.c.b16 %v1276, %v1274
  %v1619 = vpack.c.b16 %v1279, %v1277
  %v1620 = vpack.c.b16 %v1280, %v1278
  %v1621 = vpack.c.b16 %v1283, %v1281
  %v1622 = vpack.c.b16 %v1284, %v1282
  %v1623 = vpack.c.b16 %v1287, %v1285
  %v1624 = vpack.c.b16 %v1288, %v1286
  %v1625 = vpack.c.b16 %v1291, %v1289
  %v1626 = vpack.c.b16 %v1292, %v1290
  %v1627 = vpack.c.b16 %v1295, %v1293
  %v1628 = vpack.c.b16 %v1296, %v1294
  %v1629 = vpack.c.b16 %v1299, %v1297
  %v1630 = vpack.c.b16 %v1300, %v1298
  %v1631 = vpack.c.b16 %v1303, %v1301
  %v1632 = vpack.c.b16 %v1304, %v1302
  %v1633 = vpack.c.b16 %v1307, %v1305
  %v1634 = vpack.c.b16 %v1308, %v1306
  %v1635 = vpack.c.b16 %v1311, %v1309
  %v1636 = vpack.c.b16 %v1312, %v1310
  %v1637 = vpack.c.b16 %v1315, %v1313
  %v1638 = vpack.c.b16 %v1316, %v1314
  %v1639 = vpack.c.b16 %v1319, %v1317
  %v1640 = vpack.c.b16 %v1320, %v1318
  %v1641 = vpack.c.b16 %v1323, %v1321
  %v1642 = vpack.c.b16 %v1324, %v1322
  %v1643 = vpack.c.b16 %v1327, %v1325
  %v1644 = vpack.c.b16 %v1328, %v1326
  %v1645 = vpack.c.b16 %v1331, %v1329
  %v1646 = vpack.c.b16 %v1332, %v1330
  %v1647 = vpack.c.b16 %v1335, %v1333
  %v1648 = vpack.c.b16 %v1336, %v1334
  %v1649 = vpack.c.b16 %v1339, %v1337
  %v1650 = vpack.c.b16 %v1340, %v1338
  %v1651 = vpack.c.b16 %v1343, %v1341
  %v1652 = vpack.c.b16 %v1344, %v1342
  %v1653 = vpack.c.b16 %v1347, %v1345
  %v1654 = vpack.c.b16 %v1348, %v1346
  %v1655 = vpack.c.b16 %v1351, %v1349
  %v1656 = vpack.c.b16 %v1352, %v1350
  %v1657 = vpack.c.b16 %v1355, %v1353
  %v1658 = vpack.c.b16 %v1356, %v1354
  %v1659 = vpack.c.b16 %v1359, %v1357
  %v1660 = vpack.c.b16 %v1360, %v1358
  %v1661 = vpack.c.b16 %v1363, %v1361
  %v1662 = vpack.c.b16 %v1364, %v1362
  %v1663 = vpack.c.b16 %v1367, %v1365
  %v1664 = vpack.c.b16 %v1368, %v1366
  %v1665 = vpack.c.b16 %v1371, %v1369
  %v1666 = vpack.c.b16 %v1372, %v1370
  %v1667 = vpack.c.b16 %v1375, %v1373
  %v1668 = vpack.c.b16 %v1376, %v1374
  %v1669 = vpack.c.b16 %v1379, %v1377
  %v1670 = vpack.c.b16 %v1380, %v1378
  %v1671 = vpack.c.b16 %v1383, %v1381
  %v1672 = vpack.c.b16 %v1384, %v1382
  %1961 = vmatprep.subr.bf16.mxu0 %v1386
  %1962 = vmatpush1.bf16.msra.mxu0 %v1385
  %1963 = vmatprep.subr.bf16.mxu0 %v1388
  %1964 = vmatpush1.bf16.msra.mxu0 %v1387
  %1965 = vmatprep.subr.bf16.mxu0 %v1390
  %1966 = vmatpush1.bf16.msra.mxu0 %v1389
  %1967 = vmatprep.subr.bf16.mxu0 %v1392
  %1968 = vmatpush1.bf16.msra.mxu0 %v1391
  %1969 = vmatprep.subr.bf16.mxu0 %v1394
  %1970 = vmatpush1.bf16.msra.mxu0 %v1393
  %1971 = vmatprep.subr.bf16.mxu0 %v1396
  %1972 = vmatpush1.bf16.msra.mxu0 %v1395
  %1973 = vmatprep.subr.bf16.mxu0 %v1398
  %1974 = vmatpush1.bf16.msra.mxu0 %v1397
  %1975 = vmatprep.subr.bf16.mxu0 %v1400
  %1976 = vmatpush1.bf16.msra.mxu0 %v1399
  %1977 = vmatprep.subr.bf16.mxu0 %v1402
  %1978 = vmatpush1.bf16.msra.mxu0 %v1401
  %1979 = vmatprep.subr.bf16.mxu0 %v1404
  %1980 = vmatpush1.bf16.msra.mxu0 %v1403
  %1981 = vmatprep.subr.bf16.mxu0 %v1406
  %1982 = vmatpush1.bf16.msra.mxu0 %v1405
  %1983 = vmatprep.subr.bf16.mxu0 %v1408
  %1984 = vmatpush1.bf16.msra.mxu0 %v1407
  %1985 = vmatprep.subr.bf16.mxu0 %v1410
  %1986 = vmatpush1.bf16.msra.mxu0 %v1409
  %1987 = vmatprep.subr.bf16.mxu0 %v1412
  %1988 = vmatpush1.bf16.msra.mxu0 %v1411
  %1989 = vmatprep.subr.bf16.mxu0 %v1414
  %1990 = vmatpush1.bf16.msra.mxu0 %v1413
  %1991 = vmatprep.subr.bf16.mxu0 %v1416
  %1992 = vmatpush1.bf16.msra.mxu0 %v1415
  %1993 = vmatprep.mubr.bf16.mxu0 %v450
  %1994 = vmatmul.mubr.bf16.gmra.mrb[0].mxu0 %v449
  %v1995 = vpop.f32.mrb[0].mxu0
  %v1996 = vadd.f32 0.0, %v1995
  %v1997 = vpop.f32.mrb[0].mxu0
  %v1998 = vadd.f32 0.0, %v1997
  %v1999 = vpop.f32.mrb[0].mxu0
  %v2000 = vadd.f32 0.0, %v1999
  %v2001 = vpop.f32.mrb[0].mxu0
  %v2002 = vadd.f32 0.0, %v2001
  %2003 = vmatprep.mubr.bf16.mxu0 %v468
  %2004 = vmatmul.mubr.bf16.gmra.mrb[0].mxu0 %v467
  %v2005 = vpop.f32.mrb[0].mxu0
  %v2006 = vadd.f32 0.0, %v2005
  %v2007 = vpop.f32.mrb[0].mxu0
  %v2008 = vadd.f32 0.0, %v2007
  %v2009 = vpop.f32.mrb[0].mxu0
  %v2010 = vadd.f32 0.0, %v2009
  %v2011 = vpop.f32.mrb[0].mxu0
  %v2012 = vadd.f32 0.0, %v2011
  %2013 = vdwg.mxu0
  %2014 = vmatprep.subr.bf16.mxu0 %v1418
  %2015 = vmatpush1.bf16.msra.mxu0 %v1417
  %2016 = vmatprep.subr.bf16.mxu0 %v1420
  %2017 = vmatpush1.bf16.msra.mxu0 %v1419
  %2018 = vmatprep.subr.bf16.mxu0 %v1422
  %2019 = vmatpush1.bf16.msra.mxu0 %v1421
  %2020 = vmatprep.subr.bf16.mxu0 %v1424
  %2021 = vmatpush1.bf16.msra.mxu0 %v1423
  %2022 = vmatprep.subr.bf16.mxu0 %v1426
  %2023 = vmatpush1.bf16.msra.mxu0 %v1425
  %2024 = vmatprep.subr.bf16.mxu0 %v1428
  %2025 = vmatpush1.bf16.msra.mxu0 %v1427
  %2026 = vmatprep.subr.bf16.mxu0 %v1430
  %2027 = vmatpush1.bf16.msra.mxu0 %v1429
  %2028 = vmatprep.subr.bf16.mxu0 %v1432
  %2029 = vmatpush1.bf16.msra.mxu0 %v1431
  %2030 = vmatprep.subr.bf16.mxu0 %v1434
  %2031 = vmatpush1.bf16.msra.mxu0 %v1433
  %2032 = vmatprep.subr.bf16.mxu0 %v1436
  %2033 = vmatpush1.bf16.msra.mxu0 %v1435
  %2034 = vmatprep.subr.bf16.mxu0 %v1438
  %2035 = vmatpush1.bf16.msra.mxu0 %v1437
  %2036 = vmatprep.subr.bf16.mxu0 %v1440
  %2037 = vmatpush1.bf16.msra.mxu0 %v1439
  %2038 = vmatprep.subr.bf16.mxu0 %v1442
  %2039 = vmatpush1.bf16.msra.mxu0 %v1441
  %2040 = vmatprep.subr.bf16.mxu0 %v1444
  %2041 = vmatpush1.bf16.msra.mxu0 %v1443
  %2042 = vmatprep.subr.bf16.mxu0 %v1446
  %2043 = vmatpush1.bf16.msra.mxu0 %v1445
  %2044 = vmatprep.subr.bf16.mxu0 %v1448
  %2045 = vmatpush1.bf16.msra.mxu0 %v1447
  %2046 = vmatprep.mubr.bf16.mxu0 %v452
  %2047 = vmatmul.mubr.bf16.gmra.mrb[0].mxu0 %v451
  %v2048 = vpop.f32.mrb[0].mxu0
  %v2049 = vadd.f32 %v1996, %v2048
  %v2050 = vpop.f32.mrb[0].mxu0
  %v2051 = vadd.f32 %v1998, %v2050
  %v2052 = vpop.f32.mrb[0].mxu0
  %v2053 = vadd.f32 %v2000, %v2052
  %v2054 = vpop.f32.mrb[0].mxu0
  %v2055 = vadd.f32 %v2002, %v2054
  %2056 = vmatprep.mubr.bf16.mxu0 %v470
  %2057 = vmatmul.mubr.bf16.gmra.mrb[0].mxu0 %v469
  %v2058 = vpop.f32.mrb[0].mxu0
  %v2059 = vadd.f32 %v2006, %v2058
  %v2060 = vpop.f32.mrb[0].mxu0
  %v2061 = vadd.f32 %v2008, %v2060
  %v2062 = vpop.f32.mrb[0].mxu0
  %v2063 = vadd.f32 %v2010, %v2062
  %v2064 = vpop.f32.mrb[0].mxu0
  %v2065 = vadd.f32 %v2012, %v2064
  %2066 = vdwg.mxu0
  %2067 = vmatprep.subr.bf16.mxu0 %v1450
  %2068 = vmatpush1.bf16.msra.mxu0 %v1449
  %2069 = vmatprep.subr.bf16.mxu0 %v1452
  %2070 = vmatpush1.bf16.msra.mxu0 %v1451
  %2071 = vmatprep.subr.bf16.mxu0 %v1454
  %2072 = vmatpush1.bf16.msra.mxu0 %v1453
  %2073 = vmatprep.subr.bf16.mxu0 %v1456
  %2074 = vmatpush1.bf16.msra.mxu0 %v1455
  %2075 = vmatprep.subr.bf16.mxu0 %v1458
  %2076 = vmatpush1.bf16.msra.mxu0 %v1457
  %2077 = vmatprep.subr.bf16.mxu0 %v1460
  %2078 = vmatpush1.bf16.msra.mxu0 %v1459
  %2079 = vmatprep.subr.bf16.mxu0 %v1462
  %2080 = vmatpush1.bf16.msra.mxu0 %v1461
  %2081 = vmatprep.subr.bf16.mxu0 %v1464
  %2082 = vmatpush1.bf16.msra.mxu0 %v1463
  %2083 = vmatprep.subr.bf16.mxu0 %v1466
  %2084 = vmatpush1.bf16.msra.mxu0 %v1465
  %2085 = vmatprep.subr.bf16.mxu0 %v1468
  %2086 = vmatpush1.bf16.msra.mxu0 %v1467
  %2087 = vmatprep.subr.bf16.mxu0 %v1470
  %2088 = vmatpush1.bf16.msra.mxu0 %v1469
  %2089 = vmatprep.subr.bf16.mxu0 %v1472
  %2090 = vmatpush1.bf16.msra.mxu0 %v1471
  %2091 = vmatprep.subr.bf16.mxu0 %v1474
  %2092 = vmatpush1.bf16.msra.mxu0 %v1473
  %2093 = vmatprep.subr.bf16.mxu0 %v1476
  %2094 = vmatpush1.bf16.msra.mxu0 %v1475
  %2095 = vmatprep.subr.bf16.mxu0 %v1478
  %2096 = vmatpush1.bf16.msra.mxu0 %v1477
  %2097 = vmatprep.subr.bf16.mxu0 %v1480
  %2098 = vmatpush1.bf16.msra.mxu0 %v1479
  %2099 = vmatprep.mubr.bf16.mxu0 %v454
  %2100 = vmatmul.mubr.bf16.gmra.mrb[0].mxu0 %v453
  %v2101 = vpop.f32.mrb[0].mxu0
  %v2102 = vadd.f32 %v2049, %v2101
  %v2103 = vpop.f32.mrb[0].mxu0
  %v2104 = vadd.f32 %v2051, %v2103
  %v2105 = vpop.f32.mrb[0].mxu0
  %v2106 = vadd.f32 %v2053, %v2105
  %v2107 = vpop.f32.mrb[0].mxu0
  %v2108 = vadd.f32 %v2055, %v2107
  %2109 = vmatprep.mubr.bf16.mxu0 %v472
  %2110 = vmatmul.mubr.bf16.gmra.mrb[0].mxu0 %v471
  %v2111 = vpop.f32.mrb[0].mxu0
  %v2112 = vadd.f32 %v2059, %v2111
  %v2113 = vpop.f32.mrb[0].mxu0
  %v2114 = vadd.f32 %v2061, %v2113
  %v2115 = vpop.f32.mrb[0].mxu0
  %v2116 = vadd.f32 %v2063, %v2115
  %v2117 = vpop.f32.mrb[0].mxu0
  %v2118 = vadd.f32 %v2065, %v2117
  %2119 = vdwg.mxu0
  %2120 = vmatprep.subr.bf16.mxu0 %v1482
  %2121 = vmatpush1.bf16.msra.mxu0 %v1481
  %2122 = vmatprep.subr.bf16.mxu0 %v1484
  %2123 = vmatpush1.bf16.msra.mxu0 %v1483
  %2124 = vmatprep.subr.bf16.mxu0 %v1486
  %2125 = vmatpush1.bf16.msra.mxu0 %v1485
  %2126 = vmatprep.subr.bf16.mxu0 %v1488
  %2127 = vmatpush1.bf16.msra.mxu0 %v1487
  %2128 = vmatprep.subr.bf16.mxu0 %v1490
  %2129 = vmatpush1.bf16.msra.mxu0 %v1489
  %2130 = vmatprep.subr.bf16.mxu0 %v1492
  %2131 = vmatpush1.bf16.msra.mxu0 %v1491
  %2132 = vmatprep.subr.bf16.mxu0 %v1494
  %2133 = vmatpush1.bf16.msra.mxu0 %v1493
  %2134 = vmatprep.subr.bf16.mxu0 %v1496
  %2135 = vmatpush1.bf16.msra.mxu0 %v1495
  %2136 = vmatprep.subr.bf16.mxu0 %v1498
  %2137 = vmatpush1.bf16.msra.mxu0 %v1497
  %2138 = vmatprep.subr.bf16.mxu0 %v1500
  %2139 = vmatpush1.bf16.msra.mxu0 %v1499
  %2140 = vmatprep.subr.bf16.mxu0 %v1502
  %2141 = vmatpush1.bf16.msra.mxu0 %v1501
  %2142 = vmatprep.subr.bf16.mxu0 %v1504
  %2143 = vmatpush1.bf16.msra.mxu0 %v1503
  %2144 = vmatprep.subr.bf16.mxu0 %v1506
  %2145 = vmatpush1.bf16.msra.mxu0 %v1505
  %2146 = vmatprep.subr.bf16.mxu0 %v1508
  %2147 = vmatpush1.bf16.msra.mxu0 %v1507
  %2148 = vmatprep.subr.bf16.mxu0 %v1510
  %2149 = vmatpush1.bf16.msra.mxu0 %v1509
  %2150 = vmatprep.subr.bf16.mxu0 %v1512
  %2151 = vmatpush1.bf16.msra.mxu0 %v1511
  %2152 = vmatprep.mubr.bf16.mxu0 %v456
  %2153 = vmatmul.mubr.bf16.gmra.mrb[0].mxu0 %v455
  %v2154 = vpop.f32.mrb[0].mxu0
  %v2155 = vadd.f32 %v2102, %v2154
  %v2156 = vpop.f32.mrb[0].mxu0
  %v2157 = vadd.f32 %v2104, %v2156
  %v2158 = vpop.f32.mrb[0].mxu0
  %v2159 = vadd.f32 %v2106, %v2158
  %v2160 = vpop.f32.mrb[0].mxu0
  %v2161 = vadd.f32 %v2108, %v2160
  %2162 = vmatprep.mubr.bf16.mxu0 %v474
  %2163 = vmatmul.mubr.bf16.gmra.mrb[0].mxu0 %v473
  %v2164 = vpop.f32.mrb[0].mxu0
  %v2165 = vadd.f32 %v2112, %v2164
  %v2166 = vpop.f32.mrb[0].mxu0
  %v2167 = vadd.f32 %v2114, %v2166
  %v2168 = vpop.f32.mrb[0].mxu0
  %v2169 = vadd.f32 %v2116, %v2168
  %v2170 = vpop.f32.mrb[0].mxu0
  %v2171 = vadd.f32 %v2118, %v2170
  %2172 = vdwg.mxu0
  %2173 = vmatprep.subr.bf16.mxu0 %v1514
  %2174 = vmatpush1.bf16.msra.mxu0 %v1513
  %2175 = vmatprep.subr.bf16.mxu0 %v1516
  %2176 = vmatpush1.bf16.msra.mxu0 %v1515
  %2177 = vmatprep.subr.bf16.mxu0 %v1518
  %2178 = vmatpush1.bf16.msra.mxu0 %v1517
  %2179 = vmatprep.subr.bf16.mxu0 %v1520
  %2180 = vmatpush1.bf16.msra.mxu0 %v1519
  %2181 = vmatprep.subr.bf16.mxu0 %v1522
  %2182 = vmatpush1.bf16.msra.mxu0 %v1521
  %2183 = vmatprep.subr.bf16.mxu0 %v1524
  %2184 = vmatpush1.bf16.msra.mxu0 %v1523
  %2185 = vmatprep.subr.bf16.mxu0 %v1526
  %2186 = vmatpush1.bf16.msra.mxu0 %v1525
  %2187 = vmatprep.subr.bf16.mxu0 %v1528
  %2188 = vmatpush1.bf16.msra.mxu0 %v1527
  %2189 = vmatprep.subr.bf16.mxu0 %v1530
  %2190 = vmatpush1.bf16.msra.mxu0 %v1529
  %2191 = vmatprep.subr.bf16.mxu0 %v1532
  %2192 = vmatpush1.bf16.msra.mxu0 %v1531
  %2193 = vmatprep.subr.bf16.mxu0 %v1534
  %2194 = vmatpush1.bf16.msra.mxu0 %v1533
  %2195 = vmatprep.subr.bf16.mxu0 %v1536
  %2196 = vmatpush1.bf16.msra.mxu0 %v1535
  %2197 = vmatprep.subr.bf16.mxu0 %v1538
  %2198 = vmatpush1.bf16.msra.mxu0 %v1537
  %2199 = vmatprep.subr.bf16.mxu0 %v1540
  %2200 = vmatpush1.bf16.msra.mxu0 %v1539
  %2201 = vmatprep.subr.bf16.mxu0 %v1542
  %2202 = vmatpush1.bf16.msra.mxu0 %v1541
  %2203 = vmatprep.subr.bf16.mxu0 %v1544
  %2204 = vmatpush1.bf16.msra.mxu0 %v1543
  %2205 = vmatprep.mubr.bf16.mxu0 %v458
  %2206 = vmatmul.mubr.bf16.gmra.mrb[0].mxu0 %v457
  %v2207 = vpop.f32.mrb[0].mxu0
  %v2208 = vadd.f32 %v2155, %v2207
  %v2209 = vpop.f32.mrb[0].mxu0
  %v2210 = vadd.f32 %v2157, %v2209
  %v2211 = vpop.f32.mrb[0].mxu0
  %v2212 = vadd.f32 %v2159, %v2211
  %v2213 = vpop.f32.mrb[0].mxu0
  %v2214 = vadd.f32 %v2161, %v2213
  %2215 = vmatprep.mubr.bf16.mxu0 %v476
  %2216 = vmatmul.mubr.bf16.gmra.mrb[0].mxu0 %v475
  %v2217 = vpop.f32.mrb[0].mxu0
  %v2218 = vadd.f32 %v2165, %v2217
  %v2219 = vpop.f32.mrb[0].mxu0
  %v2220 = vadd.f32 %v2167, %v2219
  %v2221 = vpop.f32.mrb[0].mxu0
  %v2222 = vadd.f32 %v2169, %v2221
  %v2223 = vpop.f32.mrb[0].mxu0
  %v2224 = vadd.f32 %v2171, %v2223
  %2225 = vdwg.mxu0
  %2226 = vmatprep.subr.bf16.mxu0 %v1546
  %2227 = vmatpush1.bf16.msra.mxu0 %v1545
  %2228 = vmatprep.subr.bf16.mxu0 %v1548
  %2229 = vmatpush1.bf16.msra.mxu0 %v1547
  %2230 = vmatprep.subr.bf16.mxu0 %v1550
  %2231 = vmatpush1.bf16.msra.mxu0 %v1549
  %2232 = vmatprep.subr.bf16.mxu0 %v1552
  %2233 = vmatpush1.bf16.msra.mxu0 %v1551
  %2234 = vmatprep.subr.bf16.mxu0 %v1554
  %2235 = vmatpush1.bf16.msra.mxu0 %v1553
  %2236 = vmatprep.subr.bf16.mxu0 %v1556
  %2237 = vmatpush1.bf16.msra.mxu0 %v1555
  %2238 = vmatprep.subr.bf16.mxu0 %v1558
  %2239 = vmatpush1.bf16.msra.mxu0 %v1557
  %2240 = vmatprep.subr.bf16.mxu0 %v1560
  %2241 = vmatpush1.bf16.msra.mxu0 %v1559
  %2242 = vmatprep.subr.bf16.mxu0 %v1562
  %2243 = vmatpush1.bf16.msra.mxu0 %v1561
  %2244 = vmatprep.subr.bf16.mxu0 %v1564
  %2245 = vmatpush1.bf16.msra.mxu0 %v1563
  %2246 = vmatprep.subr.bf16.mxu0 %v1566
  %2247 = vmatpush1.bf16.msra.mxu0 %v1565
  %2248 = vmatprep.subr.bf16.mxu0 %v1568
  %2249 = vmatpush1.bf16.msra.mxu0 %v1567
  %2250 = vmatprep.subr.bf16.mxu0 %v1570
  %2251 = vmatpush1.bf16.msra.mxu0 %v1569
  %2252 = vmatprep.subr.bf16.mxu0 %v1572
  %2253 = vmatpush1.bf16.msra.mxu0 %v1571
  %2254 = vmatprep.subr.bf16.mxu0 %v1574
  %2255 = vmatpush1.bf16.msra.mxu0 %v1573
  %2256 = vmatprep.subr.bf16.mxu0 %v1576
  %2257 = vmatpush1.bf16.msra.mxu0 %v1575
  %2258 = vmatprep.mubr.bf16.mxu0 %v460
  %2259 = vmatmul.mubr.bf16.gmra.mrb[0].mxu0 %v459
  %v2260 = vpop.f32.mrb[0].mxu0
  %v2261 = vadd.f32 %v2208, %v2260
  %v2262 = vpop.f32.mrb[0].mxu0
  %v2263 = vadd.f32 %v2210, %v2262
  %v2264 = vpop.f32.mrb[0].mxu0
  %v2265 = vadd.f32 %v2212, %v2264
  %v2266 = vpop.f32.mrb[0].mxu0
  %v2267 = vadd.f32 %v2214, %v2266
  %2268 = vmatprep.mubr.bf16.mxu0 %v478
  %2269 = vmatmul.mubr.bf16.gmra.mrb[0].mxu0 %v477
  %v2270 = vpop.f32.mrb[0].mxu0
  %v2271 = vadd.f32 %v2218, %v2270
  %v2272 = vpop.f32.mrb[0].mxu0
  %v2273 = vadd.f32 %v2220, %v2272
  %v2274 = vpop.f32.mrb[0].mxu0
  %v2275 = vadd.f32 %v2222, %v2274
  %v2276 = vpop.f32.mrb[0].mxu0
  %v2277 = vadd.f32 %v2224, %v2276
  %2278 = vdwg.mxu0
  %2279 = vmatprep.subr.bf16.mxu0 %v1578
  %2280 = vmatpush1.bf16.msra.mxu0 %v1577
  %2281 = vmatprep.subr.bf16.mxu0 %v1580
  %2282 = vmatpush1.bf16.msra.mxu0 %v1579
  %2283 = vmatprep.subr.bf16.mxu0 %v1582
  %2284 = vmatpush1.bf16.msra.mxu0 %v1581
  %2285 = vmatprep.subr.bf16.mxu0 %v1584
  %2286 = vmatpush1.bf16.msra.mxu0 %v1583
  %2287 = vmatprep.subr.bf16.mxu0 %v1586
  %2288 = vmatpush1.bf16.msra.mxu0 %v1585
  %2289 = vmatprep.subr.bf16.mxu0 %v1588
  %2290 = vmatpush1.bf16.msra.mxu0 %v1587
  %2291 = vmatprep.subr.bf16.mxu0 %v1590
  %2292 = vmatpush1.bf16.msra.mxu0 %v1589
  %2293 = vmatprep.subr.bf16.mxu0 %v1592
  %2294 = vmatpush1.bf16.msra.mxu0 %v1591
  %2295 = vmatprep.subr.bf16.mxu0 %v1594
  %2296 = vmatpush1.bf16.msra.mxu0 %v1593
  %2297 = vmatprep.subr.bf16.mxu0 %v1596
  %2298 = vmatpush1.bf16.msra.mxu0 %v1595
  %2299 = vmatprep.subr.bf16.mxu0 %v1598
  %2300 = vmatpush1.bf16.msra.mxu0 %v1597
  %2301 = vmatprep.subr.bf16.mxu0 %v1600
  %2302 = vmatpush1.bf16.msra.mxu0 %v1599
  %2303 = vmatprep.subr.bf16.mxu0 %v1602
  %2304 = vmatpush1.bf16.msra.mxu0 %v1601
  %2305 = vmatprep.subr.bf16.mxu0 %v1604
  %2306 = vmatpush1.bf16.msra.mxu0 %v1603
  %2307 = vmatprep.subr.bf16.mxu0 %v1606
  %2308 = vmatpush1.bf16.msra.mxu0 %v1605
  %2309 = vmatprep.subr.bf16.mxu0 %v1608
  %2310 = vmatpush1.bf16.msra.mxu0 %v1607
  %2311 = vmatprep.mubr.bf16.mxu0 %v462
  %2312 = vmatmul.mubr.bf16.gmra.mrb[0].mxu0 %v461
  %v2313 = vpop.f32.mrb[0].mxu0
  %v2314 = vadd.f32 %v2261, %v2313
  %v2315 = vpop.f32.mrb[0].mxu0
  %v2316 = vadd.f32 %v2263, %v2315
  %v2317 = vpop.f32.mrb[0].mxu0
  %v2318 = vadd.f32 %v2265, %v2317
  %v2319 = vpop.f32.mrb[0].mxu0
  %v2320 = vadd.f32 %v2267, %v2319
  %2321 = vmatprep.mubr.bf16.mxu0 %v480
  %2322 = vmatmul.mubr.bf16.gmra.mrb[0].mxu0 %v479
  %v2323 = vpop.f32.mrb[0].mxu0
  %v2324 = vadd.f32 %v2271, %v2323
  %v2325 = vpop.f32.mrb[0].mxu0
  %v2326 = vadd.f32 %v2273, %v2325
  %v2327 = vpop.f32.mrb[0].mxu0
  %v2328 = vadd.f32 %v2275, %v2327
  %v2329 = vpop.f32.mrb[0].mxu0
  %v2330 = vadd.f32 %v2277, %v2329
  %2331 = vdwg.mxu0
  %2332 = vmatprep.subr.bf16.mxu0 %v1610
  %2333 = vmatpush1.bf16.msra.mxu0 %v1609
  %2334 = vmatprep.subr.bf16.mxu0 %v1612
  %2335 = vmatpush1.bf16.msra.mxu0 %v1611
  %2336 = vmatprep.subr.bf16.mxu0 %v1614
  %2337 = vmatpush1.bf16.msra.mxu0 %v1613
  %2338 = vmatprep.subr.bf16.mxu0 %v1616
  %2339 = vmatpush1.bf16.msra.mxu0 %v1615
  %2340 = vmatprep.subr.bf16.mxu0 %v1618
  %2341 = vmatpush1.bf16.msra.mxu0 %v1617
  %2342 = vmatprep.subr.bf16.mxu0 %v1620
  %2343 = vmatpush1.bf16.msra.mxu0 %v1619
  %2344 = vmatprep.subr.bf16.mxu0 %v1622
  %2345 = vmatpush1.bf16.msra.mxu0 %v1621
  %2346 = vmatprep.subr.bf16.mxu0 %v1624
  %2347 = vmatpush1.bf16.msra.mxu0 %v1623
  %2348 = vmatprep.subr.bf16.mxu0 %v1626
  %2349 = vmatpush1.bf16.msra.mxu0 %v1625
  %2350 = vmatprep.subr.bf16.mxu0 %v1628
  %2351 = vmatpush1.bf16.msra.mxu0 %v1627
  %2352 = vmatprep.subr.bf16.mxu0 %v1630
  %2353 = vmatpush1.bf16.msra.mxu0 %v1629
  %2354 = vmatprep.subr.bf16.mxu0 %v1632
  %2355 = vmatpush1.bf16.msra.mxu0 %v1631
  %2356 = vmatprep.subr.bf16.mxu0 %v1634
  %2357 = vmatpush1.bf16.msra.mxu0 %v1633
  %2358 = vmatprep.subr.bf16.mxu0 %v1636
  %2359 = vmatpush1.bf16.msra.mxu0 %v1635
  %2360 = vmatprep.subr.bf16.mxu0 %v1638
  %2361 = vmatpush1.bf16.msra.mxu0 %v1637
  %2362 = vmatprep.subr.bf16.mxu0 %v1640
  %2363 = vmatpush1.bf16.msra.mxu0 %v1639
  %2364 = vmatprep.mubr.bf16.mxu0 %v464
  %2365 = vmatmul.mubr.bf16.gmra.mrb[0].mxu0 %v463
  %v2366 = vpop.f32.mrb[0].mxu0
  %v2367 = vadd.f32 %v2314, %v2366
  %v2368 = vpop.f32.mrb[0].mxu0
  %v2369 = vadd.f32 %v2316, %v2368
  %v2370 = vpop.f32.mrb[0].mxu0
  %v2371 = vadd.f32 %v2318, %v2370
  %v2372 = vpop.f32.mrb[0].mxu0
  %v2373 = vadd.f32 %v2320, %v2372
  %2374 = vmatprep.mubr.bf16.mxu0 %v482
  %2375 = vmatmul.mubr.bf16.gmra.mrb[0].mxu0 %v481
  %v2376 = vpop.f32.mrb[0].mxu0
  %v2377 = vadd.f32 %v2324, %v2376
  %v2378 = vpop.f32.mrb[0].mxu0
  %v2379 = vadd.f32 %v2326, %v2378
  %v2380 = vpop.f32.mrb[0].mxu0
  %v2381 = vadd.f32 %v2328, %v2380
  %v2382 = vpop.f32.mrb[0].mxu0
  %v2383 = vadd.f32 %v2330, %v2382
  %2384 = vdwg.mxu0
  %2385 = vmatprep.subr.bf16.mxu0 %v1642
  %2386 = vmatpush1.bf16.msra.mxu0 %v1641
  %2387 = vmatprep.subr.bf16.mxu0 %v1644
  %2388 = vmatpush1.bf16.msra.mxu0 %v1643
  %2389 = vmatprep.subr.bf16.mxu0 %v1646
  %2390 = vmatpush1.bf16.msra.mxu0 %v1645
  %2391 = vmatprep.subr.bf16.mxu0 %v1648
  %2392 = vmatpush1.bf16.msra.mxu0 %v1647
  %2393 = vmatprep.subr.bf16.mxu0 %v1650
  %2394 = vmatpush1.bf16.msra.mxu0 %v1649
  %2395 = vmatprep.subr.bf16.mxu0 %v1652
  %2396 = vmatpush1.bf16.msra.mxu0 %v1651
  %2397 = vmatprep.subr.bf16.mxu0 %v1654
  %2398 = vmatpush1.bf16.msra.mxu0 %v1653
  %2399 = vmatprep.subr.bf16.mxu0 %v1656
  %2400 = vmatpush1.bf16.msra.mxu0 %v1655
  %2401 = vmatprep.subr.bf16.mxu0 %v1658
  %2402 = vmatpush1.bf16.msra.mxu0 %v1657
  %2403 = vmatprep.subr.bf16.mxu0 %v1660
  %2404 = vmatpush1.bf16.msra.mxu0 %v1659
  %2405 = vmatprep.subr.bf16.mxu0 %v1662
  %2406 = vmatpush1.bf16.msra.mxu0 %v1661
  %2407 = vmatprep.subr.bf16.mxu0 %v1664
  %2408 = vmatpush1.bf16.msra.mxu0 %v1663
  %2409 = vmatprep.subr.bf16.mxu0 %v1666
  %2410 = vmatpush1.bf16.msra.mxu0 %v1665
  %2411 = vmatprep.subr.bf16.mxu0 %v1668
  %2412 = vmatpush1.bf16.msra.mxu0 %v1667
  %2413 = vmatprep.subr.bf16.mxu0 %v1670
  %2414 = vmatpush1.bf16.msra.mxu0 %v1669
  %2415 = vmatprep.subr.bf16.mxu0 %v1672
  %2416 = vmatpush1.bf16.msra.mxu0 %v1671
  %2417 = vmatprep.mubr.bf16.mxu0 %v466
  %2418 = vmatmul.mubr.bf16.gmra.mrb[0].mxu0 %v465
  %v2419 = vpop.f32.mrb[0].mxu0
  %v2420 = vadd.f32 %v2367, %v2419
  %v2421 = vpop.f32.mrb[0].mxu0
  %v2422 = vadd.f32 %v2369, %v2421
  %v2423 = vpop.f32.mrb[0].mxu0
  %v2424 = vadd.f32 %v2371, %v2423
  %v2425 = vpop.f32.mrb[0].mxu0
  %v2426 = vadd.f32 %v2373, %v2425
  %2427 = vmatprep.mubr.bf16.mxu0 %v484
  %2428 = vmatmul.mubr.bf16.gmra.mrb[0].mxu0 %v483
  %v2429 = vpop.f32.mrb[0].mxu0
  %v2430 = vadd.f32 %v2377, %v2429
  %v2431 = vpop.f32.mrb[0].mxu0
  %v2432 = vadd.f32 %v2379, %v2431
  %v2433 = vpop.f32.mrb[0].mxu0
  %v2434 = vadd.f32 %v2381, %v2433
  %v2435 = vpop.f32.mrb[0].mxu0
  %v2436 = vadd.f32 %v2383, %v2435
  %2437 = vdwg.mxu0
  %v2438 = vld [vmem:[%s2] sm:$0x3]
  %v2440 = vlaneseq
  %v2441 = vshrl.u32 %v2440, 7
  %v2442 = vsub.s32 0, %v2441
  %v2443 = vrot.slane %v2438, %v2442
  %v2444 = vlaneseq
  %v2445 = vshrl.u32 %v2444, 7
  %v2446 = vsub.s32 1, %v2445
  %v2447 = vrot.slane %v2438, %v2446
  %v2450 = vmul.f32 %v2420, %v2443
  %v2451 = vmul.f32 %v2422, %v2447
  %v2452 = vmul.f32 %v2424, %v2443
  %v2453 = vmul.f32 %v2426, %v2447
  %v2454 = vmul.f32 %v2430, %v2443
  %v2455 = vmul.f32 %v2432, %v2447
  %v2456 = vmul.f32 %v2434, %v2443
  %v2457 = vmul.f32 %v2436, %v2447
  %v2458 = vld [vmem:[%s3] sm:$0x3]
  %v2460 = vlaneseq
  %v2461 = vshrl.u32 %v2460, 7
  %v2462 = vsub.s32 0, %v2461
  %v2463 = vrot.slane %v2458, %v2462
  %v2464 = vlaneseq
  %v2465 = vshrl.u32 %v2464, 7
  %v2466 = vsub.s32 1, %v2465
  %v2467 = vrot.slane %v2458, %v2466
  %v2470 = vadd.f32 %v2450, %v2463
  %v2471 = vadd.f32 %v2451, %v2467
  %v2472 = vadd.f32 %v2452, %v2463
  %v2473 = vadd.f32 %v2453, %v2467
  %v2474 = vadd.f32 %v2454, %v2463
  %v2475 = vadd.f32 %v2455, %v2467
  %v2476 = vadd.f32 %v2456, %v2463
  %v2477 = vadd.f32 %v2457, %v2467
  %v2478 = vpack.c.bf16 %v2472, %v2470
  %v2479 = vpack.c.bf16 %v2473, %v2471
  %v2480 = vpack.c.bf16 %v2476, %v2474
  %v2481 = vpack.c.bf16 %v2477, %v2475
  %v2486 = vunpack.c.l.b16 %v2478
  %v2487 = vunpack.c.l.b16 %v2479
  %v2488 = vunpack.c.h.b16 %v2478
  %v2489 = vunpack.c.h.b16 %v2479
  %v2490 = vunpack.c.l.b16 %v2480
  %v2491 = vunpack.c.l.b16 %v2481
  %v2492 = vunpack.c.h.b16 %v2480
  %v2493 = vunpack.c.h.b16 %v2481
  %v2494 = vpack.c.b16 %v2487, %v2486
  %v2495 = vpack.c.b16 %v2489, %v2488
  %v2496 = vpack.c.b16 %v2491, %v2490
  %v2497 = vpack.c.b16 %v2493, %v2492
  %2502 = vst [vmem:[%s4] sm:$0xff] %v2494
  %2503 = vst [vmem:[%s4 + $0x8] sm:$0xff] %v2495
  %2504 = vst [vmem:[%s4 + $0x10] sm:$0xff] %v2496
  %2505 = vst [vmem:[%s4 + $0x18] sm:$0xff] %v2497
  // Predicated region
  $region18: #{_lambda_.21} parent=0 // pred_check
    _
  $region19: #{_lambda_.21} parent=0 // pred_check_branch
    %2507 = sbr.rel (0) target = $region21
  $region20: #{_lambda_.21} parent=0 // pred_region
    _
  $region21: #{_lambda_.21} parent=0 // pred_fallthru
    _
  // Predicated region
  $region22: #{_lambda_.21} parent=0 // pred_check
    _
  $region23: #{_lambda_.21} parent=0 // pred_check_branch
    %2509 = sbr.rel (0) target = $region25
  $region24: #{_lambda_.21} parent=0 // pred_region
    _
  $region25: #{_lambda_.21} parent=0 // pred_fallthru
    _

</llo_original>
